<compile_context>
chip_gen: v5e
topology: v5e:2x2
jax: 0.10.0
libtpu: 0.0.40
codegen_flags: <defaults>
</compile_context>

<pallas_src>
import functools

import jax
import jax.numpy as jnp
from jax import lax
from jax.experimental import pallas as pl
from jax.experimental.pallas import tpu as pltpu

LN_EPS = 1e-5  # PyTorch nn.LayerNorm default


def _layernorm_f32(x_f32, w, b):
    """LayerNorm in float32 (matches the LayerNorm subclass). Returns f32."""
    mu = jnp.mean(x_f32, axis=-1, keepdims=True)
    var = jnp.mean((x_f32 - mu) ** 2, axis=-1, keepdims=True)
    return (x_f32 - mu) * lax.rsqrt(var + LN_EPS) * w + b


def _block_kernel(
    # inputs
    x_ref,                                    # (Nb, L, E) or (L, Nb, E)
    ln1w_ref, ln1b_ref,                       # (1, E) f32
    wq_ref, wk_ref, wv_ref,                   # (E, E) compute dtype
    bq_ref, bk_ref, bv_ref,                   # (1, E) f32
    wo_ref, bo_ref,                           # (E, E), (1, E)
    ln2w_ref, ln2b_ref,                       # (1, E) f32
    wfc_ref, bfc_ref,                         # (E, t4), (1, t4)
    wpr_ref, bpr_ref,                         # (t4, E), (1, E)
    # outputs
    o_ref,                                    # same block shape as x_ref
    # scratch
    x1_scr,                                   # (Nb*L, E) f32 : x + attn
    h2_scr,                                   # (Nb*L, E) cdt : ln_2(x1)
    acc_scr=None,                             # (Nb*L, E) f32 : MLP accumulator
    *, n_head: int, seq_major: bool,
):
    if seq_major:
        L, Nb, E = x_ref.shape
    else:
        Nb, L, E = x_ref.shape
    R = Nb * L
    H = n_head
    dh = E // H
    cdt = wq_ref.dtype                        # MXU compute dtype
    scale = 1.0 / (dh ** 0.5)

    ht = pl.program_id(1)

    # ---- once per batch block: ln_1 -> MHA -> residual -> ln_2 -------------
    @pl.when(ht == 0)
    def _attention_and_ln2():
        xb = x_ref[...]
        if seq_major:
            # (L, Nb, E) -> (Nb, L, E): cheap in-VMEM relayout, replaces two
            # full HBM transposes in the wrapper.
            xb = jnp.swapaxes(xb, 0, 1)
        x = xb.reshape(R, E).astype(jnp.float32)

        h = _layernorm_f32(x, ln1w_ref[...], ln1b_ref[...]).astype(cdt)

        # QKV projections batched over all Nb*L rows (single MXU pass each,
        # f32 accumulation).
        q = (jnp.dot(h, wq_ref[...], preferred_element_type=jnp.float32)
             + bq_ref[...]) * scale
        k = (jnp.dot(h, wk_ref[...], preferred_element_type=jnp.float32)
             + bk_ref[...])
        v = (jnp.dot(h, wv_ref[...], preferred_element_type=jnp.float32)
             + bv_ref[...])

        # Attention: static unroll over the Nb packed batch elements; each
        # iteration is batched over heads with (H, L, dh) operands.  Keeping
        # the loop 3-D avoids 4-D relayouts (dh < 128 forces a relayout for
        # the head split regardless) and keeps only one (H, L, L) f32 softmax
        # intermediate live at a time.
        for n in range(Nb):
            lo = n * L
            qh = jnp.swapaxes(q[lo:lo + L].reshape(L, H, dh), 0, 1).astype(cdt)
            kh = jnp.swapaxes(k[lo:lo + L].reshape(L, H, dh), 0, 1).astype(cdt)
            vh = jnp.swapaxes(v[lo:lo + L].reshape(L, H, dh), 0, 1).astype(cdt)

            s = jnp.einsum("hld,hmd->hlm", qh, kh,
                           preferred_element_type=jnp.float32)     # (H, L, L)
            s = s - jnp.max(s, axis=-1, keepdims=True)
            p = jnp.exp(s)                                         # reuses s
            p = p * pl.reciprocal(jnp.sum(p, axis=-1, keepdims=True),
                                  approx=True)

            o = jnp.einsum("hlm,hmd->hld", p.astype(cdt), vh,
                           preferred_element_type=jnp.float32)     # (H, L, dh)
            attn = jnp.swapaxes(o, 0, 1).reshape(L, E).astype(cdt)

            proj = (jnp.dot(attn, wo_ref[...],
                            preferred_element_type=jnp.float32) + bo_ref[...])
            x1 = x[lo:lo + L] + proj                               # residual 1
            x1_scr[pl.ds(lo, L), :] = x1
            h2_scr[pl.ds(lo, L), :] = _layernorm_f32(
                x1, ln2w_ref[...], ln2b_ref[...]).astype(cdt)

        if acc_scr is not None:
            acc_scr[...] = jnp.zeros_like(acc_scr)

    # ---- every hidden tile: c_fc slice -> QuickGELU -> c_proj slice --------
    a = (jnp.dot(h2_scr[...], wfc_ref[...], preferred_element_type=jnp.float32)
         + bfc_ref[...])                                           # (R, t4) f32
    g = a * jax.nn.sigmoid(1.702 * a)                              # QuickGELU
    part = jnp.dot(g.astype(cdt), wpr_ref[...],
                   preferred_element_type=jnp.float32)             # (R, E) f32

    def _emit(mlp_out):
        res = x1_scr[...] + mlp_out + bpr_ref[...]                 # residual 2
        if seq_major:
            res = jnp.swapaxes(res.reshape(Nb, L, E), 0, 1)        # (L, Nb, E)
        else:
            res = res.reshape(Nb, L, E)
        o_ref[...] = res.astype(o_ref.dtype)

    if acc_scr is None:
        # Resident MLP weights (n_ht == 1): no accumulator round-trip.
        _emit(part)
    else:
        acc_scr[...] += part
        # NOTE: correct only while the hidden-tile axis stays the innermost
        # grid axis and the output block index is independent of it.
        @pl.when(ht == pl.num_programs(1) - 1)
        def _finish():
            _emit(acc_scr[...])


def _tpu_vmem_capacity():
    try:
        return int(pltpu.get_tpu_info().vmem_capacity_bytes)
    except Exception:
        return 64 << 20  # conservative default (v7x per-TensorCore)


def _estimate_vmem_bytes(nb, t4, L, E, H, hidden, act_bytes, cdt_bytes):
    """Rough per-grid-step VMEM footprint (weights + IO + scratch + live)."""
    tiled = t4 < hidden
    R = nb * L
    w = 4 * E * E * cdt_bytes                                   # wq/wk/wv/wo
    w += (2 * 2 * E * t4 if tiled else 2 * E * hidden) * cdt_bytes
    w += (8 * E + 2 * hidden) * 4                               # biases / LN
    io = 2 * 2 * R * E * act_bytes                              # x + out, 2-buf
    scr = R * E * (4 + cdt_bytes + (4 if tiled else 0))         # x1, h2, (acc)
    attn = (R * E * (16 + 2 * cdt_bytes)                        # x,q,k,v,h live
            + 2 * H * L * L * 4                                 # s/p (one elt)
            + 6 * L * E * cdt_bytes)                            # qh/kh/vh/attn
    mlp = R * t4 * (4 + cdt_bytes)                              # a, g
    return w + io + scr + max(attn, mlp)


def _choose_tiling(N, L, E, H, hidden, act_bytes, cdt_bytes, vmem_cap):
    """Pick (Nb, hidden_tile): biggest batch pack + resident MLP that fits."""
    budget = int(vmem_cap * 0.70)
    nb_opts = [nb for nb in (16, 8, 4, 2, 1) if nb <= N and N % nb == 0]
    t4_opts = [hidden] + [t for t in (2048, 1024, 512, 256)
                          if t < hidden and hidden % t == 0]
    for nb in nb_opts:
        for t4 in t4_opts:
            if _estimate_vmem_bytes(nb, t4, L, E, H, hidden,
                                    act_bytes, cdt_bytes) <= budget:
                return nb, t4
    return nb_opts[-1], t4_opts[-1]


def residual_attention_block(x_lne, params, *, n_head: int,
                             compute_dtype=jnp.bfloat16,
                             force_batch_block=None, force_hidden_tile=None):
    """x_lne: (L, N, E) in PyTorch MultiheadAttention layout (seq-first)."""
    L, N, E = x_lne.shape
    assert E % n_head == 0
    cdt = jnp.dtype(compute_dtype)
    f32 = jnp.float32
    hidden = 4 * E
    act_bytes = jnp.dtype(x_lne.dtype).itemsize
    cdt_bytes = cdt.itemsize

    vmem_cap = _tpu_vmem_capacity()
    Nb, t4 = _choose_tiling(N, L, E, n_head, hidden, act_bytes, cdt_bytes,
                            vmem_cap)
    if force_batch_block is not None:
        Nb = int(force_batch_block)
    if force_hidden_tile is not None:
        t4 = int(force_hidden_tile)
    assert N % Nb == 0 and hidden % t4 == 0
    assert t4 == hidden or t4 % 128 == 0
    n_bt = N // Nb
    n_ht = hidden // t4
    tiled = n_ht > 1
    # Seq-major blocking of the (L, N, E) input needs Nb in the sublane slot:
    # Nb == N or Nb % 8 == 0 satisfies the (8, 128) rule and removes both
    # wrapper-side HBM transposes.
    seq_major = (Nb == N) or (Nb % 8 == 0)
    R = Nb * L

    est = _estimate_vmem_bytes(Nb, t4, L, E, n_head, hidden,
                               act_bytes, cdt_bytes)
    vmem_limit = int(min(0.75 * vmem_cap,
                         max(32 << 20, est * 3 // 2 + (8 << 20))))

    # Parameter prep (once, outside the kernel): matmul weights in the compute
    # dtype, biases / LN params in f32 (added to f32 accumulators).
    ln1w = params["ln1_w"].astype(f32).reshape(1, E)
    ln1b = params["ln1_b"].astype(f32).reshape(1, E)
    wqkv = params["wqkv"].astype(cdt)              # (E, 3E)
    wq, wk, wv = wqkv[:, :E], wqkv[:, E:2 * E], wqkv[:, 2 * E:]
    bqkv = params["bqkv"].astype(f32)
    bq = bqkv[:E].reshape(1, E)
    bk = bqkv[E:2 * E].reshape(1, E)
    bv = bqkv[2 * E:].reshape(1, E)
    wo = params["wo"].astype(cdt)
    bo = params["bo"].astype(f32).reshape(1, E)
    ln2w = params["ln2_w"].astype(f32).reshape(1, E)
    ln2b = params["ln2_b"].astype(f32).reshape(1, E)
    wfc = params["wfc"].astype(cdt)                # (E, 4E)
    bfc = params["bfc"].astype(f32).reshape(1, hidden)
    wpr = params["wpr"].astype(cdt)                # (4E, E)
    bpr = params["bpr"].astype(f32).reshape(1, E)

    def build_and_run(single_buffer):
        def const_spec(a):
            # Grid-invariant input: DMA'd once; single-buffer it to reclaim
            # the second pipeline buffer (matters on v7x's 64 MiB VMEM).
            if single_buffer:
                return pl.BlockSpec(a.shape, lambda b, t: (0, 0),
                                    pipeline_mode=pl.Buffered(1))
            return pl.BlockSpec(a.shape, lambda b, t: (0, 0))

        if seq_major:
            x_in = x_lne                                        # (L, N, E)
            io_spec = pl.BlockSpec((L, Nb, E), lambda b, t: (0, b, 0))
            out_shape = jax.ShapeDtypeStruct((L, N, E), x_lne.dtype)
        else:
            x_in = jnp.transpose(x_lne, (1, 0, 2))              # (N, L, E)
            io_spec = pl.BlockSpec((Nb, L, E), lambda b, t: (b, 0, 0))
            out_shape = jax.ShapeDtypeStruct((N, L, E), x_lne.dtype)

        if tiled:
            wfc_spec = pl.BlockSpec((E, t4), lambda b, t: (0, t))
            bfc_spec = pl.BlockSpec((1, t4), lambda b, t: (0, t))
            wpr_spec = pl.BlockSpec((t4, E), lambda b, t: (t, 0))
        else:
            wfc_spec = const_spec(wfc)
            bfc_spec = const_spec(bfc)
            wpr_spec = const_spec(wpr)

        in_specs = [
            io_spec,
            const_spec(ln1w), const_spec(ln1b),
            const_spec(wq), const_spec(wk), const_spec(wv),
            const_spec(bq), const_spec(bk), const_spec(bv),
            const_spec(wo), const_spec(bo),
            const_spec(ln2w), const_spec(ln2b),
            wfc_spec, bfc_spec, wpr_spec,
            const_spec(bpr),
        ]

        scratch = [pltpu.VMEM((R, E), jnp.float32),   # x1 (post-attn residual)
                   pltpu.VMEM((R, E), cdt)]           # ln_2(x1)
        if tiled:
            scratch.append(pltpu.VMEM((R, E), jnp.float32))   # MLP accumulator

        out = pl.pallas_call(
            functools.partial(_block_kernel, n_head=n_head,
                              seq_major=seq_major),
            out_shape=out_shape,
            grid_spec=pltpu.PrefetchScalarGridSpec(
                num_scalar_prefetch=0,
                grid=(n_bt, n_ht),
                in_specs=in_specs,
                out_specs=io_spec,
                scratch_shapes=scratch),
            compiler_params=pltpu.CompilerParams(
                # batch axis parallel (megacore split on v7x; needs n_bt >= 2
                # to give both TensorCores work), hidden-tile axis arbitrary.
                dimension_semantics=("parallel", "arbitrary"),
                vmem_limit_bytes=vmem_limit),
        )(x_in, ln1w, ln1b, wq, wk, wv, bq, bk, bv, wo, bo,
          ln2w, ln2b, wfc, bfc, wpr, bpr)

        if not seq_major:
            out = jnp.transpose(out, (1, 0, 2))
        return out

    if hasattr(pl, "Buffered"):
        try:
            return build_and_run(True)
        except Exception:
            # Older/stricter Pallas: retry with default double-buffering.
            return build_and_run(False)
    return build_and_run(False)


def _reference(x_lne, p, n_head):
    """Pure-JAX f32 reference mirroring the PyTorch forward pass."""
    L, N, E = x_lne.shape
    dh = E // n_head

    def ln(x, w, b):
        xf = x.astype(jnp.float32)
        mu = xf.mean(-1, keepdims=True)
        var = ((xf - mu) ** 2).mean(-1, keepdims=True)
        return ((xf - mu) / jnp.sqrt(var + LN_EPS) * w + b).astype(x.dtype)

    h = ln(x_lne, p["ln1_w"], p["ln1_b"])
    qkv = h @ p["wqkv"] + p["bqkv"]
    q, k, v = jnp.split(qkv, 3, axis=-1)

    def heads(t):  # (L, N, E) -> (N, H, L, dh)
        return t.reshape(L, N, n_head, dh).transpose(1, 2, 0, 3)

    qh = heads(q) / jnp.sqrt(dh)
    kh = heads(k)
    vh = heads(v)
    s = jnp.einsum("nhld,nhmd->nhlm", qh, kh)
    pa = jax.nn.softmax(s, axis=-1)
    o = jnp.einsum("nhlm,nhmd->nhld", pa, vh)
    o = o.transpose(2, 0, 1, 3).reshape(L, N, E)
    o = o @ p["wo"] + p["bo"]
    x1 = x_lne + o

    h2 = ln(x1, p["ln2_w"], p["ln2_b"])
    m = h2 @ p["wfc"] + p["bfc"]
    m = m * jax.nn.sigmoid(1.702 * m)
    m = m @ p["wpr"] + p["bpr"]
    return x1 + m


def _init_params(key, d_model):
    E = d_model
    keys = jax.random.split(key, 12)
    n = lambda k, s, sc: (jax.random.normal(k, s, jnp.float32) * sc)
    return {
        "ln1_w": 1.0 + n(keys[0], (E,), 0.05),
        "ln1_b": n(keys[1], (E,), 0.05),
        "wqkv": n(keys[2], (E, 3 * E), 0.05),
        "bqkv": n(keys[3], (3 * E,), 0.02),
        "wo": n(keys[4], (E, E), 0.05),
        "bo": n(keys[5], (E,), 0.02),
        "ln2_w": 1.0 + n(keys[6], (E,), 0.05),
        "ln2_b": n(keys[7], (E,), 0.05),
        "wfc": n(keys[8], (E, 4 * E), 0.05),
        "bfc": n(keys[9], (4 * E,), 0.02),
        "wpr": n(keys[10], (4 * E, E), 0.05),
        "bpr": n(keys[11], (E,), 0.02),
    }


if __name__ == "__main__":
    # Small shapes: seq_len L=8, batch N=4, d_model E=64, heads=4.
    L, N, E, H = 8, 4, 64, 4
    key = jax.random.PRNGKey(0)
    kx, kp = jax.random.split(key)
    x = jax.random.normal(kx, (L, N, E), jnp.float32)
    params = _init_params(kp, E)

    ref = jax.block_until_ready(_reference(x, params, H))

    # 1) Default config: bf16 MXU compute, auto tiling (batch packing Nb=N,
    #    seq-major blocks -> no wrapper transposes, resident MLP weights).
    out = jax.block_until_ready(residual_attention_block(x, params, n_head=H))
    assert out.shape == (L, N, E)
    assert jnp.allclose(out, ref, rtol=5e-2, atol=5e-2), float(
        jnp.max(jnp.abs(out - ref)))

    # 2) f32-parity config exercising the hidden-tiled accumulator path and
    #    the batch-first (Nb < 8) layout.
    out_f32 = jax.block_until_ready(
        residual_attention_block(x, params, n_head=H,
                                 compute_dtype=jnp.float32,
                                 force_batch_block=2, force_hidden_tile=128))
    assert jnp.allclose(out_f32, ref, rtol=2e-3, atol=2e-3), float(
        jnp.max(jnp.abs(out_f32 - ref)))

    print("KERNEL_OK")
</pallas_src>

<mosaic_0001>
module attributes {stable_mosaic.version = 11 : i64} {
  func.func @_block_kernel(%arg0: i32, %arg1: i32, %arg2: memref<8x4x64xf32, #tpu.memory_space<vmem>>, %arg3: memref<1x64xf32, #tpu.memory_space<vmem>>, %arg4: memref<1x64xf32, #tpu.memory_space<vmem>>, %arg5: memref<64x64xbf16, #tpu.memory_space<vmem>>, %arg6: memref<64x64xbf16, #tpu.memory_space<vmem>>, %arg7: memref<64x64xbf16, #tpu.memory_space<vmem>>, %arg8: memref<1x64xf32, #tpu.memory_space<vmem>>, %arg9: memref<1x64xf32, #tpu.memory_space<vmem>>, %arg10: memref<1x64xf32, #tpu.memory_space<vmem>>, %arg11: memref<64x64xbf16, #tpu.memory_space<vmem>>, %arg12: memref<1x64xf32, #tpu.memory_space<vmem>>, %arg13: memref<1x64xf32, #tpu.memory_space<vmem>>, %arg14: memref<1x64xf32, #tpu.memory_space<vmem>>, %arg15: memref<64x256xbf16, #tpu.memory_space<vmem>>, %arg16: memref<1x256xf32, #tpu.memory_space<vmem>>, %arg17: memref<256x64xbf16, #tpu.memory_space<vmem>>, %arg18: memref<1x64xf32, #tpu.memory_space<vmem>>, %arg19: memref<8x4x64xf32, #tpu.memory_space<vmem>>, %arg20: memref<32x64xf32, #tpu.memory_space<vmem>>, %arg21: memref<32x64xbf16, #tpu.memory_space<vmem>>) attributes {dimension_semantics = [#tpu.dimension_semantics<parallel>, #tpu.dimension_semantics<arbitrary>], iteration_bounds = array<i64: 1, 1>, scalar_prefetch = 0 : i64, scratch_operands = 2 : i64, tpu.core_type = #tpu.core_type<tc>, window_params = [{transform_indices = @transform_0, window_bounds = array<i64: 8, 4, 64>}, {pipeline_mode = #tpu.pipeline_mode<synchronous>, transform_indices = @transform_1, window_bounds = array<i64: 1, 64>}, {pipeline_mode = #tpu.pipeline_mode<synchronous>, transform_indices = @transform_2, window_bounds = array<i64: 1, 64>}, {pipeline_mode = #tpu.pipeline_mode<synchronous>, transform_indices = @transform_3, window_bounds = array<i64: 64, 64>}, {pipeline_mode = #tpu.pipeline_mode<synchronous>, transform_indices = @transform_4, window_bounds = array<i64: 64, 64>}, {pipeline_mode = #tpu.pipeline_mode<synchronous>, transform_indices = @transform_5, window_bounds = array<i64: 64, 64>}, {pipeline_mode = #tpu.pipeline_mode<synchronous>, transform_indices = @transform_6, window_bounds = array<i64: 1, 64>}, {pipeline_mode = #tpu.pipeline_mode<synchronous>, transform_indices = @transform_7, window_bounds = array<i64: 1, 64>}, {pipeline_mode = #tpu.pipeline_mode<synchronous>, transform_indices = @transform_8, window_bounds = array<i64: 1, 64>}, {pipeline_mode = #tpu.pipeline_mode<synchronous>, transform_indices = @transform_9, window_bounds = array<i64: 64, 64>}, {pipeline_mode = #tpu.pipeline_mode<synchronous>, transform_indices = @transform_10, window_bounds = array<i64: 1, 64>}, {pipeline_mode = #tpu.pipeline_mode<synchronous>, transform_indices = @transform_11, window_bounds = array<i64: 1, 64>}, {pipeline_mode = #tpu.pipeline_mode<synchronous>, transform_indices = @transform_12, window_bounds = array<i64: 1, 64>}, {pipeline_mode = #tpu.pipeline_mode<synchronous>, transform_indices = @transform_13, window_bounds = array<i64: 64, 256>}, {pipeline_mode = #tpu.pipeline_mode<synchronous>, transform_indices = @transform_14, window_bounds = array<i64: 1, 256>}, {pipeline_mode = #tpu.pipeline_mode<synchronous>, transform_indices = @transform_15, window_bounds = array<i64: 256, 64>}, {pipeline_mode = #tpu.pipeline_mode<synchronous>, transform_indices = @transform_16, window_bounds = array<i64: 1, 64>}, {transform_indices = @transform_17, window_bounds = array<i64: 8, 4, 64>}]} {
    %c0_i32 = arith.constant 0 : i32
    %0 = arith.cmpi eq, %arg1, %c0_i32 : i32
    %1 = arith.extui %0 : i1 to i32
    %c0_i32_0 = arith.constant 0 : i32
    %2 = arith.cmpi ne, %1, %c0_i32_0 : i32
    scf.if %2 {
      %c0_18 = arith.constant 0 : index
      %c0_19 = arith.constant 0 : index
      %c0_20 = arith.constant 0 : index
      %28 = vector.load %arg2[%c0_18, %c0_19, %c0_20] : memref<8x4x64xf32, #tpu.memory_space<vmem>>, vector<8x4x64xf32>
      %29 = tpu.transpose %28, [1, 0, 2] : vector<8x4x64xf32> -> vector<4x8x64xf32>
      %30 = vector.shape_cast %29 : vector<4x8x64xf32> to vector<32x64xf32>
      %c0_21 = arith.constant 0 : index
      %c0_22 = arith.constant 0 : index
      %31 = vector.load %arg3[%c0_21, %c0_22] : memref<1x64xf32, #tpu.memory_space<vmem>>, vector<1x64xf32>
      %c0_23 = arith.constant 0 : index
      %c0_24 = arith.constant 0 : index
      %32 = vector.load %arg4[%c0_23, %c0_24] : memref<1x64xf32, #tpu.memory_space<vmem>>, vector<1x64xf32>
      %cst_25 = arith.constant dense<0.000000e+00> : vector<32xf32>
      %33 = vector.multi_reduction <add>, %30, %cst_25 [1] : vector<32x64xf32> to vector<32xf32>
      %34 = vector.shape_cast %33 : vector<32xf32> to vector<32x1xf32>
      %cst_26 = arith.constant 6.400000e+01 : f32
      %35 = vector.broadcast %cst_26 : f32 to vector<32x1xf32>
      %36 = arith.divf %34, %35 : vector<32x1xf32>
      %37 = vector.broadcast %36 : vector<32x1xf32> to vector<32x64xf32>
      %38 = arith.subf %30, %37 : vector<32x64xf32>
      %39 = arith.mulf %38, %38 : vector<32x64xf32>
      %cst_27 = arith.constant dense<0.000000e+00> : vector<32xf32>
      %40 = vector.multi_reduction <add>, %39, %cst_27 [1] : vector<32x64xf32> to vector<32xf32>
      %41 = vector.shape_cast %40 : vector<32xf32> to vector<32x1xf32>
      %cst_28 = arith.constant 6.400000e+01 : f32
      %42 = vector.broadcast %cst_28 : f32 to vector<32x1xf32>
      %43 = arith.divf %41, %42 : vector<32x1xf32>
      %44 = vector.broadcast %36 : vector<32x1xf32> to vector<32x64xf32>
      %45 = arith.subf %30, %44 : vector<32x64xf32>
      %cst_29 = arith.constant 9.99999974E-6 : f32
      %46 = vector.broadcast %cst_29 : f32 to vector<32x1xf32>
      %47 = arith.addf %43, %46 : vector<32x1xf32>
      %48 = math.rsqrt %47 : vector<32x1xf32>
      %49 = vector.broadcast %48 : vector<32x1xf32> to vector<32x64xf32>
      %50 = arith.mulf %45, %49 : vector<32x64xf32>
      %51 = vector.broadcast %31 : vector<1x64xf32> to vector<32x64xf32>
      %52 = arith.mulf %50, %51 : vector<32x64xf32>
      %53 = vector.broadcast %32 : vector<1x64xf32> to vector<32x64xf32>
      %54 = arith.addf %52, %53 : vector<32x64xf32>
      %55 = arith.truncf %54 : vector<32x64xf32> to vector<32x64xbf16>
      %c0_30 = arith.constant 0 : index
      %c0_31 = arith.constant 0 : index
      %56 = vector.load %arg5[%c0_30, %c0_31] : memref<64x64xbf16, #tpu.memory_space<vmem>>, vector<64x64xbf16>
      %cst_32 = arith.constant dense<0.000000e+00> : vector<32x64xf32>
      %57 = tpu.matmul %55, %56, %cst_32 {dimension_numbers = #tpu.dot_dimension_numbers<[1], [0], [0], [1], [0, 0, 1, 1], [], []>} : vector<32x64xbf16>, vector<64x64xbf16>, vector<32x64xf32> -> vector<32x64xf32>
      %c0_33 = arith.constant 0 : index
      %c0_34 = arith.constant 0 : index
      %58 = vector.load %arg8[%c0_33, %c0_34] : memref<1x64xf32, #tpu.memory_space<vmem>>, vector<1x64xf32>
      %59 = vector.broadcast %58 : vector<1x64xf32> to vector<32x64xf32>
      %60 = arith.addf %57, %59 : vector<32x64xf32>
      %cst_35 = arith.constant 2.500000e-01 : f32
      %61 = vector.broadcast %cst_35 : f32 to vector<32x64xf32>
      %62 = arith.mulf %60, %61 : vector<32x64xf32>
      %c0_36 = arith.constant 0 : index
      %c0_37 = arith.constant 0 : index
      %63 = vector.load %arg6[%c0_36, %c0_37] : memref<64x64xbf16, #tpu.memory_space<vmem>>, vector<64x64xbf16>
      %cst_38 = arith.constant dense<0.000000e+00> : vector<32x64xf32>
      %64 = tpu.matmul %55, %63, %cst_38 {dimension_numbers = #tpu.dot_dimension_numbers<[1], [0], [0], [1], [0, 0, 1, 1], [], []>} : vector<32x64xbf16>, vector<64x64xbf16>, vector<32x64xf32> -> vector<32x64xf32>
      %c0_39 = arith.constant 0 : index
      %c0_40 = arith.constant 0 : index
      %65 = vector.load %arg9[%c0_39, %c0_40] : memref<1x64xf32, #tpu.memory_space<vmem>>, vector<1x64xf32>
      %66 = vector.broadcast %65 : vector<1x64xf32> to vector<32x64xf32>
      %67 = arith.addf %64, %66 : vector<32x64xf32>
      %c0_41 = arith.constant 0 : index
      %c0_42 = arith.constant 0 : index
      %68 = vector.load %arg7[%c0_41, %c0_42] : memref<64x64xbf16, #tpu.memory_space<vmem>>, vector<64x64xbf16>
      %cst_43 = arith.constant dense<0.000000e+00> : vector<32x64xf32>
      %69 = tpu.matmul %55, %68, %cst_43 {dimension_numbers = #tpu.dot_dimension_numbers<[1], [0], [0], [1], [0, 0, 1, 1], [], []>} : vector<32x64xbf16>, vector<64x64xbf16>, vector<32x64xf32> -> vector<32x64xf32>
      %c0_44 = arith.constant 0 : index
      %c0_45 = arith.constant 0 : index
      %70 = vector.load %arg10[%c0_44, %c0_45] : memref<1x64xf32, #tpu.memory_space<vmem>>, vector<1x64xf32>
      %71 = vector.broadcast %70 : vector<1x64xf32> to vector<32x64xf32>
      %72 = arith.addf %69, %71 : vector<32x64xf32>
      %73 = vector.extract_strided_slice %62 {offsets = [0, 0], sizes = [8, 64], strides = [1, 1]} : vector<32x64xf32> to vector<8x64xf32>
      %74 = vector.shape_cast %73 : vector<8x64xf32> to vector<8x4x16xf32>
      %75 = tpu.transpose %74, [1, 0, 2] : vector<8x4x16xf32> -> vector<4x8x16xf32>
      %76 = arith.truncf %75 : vector<4x8x16xf32> to vector<4x8x16xbf16>
      %77 = vector.extract_strided_slice %67 {offsets = [0, 0], sizes = [8, 64], strides = [1, 1]} : vector<32x64xf32> to vector<8x64xf32>
      %78 = vector.shape_cast %77 : vector<8x64xf32> to vector<8x4x16xf32>
      %79 = tpu.transpose %78, [1, 0, 2] : vector<8x4x16xf32> -> vector<4x8x16xf32>
      %80 = arith.truncf %79 : vector<4x8x16xf32> to vector<4x8x16xbf16>
      %81 = vector.extract_strided_slice %72 {offsets = [0, 0], sizes = [8, 64], strides = [1, 1]} : vector<32x64xf32> to vector<8x64xf32>
      %82 = vector.shape_cast %81 : vector<8x64xf32> to vector<8x4x16xf32>
      %83 = tpu.transpose %82, [1, 0, 2] : vector<8x4x16xf32> -> vector<4x8x16xf32>
      %84 = arith.truncf %83 : vector<4x8x16xf32> to vector<4x8x16xbf16>
      "tpu.trace_start"() <{level = 10 : i32, message = "hld,hmd->hlm"}> : () -> ()
      %cst_46 = arith.constant dense<0.000000e+00> : vector<4x8x8xf32>
      %85 = tpu.matmul %76, %80, %cst_46 {dimension_numbers = #tpu.dot_dimension_numbers<[2], [2], [1], [1], [0, 0, 0, 1, 1, 1], [0], [0]>} : vector<4x8x16xbf16>, vector<4x8x16xbf16>, vector<4x8x8xf32> -> vector<4x8x8xf32>
      "tpu.trace_stop"() : () -> ()
      %cst_47 = arith.constant dense<0xFF800000> : vector<4x8xf32>
      %86 = vector.multi_reduction <maximumf>, %85, %cst_47 [2] : vector<4x8x8xf32> to vector<4x8xf32>
      %87 = vector.shape_cast %86 : vector<4x8xf32> to vector<4x8x1xf32>
      %88 = vector.broadcast %87 : vector<4x8x1xf32> to vector<4x8x8xf32>
      %89 = arith.subf %85, %88 : vector<4x8x8xf32>
      %90 = math.exp %89 : vector<4x8x8xf32>
      %cst_48 = arith.constant dense<0.000000e+00> : vector<4x8xf32>
      %91 = vector.multi_reduction <add>, %90, %cst_48 [2] : vector<4x8x8xf32> to vector<4x8xf32>
      %92 = vector.shape_cast %91 : vector<4x8xf32> to vector<4x8x1xf32>
      %93 = tpu.reciprocal %92 {approx = true} : vector<4x8x1xf32> -> vector<4x8x1xf32>
      %94 = vector.broadcast %93 : vector<4x8x1xf32> to vector<4x8x8xf32>
      %95 = arith.mulf %90, %94 : vector<4x8x8xf32>
      %96 = arith.truncf %95 : vector<4x8x8xf32> to vector<4x8x8xbf16>
      "tpu.trace_start"() <{level = 10 : i32, message = "hlm,hmd->hld"}> : () -> ()
      %cst_49 = arith.constant dense<0.000000e+00> : vector<4x8x16xf32>
      %97 = tpu.matmul %96, %84, %cst_49 {dimension_numbers = #tpu.dot_dimension_numbers<[2], [1], [1], [2], [0, 0, 0, 1, 1, 2], [0], [0]>} : vector<4x8x8xbf16>, vector<4x8x16xbf16>, vector<4x8x16xf32> -> vector<4x8x16xf32>
      "tpu.trace_stop"() : () -> ()
      %98 = tpu.transpose %97, [1, 0, 2] : vector<4x8x16xf32> -> vector<8x4x16xf32>
      %99 = vector.shape_cast %98 : vector<8x4x16xf32> to vector<8x64xf32>
      %100 = arith.truncf %99 : vector<8x64xf32> to vector<8x64xbf16>
      %c0_50 = arith.constant 0 : index
      %c0_51 = arith.constant 0 : index
      %101 = vector.load %arg11[%c0_50, %c0_51] : memref<64x64xbf16, #tpu.memory_space<vmem>>, vector<64x64xbf16>
      %cst_52 = arith.constant dense<0.000000e+00> : vector<8x64xf32>
      %102 = tpu.matmul %100, %101, %cst_52 {dimension_numbers = #tpu.dot_dimension_numbers<[1], [0], [0], [1], [0, 0, 1, 1], [], []>} : vector<8x64xbf16>, vector<64x64xbf16>, vector<8x64xf32> -> vector<8x64xf32>
      %c0_53 = arith.constant 0 : index
      %c0_54 = arith.constant 0 : index
      %103 = vector.load %arg12[%c0_53, %c0_54] : memref<1x64xf32, #tpu.memory_space<vmem>>, vector<1x64xf32>
      %104 = vector.broadcast %103 : vector<1x64xf32> to vector<8x64xf32>
      %105 = arith.addf %102, %104 : vector<8x64xf32>
      %106 = vector.extract_strided_slice %30 {offsets = [0, 0], sizes = [8, 64], strides = [1, 1]} : vector<32x64xf32> to vector<8x64xf32>
      %107 = arith.addf %106, %105 : vector<8x64xf32>
      %c0_55 = arith.constant 0 : index
      %c0_56 = arith.constant 0 : index
      %108 = vector.load %arg20[%c0_55, %c0_56] : memref<32x64xf32, #tpu.memory_space<vmem>>, vector<8x64xf32>
      tpu.vector_store %arg20[%c0_55, %c0_56], %107 {strides = array<i32>} : memref<32x64xf32, #tpu.memory_space<vmem>>, vector<8x64xf32>,
      %c0_57 = arith.constant 0 : index
      %c0_58 = arith.constant 0 : index
      %109 = vector.load %arg13[%c0_57, %c0_58] : memref<1x64xf32, #tpu.memory_space<vmem>>, vector<1x64xf32>
      %c0_59 = arith.constant 0 : index
      %c0_60 = arith.constant 0 : index
      %110 = vector.load %arg14[%c0_59, %c0_60] : memref<1x64xf32, #tpu.memory_space<vmem>>, vector<1x64xf32>
      %cst_61 = arith.constant dense<0.000000e+00> : vector<8xf32>
      %111 = vector.multi_reduction <add>, %107, %cst_61 [1] : vector<8x64xf32> to vector<8xf32>
      %112 = vector.shape_cast %111 : vector<8xf32> to vector<8x1xf32>
      %cst_62 = arith.constant 6.400000e+01 : f32
      %113 = vector.broadcast %cst_62 : f32 to vector<8x1xf32>
      %114 = arith.divf %112, %113 : vector<8x1xf32>
      %115 = vector.broadcast %114 : vector<8x1xf32> to vector<8x64xf32>
      %116 = arith.subf %107, %115 : vector<8x64xf32>
      %117 = arith.mulf %116, %116 : vector<8x64xf32>
      %cst_63 = arith.constant dense<0.000000e+00> : vector<8xf32>
      %118 = vector.multi_reduction <add>, %117, %cst_63 [1] : vector<8x64xf32> to vector<8xf32>
      %119 = vector.shape_cast %118 : vector<8xf32> to vector<8x1xf32>
      %cst_64 = arith.constant 6.400000e+01 : f32
      %120 = vector.broadcast %cst_64 : f32 to vector<8x1xf32>
      %121 = arith.divf %119, %120 : vector<8x1xf32>
      %122 = vector.broadcast %114 : vector<8x1xf32> to vector<8x64xf32>
      %123 = arith.subf %107, %122 : vector<8x64xf32>
      %cst_65 = arith.constant 9.99999974E-6 : f32
      %124 = vector.broadcast %cst_65 : f32 to vector<8x1xf32>
      %125 = arith.addf %121, %124 : vector<8x1xf32>
      %126 = math.rsqrt %125 : vector<8x1xf32>
      %127 = vector.broadcast %126 : vector<8x1xf32> to vector<8x64xf32>
      %128 = arith.mulf %123, %127 : vector<8x64xf32>
      %129 = vector.broadcast %109 : vector<1x64xf32> to vector<8x64xf32>
      %130 = arith.mulf %128, %129 : vector<8x64xf32>
      %131 = vector.broadcast %110 : vector<1x64xf32> to vector<8x64xf32>
      %132 = arith.addf %130, %131 : vector<8x64xf32>
      %133 = arith.truncf %132 : vector<8x64xf32> to vector<8x64xbf16>
      %c0_66 = arith.constant 0 : index
      %c0_67 = arith.constant 0 : index
      %134 = vector.load %arg21[%c0_66, %c0_67] : memref<32x64xbf16, #tpu.memory_space<vmem>>, vector<8x64xbf16>
      tpu.vector_store %arg21[%c0_66, %c0_67], %133 {strides = array<i32>} : memref<32x64xbf16, #tpu.memory_space<vmem>>, vector<8x64xbf16>,
      %135 = vector.extract_strided_slice %62 {offsets = [8, 0], sizes = [8, 64], strides = [1, 1]} : vector<32x64xf32> to vector<8x64xf32>
      %136 = vector.shape_cast %135 : vector<8x64xf32> to vector<8x4x16xf32>
      %137 = tpu.transpose %136, [1, 0, 2] : vector<8x4x16xf32> -> vector<4x8x16xf32>
      %138 = arith.truncf %137 : vector<4x8x16xf32> to vector<4x8x16xbf16>
      %139 = vector.extract_strided_slice %67 {offsets = [8, 0], sizes = [8, 64], strides = [1, 1]} : vector<32x64xf32> to vector<8x64xf32>
      %140 = vector.shape_cast %139 : vector<8x64xf32> to vector<8x4x16xf32>
      %141 = tpu.transpose %140, [1, 0, 2] : vector<8x4x16xf32> -> vector<4x8x16xf32>
      %142 = arith.truncf %141 : vector<4x8x16xf32> to vector<4x8x16xbf16>
      %143 = vector.extract_strided_slice %72 {offsets = [8, 0], sizes = [8, 64], strides = [1, 1]} : vector<32x64xf32> to vector<8x64xf32>
      %144 = vector.shape_cast %143 : vector<8x64xf32> to vector<8x4x16xf32>
      %145 = tpu.transpose %144, [1, 0, 2] : vector<8x4x16xf32> -> vector<4x8x16xf32>
      %146 = arith.truncf %145 : vector<4x8x16xf32> to vector<4x8x16xbf16>
      "tpu.trace_start"() <{level = 10 : i32, message = "hld,hmd->hlm"}> : () -> ()
      %cst_68 = arith.constant dense<0.000000e+00> : vector<4x8x8xf32>
      %147 = tpu.matmul %138, %142, %cst_68 {dimension_numbers = #tpu.dot_dimension_numbers<[2], [2], [1], [1], [0, 0, 0, 1, 1, 1], [0], [0]>} : vector<4x8x16xbf16>, vector<4x8x16xbf16>, vector<4x8x8xf32> -> vector<4x8x8xf32>
      "tpu.trace_stop"() : () -> ()
      %cst_69 = arith.constant dense<0xFF800000> : vector<4x8xf32>
      %148 = vector.multi_reduction <maximumf>, %147, %cst_69 [2] : vector<4x8x8xf32> to vector<4x8xf32>
      %149 = vector.shape_cast %148 : vector<4x8xf32> to vector<4x8x1xf32>
      %150 = vector.broadcast %149 : vector<4x8x1xf32> to vector<4x8x8xf32>
      %151 = arith.subf %147, %150 : vector<4x8x8xf32>
      %152 = math.exp %151 : vector<4x8x8xf32>
      %cst_70 = arith.constant dense<0.000000e+00> : vector<4x8xf32>
      %153 = vector.multi_reduction <add>, %152, %cst_70 [2] : vector<4x8x8xf32> to vector<4x8xf32>
      %154 = vector.shape_cast %153 : vector<4x8xf32> to vector<4x8x1xf32>
      %155 = tpu.reciprocal %154 {approx = true} : vector<4x8x1xf32> -> vector<4x8x1xf32>
      %156 = vector.broadcast %155 : vector<4x8x1xf32> to vector<4x8x8xf32>
      %157 = arith.mulf %152, %156 : vector<4x8x8xf32>
      %158 = arith.truncf %157 : vector<4x8x8xf32> to vector<4x8x8xbf16>
      "tpu.trace_start"() <{level = 10 : i32, message = "hlm,hmd->hld"}> : () -> ()
      %cst_71 = arith.constant dense<0.000000e+00> : vector<4x8x16xf32>
      %159 = tpu.matmul %158, %146, %cst_71 {dimension_numbers = #tpu.dot_dimension_numbers<[2], [1], [1], [2], [0, 0, 0, 1, 1, 2], [0], [0]>} : vector<4x8x8xbf16>, vector<4x8x16xbf16>, vector<4x8x16xf32> -> vector<4x8x16xf32>
      "tpu.trace_stop"() : () -> ()
      %160 = tpu.transpose %159, [1, 0, 2] : vector<4x8x16xf32> -> vector<8x4x16xf32>
      %161 = vector.shape_cast %160 : vector<8x4x16xf32> to vector<8x64xf32>
      %162 = arith.truncf %161 : vector<8x64xf32> to vector<8x64xbf16>
      %c0_72 = arith.constant 0 : index
      %c0_73 = arith.constant 0 : index
      %163 = vector.load %arg11[%c0_72, %c0_73] : memref<64x64xbf16, #tpu.memory_space<vmem>>, vector<64x64xbf16>
      %cst_74 = arith.constant dense<0.000000e+00> : vector<8x64xf32>
      %164 = tpu.matmul %162, %163, %cst_74 {dimension_numbers = #tpu.dot_dimension_numbers<[1], [0], [0], [1], [0, 0, 1, 1], [], []>} : vector<8x64xbf16>, vector<64x64xbf16>, vector<8x64xf32> -> vector<8x64xf32>
      %c0_75 = arith.constant 0 : index
      %c0_76 = arith.constant 0 : index
      %165 = vector.load %arg12[%c0_75, %c0_76] : memref<1x64xf32, #tpu.memory_space<vmem>>, vector<1x64xf32>
      %166 = vector.broadcast %165 : vector<1x64xf32> to vector<8x64xf32>
      %167 = arith.addf %164, %166 : vector<8x64xf32>
      %168 = vector.extract_strided_slice %30 {offsets = [8, 0], sizes = [8, 64], strides = [1, 1]} : vector<32x64xf32> to vector<8x64xf32>
      %169 = arith.addf %168, %167 : vector<8x64xf32>
      %c8 = arith.constant 8 : index
      %c0_77 = arith.constant 0 : index
      %170 = vector.load %arg20[%c8, %c0_77] : memref<32x64xf32, #tpu.memory_space<vmem>>, vector<8x64xf32>
      tpu.vector_store %arg20[%c8, %c0_77], %169 {strides = array<i32>} : memref<32x64xf32, #tpu.memory_space<vmem>>, vector<8x64xf32>,
      %c0_78 = arith.constant 0 : index
      %c0_79 = arith.constant 0 : index
      %171 = vector.load %arg13[%c0_78, %c0_79] : memref<1x64xf32, #tpu.memory_space<vmem>>, vector<1x64xf32>
      %c0_80 = arith.constant 0 : index
      %c0_81 = arith.constant 0 : index
      %172 = vector.load %arg14[%c0_80, %c0_81] : memref<1x64xf32, #tpu.memory_space<vmem>>, vector<1x64xf32>
      %cst_82 = arith.constant dense<0.000000e+00> : vector<8xf32>
      %173 = vector.multi_reduction <add>, %169, %cst_82 [1] : vector<8x64xf32> to vector<8xf32>
      %174 = vector.shape_cast %173 : vector<8xf32> to vector<8x1xf32>
      %cst_83 = arith.constant 6.400000e+01 : f32
      %175 = vector.broadcast %cst_83 : f32 to vector<8x1xf32>
      %176 = arith.divf %174, %175 : vector<8x1xf32>
      %177 = vector.broadcast %176 : vector<8x1xf32> to vector<8x64xf32>
      %178 = arith.subf %169, %177 : vector<8x64xf32>
      %179 = arith.mulf %178, %178 : vector<8x64xf32>
      %cst_84 = arith.constant dense<0.000000e+00> : vector<8xf32>
      %180 = vector.multi_reduction <add>, %179, %cst_84 [1] : vector<8x64xf32> to vector<8xf32>
      %181 = vector.shape_cast %180 : vector<8xf32> to vector<8x1xf32>
      %cst_85 = arith.constant 6.400000e+01 : f32
      %182 = vector.broadcast %cst_85 : f32 to vector<8x1xf32>
      %183 = arith.divf %181, %182 : vector<8x1xf32>
      %184 = vector.broadcast %176 : vector<8x1xf32> to vector<8x64xf32>
      %185 = arith.subf %169, %184 : vector<8x64xf32>
      %cst_86 = arith.constant 9.99999974E-6 : f32
      %186 = vector.broadcast %cst_86 : f32 to vector<8x1xf32>
      %187 = arith.addf %183, %186 : vector<8x1xf32>
      %188 = math.rsqrt %187 : vector<8x1xf32>
      %189 = vector.broadcast %188 : vector<8x1xf32> to vector<8x64xf32>
      %190 = arith.mulf %185, %189 : vector<8x64xf32>
      %191 = vector.broadcast %171 : vector<1x64xf32> to vector<8x64xf32>
      %192 = arith.mulf %190, %191 : vector<8x64xf32>
      %193 = vector.broadcast %172 : vector<1x64xf32> to vector<8x64xf32>
      %194 = arith.addf %192, %193 : vector<8x64xf32>
      %195 = arith.truncf %194 : vector<8x64xf32> to vector<8x64xbf16>
      %c8_87 = arith.constant 8 : index
      %c0_88 = arith.constant 0 : index
      %196 = vector.load %arg21[%c8_87, %c0_88] : memref<32x64xbf16, #tpu.memory_space<vmem>>, vector<8x64xbf16>
      tpu.vector_store %arg21[%c8_87, %c0_88], %195 {strides = array<i32>} : memref<32x64xbf16, #tpu.memory_space<vmem>>, vector<8x64xbf16>,
      %197 = vector.extract_strided_slice %62 {offsets = [16, 0], sizes = [8, 64], strides = [1, 1]} : vector<32x64xf32> to vector<8x64xf32>
      %198 = vector.shape_cast %197 : vector<8x64xf32> to vector<8x4x16xf32>
      %199 = tpu.transpose %198, [1, 0, 2] : vector<8x4x16xf32> -> vector<4x8x16xf32>
      %200 = arith.truncf %199 : vector<4x8x16xf32> to vector<4x8x16xbf16>
      %201 = vector.extract_strided_slice %67 {offsets = [16, 0], sizes = [8, 64], strides = [1, 1]} : vector<32x64xf32> to vector<8x64xf32>
      %202 = vector.shape_cast %201 : vector<8x64xf32> to vector<8x4x16xf32>
      %203 = tpu.transpose %202, [1, 0, 2] : vector<8x4x16xf32> -> vector<4x8x16xf32>
      %204 = arith.truncf %203 : vector<4x8x16xf32> to vector<4x8x16xbf16>
      %205 = vector.extract_strided_slice %72 {offsets = [16, 0], sizes = [8, 64], strides = [1, 1]} : vector<32x64xf32> to vector<8x64xf32>
      %206 = vector.shape_cast %205 : vector<8x64xf32> to vector<8x4x16xf32>
      %207 = tpu.transpose %206, [1, 0, 2] : vector<8x4x16xf32> -> vector<4x8x16xf32>
      %208 = arith.truncf %207 : vector<4x8x16xf32> to vector<4x8x16xbf16>
      "tpu.trace_start"() <{level = 10 : i32, message = "hld,hmd->hlm"}> : () -> ()
      %cst_89 = arith.constant dense<0.000000e+00> : vector<4x8x8xf32>
      %209 = tpu.matmul %200, %204, %cst_89 {dimension_numbers = #tpu.dot_dimension_numbers<[2], [2], [1], [1], [0, 0, 0, 1, 1, 1], [0], [0]>} : vector<4x8x16xbf16>, vector<4x8x16xbf16>, vector<4x8x8xf32> -> vector<4x8x8xf32>
      "tpu.trace_stop"() : () -> ()
      %cst_90 = arith.constant dense<0xFF800000> : vector<4x8xf32>
      %210 = vector.multi_reduction <maximumf>, %209, %cst_90 [2] : vector<4x8x8xf32> to vector<4x8xf32>
      %211 = vector.shape_cast %210 : vector<4x8xf32> to vector<4x8x1xf32>
      %212 = vector.broadcast %211 : vector<4x8x1xf32> to vector<4x8x8xf32>
      %213 = arith.subf %209, %212 : vector<4x8x8xf32>
      %214 = math.exp %213 : vector<4x8x8xf32>
      %cst_91 = arith.constant dense<0.000000e+00> : vector<4x8xf32>
      %215 = vector.multi_reduction <add>, %214, %cst_91 [2] : vector<4x8x8xf32> to vector<4x8xf32>
      %216 = vector.shape_cast %215 : vector<4x8xf32> to vector<4x8x1xf32>
      %217 = tpu.reciprocal %216 {approx = true} : vector<4x8x1xf32> -> vector<4x8x1xf32>
      %218 = vector.broadcast %217 : vector<4x8x1xf32> to vector<4x8x8xf32>
      %219 = arith.mulf %214, %218 : vector<4x8x8xf32>
      %220 = arith.truncf %219 : vector<4x8x8xf32> to vector<4x8x8xbf16>
      "tpu.trace_start"() <{level = 10 : i32, message = "hlm,hmd->hld"}> : () -> ()
      %cst_92 = arith.constant dense<0.000000e+00> : vector<4x8x16xf32>
      %221 = tpu.matmul %220, %208, %cst_92 {dimension_numbers = #tpu.dot_dimension_numbers<[2], [1], [1], [2], [0, 0, 0, 1, 1, 2], [0], [0]>} : vector<4x8x8xbf16>, vector<4x8x16xbf16>, vector<4x8x16xf32> -> vector<4x8x16xf32>
      "tpu.trace_stop"() : () -> ()
      %222 = tpu.transpose %221, [1, 0, 2] : vector<4x8x16xf32> -> vector<8x4x16xf32>
      %223 = vector.shape_cast %222 : vector<8x4x16xf32> to vector<8x64xf32>
      %224 = arith.truncf %223 : vector<8x64xf32> to vector<8x64xbf16>
      %c0_93 = arith.constant 0 : index
      %c0_94 = arith.constant 0 : index
      %225 = vector.load %arg11[%c0_93, %c0_94] : memref<64x64xbf16, #tpu.memory_space<vmem>>, vector<64x64xbf16>
      %cst_95 = arith.constant dense<0.000000e+00> : vector<8x64xf32>
      %226 = tpu.matmul %224, %225, %cst_95 {dimension_numbers = #tpu.dot_dimension_numbers<[1], [0], [0], [1], [0, 0, 1, 1], [], []>} : vector<8x64xbf16>, vector<64x64xbf16>, vector<8x64xf32> -> vector<8x64xf32>
      %c0_96 = arith.constant 0 : index
      %c0_97 = arith.constant 0 : index
      %227 = vector.load %arg12[%c0_96, %c0_97] : memref<1x64xf32, #tpu.memory_space<vmem>>, vector<1x64xf32>
      %228 = vector.broadcast %227 : vector<1x64xf32> to vector<8x64xf32>
      %229 = arith.addf %226, %228 : vector<8x64xf32>
      %230 = vector.extract_strided_slice %30 {offsets = [16, 0], sizes = [8, 64], strides = [1, 1]} : vector<32x64xf32> to vector<8x64xf32>
      %231 = arith.addf %230, %229 : vector<8x64xf32>
      %c16 = arith.constant 16 : index
      %c0_98 = arith.constant 0 : index
      %232 = vector.load %arg20[%c16, %c0_98] : memref<32x64xf32, #tpu.memory_space<vmem>>, vector<8x64xf32>
      tpu.vector_store %arg20[%c16, %c0_98], %231 {strides = array<i32>} : memref<32x64xf32, #tpu.memory_space<vmem>>, vector<8x64xf32>,
      %c0_99 = arith.constant 0 : index
      %c0_100 = arith.constant 0 : index
      %233 = vector.load %arg13[%c0_99, %c0_100] : memref<1x64xf32, #tpu.memory_space<vmem>>, vector<1x64xf32>
      %c0_101 = arith.constant 0 : index
      %c0_102 = arith.constant 0 : index
      %234 = vector.load %arg14[%c0_101, %c0_102] : memref<1x64xf32, #tpu.memory_space<vmem>>, vector<1x64xf32>
      %cst_103 = arith.constant dense<0.000000e+00> : vector<8xf32>
      %235 = vector.multi_reduction <add>, %231, %cst_103 [1] : vector<8x64xf32> to vector<8xf32>
      %236 = vector.shape_cast %235 : vector<8xf32> to vector<8x1xf32>
      %cst_104 = arith.constant 6.400000e+01 : f32
      %237 = vector.broadcast %cst_104 : f32 to vector<8x1xf32>
      %238 = arith.divf %236, %237 : vector<8x1xf32>
      %239 = vector.broadcast %238 : vector<8x1xf32> to vector<8x64xf32>
      %240 = arith.subf %231, %239 : vector<8x64xf32>
      %241 = arith.mulf %240, %240 : vector<8x64xf32>
      %cst_105 = arith.constant dense<0.000000e+00> : vector<8xf32>
      %242 = vector.multi_reduction <add>, %241, %cst_105 [1] : vector<8x64xf32> to vector<8xf32>
      %243 = vector.shape_cast %242 : vector<8xf32> to vector<8x1xf32>
      %cst_106 = arith.constant 6.400000e+01 : f32
      %244 = vector.broadcast %cst_106 : f32 to vector<8x1xf32>
      %245 = arith.divf %243, %244 : vector<8x1xf32>
      %246 = vector.broadcast %238 : vector<8x1xf32> to vector<8x64xf32>
      %247 = arith.subf %231, %246 : vector<8x64xf32>
      %cst_107 = arith.constant 9.99999974E-6 : f32
      %248 = vector.broadcast %cst_107 : f32 to vector<8x1xf32>
      %249 = arith.addf %245, %248 : vector<8x1xf32>
      %250 = math.rsqrt %249 : vector<8x1xf32>
      %251 = vector.broadcast %250 : vector<8x1xf32> to vector<8x64xf32>
      %252 = arith.mulf %247, %251 : vector<8x64xf32>
      %253 = vector.broadcast %233 : vector<1x64xf32> to vector<8x64xf32>
      %254 = arith.mulf %252, %253 : vector<8x64xf32>
      %255 = vector.broadcast %234 : vector<1x64xf32> to vector<8x64xf32>
      %256 = arith.addf %254, %255 : vector<8x64xf32>
      %257 = arith.truncf %256 : vector<8x64xf32> to vector<8x64xbf16>
      %c16_108 = arith.constant 16 : index
      %c0_109 = arith.constant 0 : index
      %258 = vector.load %arg21[%c16_108, %c0_109] : memref<32x64xbf16, #tpu.memory_space<vmem>>, vector<8x64xbf16>
      tpu.vector_store %arg21[%c16_108, %c0_109], %257 {strides = array<i32>} : memref<32x64xbf16, #tpu.memory_space<vmem>>, vector<8x64xbf16>,
      %259 = vector.extract_strided_slice %62 {offsets = [24, 0], sizes = [8, 64], strides = [1, 1]} : vector<32x64xf32> to vector<8x64xf32>
      %260 = vector.shape_cast %259 : vector<8x64xf32> to vector<8x4x16xf32>
      %261 = tpu.transpose %260, [1, 0, 2] : vector<8x4x16xf32> -> vector<4x8x16xf32>
      %262 = arith.truncf %261 : vector<4x8x16xf32> to vector<4x8x16xbf16>
      %263 = vector.extract_strided_slice %67 {offsets = [24, 0], sizes = [8, 64], strides = [1, 1]} : vector<32x64xf32> to vector<8x64xf32>
      %264 = vector.shape_cast %263 : vector<8x64xf32> to vector<8x4x16xf32>
      %265 = tpu.transpose %264, [1, 0, 2] : vector<8x4x16xf32> -> vector<4x8x16xf32>
      %266 = arith.truncf %265 : vector<4x8x16xf32> to vector<4x8x16xbf16>
      %267 = vector.extract_strided_slice %72 {offsets = [24, 0], sizes = [8, 64], strides = [1, 1]} : vector<32x64xf32> to vector<8x64xf32>
      %268 = vector.shape_cast %267 : vector<8x64xf32> to vector<8x4x16xf32>
      %269 = tpu.transpose %268, [1, 0, 2] : vector<8x4x16xf32> -> vector<4x8x16xf32>
      %270 = arith.truncf %269 : vector<4x8x16xf32> to vector<4x8x16xbf16>
      "tpu.trace_start"() <{level = 10 : i32, message = "hld,hmd->hlm"}> : () -> ()
      %cst_110 = arith.constant dense<0.000000e+00> : vector<4x8x8xf32>
      %271 = tpu.matmul %262, %266, %cst_110 {dimension_numbers = #tpu.dot_dimension_numbers<[2], [2], [1], [1], [0, 0, 0, 1, 1, 1], [0], [0]>} : vector<4x8x16xbf16>, vector<4x8x16xbf16>, vector<4x8x8xf32> -> vector<4x8x8xf32>
      "tpu.trace_stop"() : () -> ()
      %cst_111 = arith.constant dense<0xFF800000> : vector<4x8xf32>
      %272 = vector.multi_reduction <maximumf>, %271, %cst_111 [2] : vector<4x8x8xf32> to vector<4x8xf32>
      %273 = vector.shape_cast %272 : vector<4x8xf32> to vector<4x8x1xf32>
      %274 = vector.broadcast %273 : vector<4x8x1xf32> to vector<4x8x8xf32>
      %275 = arith.subf %271, %274 : vector<4x8x8xf32>
      %276 = math.exp %275 : vector<4x8x8xf32>
      %cst_112 = arith.constant dense<0.000000e+00> : vector<4x8xf32>
      %277 = vector.multi_reduction <add>, %276, %cst_112 [2] : vector<4x8x8xf32> to vector<4x8xf32>
      %278 = vector.shape_cast %277 : vector<4x8xf32> to vector<4x8x1xf32>
      %279 = tpu.reciprocal %278 {approx = true} : vector<4x8x1xf32> -> vector<4x8x1xf32>
      %280 = vector.broadcast %279 : vector<4x8x1xf32> to vector<4x8x8xf32>
      %281 = arith.mulf %276, %280 : vector<4x8x8xf32>
      %282 = arith.truncf %281 : vector<4x8x8xf32> to vector<4x8x8xbf16>
      "tpu.trace_start"() <{level = 10 : i32, message = "hlm,hmd->hld"}> : () -> ()
      %cst_113 = arith.constant dense<0.000000e+00> : vector<4x8x16xf32>
      %283 = tpu.matmul %282, %270, %cst_113 {dimension_numbers = #tpu.dot_dimension_numbers<[2], [1], [1], [2], [0, 0, 0, 1, 1, 2], [0], [0]>} : vector<4x8x8xbf16>, vector<4x8x16xbf16>, vector<4x8x16xf32> -> vector<4x8x16xf32>
      "tpu.trace_stop"() : () -> ()
      %284 = tpu.transpose %283, [1, 0, 2] : vector<4x8x16xf32> -> vector<8x4x16xf32>
      %285 = vector.shape_cast %284 : vector<8x4x16xf32> to vector<8x64xf32>
      %286 = arith.truncf %285 : vector<8x64xf32> to vector<8x64xbf16>
      %c0_114 = arith.constant 0 : index
      %c0_115 = arith.constant 0 : index
      %287 = vector.load %arg11[%c0_114, %c0_115] : memref<64x64xbf16, #tpu.memory_space<vmem>>, vector<64x64xbf16>
      %cst_116 = arith.constant dense<0.000000e+00> : vector<8x64xf32>
      %288 = tpu.matmul %286, %287, %cst_116 {dimension_numbers = #tpu.dot_dimension_numbers<[1], [0], [0], [1], [0, 0, 1, 1], [], []>} : vector<8x64xbf16>, vector<64x64xbf16>, vector<8x64xf32> -> vector<8x64xf32>
      %c0_117 = arith.constant 0 : index
      %c0_118 = arith.constant 0 : index
      %289 = vector.load %arg12[%c0_117, %c0_118] : memref<1x64xf32, #tpu.memory_space<vmem>>, vector<1x64xf32>
      %290 = vector.broadcast %289 : vector<1x64xf32> to vector<8x64xf32>
      %291 = arith.addf %288, %290 : vector<8x64xf32>
      %292 = vector.extract_strided_slice %30 {offsets = [24, 0], sizes = [8, 64], strides = [1, 1]} : vector<32x64xf32> to vector<8x64xf32>
      %293 = arith.addf %292, %291 : vector<8x64xf32>
      %c24 = arith.constant 24 : index
      %c0_119 = arith.constant 0 : index
      %294 = vector.load %arg20[%c24, %c0_119] : memref<32x64xf32, #tpu.memory_space<vmem>>, vector<8x64xf32>
      tpu.vector_store %arg20[%c24, %c0_119], %293 {strides = array<i32>} : memref<32x64xf32, #tpu.memory_space<vmem>>, vector<8x64xf32>,
      %c0_120 = arith.constant 0 : index
      %c0_121 = arith.constant 0 : index
      %295 = vector.load %arg13[%c0_120, %c0_121] : memref<1x64xf32, #tpu.memory_space<vmem>>, vector<1x64xf32>
      %c0_122 = arith.constant 0 : index
      %c0_123 = arith.constant 0 : index
      %296 = vector.load %arg14[%c0_122, %c0_123] : memref<1x64xf32, #tpu.memory_space<vmem>>, vector<1x64xf32>
      %cst_124 = arith.constant dense<0.000000e+00> : vector<8xf32>
      %297 = vector.multi_reduction <add>, %293, %cst_124 [1] : vector<8x64xf32> to vector<8xf32>
      %298 = vector.shape_cast %297 : vector<8xf32> to vector<8x1xf32>
      %cst_125 = arith.constant 6.400000e+01 : f32
      %299 = vector.broadcast %cst_125 : f32 to vector<8x1xf32>
      %300 = arith.divf %298, %299 : vector<8x1xf32>
      %301 = vector.broadcast %300 : vector<8x1xf32> to vector<8x64xf32>
      %302 = arith.subf %293, %301 : vector<8x64xf32>
      %303 = arith.mulf %302, %302 : vector<8x64xf32>
      %cst_126 = arith.constant dense<0.000000e+00> : vector<8xf32>
      %304 = vector.multi_reduction <add>, %303, %cst_126 [1] : vector<8x64xf32> to vector<8xf32>
      %305 = vector.shape_cast %304 : vector<8xf32> to vector<8x1xf32>
      %cst_127 = arith.constant 6.400000e+01 : f32
      %306 = vector.broadcast %cst_127 : f32 to vector<8x1xf32>
      %307 = arith.divf %305, %306 : vector<8x1xf32>
      %308 = vector.broadcast %300 : vector<8x1xf32> to vector<8x64xf32>
      %309 = arith.subf %293, %308 : vector<8x64xf32>
      %cst_128 = arith.constant 9.99999974E-6 : f32
      %310 = vector.broadcast %cst_128 : f32 to vector<8x1xf32>
      %311 = arith.addf %307, %310 : vector<8x1xf32>
      %312 = math.rsqrt %311 : vector<8x1xf32>
      %313 = vector.broadcast %312 : vector<8x1xf32> to vector<8x64xf32>
      %314 = arith.mulf %309, %313 : vector<8x64xf32>
      %315 = vector.broadcast %295 : vector<1x64xf32> to vector<8x64xf32>
      %316 = arith.mulf %314, %315 : vector<8x64xf32>
      %317 = vector.broadcast %296 : vector<1x64xf32> to vector<8x64xf32>
      %318 = arith.addf %316, %317 : vector<8x64xf32>
      %319 = arith.truncf %318 : vector<8x64xf32> to vector<8x64xbf16>
      %c24_129 = arith.constant 24 : index
      %c0_130 = arith.constant 0 : index
      %320 = vector.load %arg21[%c24_129, %c0_130] : memref<32x64xbf16, #tpu.memory_space<vmem>>, vector<8x64xbf16>
      tpu.vector_store %arg21[%c24_129, %c0_130], %319 {strides = array<i32>} : memref<32x64xbf16, #tpu.memory_space<vmem>>, vector<8x64xbf16>,
    } else {
    }
    %c0 = arith.constant 0 : index
    %c0_1 = arith.constant 0 : index
    %3 = vector.load %arg21[%c0, %c0_1] : memref<32x64xbf16, #tpu.memory_space<vmem>>, vector<32x64xbf16>
    %c0_2 = arith.constant 0 : index
    %c0_3 = arith.constant 0 : index
    %4 = vector.load %arg15[%c0_2, %c0_3] : memref<64x256xbf16, #tpu.memory_space<vmem>>, vector<64x256xbf16>
    %cst = arith.constant dense<0.000000e+00> : vector<32x256xf32>
    %5 = tpu.matmul %3, %4, %cst {dimension_numbers = #tpu.dot_dimension_numbers<[1], [0], [0], [1], [0, 0, 1, 1], [], []>} : vector<32x64xbf16>, vector<64x256xbf16>, vector<32x256xf32> -> vector<32x256xf32>
    %c0_4 = arith.constant 0 : index
    %c0_5 = arith.constant 0 : index
    %6 = vector.load %arg16[%c0_4, %c0_5] : memref<1x256xf32, #tpu.memory_space<vmem>>, vector<1x256xf32>
    %7 = vector.broadcast %6 : vector<1x256xf32> to vector<32x256xf32>
    %8 = arith.addf %5, %7 : vector<32x256xf32>
    %cst_6 = arith.constant 1.702000e+00 : f32
    %9 = vector.broadcast %cst_6 : f32 to vector<32x256xf32>
    %10 = arith.mulf %9, %8 : vector<32x256xf32>
    %11 = arith.negf %10 : vector<32x256xf32>
    %12 = math.exp %11 : vector<32x256xf32>
    %cst_7 = arith.constant 1.000000e+00 : f32
    %13 = vector.broadcast %cst_7 : f32 to vector<32x256xf32>
    %14 = arith.addf %13, %12 : vector<32x256xf32>
    %15 = arith.divf %13, %14 : vector<32x256xf32>
    %16 = arith.mulf %8, %15 : vector<32x256xf32>
    %17 = arith.truncf %16 : vector<32x256xf32> to vector<32x256xbf16>
    %c0_8 = arith.constant 0 : index
    %c0_9 = arith.constant 0 : index
    %18 = vector.load %arg17[%c0_8, %c0_9] : memref<256x64xbf16, #tpu.memory_space<vmem>>, vector<256x64xbf16>
    %cst_10 = arith.constant dense<0.000000e+00> : vector<32x64xf32>
    %19 = tpu.matmul %17, %18, %cst_10 {dimension_numbers = #tpu.dot_dimension_numbers<[1], [0], [0], [1], [0, 0, 1, 1], [], []>} : vector<32x256xbf16>, vector<256x64xbf16>, vector<32x64xf32> -> vector<32x64xf32>
    %c0_11 = arith.constant 0 : index
    %c0_12 = arith.constant 0 : index
    %20 = vector.load %arg20[%c0_11, %c0_12] : memref<32x64xf32, #tpu.memory_space<vmem>>, vector<32x64xf32>
    %21 = arith.addf %20, %19 : vector<32x64xf32>
    %c0_13 = arith.constant 0 : index
    %c0_14 = arith.constant 0 : index
    %22 = vector.load %arg18[%c0_13, %c0_14] : memref<1x64xf32, #tpu.memory_space<vmem>>, vector<1x64xf32>
    %23 = vector.broadcast %22 : vector<1x64xf32> to vector<32x64xf32>
    %24 = arith.addf %21, %23 : vector<32x64xf32>
    %25 = vector.shape_cast %24 : vector<32x64xf32> to vector<4x8x64xf32>
    %26 = tpu.transpose %25, [1, 0, 2] : vector<4x8x64xf32> -> vector<8x4x64xf32>
    %c0_15 = arith.constant 0 : index
    %c0_16 = arith.constant 0 : index
    %c0_17 = arith.constant 0 : index
    %27 = vector.load %arg19[%c0_15, %c0_16, %c0_17] : memref<8x4x64xf32, #tpu.memory_space<vmem>>, vector<8x4x64xf32>
    tpu.vector_store %arg19[%c0_15, %c0_16, %c0_17], %26 {strides = array<i32>} : memref<8x4x64xf32, #tpu.memory_space<vmem>>, vector<8x4x64xf32>,
    return
  }
  func.func @transform_0(%arg0: i32, %arg1: i32) -> (i32, i32, i32) {
    %c0_i32 = arith.constant 0 : i32
    %c0_i32_0 = arith.constant 0 : i32
    %c0_i32_1 = arith.constant 0 : i32
    return %c0_i32, %arg0, %c0_i32_0 : i32, i32, i32
  }
  func.func @transform_1(%arg0: i32, %arg1: i32) -> (i32, i32) {
    %c0_i32 = arith.constant 0 : i32
    %c0_i32_0 = arith.constant 0 : i32
    %c0_i32_1 = arith.constant 0 : i32
    return %c0_i32, %c0_i32_0 : i32, i32
  }
  func.func @transform_2(%arg0: i32, %arg1: i32) -> (i32, i32) {
    %c0_i32 = arith.constant 0 : i32
    %c0_i32_0 = arith.constant 0 : i32
    %c0_i32_1 = arith.constant 0 : i32
    return %c0_i32, %c0_i32_0 : i32, i32
  }
  func.func @transform_3(%arg0: i32, %arg1: i32) -> (i32, i32) {
    %c0_i32 = arith.constant 0 : i32
    %c0_i32_0 = arith.constant 0 : i32
    %c0_i32_1 = arith.constant 0 : i32
    return %c0_i32, %c0_i32_0 : i32, i32
  }
  func.func @transform_4(%arg0: i32, %arg1: i32) -> (i32, i32) {
    %c0_i32 = arith.constant 0 : i32
    %c0_i32_0 = arith.constant 0 : i32
    %c0_i32_1 = arith.constant 0 : i32
    return %c0_i32, %c0_i32_0 : i32, i32
  }
  func.func @transform_5(%arg0: i32, %arg1: i32) -> (i32, i32) {
    %c0_i32 = arith.constant 0 : i32
    %c0_i32_0 = arith.constant 0 : i32
    %c0_i32_1 = arith.constant 0 : i32
    return %c0_i32, %c0_i32_0 : i32, i32
  }
  func.func @transform_6(%arg0: i32, %arg1: i32) -> (i32, i32) {
    %c0_i32 = arith.constant 0 : i32
    %c0_i32_0 = arith.constant 0 : i32
    %c0_i32_1 = arith.constant 0 : i32
    return %c0_i32, %c0_i32_0 : i32, i32
  }
  func.func @transform_7(%arg0: i32, %arg1: i32) -> (i32, i32) {
    %c0_i32 = arith.constant 0 : i32
    %c0_i32_0 = arith.constant 0 : i32
    %c0_i32_1 = arith.constant 0 : i32
    return %c0_i32, %c0_i32_0 : i32, i32
  }
  func.func @transform_8(%arg0: i32, %arg1: i32) -> (i32, i32) {
    %c0_i32 = arith.constant 0 : i32
    %c0_i32_0 = arith.constant 0 : i32
    %c0_i32_1 = arith.constant 0 : i32
    return %c0_i32, %c0_i32_0 : i32, i32
  }
  func.func @transform_9(%arg0: i32, %arg1: i32) -> (i32, i32) {
    %c0_i32 = arith.constant 0 : i32
    %c0_i32_0 = arith.constant 0 : i32
    %c0_i32_1 = arith.constant 0 : i32
    return %c0_i32, %c0_i32_0 : i32, i32
  }
  func.func @transform_10(%arg0: i32, %arg1: i32) -> (i32, i32) {
    %c0_i32 = arith.constant 0 : i32
    %c0_i32_0 = arith.constant 0 : i32
    %c0_i32_1 = arith.constant 0 : i32
    return %c0_i32, %c0_i32_0 : i32, i32
  }
  func.func @transform_11(%arg0: i32, %arg1: i32) -> (i32, i32) {
    %c0_i32 = arith.constant 0 : i32
    %c0_i32_0 = arith.constant 0 : i32
    %c0_i32_1 = arith.constant 0 : i32
    return %c0_i32, %c0_i32_0 : i32, i32
  }
  func.func @transform_12(%arg0: i32, %arg1: i32) -> (i32, i32) {
    %c0_i32 = arith.constant 0 : i32
    %c0_i32_0 = arith.constant 0 : i32
    %c0_i32_1 = arith.constant 0 : i32
    return %c0_i32, %c0_i32_0 : i32, i32
  }
  func.func @transform_13(%arg0: i32, %arg1: i32) -> (i32, i32) {
    %c0_i32 = arith.constant 0 : i32
    %c0_i32_0 = arith.constant 0 : i32
    %c0_i32_1 = arith.constant 0 : i32
    return %c0_i32, %c0_i32_0 : i32, i32
  }
  func.func @transform_14(%arg0: i32, %arg1: i32) -> (i32, i32) {
    %c0_i32 = arith.constant 0 : i32
    %c0_i32_0 = arith.constant 0 : i32
    %c0_i32_1 = arith.constant 0 : i32
    return %c0_i32, %c0_i32_0 : i32, i32
  }
  func.func @transform_15(%arg0: i32, %arg1: i32) -> (i32, i32) {
    %c0_i32 = arith.constant 0 : i32
    %c0_i32_0 = arith.constant 0 : i32
    %c0_i32_1 = arith.constant 0 : i32
    return %c0_i32, %c0_i32_0 : i32, i32
  }
  func.func @transform_16(%arg0: i32, %arg1: i32) -> (i32, i32) {
    %c0_i32 = arith.constant 0 : i32
    %c0_i32_0 = arith.constant 0 : i32
    %c0_i32_1 = arith.constant 0 : i32
    return %c0_i32, %c0_i32_0 : i32, i32
  }
  func.func @transform_17(%arg0: i32, %arg1: i32) -> (i32, i32, i32) {
    %c0_i32 = arith.constant 0 : i32
    %c0_i32_0 = arith.constant 0 : i32
    %c0_i32_1 = arith.constant 0 : i32
    return %c0_i32, %arg0, %c0_i32_0 : i32, i32, i32
  }
}

module attributes {stable_mosaic.version = 11 : i64} {
  func.func @_block_kernel(%arg0: i32, %arg1: i32, %arg2: memref<8x4x64xf32, #tpu.memory_space<vmem>>, %arg3: memref<1x64xf32, #tpu.memory_space<vmem>>, %arg4: memref<1x64xf32, #tpu.memory_space<vmem>>, %arg5: memref<64x64xbf16, #tpu.memory_space<vmem>>, %arg6: memref<64x64xbf16, #tpu.memory_space<vmem>>, %arg7: memref<64x64xbf16, #tpu.memory_space<vmem>>, %arg8: memref<1x64xf32, #tpu.memory_space<vmem>>, %arg9: memref<1x64xf32, #tpu.memory_space<vmem>>, %arg10: memref<1x64xf32, #tpu.memory_space<vmem>>, %arg11: memref<64x64xbf16, #tpu.memory_space<vmem>>, %arg12: memref<1x64xf32, #tpu.memory_space<vmem>>, %arg13: memref<1x64xf32, #tpu.memory_space<vmem>>, %arg14: memref<1x64xf32, #tpu.memory_space<vmem>>, %arg15: memref<64x256xbf16, #tpu.memory_space<vmem>>, %arg16: memref<1x256xf32, #tpu.memory_space<vmem>>, %arg17: memref<256x64xbf16, #tpu.memory_space<vmem>>, %arg18: memref<1x64xf32, #tpu.memory_space<vmem>>, %arg19: memref<8x4x64xf32, #tpu.memory_space<vmem>>, %arg20: memref<32x64xf32, #tpu.memory_space<vmem>>, %arg21: memref<32x64xbf16, #tpu.memory_space<vmem>>) attributes {dimension_semantics = [#tpu.dimension_semantics<parallel>, #tpu.dimension_semantics<arbitrary>], iteration_bounds = array<i64: 1, 1>, scalar_prefetch = 0 : i64, scratch_operands = 2 : i64, tpu.core_type = #tpu.core_type<tc>, window_params = [{transform_indices = @transform_0, window_bounds = array<i64: 8, 4, 64>}, {pipeline_mode = #tpu.pipeline_mode<synchronous>, transform_indices = @transform_1, window_bounds = array<i64: 1, 64>}, {pipeline_mode = #tpu.pipeline_mode<synchronous>, transform_indices = @transform_2, window_bounds = array<i64: 1, 64>}, {pipeline_mode = #tpu.pipeline_mode<synchronous>, transform_indices = @transform_3, window_bounds = array<i64: 64, 64>}, {pipeline_mode = #tpu.pipeline_mode<synchronous>, transform_indices = @transform_4, window_bounds = array<i64: 64, 64>}, {pipeline_mode = #tpu.pipeline_mode<synchronous>, transform_indices = @transform_5, window_bounds = array<i64: 64, 64>}, {pipeline_mode = #tpu.pipeline_mode<synchronous>, transform_indices = @transform_6, window_bounds = array<i64: 1, 64>}, {pipeline_mode = #tpu.pipeline_mode<synchronous>, transform_indices = @transform_7, window_bounds = array<i64: 1, 64>}, {pipeline_mode = #tpu.pipeline_mode<synchronous>, transform_indices = @transform_8, window_bounds = array<i64: 1, 64>}, {pipeline_mode = #tpu.pipeline_mode<synchronous>, transform_indices = @transform_9, window_bounds = array<i64: 64, 64>}, {pipeline_mode = #tpu.pipeline_mode<synchronous>, transform_indices = @transform_10, window_bounds = array<i64: 1, 64>}, {pipeline_mode = #tpu.pipeline_mode<synchronous>, transform_indices = @transform_11, window_bounds = array<i64: 1, 64>}, {pipeline_mode = #tpu.pipeline_mode<synchronous>, transform_indices = @transform_12, window_bounds = array<i64: 1, 64>}, {pipeline_mode = #tpu.pipeline_mode<synchronous>, transform_indices = @transform_13, window_bounds = array<i64: 64, 256>}, {pipeline_mode = #tpu.pipeline_mode<synchronous>, transform_indices = @transform_14, window_bounds = array<i64: 1, 256>}, {pipeline_mode = #tpu.pipeline_mode<synchronous>, transform_indices = @transform_15, window_bounds = array<i64: 256, 64>}, {pipeline_mode = #tpu.pipeline_mode<synchronous>, transform_indices = @transform_16, window_bounds = array<i64: 1, 64>}, {transform_indices = @transform_17, window_bounds = array<i64: 8, 4, 64>}]} {
    %c0_i32 = arith.constant 0 : i32
    %0 = arith.cmpi eq, %arg1, %c0_i32 : i32
    %1 = arith.extui %0 : i1 to i32
    %c0_i32_0 = arith.constant 0 : i32
    %2 = arith.cmpi ne, %1, %c0_i32_0 : i32
    scf.if %2 {
      %c0_18 = arith.constant 0 : index
      %c0_19 = arith.constant 0 : index
      %c0_20 = arith.constant 0 : index
      %28 = vector.load %arg2[%c0_18, %c0_19, %c0_20] : memref<8x4x64xf32, #tpu.memory_space<vmem>>, vector<8x4x64xf32>
      %29 = tpu.transpose %28, [1, 0, 2] : vector<8x4x64xf32> -> vector<4x8x64xf32>
      %30 = vector.shape_cast %29 : vector<4x8x64xf32> to vector<32x64xf32>
      %c0_21 = arith.constant 0 : index
      %c0_22 = arith.constant 0 : index
      %31 = vector.load %arg3[%c0_21, %c0_22] : memref<1x64xf32, #tpu.memory_space<vmem>>, vector<1x64xf32>
      %c0_23 = arith.constant 0 : index
      %c0_24 = arith.constant 0 : index
      %32 = vector.load %arg4[%c0_23, %c0_24] : memref<1x64xf32, #tpu.memory_space<vmem>>, vector<1x64xf32>
      %cst_25 = arith.constant dense<0.000000e+00> : vector<32xf32>
      %33 = vector.multi_reduction <add>, %30, %cst_25 [1] : vector<32x64xf32> to vector<32xf32>
      %34 = vector.shape_cast %33 : vector<32xf32> to vector<32x1xf32>
      %cst_26 = arith.constant 6.400000e+01 : f32
      %35 = vector.broadcast %cst_26 : f32 to vector<32x1xf32>
      %36 = arith.divf %34, %35 : vector<32x1xf32>
      %37 = vector.broadcast %36 : vector<32x1xf32> to vector<32x64xf32>
      %38 = arith.subf %30, %37 : vector<32x64xf32>
      %39 = arith.mulf %38, %38 : vector<32x64xf32>
      %cst_27 = arith.constant dense<0.000000e+00> : vector<32xf32>
      %40 = vector.multi_reduction <add>, %39, %cst_27 [1] : vector<32x64xf32> to vector<32xf32>
      %41 = vector.shape_cast %40 : vector<32xf32> to vector<32x1xf32>
      %cst_28 = arith.constant 6.400000e+01 : f32
      %42 = vector.broadcast %cst_28 : f32 to vector<32x1xf32>
      %43 = arith.divf %41, %42 : vector<32x1xf32>
      %44 = vector.broadcast %36 : vector<32x1xf32> to vector<32x64xf32>
      %45 = arith.subf %30, %44 : vector<32x64xf32>
      %cst_29 = arith.constant 9.99999974E-6 : f32
      %46 = vector.broadcast %cst_29 : f32 to vector<32x1xf32>
      %47 = arith.addf %43, %46 : vector<32x1xf32>
      %48 = math.rsqrt %47 : vector<32x1xf32>
      %49 = vector.broadcast %48 : vector<32x1xf32> to vector<32x64xf32>
      %50 = arith.mulf %45, %49 : vector<32x64xf32>
      %51 = vector.broadcast %31 : vector<1x64xf32> to vector<32x64xf32>
      %52 = arith.mulf %50, %51 : vector<32x64xf32>
      %53 = vector.broadcast %32 : vector<1x64xf32> to vector<32x64xf32>
      %54 = arith.addf %52, %53 : vector<32x64xf32>
      %55 = arith.truncf %54 : vector<32x64xf32> to vector<32x64xbf16>
      %c0_30 = arith.constant 0 : index
      %c0_31 = arith.constant 0 : index
      %56 = vector.load %arg5[%c0_30, %c0_31] : memref<64x64xbf16, #tpu.memory_space<vmem>>, vector<64x64xbf16>
      %cst_32 = arith.constant dense<0.000000e+00> : vector<32x64xf32>
      %57 = tpu.matmul %55, %56, %cst_32 {dimension_numbers = #tpu.dot_dimension_numbers<[1], [0], [0], [1], [0, 0, 1, 1], [], []>} : vector<32x64xbf16>, vector<64x64xbf16>, vector<32x64xf32> -> vector<32x64xf32>
      %c0_33 = arith.constant 0 : index
      %c0_34 = arith.constant 0 : index
      %58 = vector.load %arg8[%c0_33, %c0_34] : memref<1x64xf32, #tpu.memory_space<vmem>>, vector<1x64xf32>
      %59 = vector.broadcast %58 : vector<1x64xf32> to vector<32x64xf32>
      %60 = arith.addf %57, %59 : vector<32x64xf32>
      %cst_35 = arith.constant 2.500000e-01 : f32
      %61 = vector.broadcast %cst_35 : f32 to vector<32x64xf32>
      %62 = arith.mulf %60, %61 : vector<32x64xf32>
      %c0_36 = arith.constant 0 : index
      %c0_37 = arith.constant 0 : index
      %63 = vector.load %arg6[%c0_36, %c0_37] : memref<64x64xbf16, #tpu.memory_space<vmem>>, vector<64x64xbf16>
      %cst_38 = arith.constant dense<0.000000e+00> : vector<32x64xf32>
      %64 = tpu.matmul %55, %63, %cst_38 {dimension_numbers = #tpu.dot_dimension_numbers<[1], [0], [0], [1], [0, 0, 1, 1], [], []>} : vector<32x64xbf16>, vector<64x64xbf16>, vector<32x64xf32> -> vector<32x64xf32>
      %c0_39 = arith.constant 0 : index
      %c0_40 = arith.constant 0 : index
      %65 = vector.load %arg9[%c0_39, %c0_40] : memref<1x64xf32, #tpu.memory_space<vmem>>, vector<1x64xf32>
      %66 = vector.broadcast %65 : vector<1x64xf32> to vector<32x64xf32>
      %67 = arith.addf %64, %66 : vector<32x64xf32>
      %c0_41 = arith.constant 0 : index
      %c0_42 = arith.constant 0 : index
      %68 = vector.load %arg7[%c0_41, %c0_42] : memref<64x64xbf16, #tpu.memory_space<vmem>>, vector<64x64xbf16>
      %cst_43 = arith.constant dense<0.000000e+00> : vector<32x64xf32>
      %69 = tpu.matmul %55, %68, %cst_43 {dimension_numbers = #tpu.dot_dimension_numbers<[1], [0], [0], [1], [0, 0, 1, 1], [], []>} : vector<32x64xbf16>, vector<64x64xbf16>, vector<32x64xf32> -> vector<32x64xf32>
      %c0_44 = arith.constant 0 : index
      %c0_45 = arith.constant 0 : index
      %70 = vector.load %arg10[%c0_44, %c0_45] : memref<1x64xf32, #tpu.memory_space<vmem>>, vector<1x64xf32>
      %71 = vector.broadcast %70 : vector<1x64xf32> to vector<32x64xf32>
      %72 = arith.addf %69, %71 : vector<32x64xf32>
      %73 = vector.extract_strided_slice %62 {offsets = [0, 0], sizes = [8, 64], strides = [1, 1]} : vector<32x64xf32> to vector<8x64xf32>
      %74 = vector.shape_cast %73 : vector<8x64xf32> to vector<8x4x16xf32>
      %75 = tpu.transpose %74, [1, 0, 2] : vector<8x4x16xf32> -> vector<4x8x16xf32>
      %76 = arith.truncf %75 : vector<4x8x16xf32> to vector<4x8x16xbf16>
      %77 = vector.extract_strided_slice %67 {offsets = [0, 0], sizes = [8, 64], strides = [1, 1]} : vector<32x64xf32> to vector<8x64xf32>
      %78 = vector.shape_cast %77 : vector<8x64xf32> to vector<8x4x16xf32>
      %79 = tpu.transpose %78, [1, 0, 2] : vector<8x4x16xf32> -> vector<4x8x16xf32>
      %80 = arith.truncf %79 : vector<4x8x16xf32> to vector<4x8x16xbf16>
      %81 = vector.extract_strided_slice %72 {offsets = [0, 0], sizes = [8, 64], strides = [1, 1]} : vector<32x64xf32> to vector<8x64xf32>
      %82 = vector.shape_cast %81 : vector<8x64xf32> to vector<8x4x16xf32>
      %83 = tpu.transpose %82, [1, 0, 2] : vector<8x4x16xf32> -> vector<4x8x16xf32>
      %84 = arith.truncf %83 : vector<4x8x16xf32> to vector<4x8x16xbf16>
      "tpu.trace_start"() <{level = 10 : i32, message = "hld,hmd->hlm"}> : () -> ()
      %cst_46 = arith.constant dense<0.000000e+00> : vector<4x8x8xf32>
      %85 = tpu.matmul %76, %80, %cst_46 {dimension_numbers = #tpu.dot_dimension_numbers<[2], [2], [1], [1], [0, 0, 0, 1, 1, 1], [0], [0]>} : vector<4x8x16xbf16>, vector<4x8x16xbf16>, vector<4x8x8xf32> -> vector<4x8x8xf32>
      "tpu.trace_stop"() : () -> ()
      %cst_47 = arith.constant dense<0xFF800000> : vector<4x8xf32>
      %86 = vector.multi_reduction <maximumf>, %85, %cst_47 [2] : vector<4x8x8xf32> to vector<4x8xf32>
      %87 = vector.shape_cast %86 : vector<4x8xf32> to vector<4x8x1xf32>
      %88 = vector.broadcast %87 : vector<4x8x1xf32> to vector<4x8x8xf32>
      %89 = arith.subf %85, %88 : vector<4x8x8xf32>
      %90 = math.exp %89 : vector<4x8x8xf32>
      %cst_48 = arith.constant dense<0.000000e+00> : vector<4x8xf32>
      %91 = vector.multi_reduction <add>, %90, %cst_48 [2] : vector<4x8x8xf32> to vector<4x8xf32>
      %92 = vector.shape_cast %91 : vector<4x8xf32> to vector<4x8x1xf32>
      %93 = tpu.reciprocal %92 {approx = true} : vector<4x8x1xf32> -> vector<4x8x1xf32>
      %94 = vector.broadcast %93 : vector<4x8x1xf32> to vector<4x8x8xf32>
      %95 = arith.mulf %90, %94 : vector<4x8x8xf32>
      %96 = arith.truncf %95 : vector<4x8x8xf32> to vector<4x8x8xbf16>
      "tpu.trace_start"() <{level = 10 : i32, message = "hlm,hmd->hld"}> : () -> ()
      %cst_49 = arith.constant dense<0.000000e+00> : vector<4x8x16xf32>
      %97 = tpu.matmul %96, %84, %cst_49 {dimension_numbers = #tpu.dot_dimension_numbers<[2], [1], [1], [2], [0, 0, 0, 1, 1, 2], [0], [0]>} : vector<4x8x8xbf16>, vector<4x8x16xbf16>, vector<4x8x16xf32> -> vector<4x8x16xf32>
      "tpu.trace_stop"() : () -> ()
      %98 = tpu.transpose %97, [1, 0, 2] : vector<4x8x16xf32> -> vector<8x4x16xf32>
      %99 = vector.shape_cast %98 : vector<8x4x16xf32> to vector<8x64xf32>
      %100 = arith.truncf %99 : vector<8x64xf32> to vector<8x64xbf16>
      %c0_50 = arith.constant 0 : index
      %c0_51 = arith.constant 0 : index
      %101 = vector.load %arg11[%c0_50, %c0_51] : memref<64x64xbf16, #tpu.memory_space<vmem>>, vector<64x64xbf16>
      %cst_52 = arith.constant dense<0.000000e+00> : vector<8x64xf32>
      %102 = tpu.matmul %100, %101, %cst_52 {dimension_numbers = #tpu.dot_dimension_numbers<[1], [0], [0], [1], [0, 0, 1, 1], [], []>} : vector<8x64xbf16>, vector<64x64xbf16>, vector<8x64xf32> -> vector<8x64xf32>
      %c0_53 = arith.constant 0 : index
      %c0_54 = arith.constant 0 : index
      %103 = vector.load %arg12[%c0_53, %c0_54] : memref<1x64xf32, #tpu.memory_space<vmem>>, vector<1x64xf32>
      %104 = vector.broadcast %103 : vector<1x64xf32> to vector<8x64xf32>
      %105 = arith.addf %102, %104 : vector<8x64xf32>
      %106 = vector.extract_strided_slice %30 {offsets = [0, 0], sizes = [8, 64], strides = [1, 1]} : vector<32x64xf32> to vector<8x64xf32>
      %107 = arith.addf %106, %105 : vector<8x64xf32>
      %c0_55 = arith.constant 0 : index
      %c0_56 = arith.constant 0 : index
      %108 = vector.load %arg20[%c0_55, %c0_56] : memref<32x64xf32, #tpu.memory_space<vmem>>, vector<8x64xf32>
      tpu.vector_store %arg20[%c0_55, %c0_56], %107 {strides = array<i32>} : memref<32x64xf32, #tpu.memory_space<vmem>>, vector<8x64xf32>,
      %c0_57 = arith.constant 0 : index
      %c0_58 = arith.constant 0 : index
      %109 = vector.load %arg13[%c0_57, %c0_58] : memref<1x64xf32, #tpu.memory_space<vmem>>, vector<1x64xf32>
      %c0_59 = arith.constant 0 : index
      %c0_60 = arith.constant 0 : index
      %110 = vector.load %arg14[%c0_59, %c0_60] : memref<1x64xf32, #tpu.memory_space<vmem>>, vector<1x64xf32>
      %cst_61 = arith.constant dense<0.000000e+00> : vector<8xf32>
      %111 = vector.multi_reduction <add>, %107, %cst_61 [1] : vector<8x64xf32> to vector<8xf32>
      %112 = vector.shape_cast %111 : vector<8xf32> to vector<8x1xf32>
      %cst_62 = arith.constant 6.400000e+01 : f32
      %113 = vector.broadcast %cst_62 : f32 to vector<8x1xf32>
      %114 = arith.divf %112, %113 : vector<8x1xf32>
      %115 = vector.broadcast %114 : vector<8x1xf32> to vector<8x64xf32>
      %116 = arith.subf %107, %115 : vector<8x64xf32>
      %117 = arith.mulf %116, %116 : vector<8x64xf32>
      %cst_63 = arith.constant dense<0.000000e+00> : vector<8xf32>
      %118 = vector.multi_reduction <add>, %117, %cst_63 [1] : vector<8x64xf32> to vector<8xf32>
      %119 = vector.shape_cast %118 : vector<8xf32> to vector<8x1xf32>
      %cst_64 = arith.constant 6.400000e+01 : f32
      %120 = vector.broadcast %cst_64 : f32 to vector<8x1xf32>
      %121 = arith.divf %119, %120 : vector<8x1xf32>
      %122 = vector.broadcast %114 : vector<8x1xf32> to vector<8x64xf32>
      %123 = arith.subf %107, %122 : vector<8x64xf32>
      %cst_65 = arith.constant 9.99999974E-6 : f32
      %124 = vector.broadcast %cst_65 : f32 to vector<8x1xf32>
      %125 = arith.addf %121, %124 : vector<8x1xf32>
      %126 = math.rsqrt %125 : vector<8x1xf32>
      %127 = vector.broadcast %126 : vector<8x1xf32> to vector<8x64xf32>
      %128 = arith.mulf %123, %127 : vector<8x64xf32>
      %129 = vector.broadcast %109 : vector<1x64xf32> to vector<8x64xf32>
      %130 = arith.mulf %128, %129 : vector<8x64xf32>
      %131 = vector.broadcast %110 : vector<1x64xf32> to vector<8x64xf32>
      %132 = arith.addf %130, %131 : vector<8x64xf32>
      %133 = arith.truncf %132 : vector<8x64xf32> to vector<8x64xbf16>
      %c0_66 = arith.constant 0 : index
      %c0_67 = arith.constant 0 : index
      %134 = vector.load %arg21[%c0_66, %c0_67] : memref<32x64xbf16, #tpu.memory_space<vmem>>, vector<8x64xbf16>
      tpu.vector_store %arg21[%c0_66, %c0_67], %133 {strides = array<i32>} : memref<32x64xbf16, #tpu.memory_space<vmem>>, vector<8x64xbf16>,
      %135 = vector.extract_strided_slice %62 {offsets = [8, 0], sizes = [8, 64], strides = [1, 1]} : vector<32x64xf32> to vector<8x64xf32>
      %136 = vector.shape_cast %135 : vector<8x64xf32> to vector<8x4x16xf32>
      %137 = tpu.transpose %136, [1, 0, 2] : vector<8x4x16xf32> -> vector<4x8x16xf32>
      %138 = arith.truncf %137 : vector<4x8x16xf32> to vector<4x8x16xbf16>
      %139 = vector.extract_strided_slice %67 {offsets = [8, 0], sizes = [8, 64], strides = [1, 1]} : vector<32x64xf32> to vector<8x64xf32>
      %140 = vector.shape_cast %139 : vector<8x64xf32> to vector<8x4x16xf32>
      %141 = tpu.transpose %140, [1, 0, 2] : vector<8x4x16xf32> -> vector<4x8x16xf32>
      %142 = arith.truncf %141 : vector<4x8x16xf32> to vector<4x8x16xbf16>
      %143 = vector.extract_strided_slice %72 {offsets = [8, 0], sizes = [8, 64], strides = [1, 1]} : vector<32x64xf32> to vector<8x64xf32>
      %144 = vector.shape_cast %143 : vector<8x64xf32> to vector<8x4x16xf32>
      %145 = tpu.transpose %144, [1, 0, 2] : vector<8x4x16xf32> -> vector<4x8x16xf32>
      %146 = arith.truncf %145 : vector<4x8x16xf32> to vector<4x8x16xbf16>
      "tpu.trace_start"() <{level = 10 : i32, message = "hld,hmd->hlm"}> : () -> ()
      %cst_68 = arith.constant dense<0.000000e+00> : vector<4x8x8xf32>
      %147 = tpu.matmul %138, %142, %cst_68 {dimension_numbers = #tpu.dot_dimension_numbers<[2], [2], [1], [1], [0, 0, 0, 1, 1, 1], [0], [0]>} : vector<4x8x16xbf16>, vector<4x8x16xbf16>, vector<4x8x8xf32> -> vector<4x8x8xf32>
      "tpu.trace_stop"() : () -> ()
      %cst_69 = arith.constant dense<0xFF800000> : vector<4x8xf32>
      %148 = vector.multi_reduction <maximumf>, %147, %cst_69 [2] : vector<4x8x8xf32> to vector<4x8xf32>
      %149 = vector.shape_cast %148 : vector<4x8xf32> to vector<4x8x1xf32>
      %150 = vector.broadcast %149 : vector<4x8x1xf32> to vector<4x8x8xf32>
      %151 = arith.subf %147, %150 : vector<4x8x8xf32>
      %152 = math.exp %151 : vector<4x8x8xf32>
      %cst_70 = arith.constant dense<0.000000e+00> : vector<4x8xf32>
      %153 = vector.multi_reduction <add>, %152, %cst_70 [2] : vector<4x8x8xf32> to vector<4x8xf32>
      %154 = vector.shape_cast %153 : vector<4x8xf32> to vector<4x8x1xf32>
      %155 = tpu.reciprocal %154 {approx = true} : vector<4x8x1xf32> -> vector<4x8x1xf32>
      %156 = vector.broadcast %155 : vector<4x8x1xf32> to vector<4x8x8xf32>
      %157 = arith.mulf %152, %156 : vector<4x8x8xf32>
      %158 = arith.truncf %157 : vector<4x8x8xf32> to vector<4x8x8xbf16>
      "tpu.trace_start"() <{level = 10 : i32, message = "hlm,hmd->hld"}> : () -> ()
      %cst_71 = arith.constant dense<0.000000e+00> : vector<4x8x16xf32>
      %159 = tpu.matmul %158, %146, %cst_71 {dimension_numbers = #tpu.dot_dimension_numbers<[2], [1], [1], [2], [0, 0, 0, 1, 1, 2], [0], [0]>} : vector<4x8x8xbf16>, vector<4x8x16xbf16>, vector<4x8x16xf32> -> vector<4x8x16xf32>
      "tpu.trace_stop"() : () -> ()
      %160 = tpu.transpose %159, [1, 0, 2] : vector<4x8x16xf32> -> vector<8x4x16xf32>
      %161 = vector.shape_cast %160 : vector<8x4x16xf32> to vector<8x64xf32>
      %162 = arith.truncf %161 : vector<8x64xf32> to vector<8x64xbf16>
      %c0_72 = arith.constant 0 : index
      %c0_73 = arith.constant 0 : index
      %163 = vector.load %arg11[%c0_72, %c0_73] : memref<64x64xbf16, #tpu.memory_space<vmem>>, vector<64x64xbf16>
      %cst_74 = arith.constant dense<0.000000e+00> : vector<8x64xf32>
      %164 = tpu.matmul %162, %163, %cst_74 {dimension_numbers = #tpu.dot_dimension_numbers<[1], [0], [0], [1], [0, 0, 1, 1], [], []>} : vector<8x64xbf16>, vector<64x64xbf16>, vector<8x64xf32> -> vector<8x64xf32>
      %c0_75 = arith.constant 0 : index
      %c0_76 = arith.constant 0 : index
      %165 = vector.load %arg12[%c0_75, %c0_76] : memref<1x64xf32, #tpu.memory_space<vmem>>, vector<1x64xf32>
      %166 = vector.broadcast %165 : vector<1x64xf32> to vector<8x64xf32>
      %167 = arith.addf %164, %166 : vector<8x64xf32>
      %168 = vector.extract_strided_slice %30 {offsets = [8, 0], sizes = [8, 64], strides = [1, 1]} : vector<32x64xf32> to vector<8x64xf32>
      %169 = arith.addf %168, %167 : vector<8x64xf32>
      %c8 = arith.constant 8 : index
      %c0_77 = arith.constant 0 : index
      %170 = vector.load %arg20[%c8, %c0_77] : memref<32x64xf32, #tpu.memory_space<vmem>>, vector<8x64xf32>
      tpu.vector_store %arg20[%c8, %c0_77], %169 {strides = array<i32>} : memref<32x64xf32, #tpu.memory_space<vmem>>, vector<8x64xf32>,
      %c0_78 = arith.constant 0 : index
      %c0_79 = arith.constant 0 : index
      %171 = vector.load %arg13[%c0_78, %c0_79] : memref<1x64xf32, #tpu.memory_space<vmem>>, vector<1x64xf32>
      %c0_80 = arith.constant 0 : index
      %c0_81 = arith.constant 0 : index
      %172 = vector.load %arg14[%c0_80, %c0_81] : memref<1x64xf32, #tpu.memory_space<vmem>>, vector<1x64xf32>
      %cst_82 = arith.constant dense<0.000000e+00> : vector<8xf32>
      %173 = vector.multi_reduction <add>, %169, %cst_82 [1] : vector<8x64xf32> to vector<8xf32>
      %174 = vector.shape_cast %173 : vector<8xf32> to vector<8x1xf32>
      %cst_83 = arith.constant 6.400000e+01 : f32
      %175 = vector.broadcast %cst_83 : f32 to vector<8x1xf32>
      %176 = arith.divf %174, %175 : vector<8x1xf32>
      %177 = vector.broadcast %176 : vector<8x1xf32> to vector<8x64xf32>
      %178 = arith.subf %169, %177 : vector<8x64xf32>
      %179 = arith.mulf %178, %178 : vector<8x64xf32>
      %cst_84 = arith.constant dense<0.000000e+00> : vector<8xf32>
      %180 = vector.multi_reduction <add>, %179, %cst_84 [1] : vector<8x64xf32> to vector<8xf32>
      %181 = vector.shape_cast %180 : vector<8xf32> to vector<8x1xf32>
      %cst_85 = arith.constant 6.400000e+01 : f32
      %182 = vector.broadcast %cst_85 : f32 to vector<8x1xf32>
      %183 = arith.divf %181, %182 : vector<8x1xf32>
      %184 = vector.broadcast %176 : vector<8x1xf32> to vector<8x64xf32>
      %185 = arith.subf %169, %184 : vector<8x64xf32>
      %cst_86 = arith.constant 9.99999974E-6 : f32
      %186 = vector.broadcast %cst_86 : f32 to vector<8x1xf32>
      %187 = arith.addf %183, %186 : vector<8x1xf32>
      %188 = math.rsqrt %187 : vector<8x1xf32>
      %189 = vector.broadcast %188 : vector<8x1xf32> to vector<8x64xf32>
      %190 = arith.mulf %185, %189 : vector<8x64xf32>
      %191 = vector.broadcast %171 : vector<1x64xf32> to vector<8x64xf32>
      %192 = arith.mulf %190, %191 : vector<8x64xf32>
      %193 = vector.broadcast %172 : vector<1x64xf32> to vector<8x64xf32>
      %194 = arith.addf %192, %193 : vector<8x64xf32>
      %195 = arith.truncf %194 : vector<8x64xf32> to vector<8x64xbf16>
      %c8_87 = arith.constant 8 : index
      %c0_88 = arith.constant 0 : index
      %196 = vector.load %arg21[%c8_87, %c0_88] : memref<32x64xbf16, #tpu.memory_space<vmem>>, vector<8x64xbf16>
      tpu.vector_store %arg21[%c8_87, %c0_88], %195 {strides = array<i32>} : memref<32x64xbf16, #tpu.memory_space<vmem>>, vector<8x64xbf16>,
      %197 = vector.extract_strided_slice %62 {offsets = [16, 0], sizes = [8, 64], strides = [1, 1]} : vector<32x64xf32> to vector<8x64xf32>
      %198 = vector.shape_cast %197 : vector<8x64xf32> to vector<8x4x16xf32>
      %199 = tpu.transpose %198, [1, 0, 2] : vector<8x4x16xf32> -> vector<4x8x16xf32>
      %200 = arith.truncf %199 : vector<4x8x16xf32> to vector<4x8x16xbf16>
      %201 = vector.extract_strided_slice %67 {offsets = [16, 0], sizes = [8, 64], strides = [1, 1]} : vector<32x64xf32> to vector<8x64xf32>
      %202 = vector.shape_cast %201 : vector<8x64xf32> to vector<8x4x16xf32>
      %203 = tpu.transpose %202, [1, 0, 2] : vector<8x4x16xf32> -> vector<4x8x16xf32>
      %204 = arith.truncf %203 : vector<4x8x16xf32> to vector<4x8x16xbf16>
      %205 = vector.extract_strided_slice %72 {offsets = [16, 0], sizes = [8, 64], strides = [1, 1]} : vector<32x64xf32> to vector<8x64xf32>
      %206 = vector.shape_cast %205 : vector<8x64xf32> to vector<8x4x16xf32>
      %207 = tpu.transpose %206, [1, 0, 2] : vector<8x4x16xf32> -> vector<4x8x16xf32>
      %208 = arith.truncf %207 : vector<4x8x16xf32> to vector<4x8x16xbf16>
      "tpu.trace_start"() <{level = 10 : i32, message = "hld,hmd->hlm"}> : () -> ()
      %cst_89 = arith.constant dense<0.000000e+00> : vector<4x8x8xf32>
      %209 = tpu.matmul %200, %204, %cst_89 {dimension_numbers = #tpu.dot_dimension_numbers<[2], [2], [1], [1], [0, 0, 0, 1, 1, 1], [0], [0]>} : vector<4x8x16xbf16>, vector<4x8x16xbf16>, vector<4x8x8xf32> -> vector<4x8x8xf32>
      "tpu.trace_stop"() : () -> ()
      %cst_90 = arith.constant dense<0xFF800000> : vector<4x8xf32>
      %210 = vector.multi_reduction <maximumf>, %209, %cst_90 [2] : vector<4x8x8xf32> to vector<4x8xf32>
      %211 = vector.shape_cast %210 : vector<4x8xf32> to vector<4x8x1xf32>
      %212 = vector.broadcast %211 : vector<4x8x1xf32> to vector<4x8x8xf32>
      %213 = arith.subf %209, %212 : vector<4x8x8xf32>
      %214 = math.exp %213 : vector<4x8x8xf32>
      %cst_91 = arith.constant dense<0.000000e+00> : vector<4x8xf32>
      %215 = vector.multi_reduction <add>, %214, %cst_91 [2] : vector<4x8x8xf32> to vector<4x8xf32>
      %216 = vector.shape_cast %215 : vector<4x8xf32> to vector<4x8x1xf32>
      %217 = tpu.reciprocal %216 {approx = true} : vector<4x8x1xf32> -> vector<4x8x1xf32>
      %218 = vector.broadcast %217 : vector<4x8x1xf32> to vector<4x8x8xf32>
      %219 = arith.mulf %214, %218 : vector<4x8x8xf32>
      %220 = arith.truncf %219 : vector<4x8x8xf32> to vector<4x8x8xbf16>
      "tpu.trace_start"() <{level = 10 : i32, message = "hlm,hmd->hld"}> : () -> ()
      %cst_92 = arith.constant dense<0.000000e+00> : vector<4x8x16xf32>
      %221 = tpu.matmul %220, %208, %cst_92 {dimension_numbers = #tpu.dot_dimension_numbers<[2], [1], [1], [2], [0, 0, 0, 1, 1, 2], [0], [0]>} : vector<4x8x8xbf16>, vector<4x8x16xbf16>, vector<4x8x16xf32> -> vector<4x8x16xf32>
      "tpu.trace_stop"() : () -> ()
      %222 = tpu.transpose %221, [1, 0, 2] : vector<4x8x16xf32> -> vector<8x4x16xf32>
      %223 = vector.shape_cast %222 : vector<8x4x16xf32> to vector<8x64xf32>
      %224 = arith.truncf %223 : vector<8x64xf32> to vector<8x64xbf16>
      %c0_93 = arith.constant 0 : index
      %c0_94 = arith.constant 0 : index
      %225 = vector.load %arg11[%c0_93, %c0_94] : memref<64x64xbf16, #tpu.memory_space<vmem>>, vector<64x64xbf16>
      %cst_95 = arith.constant dense<0.000000e+00> : vector<8x64xf32>
      %226 = tpu.matmul %224, %225, %cst_95 {dimension_numbers = #tpu.dot_dimension_numbers<[1], [0], [0], [1], [0, 0, 1, 1], [], []>} : vector<8x64xbf16>, vector<64x64xbf16>, vector<8x64xf32> -> vector<8x64xf32>
      %c0_96 = arith.constant 0 : index
      %c0_97 = arith.constant 0 : index
      %227 = vector.load %arg12[%c0_96, %c0_97] : memref<1x64xf32, #tpu.memory_space<vmem>>, vector<1x64xf32>
      %228 = vector.broadcast %227 : vector<1x64xf32> to vector<8x64xf32>
      %229 = arith.addf %226, %228 : vector<8x64xf32>
      %230 = vector.extract_strided_slice %30 {offsets = [16, 0], sizes = [8, 64], strides = [1, 1]} : vector<32x64xf32> to vector<8x64xf32>
      %231 = arith.addf %230, %229 : vector<8x64xf32>
      %c16 = arith.constant 16 : index
      %c0_98 = arith.constant 0 : index
      %232 = vector.load %arg20[%c16, %c0_98] : memref<32x64xf32, #tpu.memory_space<vmem>>, vector<8x64xf32>
      tpu.vector_store %arg20[%c16, %c0_98], %231 {strides = array<i32>} : memref<32x64xf32, #tpu.memory_space<vmem>>, vector<8x64xf32>,
      %c0_99 = arith.constant 0 : index
      %c0_100 = arith.constant 0 : index
      %233 = vector.load %arg13[%c0_99, %c0_100] : memref<1x64xf32, #tpu.memory_space<vmem>>, vector<1x64xf32>
      %c0_101 = arith.constant 0 : index
      %c0_102 = arith.constant 0 : index
      %234 = vector.load %arg14[%c0_101, %c0_102] : memref<1x64xf32, #tpu.memory_space<vmem>>, vector<1x64xf32>
      %cst_103 = arith.constant dense<0.000000e+00> : vector<8xf32>
      %235 = vector.multi_reduction <add>, %231, %cst_103 [1] : vector<8x64xf32> to vector<8xf32>
      %236 = vector.shape_cast %235 : vector<8xf32> to vector<8x1xf32>
      %cst_104 = arith.constant 6.400000e+01 : f32
      %237 = vector.broadcast %cst_104 : f32 to vector<8x1xf32>
      %238 = arith.divf %236, %237 : vector<8x1xf32>
      %239 = vector.broadcast %238 : vector<8x1xf32> to vector<8x64xf32>
      %240 = arith.subf %231, %239 : vector<8x64xf32>
      %241 = arith.mulf %240, %240 : vector<8x64xf32>
      %cst_105 = arith.constant dense<0.000000e+00> : vector<8xf32>
      %242 = vector.multi_reduction <add>, %241, %cst_105 [1] : vector<8x64xf32> to vector<8xf32>
      %243 = vector.shape_cast %242 : vector<8xf32> to vector<8x1xf32>
      %cst_106 = arith.constant 6.400000e+01 : f32
      %244 = vector.broadcast %cst_106 : f32 to vector<8x1xf32>
      %245 = arith.divf %243, %244 : vector<8x1xf32>
      %246 = vector.broadcast %238 : vector<8x1xf32> to vector<8x64xf32>
      %247 = arith.subf %231, %246 : vector<8x64xf32>
      %cst_107 = arith.constant 9.99999974E-6 : f32
      %248 = vector.broadcast %cst_107 : f32 to vector<8x1xf32>
      %249 = arith.addf %245, %248 : vector<8x1xf32>
      %250 = math.rsqrt %249 : vector<8x1xf32>
      %251 = vector.broadcast %250 : vector<8x1xf32> to vector<8x64xf32>
      %252 = arith.mulf %247, %251 : vector<8x64xf32>
      %253 = vector.broadcast %233 : vector<1x64xf32> to vector<8x64xf32>
      %254 = arith.mulf %252, %253 : vector<8x64xf32>
      %255 = vector.broadcast %234 : vector<1x64xf32> to vector<8x64xf32>
      %256 = arith.addf %254, %255 : vector<8x64xf32>
      %257 = arith.truncf %256 : vector<8x64xf32> to vector<8x64xbf16>
      %c16_108 = arith.constant 16 : index
      %c0_109 = arith.constant 0 : index
      %258 = vector.load %arg21[%c16_108, %c0_109] : memref<32x64xbf16, #tpu.memory_space<vmem>>, vector<8x64xbf16>
      tpu.vector_store %arg21[%c16_108, %c0_109], %257 {strides = array<i32>} : memref<32x64xbf16, #tpu.memory_space<vmem>>, vector<8x64xbf16>,
      %259 = vector.extract_strided_slice %62 {offsets = [24, 0], sizes = [8, 64], strides = [1, 1]} : vector<32x64xf32> to vector<8x64xf32>
      %260 = vector.shape_cast %259 : vector<8x64xf32> to vector<8x4x16xf32>
      %261 = tpu.transpose %260, [1, 0, 2] : vector<8x4x16xf32> -> vector<4x8x16xf32>
      %262 = arith.truncf %261 : vector<4x8x16xf32> to vector<4x8x16xbf16>
      %263 = vector.extract_strided_slice %67 {offsets = [24, 0], sizes = [8, 64], strides = [1, 1]} : vector<32x64xf32> to vector<8x64xf32>
      %264 = vector.shape_cast %263 : vector<8x64xf32> to vector<8x4x16xf32>
      %265 = tpu.transpose %264, [1, 0, 2] : vector<8x4x16xf32> -> vector<4x8x16xf32>
      %266 = arith.truncf %265 : vector<4x8x16xf32> to vector<4x8x16xbf16>
      %267 = vector.extract_strided_slice %72 {offsets = [24, 0], sizes = [8, 64], strides = [1, 1]} : vector<32x64xf32> to vector<8x64xf32>
      %268 = vector.shape_cast %267 : vector<8x64xf32> to vector<8x4x16xf32>
      %269 = tpu.transpose %268, [1, 0, 2] : vector<8x4x16xf32> -> vector<4x8x16xf32>
      %270 = arith.truncf %269 : vector<4x8x16xf32> to vector<4x8x16xbf16>
      "tpu.trace_start"() <{level = 10 : i32, message = "hld,hmd->hlm"}> : () -> ()
      %cst_110 = arith.constant dense<0.000000e+00> : vector<4x8x8xf32>
      %271 = tpu.matmul %262, %266, %cst_110 {dimension_numbers = #tpu.dot_dimension_numbers<[2], [2], [1], [1], [0, 0, 0, 1, 1, 1], [0], [0]>} : vector<4x8x16xbf16>, vector<4x8x16xbf16>, vector<4x8x8xf32> -> vector<4x8x8xf32>
      "tpu.trace_stop"() : () -> ()
      %cst_111 = arith.constant dense<0xFF800000> : vector<4x8xf32>
      %272 = vector.multi_reduction <maximumf>, %271, %cst_111 [2] : vector<4x8x8xf32> to vector<4x8xf32>
      %273 = vector.shape_cast %272 : vector<4x8xf32> to vector<4x8x1xf32>
      %274 = vector.broadcast %273 : vector<4x8x1xf32> to vector<4x8x8xf32>
      %275 = arith.subf %271, %274 : vector<4x8x8xf32>
      %276 = math.exp %275 : vector<4x8x8xf32>
      %cst_112 = arith.constant dense<0.000000e+00> : vector<4x8xf32>
      %277 = vector.multi_reduction <add>, %276, %cst_112 [2] : vector<4x8x8xf32> to vector<4x8xf32>
      %278 = vector.shape_cast %277 : vector<4x8xf32> to vector<4x8x1xf32>
      %279 = tpu.reciprocal %278 {approx = true} : vector<4x8x1xf32> -> vector<4x8x1xf32>
      %280 = vector.broadcast %279 : vector<4x8x1xf32> to vector<4x8x8xf32>
      %281 = arith.mulf %276, %280 : vector<4x8x8xf32>
      %282 = arith.truncf %281 : vector<4x8x8xf32> to vector<4x8x8xbf16>
      "tpu.trace_start"() <{level = 10 : i32, message = "hlm,hmd->hld"}> : () -> ()
      %cst_113 = arith.constant dense<0.000000e+00> : vector<4x8x16xf32>
      %283 = tpu.matmul %282, %270, %cst_113 {dimension_numbers = #tpu.dot_dimension_numbers<[2], [1], [1], [2], [0, 0, 0, 1, 1, 2], [0], [0]>} : vector<4x8x8xbf16>, vector<4x8x16xbf16>, vector<4x8x16xf32> -> vector<4x8x16xf32>
      "tpu.trace_stop"() : () -> ()
      %284 = tpu.transpose %283, [1, 0, 2] : vector<4x8x16xf32> -> vector<8x4x16xf32>
      %285 = vector.shape_cast %284 : vector<8x4x16xf32> to vector<8x64xf32>
      %286 = arith.truncf %285 : vector<8x64xf32> to vector<8x64xbf16>
      %c0_114 = arith.constant 0 : index
      %c0_115 = arith.constant 0 : index
      %287 = vector.load %arg11[%c0_114, %c0_115] : memref<64x64xbf16, #tpu.memory_space<vmem>>, vector<64x64xbf16>
      %cst_116 = arith.constant dense<0.000000e+00> : vector<8x64xf32>
      %288 = tpu.matmul %286, %287, %cst_116 {dimension_numbers = #tpu.dot_dimension_numbers<[1], [0], [0], [1], [0, 0, 1, 1], [], []>} : vector<8x64xbf16>, vector<64x64xbf16>, vector<8x64xf32> -> vector<8x64xf32>
      %c0_117 = arith.constant 0 : index
      %c0_118 = arith.constant 0 : index
      %289 = vector.load %arg12[%c0_117, %c0_118] : memref<1x64xf32, #tpu.memory_space<vmem>>, vector<1x64xf32>
      %290 = vector.broadcast %289 : vector<1x64xf32> to vector<8x64xf32>
      %291 = arith.addf %288, %290 : vector<8x64xf32>
      %292 = vector.extract_strided_slice %30 {offsets = [24, 0], sizes = [8, 64], strides = [1, 1]} : vector<32x64xf32> to vector<8x64xf32>
      %293 = arith.addf %292, %291 : vector<8x64xf32>
      %c24 = arith.constant 24 : index
      %c0_119 = arith.constant 0 : index
      %294 = vector.load %arg20[%c24, %c0_119] : memref<32x64xf32, #tpu.memory_space<vmem>>, vector<8x64xf32>
      tpu.vector_store %arg20[%c24, %c0_119], %293 {strides = array<i32>} : memref<32x64xf32, #tpu.memory_space<vmem>>, vector<8x64xf32>,
      %c0_120 = arith.constant 0 : index
      %c0_121 = arith.constant 0 : index
      %295 = vector.load %arg13[%c0_120, %c0_121] : memref<1x64xf32, #tpu.memory_space<vmem>>, vector<1x64xf32>
      %c0_122 = arith.constant 0 : index
      %c0_123 = arith.constant 0 : index
      %296 = vector.load %arg14[%c0_122, %c0_123] : memref<1x64xf32, #tpu.memory_space<vmem>>, vector<1x64xf32>
      %cst_124 = arith.constant dense<0.000000e+00> : vector<8xf32>
      %297 = vector.multi_reduction <add>, %293, %cst_124 [1] : vector<8x64xf32> to vector<8xf32>
      %298 = vector.shape_cast %297 : vector<8xf32> to vector<8x1xf32>
      %cst_125 = arith.constant 6.400000e+01 : f32
      %299 = vector.broadcast %cst_125 : f32 to vector<8x1xf32>
      %300 = arith.divf %298, %299 : vector<8x1xf32>
      %301 = vector.broadcast %300 : vector<8x1xf32> to vector<8x64xf32>
      %302 = arith.subf %293, %301 : vector<8x64xf32>
      %303 = arith.mulf %302, %302 : vector<8x64xf32>
      %cst_126 = arith.constant dense<0.000000e+00> : vector<8xf32>
      %304 = vector.multi_reduction <add>, %303, %cst_126 [1] : vector<8x64xf32> to vector<8xf32>
      %305 = vector.shape_cast %304 : vector<8xf32> to vector<8x1xf32>
      %cst_127 = arith.constant 6.400000e+01 : f32
      %306 = vector.broadcast %cst_127 : f32 to vector<8x1xf32>
      %307 = arith.divf %305, %306 : vector<8x1xf32>
      %308 = vector.broadcast %300 : vector<8x1xf32> to vector<8x64xf32>
      %309 = arith.subf %293, %308 : vector<8x64xf32>
      %cst_128 = arith.constant 9.99999974E-6 : f32
      %310 = vector.broadcast %cst_128 : f32 to vector<8x1xf32>
      %311 = arith.addf %307, %310 : vector<8x1xf32>
      %312 = math.rsqrt %311 : vector<8x1xf32>
      %313 = vector.broadcast %312 : vector<8x1xf32> to vector<8x64xf32>
      %314 = arith.mulf %309, %313 : vector<8x64xf32>
      %315 = vector.broadcast %295 : vector<1x64xf32> to vector<8x64xf32>
      %316 = arith.mulf %314, %315 : vector<8x64xf32>
      %317 = vector.broadcast %296 : vector<1x64xf32> to vector<8x64xf32>
      %318 = arith.addf %316, %317 : vector<8x64xf32>
      %319 = arith.truncf %318 : vector<8x64xf32> to vector<8x64xbf16>
      %c24_129 = arith.constant 24 : index
      %c0_130 = arith.constant 0 : index
      %320 = vector.load %arg21[%c24_129, %c0_130] : memref<32x64xbf16, #tpu.memory_space<vmem>>, vector<8x64xbf16>
      tpu.vector_store %arg21[%c24_129, %c0_130], %319 {strides = array<i32>} : memref<32x64xbf16, #tpu.memory_space<vmem>>, vector<8x64xbf16>,
    } else {
    }
    %c0 = arith.constant 0 : index
    %c0_1 = arith.constant 0 : index
    %3 = vector.load %arg21[%c0, %c0_1] : memref<32x64xbf16, #tpu.memory_space<vmem>>, vector<32x64xbf16>
    %c0_2 = arith.constant 0 : index
    %c0_3 = arith.constant 0 : index
    %4 = vector.load %arg15[%c0_2, %c0_3] : memref<64x256xbf16, #tpu.memory_space<vmem>>, vector<64x256xbf16>
    %cst = arith.constant dense<0.000000e+00> : vector<32x256xf32>
    %5 = tpu.matmul %3, %4, %cst {dimension_numbers = #tpu.dot_dimension_numbers<[1], [0], [0], [1], [0, 0, 1, 1], [], []>} : vector<32x64xbf16>, vector<64x256xbf16>, vector<32x256xf32> -> vector<32x256xf32>
    %c0_4 = arith.constant 0 : index
    %c0_5 = arith.constant 0 : index
    %6 = vector.load %arg16[%c0_4, %c0_5] : memref<1x256xf32, #tpu.memory_space<vmem>>, vector<1x256xf32>
    %7 = vector.broadcast %6 : vector<1x256xf32> to vector<32x256xf32>
    %8 = arith.addf %5, %7 : vector<32x256xf32>
    %cst_6 = arith.constant 1.702000e+00 : f32
    %9 = vector.broadcast %cst_6 : f32 to vector<32x256xf32>
    %10 = arith.mulf %9, %8 : vector<32x256xf32>
    %11 = arith.negf %10 : vector<32x256xf32>
    %12 = math.exp %11 : vector<32x256xf32>
    %cst_7 = arith.constant 1.000000e+00 : f32
    %13 = vector.broadcast %cst_7 : f32 to vector<32x256xf32>
    %14 = arith.addf %13, %12 : vector<32x256xf32>
    %15 = arith.divf %13, %14 : vector<32x256xf32>
    %16 = arith.mulf %8, %15 : vector<32x256xf32>
    %17 = arith.truncf %16 : vector<32x256xf32> to vector<32x256xbf16>
    %c0_8 = arith.constant 0 : index
    %c0_9 = arith.constant 0 : index
    %18 = vector.load %arg17[%c0_8, %c0_9] : memref<256x64xbf16, #tpu.memory_space<vmem>>, vector<256x64xbf16>
    %cst_10 = arith.constant dense<0.000000e+00> : vector<32x64xf32>
    %19 = tpu.matmul %17, %18, %cst_10 {dimension_numbers = #tpu.dot_dimension_numbers<[1], [0], [0], [1], [0, 0, 1, 1], [], []>} : vector<32x256xbf16>, vector<256x64xbf16>, vector<32x64xf32> -> vector<32x64xf32>
    %c0_11 = arith.constant 0 : index
    %c0_12 = arith.constant 0 : index
    %20 = vector.load %arg20[%c0_11, %c0_12] : memref<32x64xf32, #tpu.memory_space<vmem>>, vector<32x64xf32>
    %21 = arith.addf %20, %19 : vector<32x64xf32>
    %c0_13 = arith.constant 0 : index
    %c0_14 = arith.constant 0 : index
    %22 = vector.load %arg18[%c0_13, %c0_14] : memref<1x64xf32, #tpu.memory_space<vmem>>, vector<1x64xf32>
    %23 = vector.broadcast %22 : vector<1x64xf32> to vector<32x64xf32>
    %24 = arith.addf %21, %23 : vector<32x64xf32>
    %25 = vector.shape_cast %24 : vector<32x64xf32> to vector<4x8x64xf32>
    %26 = tpu.transpose %25, [1, 0, 2] : vector<4x8x64xf32> -> vector<8x4x64xf32>
    %c0_15 = arith.constant 0 : index
    %c0_16 = arith.constant 0 : index
    %c0_17 = arith.constant 0 : index
    %27 = vector.load %arg19[%c0_15, %c0_16, %c0_17] : memref<8x4x64xf32, #tpu.memory_space<vmem>>, vector<8x4x64xf32>
    tpu.vector_store %arg19[%c0_15, %c0_16, %c0_17], %26 {strides = array<i32>} : memref<8x4x64xf32, #tpu.memory_space<vmem>>, vector<8x4x64xf32>,
    return
  }
  func.func @transform_0(%arg0: i32, %arg1: i32) -> (i32, i32, i32) {
    %c0_i32 = arith.constant 0 : i32
    %c0_i32_0 = arith.constant 0 : i32
    %c0_i32_1 = arith.constant 0 : i32
    return %c0_i32, %arg0, %c0_i32_0 : i32, i32, i32
  }
  func.func @transform_1(%arg0: i32, %arg1: i32) -> (i32, i32) {
    %c0_i32 = arith.constant 0 : i32
    %c0_i32_0 = arith.constant 0 : i32
    %c0_i32_1 = arith.constant 0 : i32
    return %c0_i32, %c0_i32_0 : i32, i32
  }
  func.func @transform_2(%arg0: i32, %arg1: i32) -> (i32, i32) {
    %c0_i32 = arith.constant 0 : i32
    %c0_i32_0 = arith.constant 0 : i32
    %c0_i32_1 = arith.constant 0 : i32
    return %c0_i32, %c0_i32_0 : i32, i32
  }
  func.func @transform_3(%arg0: i32, %arg1: i32) -> (i32, i32) {
    %c0_i32 = arith.constant 0 : i32
    %c0_i32_0 = arith.constant 0 : i32
    %c0_i32_1 = arith.constant 0 : i32
    return %c0_i32, %c0_i32_0 : i32, i32
  }
  func.func @transform_4(%arg0: i32, %arg1: i32) -> (i32, i32) {
    %c0_i32 = arith.constant 0 : i32
    %c0_i32_0 = arith.constant 0 : i32
    %c0_i32_1 = arith.constant 0 : i32
    return %c0_i32, %c0_i32_0 : i32, i32
  }
  func.func @transform_5(%arg0: i32, %arg1: i32) -> (i32, i32) {
    %c0_i32 = arith.constant 0 : i32
    %c0_i32_0 = arith.constant 0 : i32
    %c0_i32_1 = arith.constant 0 : i32
    return %c0_i32, %c0_i32_0 : i32, i32
  }
  func.func @transform_6(%arg0: i32, %arg1: i32) -> (i32, i32) {
    %c0_i32 = arith.constant 0 : i32
    %c0_i32_0 = arith.constant 0 : i32
    %c0_i32_1 = arith.constant 0 : i32
    return %c0_i32, %c0_i32_0 : i32, i32
  }
  func.func @transform_7(%arg0: i32, %arg1: i32) -> (i32, i32) {
    %c0_i32 = arith.constant 0 : i32
    %c0_i32_0 = arith.constant 0 : i32
    %c0_i32_1 = arith.constant 0 : i32
    return %c0_i32, %c0_i32_0 : i32, i32
  }
  func.func @transform_8(%arg0: i32, %arg1: i32) -> (i32, i32) {
    %c0_i32 = arith.constant 0 : i32
    %c0_i32_0 = arith.constant 0 : i32
    %c0_i32_1 = arith.constant 0 : i32
    return %c0_i32, %c0_i32_0 : i32, i32
  }
  func.func @transform_9(%arg0: i32, %arg1: i32) -> (i32, i32) {
    %c0_i32 = arith.constant 0 : i32
    %c0_i32_0 = arith.constant 0 : i32
    %c0_i32_1 = arith.constant 0 : i32
    return %c0_i32, %c0_i32_0 : i32, i32
  }
  func.func @transform_10(%arg0: i32, %arg1: i32) -> (i32, i32) {
    %c0_i32 = arith.constant 0 : i32
    %c0_i32_0 = arith.constant 0 : i32
    %c0_i32_1 = arith.constant 0 : i32
    return %c0_i32, %c0_i32_0 : i32, i32
  }
  func.func @transform_11(%arg0: i32, %arg1: i32) -> (i32, i32) {
    %c0_i32 = arith.constant 0 : i32
    %c0_i32_0 = arith.constant 0 : i32
    %c0_i32_1 = arith.constant 0 : i32
    return %c0_i32, %c0_i32_0 : i32, i32
  }
  func.func @transform_12(%arg0: i32, %arg1: i32) -> (i32, i32) {
    %c0_i32 = arith.constant 0 : i32
    %c0_i32_0 = arith.constant 0 : i32
    %c0_i32_1 = arith.constant 0 : i32
    return %c0_i32, %c0_i32_0 : i32, i32
  }
  func.func @transform_13(%arg0: i32, %arg1: i32) -> (i32, i32) {
    %c0_i32 = arith.constant 0 : i32
    %c0_i32_0 = arith.constant 0 : i32
    %c0_i32_1 = arith.constant 0 : i32
    return %c0_i32, %c0_i32_0 : i32, i32
  }
  func.func @transform_14(%arg0: i32, %arg1: i32) -> (i32, i32) {
    %c0_i32 = arith.constant 0 : i32
    %c0_i32_0 = arith.constant 0 : i32
    %c0_i32_1 = arith.constant 0 : i32
    return %c0_i32, %c0_i32_0 : i32, i32
  }
  func.func @transform_15(%arg0: i32, %arg1: i32) -> (i32, i32) {
    %c0_i32 = arith.constant 0 : i32
    %c0_i32_0 = arith.constant 0 : i32
    %c0_i32_1 = arith.constant 0 : i32
    return %c0_i32, %c0_i32_0 : i32, i32
  }
  func.func @transform_16(%arg0: i32, %arg1: i32) -> (i32, i32) {
    %c0_i32 = arith.constant 0 : i32
    %c0_i32_0 = arith.constant 0 : i32
    %c0_i32_1 = arith.constant 0 : i32
    return %c0_i32, %c0_i32_0 : i32, i32
  }
  func.func @transform_17(%arg0: i32, %arg1: i32) -> (i32, i32, i32) {
    %c0_i32 = arith.constant 0 : i32
    %c0_i32_0 = arith.constant 0 : i32
    %c0_i32_1 = arith.constant 0 : i32
    return %c0_i32, %arg0, %c0_i32_0 : i32, i32, i32
  }
}

</mosaic_0001>

<llo_original>
// kernel: tpu_custom_call.1
$region0: #{tpu_custom_call.1}
  #allocation0 [shape = 'u32[]', space=smem, size = 0x4, offset = 0x4, fixed_abs, tag = 'smem constant byte address 0x4 - core index']
  #allocation1 [shape = 'u32[72,128]{1,0:T(1,128)}', space=vmem, size = 0x9000, scoped, tag = 'internal scratch']
  #allocation2 [shape = 'f32[32,64]{1,0:T(8,128)}', space=vmem, size = 0x4000, scoped, tag = 'scratch operand']
  #allocation3 [shape = 'bf16[32,64]{1,0:T(8,128)(2,1)}', space=vmem, size = 0x2000, scoped, tag = 'scratch operand']
  %s0 = inlined_call_operand.vmem [shape: f32[8,4,64], index: 0, kind: input, shape index: {}]
  %s1 = inlined_call_operand.hbm [shape: f32[1,64], index: 1, kind: input, shape index: {}]
  %s2 = inlined_call_operand.hbm [shape: f32[1,64], index: 2, kind: input, shape index: {}]
  %s3 = inlined_call_operand.vmem [shape: bf16[64,64], index: 3, kind: input, shape index: {}]
  %s4 = inlined_call_operand.vmem [shape: bf16[64,64], index: 4, kind: input, shape index: {}]
  %s5 = inlined_call_operand.vmem [shape: bf16[64,64], index: 5, kind: input, shape index: {}]
  %s6 = inlined_call_operand.vmem [shape: f32[1,64], index: 6, kind: input, shape index: {}]
  %s7 = inlined_call_operand.vmem [shape: f32[1,64], index: 7, kind: input, shape index: {}]
  %s8 = inlined_call_operand.vmem [shape: f32[1,64], index: 8, kind: input, shape index: {}]
  %s9 = inlined_call_operand.hbm [shape: bf16[64,64], index: 9, kind: input, shape index: {}]
  %s10 = inlined_call_operand.vmem [shape: f32[1,64], index: 10, kind: input, shape index: {}]
  %s11 = inlined_call_operand.vmem [shape: f32[1,64], index: 11, kind: input, shape index: {}]
  %s12 = inlined_call_operand.vmem [shape: f32[1,64], index: 12, kind: input, shape index: {}]
  %s13 = inlined_call_operand.vmem [shape: bf16[64,256], index: 13, kind: input, shape index: {}]
  %s14 = inlined_call_operand.vmem [shape: f32[1,256], index: 14, kind: input, shape index: {}]
  %s15 = inlined_call_operand.vmem [shape: bf16[256,64], index: 15, kind: input, shape index: {}]
  %s16 = inlined_call_operand.vmem [shape: f32[1,64], index: 16, kind: input, shape index: {}]
  %s17 = inlined_call_operand.hbm [shape: f32[8,4,64], index: 17, kind: output, shape index: {}]
  %s18 = sld [smem:[#allocation0]]
  $region94: #{tpu_custom_call.1} parent=0
    _
  %s20 = ssub.s32 1, %s18
  %s21 = scalar_select 0, %s20, %s18
  $region1: #{tpu_custom_call.1} parent=0
    #allocation4 [shape = 'u8[512]{0}', space=vmem, size = 0x400, scoped, tag = 'input window, operand 1, single buffered']
    #allocation5 [shape = 's32[1]{0}', space=sflag, size = 0x4, scoped, tag = 'scoped memory for tpu_custom_call.1']
    #allocation6 [shape = 's32[1]{0}', space=sflag, size = 0x4, scoped, tag = 'scoped memory for tpu_custom_call.1']
    #allocation7 [shape = 'u8[512]{0}', space=vmem, size = 0x400, scoped, tag = 'input window, operand 2, single buffered']
    #allocation8 [shape = 's32[1]{0}', space=sflag, size = 0x4, scoped, tag = 'scoped memory for tpu_custom_call.1']
    #allocation9 [shape = 'u8[16384]{0}', space=vmem, size = 0x4000, scoped, tag = 'input window, operand 9, single buffered']
    #allocation10 [shape = 'u8[16384]{0}', space=vmem, size = 0x4000, scoped, tag = 'output window, operand 0, single buffered']
    %22 = vsyncpa [#allocation5], 0
    %23 = vsyncpa [#allocation8], 0
    %24 = vsyncpa [#allocation6], 0
    // Predicated region
    $region2: #{tpu_custom_call.1} parent=1 // pred_check
      _
    $region3: #{tpu_custom_call.1} parent=1 // pred_check_branch
      %26 = sbr.rel (0) target = $region5
    $region4: #{tpu_custom_call.1} parent=1 // pred_region
      _
    $region5: #{tpu_custom_call.1} parent=1 // pred_fallthru
      _
    // Predicated region
    $region6: #{tpu_custom_call.1} parent=1 // pred_check
      _
    $region7: #{tpu_custom_call.1} parent=1 // pred_check_branch
      %28 = sbr.rel (0) target = $region9
    $region8: #{tpu_custom_call.1} parent=1 // pred_region
      %30 = vsyncadd [#allocation5], 0
      %s32 = sshll.u32 %s1, 4
      %s33 = int_to_ptr.hbm [resolvable:$true] %s32
      %s34 = sshll.u32 [#allocation4], 4
      %s35 = int_to_ptr.vmem [resolvable:$true] %s34
      %37 = dma.hbm_to_vmem [thread:$0]  %s33, 16, %s35, [#allocation5]
    $region9: #{tpu_custom_call.1} parent=1 // pred_fallthru
      _
    // Predicated region
    $region10: #{tpu_custom_call.1} parent=1 // pred_check
      _
    $region11: #{tpu_custom_call.1} parent=1 // pred_check_branch
      %39 = sbr.rel (0) target = $region13
    $region12: #{tpu_custom_call.1} parent=1 // pred_region
      %41 = vsyncadd [#allocation8], 0
      %s43 = sshll.u32 %s2, 4
      %s44 = int_to_ptr.hbm [resolvable:$true] %s43
      %s45 = sshll.u32 [#allocation7], 4
      %s46 = int_to_ptr.vmem [resolvable:$true] %s45
      %48 = dma.hbm_to_vmem [thread:$0]  %s44, 16, %s46, [#allocation8]
    $region13: #{tpu_custom_call.1} parent=1 // pred_fallthru
      _
    // Predicated region
    $region14: #{tpu_custom_call.1} parent=1 // pred_check
      _
    $region15: #{tpu_custom_call.1} parent=1 // pred_check_branch
      %50 = sbr.rel (0) target = $region17
    $region16: #{tpu_custom_call.1} parent=1 // pred_region
      _
    $region17: #{tpu_custom_call.1} parent=1 // pred_fallthru
      _
    // Predicated region
    $region18: #{tpu_custom_call.1} parent=1 // pred_check
      _
    $region19: #{tpu_custom_call.1} parent=1 // pred_check_branch
      %52 = sbr.rel (0) target = $region21
    $region20: #{tpu_custom_call.1} parent=1 // pred_region
      _
    $region21: #{tpu_custom_call.1} parent=1 // pred_fallthru
      _
    // Predicated region
    $region22: #{tpu_custom_call.1} parent=1 // pred_check
      _
    $region23: #{tpu_custom_call.1} parent=1 // pred_check_branch
      %54 = sbr.rel (0) target = $region25
    $region24: #{tpu_custom_call.1} parent=1 // pred_region
      _
    $region25: #{tpu_custom_call.1} parent=1 // pred_fallthru
      _
    // Predicated region
    $region26: #{tpu_custom_call.1} parent=1 // pred_check
      _
    $region27: #{tpu_custom_call.1} parent=1 // pred_check_branch
      %56 = sbr.rel (0) target = $region29
    $region28: #{tpu_custom_call.1} parent=1 // pred_region
      _
    $region29: #{tpu_custom_call.1} parent=1 // pred_fallthru
      _
    // Predicated region
    $region30: #{tpu_custom_call.1} parent=1 // pred_check
      _
    $region31: #{tpu_custom_call.1} parent=1 // pred_check_branch
      %58 = sbr.rel (0) target = $region33
    $region32: #{tpu_custom_call.1} parent=1 // pred_region
      _
    $region33: #{tpu_custom_call.1} parent=1 // pred_fallthru
      _
    // Predicated region
    $region34: #{tpu_custom_call.1} parent=1 // pred_check
      _
    $region35: #{tpu_custom_call.1} parent=1 // pred_check_branch
      %60 = sbr.rel (0) target = $region37
    $region36: #{tpu_custom_call.1} parent=1 // pred_region
      _
    $region37: #{tpu_custom_call.1} parent=1 // pred_fallthru
      _
    // Predicated region
    $region38: #{tpu_custom_call.1} parent=1 // pred_check
      _
    $region39: #{tpu_custom_call.1} parent=1 // pred_check_branch
      %62 = sbr.rel (0) target = $region41
    $region40: #{tpu_custom_call.1} parent=1 // pred_region
      %64 = vsyncadd [#allocation8], 0
      %s65 = sshll.u32 %s9, 4
      %s66 = int_to_ptr.hbm [resolvable:$true] %s65
      %s67 = sshll.u32 [#allocation9], 4
      %s68 = int_to_ptr.vmem [resolvable:$true] %s67
      %73 = dma.hbm_to_vmem [thread:$0]  %s66, 512, %s68, [#allocation8], 64, 64, 4
    $region41: #{tpu_custom_call.1} parent=1 // pred_fallthru
      _
    // Predicated region
    $region42: #{tpu_custom_call.1} parent=1 // pred_check
      _
    $region43: #{tpu_custom_call.1} parent=1 // pred_check_branch
      %75 = sbr.rel (0) target = $region45
    $region44: #{tpu_custom_call.1} parent=1 // pred_region
      _
    $region45: #{tpu_custom_call.1} parent=1 // pred_fallthru
      _
    // Predicated region
    $region46: #{tpu_custom_call.1} parent=1 // pred_check
      _
    $region47: #{tpu_custom_call.1} parent=1 // pred_check_branch
      %77 = sbr.rel (0) target = $region49
    $region48: #{tpu_custom_call.1} parent=1 // pred_region
      _
    $region49: #{tpu_custom_call.1} parent=1 // pred_fallthru
      _
    // Predicated region
    $region50: #{tpu_custom_call.1} parent=1 // pred_check
      _
    $region51: #{tpu_custom_call.1} parent=1 // pred_check_branch
      %79 = sbr.rel (0) target = $region53
    $region52: #{tpu_custom_call.1} parent=1 // pred_region
      _
    $region53: #{tpu_custom_call.1} parent=1 // pred_fallthru
      _
    // Predicated region
    $region54: #{tpu_custom_call.1} parent=1 // pred_check
      _
    $region55: #{tpu_custom_call.1} parent=1 // pred_check_branch
      %81 = sbr.rel (0) target = $region57
    $region56: #{tpu_custom_call.1} parent=1 // pred_region
      _
    $region57: #{tpu_custom_call.1} parent=1 // pred_fallthru
      _
    // Predicated region
    $region58: #{tpu_custom_call.1} parent=1 // pred_check
      _
    $region59: #{tpu_custom_call.1} parent=1 // pred_check_branch
      %83 = sbr.rel (0) target = $region61
    $region60: #{tpu_custom_call.1} parent=1 // pred_region
      _
    $region61: #{tpu_custom_call.1} parent=1 // pred_fallthru
      _
    // Predicated region
    $region62: #{tpu_custom_call.1} parent=1 // pred_check
      _
    $region63: #{tpu_custom_call.1} parent=1 // pred_check_branch
      %85 = sbr.rel (0) target = $region65
    $region64: #{tpu_custom_call.1} parent=1 // pred_region
      _
    $region65: #{tpu_custom_call.1} parent=1 // pred_fallthru
      _
    // Predicated region
    $region66: #{tpu_custom_call.1} parent=1 // pred_check
      _
    $region67: #{tpu_custom_call.1} parent=1 // pred_check_branch
      %87 = sbr.rel (0) target = $region69
    $region68: #{tpu_custom_call.1} parent=1 // pred_region
      _
    $region69: #{tpu_custom_call.1} parent=1 // pred_fallthru
      _
    // Predicated region
    $region70: #{tpu_custom_call.1} parent=1 // pred_check
      _
    $region71: #{tpu_custom_call.1} parent=1 // pred_check_branch
      %89 = sbr.rel (0) target = $region73
    $region72: #{tpu_custom_call.1} parent=1 // pred_region
      %91 = dma.done [#allocation5], 16
    $region73: #{tpu_custom_call.1} parent=1 // pred_fallthru
      _
    // Predicated region
    $region74: #{tpu_custom_call.1} parent=1 // pred_check
      _
    $region75: #{tpu_custom_call.1} parent=1 // pred_check_branch
      %93 = sbr.rel (0) target = $region77
    $region76: #{tpu_custom_call.1} parent=1 // pred_region
      %95 = dma.done [#allocation8], 16
    $region77: #{tpu_custom_call.1} parent=1 // pred_fallthru
      _
    // Predicated region
    $region78: #{tpu_custom_call.1} parent=1 // pred_check
      _
    $region79: #{tpu_custom_call.1} parent=1 // pred_check_branch
      %97 = sbr.rel (0) target = $region81
    $region80: #{tpu_custom_call.1} parent=1 // pred_region
      %99 = dma.done [#allocation8], 512
    $region81: #{tpu_custom_call.1} parent=1 // pred_fallthru
      _
    %p101 = scmp.eq.s32.totalorder 0, 0
    // Predicated region
    $region82: #{tpu_custom_call.1} parent=1 // pred_check
      %p102 = pneg %p101
    $region83: #{tpu_custom_call.1} parent=1 // pred_check_branch
      %104 = sbr.rel (%p102) target = $region85
    $region84: #{tpu_custom_call.1} parent=1 // pred_region
      %v105 = vld [vmem:[%s0] sm:$0xf]
      %v106 = vld [vmem:[%s0 + $0x4] sm:$0xf]
      %v107 = vld [vmem:[%s0 + $0x8] sm:$0xf]
      %v108 = vld [vmem:[%s0 + $0xc] sm:$0xf]
      %v109 = vld [vmem:[%s0 + $0x10] sm:$0xf]
      %v110 = vld [vmem:[%s0 + $0x14] sm:$0xf]
      %v111 = vld [vmem:[%s0 + $0x18] sm:$0xf]
      %v112 = vld [vmem:[%s0 + $0x1c] sm:$0xf]
      %v113 = vrot.slane %v107, 4
      %vm114 = vcmask 1047556
      %v115 = vsel %vm114, %v113, %v105
      %v117 = vunpack.c.l.s4 1983009808
      %v118 = vunpack.c.0.s8 %v117
      %v119 = vperm.slane %v115, %v118
      %v120 = vrot.slane %v108, 4
      %v121 = vsel %vm114, %v120, %v106
      %v123 = vunpack.c.l.s4 1983009808
      %v124 = vunpack.c.0.s8 %v123
      %v125 = vperm.slane %v121, %v124
      %v126 = vrot.slane %v111, 4
      %v127 = vsel %vm114, %v126, %v109
      %v129 = vunpack.c.l.s4 1983009808
      %v130 = vunpack.c.0.s8 %v129
      %v131 = vperm.slane %v127, %v130
      %v132 = vrot.slane %v112, 4
      %v133 = vsel %vm114, %v132, %v110
      %v135 = vunpack.c.l.s4 1983009808
      %v136 = vunpack.c.0.s8 %v135
      %v137 = vperm.slane %v133, %v136
      %v138 = vrot.slane %v125, 4
      %v139 = vsel %vm114, %v138, %v119
      %v140 = vrot.slane %v119, 4
      %v141 = vsel %vm114, %v125, %v140
      %v143 = vunpack.c.l.s4 1934713408
      %v144 = vunpack.c.0.s8 %v143
      %v145 = vperm.slane %v139, %v144
      %v147 = vunpack.c.l.s4 1934713408
      %v148 = vunpack.c.0.s8 %v147
      %v149 = vperm.slane %v141, %v148
      %v150 = vrot.slane %v137, 4
      %v151 = vsel %vm114, %v150, %v131
      %v152 = vrot.slane %v131, 4
      %v153 = vsel %vm114, %v137, %v152
      %v155 = vunpack.c.l.s4 1934713408
      %v156 = vunpack.c.0.s8 %v155
      %v157 = vperm.slane %v151, %v156
      %v159 = vunpack.c.l.s4 1934713408
      %v160 = vunpack.c.0.s8 %v159
      %v161 = vperm.slane %v153, %v160
      %v162 = vrot.slane %v157, 4
      %v163 = vsel %vm114, %v162, %v145
      %v164 = vrot.slane %v145, 4
      %v165 = vsel %vm114, %v157, %v164
      %v166 = vrot.slane %v161, 4
      %v167 = vsel %vm114, %v166, %v149
      %v168 = vrot.slane %v149, 4
      %v169 = vsel %vm114, %v161, %v168
      %v170 = vld [vmem:[#allocation4] sm:$0x1]
      %v171 = vld [vmem:[#allocation7] sm:$0x1]
      %vm172 = vcmask 523264
      %v173 = vsel %vm172, %v163, 0.0
      %174 = vadd.xlane.f32.xlu0 %v173
      %v175 = vpop.xlane.xlu0 %174
      %v176 = vsel %vm172, %v165, 0.0
      %177 = vadd.xlane.f32.xlu0 %v176
      %v178 = vpop.xlane.xlu0 %177
      %v179 = vsel %vm172, %v167, 0.0
      %180 = vadd.xlane.f32.xlu0 %v179
      %v181 = vpop.xlane.xlu0 %180
      %v182 = vsel %vm172, %v169, 0.0
      %183 = vadd.xlane.f32.xlu0 %v182
      %v184 = vpop.xlane.xlu0 %183
      %v185 = vrcp.pop 64.0
      %v186 = vmul.f32 64.0, %v185
      %v187 = vsub.f32 1.0, %v186
      %v188 = vmul.f32 %v185, %v187
      %v189 = vadd.f32 %v185, %v188
      %vm190 = vweird.f32 %v185
      %v191 = vsel %vm190, %v185, %v189
      %v192 = vmul.f32 %v175, %v191
      %v193 = vmul.f32 %v178, %v191
      %v194 = vmul.f32 %v181, %v191
      %v195 = vmul.f32 %v184, %v191
      %v196 = vsub.f32 %v163, %v192
      %v197 = vsub.f32 %v165, %v193
      %v198 = vsub.f32 %v167, %v194
      %v199 = vsub.f32 %v169, %v195
      %v200 = vmul.f32 %v196, %v196
      %v201 = vmul.f32 %v197, %v197
      %v202 = vmul.f32 %v198, %v198
      %v203 = vmul.f32 %v199, %v199
      %v204 = vsel %vm172, %v200, 0.0
      %205 = vadd.xlane.f32.xlu0 %v204
      %v206 = vpop.xlane.xlu0 %205
      %v207 = vsel %vm172, %v201, 0.0
      %208 = vadd.xlane.f32.xlu0 %v207
      %v209 = vpop.xlane.xlu0 %208
      %v210 = vsel %vm172, %v202, 0.0
      %211 = vadd.xlane.f32.xlu0 %v210
      %v212 = vpop.xlane.xlu0 %211
      %v213 = vsel %vm172, %v203, 0.0
      %214 = vadd.xlane.f32.xlu0 %v213
      %v215 = vpop.xlane.xlu0 %214
      %v216 = vmul.f32 %v206, %v191
      %v217 = vmul.f32 %v209, %v191
      %v218 = vmul.f32 %v212, %v191
      %v219 = vmul.f32 %v215, %v191
      %v220 = vadd.f32 %v216, 1e-05
      %v221 = vadd.f32 %v217, 1e-05
      %v222 = vadd.f32 %v218, 1e-05
      %v223 = vadd.f32 %v219, 1e-05
      %v224 = vrsqrt.pop %v220
      %v225 = vmul.f32 %v224, %v220
      %v226 = vmul.f32 %v225, %v224
      %v227 = vmul.f32 0.5, %v226
      %v228 = vsub.f32 1.5, %v227
      %v229 = vmul.f32 %v224, %v228
      %vm230 = vweird.f32 %v220
      %vm231 = vweird.f32 %v224
      %vm232 = vmor %vm230, %vm231
      %v233 = vsel %vm232, %v224, %v229
      %v234 = vrsqrt.pop %v221
      %v235 = vmul.f32 %v234, %v221
      %v236 = vmul.f32 %v235, %v234
      %v237 = vmul.f32 0.5, %v236
      %v238 = vsub.f32 1.5, %v237
      %v239 = vmul.f32 %v234, %v238
      %vm240 = vweird.f32 %v221
      %vm241 = vweird.f32 %v234
      %vm242 = vmor %vm240, %vm241
      %v243 = vsel %vm242, %v234, %v239
      %v244 = vrsqrt.pop %v222
      %v245 = vmul.f32 %v244, %v222
      %v246 = vmul.f32 %v245, %v244
      %v247 = vmul.f32 0.5, %v246
      %v248 = vsub.f32 1.5, %v247
      %v249 = vmul.f32 %v244, %v248
      %vm250 = vweird.f32 %v222
      %vm251 = vweird.f32 %v244
      %vm252 = vmor %vm250, %vm251
      %v253 = vsel %vm252, %v244, %v249
      %v254 = vrsqrt.pop %v223
      %v255 = vmul.f32 %v254, %v223
      %v256 = vmul.f32 %v255, %v254
      %v257 = vmul.f32 0.5, %v256
      %v258 = vsub.f32 1.5, %v257
      %v259 = vmul.f32 %v254, %v258
      %vm260 = vweird.f32 %v223
      %vm261 = vweird.f32 %v254
      %vm262 = vmor %vm260, %vm261
      %v263 = vsel %vm262, %v254, %v259
      %v264 = vmul.f32 %v196, %v233
      %v265 = vmul.f32 %v197, %v243
      %v266 = vmul.f32 %v198, %v253
      %v267 = vmul.f32 %v199, %v263
      %v269 = vperm.slane %v170, 0
      %v271 = vmul.f32 %v264, %v269
      %v272 = vmul.f32 %v265, %v269
      %v273 = vmul.f32 %v266, %v269
      %v274 = vmul.f32 %v267, %v269
      %v276 = vperm.slane %v171, 0
      %v278 = vadd.f32 %v271, %v276
      %v279 = vadd.f32 %v272, %v276
      %v280 = vadd.f32 %v273, %v276
      %v281 = vadd.f32 %v274, %v276
      %v282 = vpack.c.bf16 %v279, %v278
      %v283 = vpack.c.bf16 %v281, %v280
      %v284 = vld [vmem:[%s3] sm:$0xf]
      %v285 = vld [vmem:[%s3 + $0x4] sm:$0xf]
      %v286 = vld [vmem:[%s3 + $0x8] sm:$0xf]
      %v287 = vld [vmem:[%s3 + $0xc] sm:$0xf]
      %v288 = vld [vmem:[%s3 + $0x10] sm:$0xf]
      %v289 = vld [vmem:[%s3 + $0x14] sm:$0xf]
      %v290 = vld [vmem:[%s3 + $0x18] sm:$0xf]
      %v291 = vld [vmem:[%s3 + $0x1c] sm:$0xf]
      %v292 = vld [vmem:[%s6] sm:$0x1]
      %v294 = vperm.slane %v292, 0
      %v304 = vunpack.c.l.b16 %v284
      %v305 = vunpack.c.l.b16 %v285
      %v306 = vunpack.c.l.b16 %v286
      %v307 = vunpack.c.l.b16 %v287
      %v308 = vunpack.c.l.b16 %v288
      %v309 = vunpack.c.l.b16 %v289
      %v310 = vunpack.c.l.b16 %v290
      %v311 = vunpack.c.l.b16 %v291
      %v312 = vpack.c.b16 %v305, %v304
      %v313 = vpack.c.b16 %v307, %v306
      %v314 = vpack.c.b16 %v309, %v308
      %v315 = vpack.c.b16 %v311, %v310
      %v321 = vsel %vm172, %v282, 0
      %v324 = vsel %vm172, %v283, 0
      %326 = vmatpush.bf16.msra.mxu0 0
      %327 = vmatpush.bf16.msra.mxu0 0
      %328 = vmatpush.bf16.msra.mxu0 0
      %329 = vmatpush.bf16.msra.mxu0 0
      %330 = vmatpush.bf16.msra.mxu0 %v315
      %331 = vmatpush.bf16.msra.mxu0 %v314
      %332 = vmatpush.bf16.msra.mxu0 %v313
      %333 = vmatpush.bf16.msra.mxu0 %v312
      %334 = vmatmul.bf16.gmra.mxu0 %v321
      %v335 = vpop.f32.mrf.mxu0
      %v336 = vadd.f32 %v294, %v335
      %v337 = vpop.f32.mrf.mxu0
      %v338 = vadd.f32 %v294, %v337
      %339 = vmatmul.bf16.gmra.mxu0 %v324
      %v340 = vpop.f32.mrf.mxu0
      %v341 = vadd.f32 %v294, %v340
      %v342 = vpop.f32.mrf.mxu0
      %v343 = vadd.f32 %v294, %v342
      %344 = vdwg.mxu0
      %v345 = vmul.f32 %v336, 0.25
      %v346 = vmul.f32 %v338, 0.25
      %v347 = vmul.f32 %v341, 0.25
      %v348 = vmul.f32 %v343, 0.25
      %v349 = vld [vmem:[%s4] sm:$0xf]
      %v350 = vld [vmem:[%s4 + $0x4] sm:$0xf]
      %v351 = vld [vmem:[%s4 + $0x8] sm:$0xf]
      %v352 = vld [vmem:[%s4 + $0xc] sm:$0xf]
      %v353 = vld [vmem:[%s4 + $0x10] sm:$0xf]
      %v354 = vld [vmem:[%s4 + $0x14] sm:$0xf]
      %v355 = vld [vmem:[%s4 + $0x18] sm:$0xf]
      %v356 = vld [vmem:[%s4 + $0x1c] sm:$0xf]
      %v357 = vld [vmem:[%s7] sm:$0x1]
      %v359 = vperm.slane %v357, 0
      %v369 = vunpack.c.l.b16 %v349
      %v370 = vunpack.c.l.b16 %v350
      %v371 = vunpack.c.l.b16 %v351
      %v372 = vunpack.c.l.b16 %v352
      %v373 = vunpack.c.l.b16 %v353
      %v374 = vunpack.c.l.b16 %v354
      %v375 = vunpack.c.l.b16 %v355
      %v376 = vunpack.c.l.b16 %v356
      %v377 = vpack.c.b16 %v370, %v369
      %v378 = vpack.c.b16 %v372, %v371
      %v379 = vpack.c.b16 %v374, %v373
      %v380 = vpack.c.b16 %v376, %v375
      %385 = vmatpush.bf16.msra.mxu0 0
      %386 = vmatpush.bf16.msra.mxu0 0
      %387 = vmatpush.bf16.msra.mxu0 0
      %388 = vmatpush.bf16.msra.mxu0 0
      %389 = vmatpush.bf16.msra.mxu0 %v380
      %390 = vmatpush.bf16.msra.mxu0 %v379
      %391 = vmatpush.bf16.msra.mxu0 %v378
      %392 = vmatpush.bf16.msra.mxu0 %v377
      %393 = vmatmul.bf16.gmra.mxu0 %v321
      %v394 = vpop.f32.mrf.mxu0
      %v395 = vadd.f32 %v359, %v394
      %v396 = vpop.f32.mrf.mxu0
      %v397 = vadd.f32 %v359, %v396
      %398 = vmatmul.bf16.gmra.mxu0 %v324
      %v399 = vpop.f32.mrf.mxu0
      %v400 = vadd.f32 %v359, %v399
      %v401 = vpop.f32.mrf.mxu0
      %v402 = vadd.f32 %v359, %v401
      %403 = vdwg.mxu0
      %v404 = vld [vmem:[%s5] sm:$0xf]
      %v405 = vld [vmem:[%s5 + $0x4] sm:$0xf]
      %v406 = vld [vmem:[%s5 + $0x8] sm:$0xf]
      %v407 = vld [vmem:[%s5 + $0xc] sm:$0xf]
      %v408 = vld [vmem:[%s5 + $0x10] sm:$0xf]
      %v409 = vld [vmem:[%s5 + $0x14] sm:$0xf]
      %v410 = vld [vmem:[%s5 + $0x18] sm:$0xf]
      %v411 = vld [vmem:[%s5 + $0x1c] sm:$0xf]
      %v412 = vld [vmem:[%s8] sm:$0x1]
      %v414 = vperm.slane %v412, 0
      %v424 = vunpack.c.l.b16 %v404
      %v425 = vunpack.c.l.b16 %v405
      %v426 = vunpack.c.l.b16 %v406
      %v427 = vunpack.c.l.b16 %v407
      %v428 = vunpack.c.l.b16 %v408
      %v429 = vunpack.c.l.b16 %v409
      %v430 = vunpack.c.l.b16 %v410
      %v431 = vunpack.c.l.b16 %v411
      %v432 = vpack.c.b16 %v425, %v424
      %v433 = vpack.c.b16 %v427, %v426
      %v434 = vpack.c.b16 %v429, %v428
      %v435 = vpack.c.b16 %v431, %v430
      %440 = vmatpush.bf16.msra.mxu0 0
      %441 = vmatpush.bf16.msra.mxu0 0
      %442 = vmatpush.bf16.msra.mxu0 0
      %443 = vmatpush.bf16.msra.mxu0 0
      %444 = vmatpush.bf16.msra.mxu0 %v435
      %445 = vmatpush.bf16.msra.mxu0 %v434
      %446 = vmatpush.bf16.msra.mxu0 %v433
      %447 = vmatpush.bf16.msra.mxu0 %v432
      %448 = vmatmul.bf16.gmra.mxu0 %v321
      %v449 = vpop.f32.mrf.mxu0
      %v450 = vadd.f32 %v414, %v449
      %v451 = vpop.f32.mrf.mxu0
      %v452 = vadd.f32 %v414, %v451
      %453 = vmatmul.bf16.gmra.mxu0 %v324
      %v454 = vpop.f32.mrf.mxu0
      %v455 = vadd.f32 %v414, %v454
      %v456 = vpop.f32.mrf.mxu0
      %v457 = vadd.f32 %v414, %v456
      %458 = vdwg.mxu0
      %460 = vrot.lane.b32.xlu0 %v345, 112
      %v461 = vpop.permute.xlu0 %460
      %463 = vrot.lane.b32.xlu0 %v345, 96
      %v464 = vpop.permute.xlu0 %463
      %466 = vrot.lane.b32.xlu0 %v345, 80
      %v467 = vpop.permute.xlu0 %466
      %v469 = vrot.slane %v464, 4
      %v470 = vsel %vm114, %v469, %v345
      %v471 = vrot.slane %v345, 4
      %v472 = vsel %vm114, %v464, %v471
      %v474 = vunpack.c.l.s4 1983009808
      %v475 = vunpack.c.0.s8 %v474
      %v476 = vperm.slane %v470, %v475
      %v478 = vunpack.c.l.s4 1983009808
      %v479 = vunpack.c.0.s8 %v478
      %v480 = vperm.slane %v472, %v479
      %v481 = vrot.slane %v467, 4
      %v482 = vsel %vm114, %v481, %v461
      %v483 = vrot.slane %v461, 4
      %v484 = vsel %vm114, %v467, %v483
      %v486 = vunpack.c.l.s4 1983009808
      %v487 = vunpack.c.0.s8 %v486
      %v488 = vperm.slane %v482, %v487
      %v490 = vunpack.c.l.s4 1983009808
      %v491 = vunpack.c.0.s8 %v490
      %v492 = vperm.slane %v484, %v491
      %v493 = vrot.slane %v488, 4
      %v494 = vsel %vm114, %v493, %v476
      %v495 = vrot.slane %v476, 4
      %v496 = vsel %vm114, %v488, %v495
      %v498 = vunpack.c.l.s4 1934713408
      %v499 = vunpack.c.0.s8 %v498
      %v500 = vperm.slane %v494, %v499
      %v502 = vunpack.c.l.s4 1934713408
      %v503 = vunpack.c.0.s8 %v502
      %v504 = vperm.slane %v496, %v503
      %v505 = vrot.slane %v492, 4
      %v506 = vsel %vm114, %v505, %v480
      %v507 = vrot.slane %v480, 4
      %v508 = vsel %vm114, %v492, %v507
      %v510 = vunpack.c.l.s4 1934713408
      %v511 = vunpack.c.0.s8 %v510
      %v512 = vperm.slane %v506, %v511
      %v514 = vunpack.c.l.s4 1934713408
      %v515 = vunpack.c.0.s8 %v514
      %v516 = vperm.slane %v508, %v515
      %v517 = vrot.slane %v500, 4
      %v518 = vsel %vm114, 0.0, %v517
      %v519 = vrot.slane %v504, 4
      %v520 = vsel %vm114, 0.0, %v519
      %v521 = vrot.slane %v512, 4
      %v522 = vsel %vm114, 0.0, %v521
      %v523 = vrot.slane %v516, 4
      %v524 = vsel %vm114, 0.0, %v523
      %v525 = vsel %vm114, %v519, %v500
      %v527 = vunpack.c.l.s4 1983009808
      %v528 = vunpack.c.0.s8 %v527
      %v529 = vperm.slane %v525, %v528
      %v530 = vrot.slane %v520, 4
      %v531 = vsel %vm114, %v530, %v518
      %v533 = vunpack.c.l.s4 1983009808
      %v534 = vunpack.c.0.s8 %v533
      %v535 = vperm.slane %v531, %v534
      %v536 = vsel %vm114, %v523, %v512
      %v538 = vunpack.c.l.s4 1983009808
      %v539 = vunpack.c.0.s8 %v538
      %v540 = vperm.slane %v536, %v539
      %v541 = vrot.slane %v524, 4
      %v542 = vsel %vm114, %v541, %v522
      %v544 = vunpack.c.l.s4 1983009808
      %v545 = vunpack.c.0.s8 %v544
      %v546 = vperm.slane %v542, %v545
      %v547 = vrot.slane %v535, 4
      %v548 = vsel %vm114, %v547, %v529
      %v549 = vrot.slane %v529, 4
      %v550 = vsel %vm114, %v535, %v549
      %v552 = vunpack.c.l.s4 1934713408
      %v553 = vunpack.c.0.s8 %v552
      %v554 = vperm.slane %v548, %v553
      %v556 = vunpack.c.l.s4 1934713408
      %v557 = vunpack.c.0.s8 %v556
      %v558 = vperm.slane %v550, %v557
      %v559 = vrot.slane %v546, 4
      %v560 = vsel %vm114, %v559, %v540
      %v561 = vrot.slane %v540, 4
      %v562 = vsel %vm114, %v546, %v561
      %v564 = vunpack.c.l.s4 1934713408
      %v565 = vunpack.c.0.s8 %v564
      %v566 = vperm.slane %v560, %v565
      %v568 = vunpack.c.l.s4 1934713408
      %v569 = vunpack.c.0.s8 %v568
      %v570 = vperm.slane %v562, %v569
      %v571 = vrot.slane %v566, 4
      %v572 = vsel %vm114, %v571, %v554
      %v573 = vrot.slane %v554, 4
      %v574 = vsel %vm114, %v566, %v573
      %v575 = vrot.slane %v570, 4
      %v576 = vsel %vm114, %v575, %v558
      %v577 = vrot.slane %v558, 4
      %v578 = vsel %vm114, %v570, %v577
      %v579 = vpack.c.bf16 %v572, %v572
      %v580 = vpack.c.bf16 %v574, %v574
      %v581 = vpack.c.bf16 %v576, %v576
      %v582 = vpack.c.bf16 %v578, %v578
      %584 = vrot.lane.b32.xlu0 %v395, 112
      %v585 = vpop.permute.xlu0 %584
      %587 = vrot.lane.b32.xlu0 %v395, 96
      %v588 = vpop.permute.xlu0 %587
      %590 = vrot.lane.b32.xlu0 %v395, 80
      %v591 = vpop.permute.xlu0 %590
      %v593 = vrot.slane %v588, 4
      %v594 = vsel %vm114, %v593, %v395
      %v595 = vrot.slane %v395, 4
      %v596 = vsel %vm114, %v588, %v595
      %v598 = vunpack.c.l.s4 1983009808
      %v599 = vunpack.c.0.s8 %v598
      %v600 = vperm.slane %v594, %v599
      %v602 = vunpack.c.l.s4 1983009808
      %v603 = vunpack.c.0.s8 %v602
      %v604 = vperm.slane %v596, %v603
      %v605 = vrot.slane %v591, 4
      %v606 = vsel %vm114, %v605, %v585
      %v607 = vrot.slane %v585, 4
      %v608 = vsel %vm114, %v591, %v607
      %v610 = vunpack.c.l.s4 1983009808
      %v611 = vunpack.c.0.s8 %v610
      %v612 = vperm.slane %v606, %v611
      %v614 = vunpack.c.l.s4 1983009808
      %v615 = vunpack.c.0.s8 %v614
      %v616 = vperm.slane %v608, %v615
      %v617 = vrot.slane %v612, 4
      %v618 = vsel %vm114, %v617, %v600
      %v619 = vrot.slane %v600, 4
      %v620 = vsel %vm114, %v612, %v619
      %v622 = vunpack.c.l.s4 1934713408
      %v623 = vunpack.c.0.s8 %v622
      %v624 = vperm.slane %v618, %v623
      %v626 = vunpack.c.l.s4 1934713408
      %v627 = vunpack.c.0.s8 %v626
      %v628 = vperm.slane %v620, %v627
      %v629 = vrot.slane %v616, 4
      %v630 = vsel %vm114, %v629, %v604
      %v631 = vrot.slane %v604, 4
      %v632 = vsel %vm114, %v616, %v631
      %v634 = vunpack.c.l.s4 1934713408
      %v635 = vunpack.c.0.s8 %v634
      %v636 = vperm.slane %v630, %v635
      %v638 = vunpack.c.l.s4 1934713408
      %v639 = vunpack.c.0.s8 %v638
      %v640 = vperm.slane %v632, %v639
      %v641 = vrot.slane %v624, 4
      %v642 = vsel %vm114, 0.0, %v641
      %v643 = vrot.slane %v628, 4
      %v644 = vsel %vm114, 0.0, %v643
      %v645 = vrot.slane %v636, 4
      %v646 = vsel %vm114, 0.0, %v645
      %v647 = vrot.slane %v640, 4
      %v648 = vsel %vm114, 0.0, %v647
      %v649 = vsel %vm114, %v643, %v624
      %v651 = vunpack.c.l.s4 1983009808
      %v652 = vunpack.c.0.s8 %v651
      %v653 = vperm.slane %v649, %v652
      %v654 = vrot.slane %v644, 4
      %v655 = vsel %vm114, %v654, %v642
      %v657 = vunpack.c.l.s4 1983009808
      %v658 = vunpack.c.0.s8 %v657
      %v659 = vperm.slane %v655, %v658
      %v660 = vsel %vm114, %v647, %v636
      %v662 = vunpack.c.l.s4 1983009808
      %v663 = vunpack.c.0.s8 %v662
      %v664 = vperm.slane %v660, %v663
      %v665 = vrot.slane %v648, 4
      %v666 = vsel %vm114, %v665, %v646
      %v668 = vunpack.c.l.s4 1983009808
      %v669 = vunpack.c.0.s8 %v668
      %v670 = vperm.slane %v666, %v669
      %v671 = vrot.slane %v659, 4
      %v672 = vsel %vm114, %v671, %v653
      %v673 = vrot.slane %v653, 4
      %v674 = vsel %vm114, %v659, %v673
      %v676 = vunpack.c.l.s4 1934713408
      %v677 = vunpack.c.0.s8 %v676
      %v678 = vperm.slane %v672, %v677
      %v680 = vunpack.c.l.s4 1934713408
      %v681 = vunpack.c.0.s8 %v680
      %v682 = vperm.slane %v674, %v681
      %v683 = vrot.slane %v670, 4
      %v684 = vsel %vm114, %v683, %v664
      %v685 = vrot.slane %v664, 4
      %v686 = vsel %vm114, %v670, %v685
      %v688 = vunpack.c.l.s4 1934713408
      %v689 = vunpack.c.0.s8 %v688
      %v690 = vperm.slane %v684, %v689
      %v692 = vunpack.c.l.s4 1934713408
      %v693 = vunpack.c.0.s8 %v692
      %v694 = vperm.slane %v686, %v693
      %v695 = vrot.slane %v690, 4
      %v696 = vsel %vm114, %v695, %v678
      %v697 = vrot.slane %v678, 4
      %v698 = vsel %vm114, %v690, %v697
      %v699 = vrot.slane %v694, 4
      %v700 = vsel %vm114, %v699, %v682
      %v701 = vrot.slane %v682, 4
      %v702 = vsel %vm114, %v694, %v701
      %v703 = vpack.c.bf16 %v696, %v696
      %v704 = vpack.c.bf16 %v698, %v698
      %v705 = vpack.c.bf16 %v700, %v700
      %v706 = vpack.c.bf16 %v702, %v702
      %708 = vrot.lane.b32.xlu0 %v450, 112
      %v709 = vpop.permute.xlu0 %708
      %711 = vrot.lane.b32.xlu0 %v450, 96
      %v712 = vpop.permute.xlu0 %711
      %714 = vrot.lane.b32.xlu0 %v450, 80
      %v715 = vpop.permute.xlu0 %714
      %v717 = vrot.slane %v712, 4
      %v718 = vsel %vm114, %v717, %v450
      %v719 = vrot.slane %v450, 4
      %v720 = vsel %vm114, %v712, %v719
      %v722 = vunpack.c.l.s4 1983009808
      %v723 = vunpack.c.0.s8 %v722
      %v724 = vperm.slane %v718, %v723
      %v726 = vunpack.c.l.s4 1983009808
      %v727 = vunpack.c.0.s8 %v726
      %v728 = vperm.slane %v720, %v727
      %v729 = vrot.slane %v715, 4
      %v730 = vsel %vm114, %v729, %v709
      %v731 = vrot.slane %v709, 4
      %v732 = vsel %vm114, %v715, %v731
      %v734 = vunpack.c.l.s4 1983009808
      %v735 = vunpack.c.0.s8 %v734
      %v736 = vperm.slane %v730, %v735
      %v738 = vunpack.c.l.s4 1983009808
      %v739 = vunpack.c.0.s8 %v738
      %v740 = vperm.slane %v732, %v739
      %v741 = vrot.slane %v736, 4
      %v742 = vsel %vm114, %v741, %v724
      %v743 = vrot.slane %v724, 4
      %v744 = vsel %vm114, %v736, %v743
      %v746 = vunpack.c.l.s4 1934713408
      %v747 = vunpack.c.0.s8 %v746
      %v748 = vperm.slane %v742, %v747
      %v750 = vunpack.c.l.s4 1934713408
      %v751 = vunpack.c.0.s8 %v750
      %v752 = vperm.slane %v744, %v751
      %v753 = vrot.slane %v740, 4
      %v754 = vsel %vm114, %v753, %v728
      %v755 = vrot.slane %v728, 4
      %v756 = vsel %vm114, %v740, %v755
      %v758 = vunpack.c.l.s4 1934713408
      %v759 = vunpack.c.0.s8 %v758
      %v760 = vperm.slane %v754, %v759
      %v762 = vunpack.c.l.s4 1934713408
      %v763 = vunpack.c.0.s8 %v762
      %v764 = vperm.slane %v756, %v763
      %v765 = vrot.slane %v748, 4
      %v766 = vsel %vm114, 0.0, %v765
      %v767 = vrot.slane %v752, 4
      %v768 = vsel %vm114, 0.0, %v767
      %v769 = vrot.slane %v760, 4
      %v770 = vsel %vm114, 0.0, %v769
      %v771 = vrot.slane %v764, 4
      %v772 = vsel %vm114, 0.0, %v771
      %v773 = vsel %vm114, %v767, %v748
      %v775 = vunpack.c.l.s4 1983009808
      %v776 = vunpack.c.0.s8 %v775
      %v777 = vperm.slane %v773, %v776
      %v778 = vrot.slane %v768, 4
      %v779 = vsel %vm114, %v778, %v766
      %v781 = vunpack.c.l.s4 1983009808
      %v782 = vunpack.c.0.s8 %v781
      %v783 = vperm.slane %v779, %v782
      %v784 = vsel %vm114, %v771, %v760
      %v786 = vunpack.c.l.s4 1983009808
      %v787 = vunpack.c.0.s8 %v786
      %v788 = vperm.slane %v784, %v787
      %v789 = vrot.slane %v772, 4
      %v790 = vsel %vm114, %v789, %v770
      %v792 = vunpack.c.l.s4 1983009808
      %v793 = vunpack.c.0.s8 %v792
      %v794 = vperm.slane %v790, %v793
      %v795 = vrot.slane %v783, 4
      %v796 = vsel %vm114, %v795, %v777
      %v797 = vrot.slane %v777, 4
      %v798 = vsel %vm114, %v783, %v797
      %v800 = vunpack.c.l.s4 1934713408
      %v801 = vunpack.c.0.s8 %v800
      %v802 = vperm.slane %v796, %v801
      %v804 = vunpack.c.l.s4 1934713408
      %v805 = vunpack.c.0.s8 %v804
      %v806 = vperm.slane %v798, %v805
      %v807 = vrot.slane %v794, 4
      %v808 = vsel %vm114, %v807, %v788
      %v809 = vrot.slane %v788, 4
      %v810 = vsel %vm114, %v794, %v809
      %v812 = vunpack.c.l.s4 1934713408
      %v813 = vunpack.c.0.s8 %v812
      %v814 = vperm.slane %v808, %v813
      %v816 = vunpack.c.l.s4 1934713408
      %v817 = vunpack.c.0.s8 %v816
      %v818 = vperm.slane %v810, %v817
      %v819 = vrot.slane %v814, 4
      %v820 = vsel %vm114, %v819, %v802
      %v821 = vrot.slane %v802, 4
      %v822 = vsel %vm114, %v814, %v821
      %v823 = vrot.slane %v818, 4
      %v824 = vsel %vm114, %v823, %v806
      %v825 = vrot.slane %v806, 4
      %v826 = vsel %vm114, %v818, %v825
      %v827 = vpack.c.bf16 %v820, %v820
      %v828 = vpack.c.bf16 %v822, %v822
      %v829 = vpack.c.bf16 %v824, %v824
      %v830 = vpack.c.bf16 %v826, %v826
      %vm831 = vcmask 130048
      %v833 = vsel %vm831, %v579, 0
      %v836 = vsel %vm831, %v703, 0
      %838 = vmatpush.bf16.xpose.msra.mxu0 0
      %839 = vmatpush.bf16.xpose.msra.mxu0 0
      %840 = vmatpush.bf16.xpose.msra.mxu0 0
      %841 = vmatpush.bf16.xpose.msra.mxu0 0
      %842 = vmatpush.bf16.xpose.msra.mxu0 0
      %843 = vmatpush.bf16.xpose.msra.mxu0 0
      %844 = vmatpush.bf16.xpose.msra.mxu0 0
      %845 = vmatpush.bf16.xpose.msra.mxu0 %v836
      %846 = vmatmul.bf16.gmra.mxu0 %v833
      %v847 = vpop.f32.mrf.mxu0
      %v848 = vadd.f32 0.0, %v847
      %v849 = vpop.f32.mrf.mxu0
      %850 = vdwg.mxu0
      %v852 = vsel %vm831, %v580, 0
      %v855 = vsel %vm831, %v704, 0
      %857 = vmatpush.bf16.xpose.msra.mxu0 0
      %858 = vmatpush.bf16.xpose.msra.mxu0 0
      %859 = vmatpush.bf16.xpose.msra.mxu0 0
      %860 = vmatpush.bf16.xpose.msra.mxu0 0
      %861 = vmatpush.bf16.xpose.msra.mxu0 0
      %862 = vmatpush.bf16.xpose.msra.mxu0 0
      %863 = vmatpush.bf16.xpose.msra.mxu0 0
      %864 = vmatpush.bf16.xpose.msra.mxu0 %v855
      %865 = vmatmul.bf16.gmra.mxu0 %v852
      %v866 = vpop.f32.mrf.mxu0
      %v867 = vadd.f32 0.0, %v866
      %v868 = vpop.f32.mrf.mxu0
      %869 = vdwg.mxu0
      %v871 = vsel %vm831, %v581, 0
      %v874 = vsel %vm831, %v705, 0
      %876 = vmatpush.bf16.xpose.msra.mxu0 0
      %877 = vmatpush.bf16.xpose.msra.mxu0 0
      %878 = vmatpush.bf16.xpose.msra.mxu0 0
      %879 = vmatpush.bf16.xpose.msra.mxu0 0
      %880 = vmatpush.bf16.xpose.msra.mxu0 0
      %881 = vmatpush.bf16.xpose.msra.mxu0 0
      %882 = vmatpush.bf16.xpose.msra.mxu0 0
      %883 = vmatpush.bf16.xpose.msra.mxu0 %v874
      %884 = vmatmul.bf16.gmra.mxu0 %v871
      %v885 = vpop.f32.mrf.mxu0
      %v886 = vadd.f32 0.0, %v885
      %v887 = vpop.f32.mrf.mxu0
      %888 = vdwg.mxu0
      %v890 = vsel %vm831, %v582, 0
      %v893 = vsel %vm831, %v706, 0
      %895 = vmatpush.bf16.xpose.msra.mxu0 0
      %896 = vmatpush.bf16.xpose.msra.mxu0 0
      %897 = vmatpush.bf16.xpose.msra.mxu0 0
      %898 = vmatpush.bf16.xpose.msra.mxu0 0
      %899 = vmatpush.bf16.xpose.msra.mxu0 0
      %900 = vmatpush.bf16.xpose.msra.mxu0 0
      %901 = vmatpush.bf16.xpose.msra.mxu0 0
      %902 = vmatpush.bf16.xpose.msra.mxu0 %v893
      %903 = vmatmul.bf16.gmra.mxu0 %v890
      %v904 = vpop.f32.mrf.mxu0
      %v905 = vadd.f32 0.0, %v904
      %v906 = vpop.f32.mrf.mxu0
      %907 = vdwg.mxu0
      %vm908 = vcmask 64512
      %v909 = vsel %vm908, %v848, -inf
      %910 = vmax.xlane.f32.xlu0 %v909
      %v911 = vpop.xlane.xlu0 %910
      %v912 = vsel %vm908, %v867, -inf
      %913 = vmax.xlane.f32.xlu0 %v912
      %v914 = vpop.xlane.xlu0 %913
      %v915 = vsel %vm908, %v886, -inf
      %916 = vmax.xlane.f32.xlu0 %v915
      %v917 = vpop.xlane.xlu0 %916
      %v918 = vsel %vm908, %v905, -inf
      %919 = vmax.xlane.f32.xlu0 %v918
      %v920 = vpop.xlane.xlu0 %919
      %v921 = vsub.f32 %v848, %v911
      %v922 = vsub.f32 %v867, %v914
      %v923 = vsub.f32 %v886, %v917
      %v924 = vsub.f32 %v905, %v920
      %v925 = vmul.f32 %v921, 1.442695
      %v926 = vpow.pop %v925
      %v927 = vmul.f32 %v922, 1.442695
      %v928 = vpow.pop %v927
      %v929 = vmul.f32 %v923, 1.442695
      %v930 = vpow.pop %v929
      %v931 = vmul.f32 %v924, 1.442695
      %v932 = vpow.pop %v931
      %v933 = vsel %vm908, %v926, 0.0
      %934 = vadd.xlane.f32.xlu0 %v933
      %v935 = vpop.xlane.xlu0 %934
      %v936 = vsel %vm908, %v928, 0.0
      %937 = vadd.xlane.f32.xlu0 %v936
      %v938 = vpop.xlane.xlu0 %937
      %v939 = vsel %vm908, %v930, 0.0
      %940 = vadd.xlane.f32.xlu0 %v939
      %v941 = vpop.xlane.xlu0 %940
      %v942 = vsel %vm908, %v932, 0.0
      %943 = vadd.xlane.f32.xlu0 %v942
      %v944 = vpop.xlane.xlu0 %943
      %v945 = vrcp.pop %v935
      %v946 = vrcp.pop %v938
      %v947 = vrcp.pop %v941
      %v948 = vrcp.pop %v944
      %v949 = vmul.f32 %v926, %v945
      %v950 = vmul.f32 %v928, %v946
      %v951 = vmul.f32 %v930, %v947
      %v952 = vmul.f32 %v932, %v948
      %v953 = vpack.c.bf16 %v949, %v949
      %v954 = vpack.c.bf16 %v950, %v950
      %v955 = vpack.c.bf16 %v951, %v951
      %v956 = vpack.c.bf16 %v952, %v952
      %v958 = vsel %vm908, %v953, 0
      %vm960 = vcmask 1043456
      %v962 = vsel %vm960, %v827, 0
      %964 = vmatpush.bf16.msra.mxu0 0
      %965 = vmatpush.bf16.msra.mxu0 0
      %966 = vmatpush.bf16.msra.mxu0 0
      %967 = vmatpush.bf16.msra.mxu0 0
      %968 = vmatpush.bf16.msra.mxu0 0
      %969 = vmatpush.bf16.msra.mxu0 0
      %970 = vmatpush.bf16.msra.mxu0 0
      %971 = vmatpush.bf16.msra.mxu0 %v962
      %972 = vmatmul.bf16.gmra.mxu0 %v958
      %v973 = vpop.f32.mrf.mxu0
      %v974 = vadd.f32 0.0, %v973
      %v975 = vpop.f32.mrf.mxu0
      %976 = vdwg.mxu0
      %v978 = vsel %vm908, %v954, 0
      %v981 = vsel %vm960, %v828, 0
      %983 = vmatpush.bf16.msra.mxu0 0
      %984 = vmatpush.bf16.msra.mxu0 0
      %985 = vmatpush.bf16.msra.mxu0 0
      %986 = vmatpush.bf16.msra.mxu0 0
      %987 = vmatpush.bf16.msra.mxu0 0
      %988 = vmatpush.bf16.msra.mxu0 0
      %989 = vmatpush.bf16.msra.mxu0 0
      %990 = vmatpush.bf16.msra.mxu0 %v981
      %991 = vmatmul.bf16.gmra.mxu0 %v978
      %v992 = vpop.f32.mrf.mxu0
      %v993 = vadd.f32 0.0, %v992
      %v994 = vpop.f32.mrf.mxu0
      %995 = vdwg.mxu0
      %v997 = vsel %vm908, %v955, 0
      %v1000 = vsel %vm960, %v829, 0
      %1002 = vmatpush.bf16.msra.mxu0 0
      %1003 = vmatpush.bf16.msra.mxu0 0
      %1004 = vmatpush.bf16.msra.mxu0 0
      %1005 = vmatpush.bf16.msra.mxu0 0
      %1006 = vmatpush.bf16.msra.mxu0 0
      %1007 = vmatpush.bf16.msra.mxu0 0
      %1008 = vmatpush.bf16.msra.mxu0 0
      %1009 = vmatpush.bf16.msra.mxu0 %v1000
      %1010 = vmatmul.bf16.gmra.mxu0 %v997
      %v1011 = vpop.f32.mrf.mxu0
      %v1012 = vadd.f32 0.0, %v1011
      %v1013 = vpop.f32.mrf.mxu0
      %1014 = vdwg.mxu0
      %v1016 = vsel %vm908, %v956, 0
      %v1019 = vsel %vm960, %v830, 0
      %1021 = vmatpush.bf16.msra.mxu0 0
      %1022 = vmatpush.bf16.msra.mxu0 0
      %1023 = vmatpush.bf16.msra.mxu0 0
      %1024 = vmatpush.bf16.msra.mxu0 0
      %1025 = vmatpush.bf16.msra.mxu0 0
      %1026 = vmatpush.bf16.msra.mxu0 0
      %1027 = vmatpush.bf16.msra.mxu0 0
      %1028 = vmatpush.bf16.msra.mxu0 %v1019
      %1029 = vmatmul.bf16.gmra.mxu0 %v1016
      %v1030 = vpop.f32.mrf.mxu0
      %v1031 = vadd.f32 0.0, %v1030
      %v1032 = vpop.f32.mrf.mxu0
      %1033 = vdwg.mxu0
      %v1034 = vrot.slane %v1012, 4
      %v1035 = vsel %vm114, %v1034, %v974
      %v1036 = vrot.slane %v974, 4
      %v1037 = vsel %vm114, %v1012, %v1036
      %v1039 = vunpack.c.l.s4 1983009808
      %v1040 = vunpack.c.0.s8 %v1039
      %v1041 = vperm.slane %v1035, %v1040
      %v1043 = vunpack.c.l.s4 1983009808
      %v1044 = vunpack.c.0.s8 %v1043
      %v1045 = vperm.slane %v1037, %v1044
      %v1046 = vrot.slane %v1031, 4
      %v1047 = vsel %vm114, %v1046, %v993
      %v1048 = vrot.slane %v993, 4
      %v1049 = vsel %vm114, %v1031, %v1048
      %v1051 = vunpack.c.l.s4 1983009808
      %v1052 = vunpack.c.0.s8 %v1051
      %v1053 = vperm.slane %v1047, %v1052
      %v1055 = vunpack.c.l.s4 1983009808
      %v1056 = vunpack.c.0.s8 %v1055
      %v1057 = vperm.slane %v1049, %v1056
      %v1058 = vrot.slane %v1053, 4
      %v1059 = vsel %vm114, %v1058, %v1041
      %v1060 = vrot.slane %v1041, 4
      %v1061 = vsel %vm114, %v1053, %v1060
      %v1063 = vunpack.c.l.s4 1934713408
      %v1064 = vunpack.c.0.s8 %v1063
      %v1065 = vperm.slane %v1059, %v1064
      %v1067 = vunpack.c.l.s4 1934713408
      %v1068 = vunpack.c.0.s8 %v1067
      %v1069 = vperm.slane %v1061, %v1068
      %v1070 = vrot.slane %v1057, 4
      %v1071 = vsel %vm114, %v1070, %v1045
      %v1072 = vrot.slane %v1045, 4
      %v1073 = vsel %vm114, %v1057, %v1072
      %v1075 = vunpack.c.l.s4 1934713408
      %v1076 = vunpack.c.0.s8 %v1075
      %v1077 = vperm.slane %v1071, %v1076
      %v1079 = vunpack.c.l.s4 1934713408
      %v1080 = vunpack.c.0.s8 %v1079
      %v1081 = vperm.slane %v1073, %v1080
      %v1082 = vrot.slane %v1065, 4
      %v1083 = vsel %vm114, 0.0, %v1082
      %v1084 = vrot.slane %v1069, 4
      %v1085 = vsel %vm114, 0.0, %v1084
      %v1086 = vrot.slane %v1077, 4
      %v1087 = vsel %vm114, 0.0, %v1086
      %v1088 = vrot.slane %v1081, 4
      %v1089 = vsel %vm114, 0.0, %v1088
      %v1090 = vsel %vm114, %v1084, %v1065
      %v1092 = vunpack.c.l.s4 1983009808
      %v1093 = vunpack.c.0.s8 %v1092
      %v1094 = vperm.slane %v1090, %v1093
      %v1095 = vrot.slane %v1085, 4
      %v1096 = vsel %vm114, %v1095, %v1083
      %v1098 = vunpack.c.l.s4 1983009808
      %v1099 = vunpack.c.0.s8 %v1098
      %v1100 = vperm.slane %v1096, %v1099
      %v1101 = vsel %vm114, %v1088, %v1077
      %v1103 = vunpack.c.l.s4 1983009808
      %v1104 = vunpack.c.0.s8 %v1103
      %v1105 = vperm.slane %v1101, %v1104
      %v1106 = vrot.slane %v1089, 4
      %v1107 = vsel %vm114, %v1106, %v1087
      %v1109 = vunpack.c.l.s4 1983009808
      %v1110 = vunpack.c.0.s8 %v1109
      %v1111 = vperm.slane %v1107, %v1110
      %v1112 = vrot.slane %v1100, 4
      %v1113 = vsel %vm114, %v1112, %v1094
      %v1114 = vrot.slane %v1094, 4
      %v1115 = vsel %vm114, %v1100, %v1114
      %v1117 = vunpack.c.l.s4 1934713408
      %v1118 = vunpack.c.0.s8 %v1117
      %v1119 = vperm.slane %v1113, %v1118
      %v1121 = vunpack.c.l.s4 1934713408
      %v1122 = vunpack.c.0.s8 %v1121
      %v1123 = vperm.slane %v1115, %v1122
      %v1124 = vrot.slane %v1111, 4
      %v1125 = vsel %vm114, %v1124, %v1105
      %v1126 = vrot.slane %v1105, 4
      %v1127 = vsel %vm114, %v1111, %v1126
      %v1129 = vunpack.c.l.s4 1934713408
      %v1130 = vunpack.c.0.s8 %v1129
      %v1131 = vperm.slane %v1125, %v1130
      %v1133 = vunpack.c.l.s4 1934713408
      %v1134 = vunpack.c.0.s8 %v1133
      %v1135 = vperm.slane %v1127, %v1134
      %v1136 = vrot.slane %v1131, 4
      %v1137 = vsel %vm114, %v1136, %v1119
      %v1138 = vrot.slane %v1119, 4
      %v1139 = vsel %vm114, %v1131, %v1138
      %v1140 = vrot.slane %v1135, 4
      %v1141 = vsel %vm114, %v1140, %v1123
      %v1142 = vrot.slane %v1123, 4
      %v1143 = vsel %vm114, %v1135, %v1142
      %1145 = vrot.lane.b32.xlu0 %v1139, 16
      %v1146 = vpop.permute.xlu0 %1145
      %1149 = vrot.lane.b32.xlu0 %v1141, 32
      %v1150 = vpop.permute.xlu0 %1149
      %1153 = vrot.lane.b32.xlu0 %v1143, 48
      %v1154 = vpop.permute.xlu0 %1153
      %v1156 = vsel %vm831, %v1137, %v1146
      %vm1157 = vcmask 261120
      %v1158 = vsel %vm1157, %v1156, %v1150
      %vm1159 = vcmask 392192
      %v1160 = vsel %vm1159, %v1158, %v1154
      %v1161 = vpack.c.bf16 %v1160, %v1160
      %v1162 = vld [vmem:[#allocation9] sm:$0xf]
      %v1163 = vld [vmem:[#allocation9 + $0x4] sm:$0xf]
      %v1164 = vld [vmem:[#allocation9 + $0x8] sm:$0xf]
      %v1165 = vld [vmem:[#allocation9 + $0xc] sm:$0xf]
      %v1166 = vld [vmem:[#allocation9 + $0x10] sm:$0xf]
      %v1167 = vld [vmem:[#allocation9 + $0x14] sm:$0xf]
      %v1168 = vld [vmem:[#allocation9 + $0x18] sm:$0xf]
      %v1169 = vld [vmem:[#allocation9 + $0x1c] sm:$0xf]
      %v1170 = vld [vmem:[%s10] sm:$0x1]
      %v1172 = vperm.slane %v1170, 0
      %v1182 = vunpack.c.l.b16 %v1162
      %v1183 = vunpack.c.l.b16 %v1163
      %v1184 = vunpack.c.l.b16 %v1164
      %v1185 = vunpack.c.l.b16 %v1165
      %v1186 = vunpack.c.l.b16 %v1166
      %v1187 = vunpack.c.l.b16 %v1167
      %v1188 = vunpack.c.l.b16 %v1168
      %v1189 = vunpack.c.l.b16 %v1169
      %v1190 = vpack.c.b16 %v1183, %v1182
      %v1191 = vpack.c.b16 %v1185, %v1184
      %v1192 = vpack.c.b16 %v1187, %v1186
      %v1193 = vpack.c.b16 %v1189, %v1188
      %v1199 = vsel %vm172, %v1161, 0
      %1201 = vmatpush.bf16.msra.mxu0 0
      %1202 = vmatpush.bf16.msra.mxu0 0
      %1203 = vmatpush.bf16.msra.mxu0 0
      %1204 = vmatpush.bf16.msra.mxu0 0
      %1205 = vmatpush.bf16.msra.mxu0 %v1193
      %1206 = vmatpush.bf16.msra.mxu0 %v1192
      %1207 = vmatpush.bf16.msra.mxu0 %v1191
      %1208 = vmatpush.bf16.msra.mxu0 %v1190
      %1209 = vmatmul.bf16.gmra.mxu0 %v1199
      %v1210 = vpop.f32.mrf.mxu0
      %v1211 = vadd.f32 %v1172, %v1210
      %v1212 = vpop.f32.mrf.mxu0
      %1213 = vdwg.mxu0
      %v1214 = vadd.f32 %v163, %v1211
      %1215 = vst.msk [vmem:[#allocation2] sm:$0xff] %vm172, %v1214
      %v1216 = vld [vmem:[%s11] sm:$0x1]
      %v1217 = vld [vmem:[%s12] sm:$0x1]
      %v1218 = vsel %vm172, %v1214, 0.0
      %1219 = vadd.xlane.f32.xlu0 %v1218
      %v1220 = vpop.xlane.xlu0 %1219
      %v1221 = vmul.f32 %v1220, %v191
      %v1222 = vsub.f32 %v1214, %v1221
      %v1223 = vmul.f32 %v1222, %v1222
      %v1224 = vsel %vm172, %v1223, 0.0
      %1225 = vadd.xlane.f32.xlu0 %v1224
      %v1226 = vpop.xlane.xlu0 %1225
      %v1227 = vmul.f32 %v1226, %v191
      %v1228 = vadd.f32 %v1227, 1e-05
      %v1229 = vrsqrt.pop %v1228
      %v1230 = vmul.f32 %v1229, %v1228
      %v1231 = vmul.f32 %v1230, %v1229
      %v1232 = vmul.f32 0.5, %v1231
      %v1233 = vsub.f32 1.5, %v1232
      %v1234 = vmul.f32 %v1229, %v1233
      %vm1235 = vweird.f32 %v1228
      %vm1236 = vweird.f32 %v1229
      %vm1237 = vmor %vm1235, %vm1236
      %v1238 = vsel %vm1237, %v1229, %v1234
      %v1239 = vmul.f32 %v1222, %v1238
      %v1241 = vperm.slane %v1216, 0
      %v1243 = vmul.f32 %v1239, %v1241
      %v1245 = vperm.slane %v1217, 0
      %v1247 = vadd.f32 %v1243, %v1245
      %v1248 = vpack.c.bf16 %v1247, %v1247
      %vm1249 = vcmask 519168
      %1250 = vst.msk [vmem:[#allocation3] sm:$0xf] %vm1249, %v1248
      %1252 = vrot.lane.b32.xlu0 %v346, 112
      %v1253 = vpop.permute.xlu0 %1252
      %1255 = vrot.lane.b32.xlu0 %v346, 96
      %v1256 = vpop.permute.xlu0 %1255
      %1258 = vrot.lane.b32.xlu0 %v346, 80
      %v1259 = vpop.permute.xlu0 %1258
      %v1261 = vrot.slane %v1256, 4
      %v1262 = vsel %vm114, %v1261, %v346
      %v1263 = vrot.slane %v346, 4
      %v1264 = vsel %vm114, %v1256, %v1263
      %v1266 = vunpack.c.l.s4 1983009808
      %v1267 = vunpack.c.0.s8 %v1266
      %v1268 = vperm.slane %v1262, %v1267
      %v1270 = vunpack.c.l.s4 1983009808
      %v1271 = vunpack.c.0.s8 %v1270
      %v1272 = vperm.slane %v1264, %v1271
      %v1273 = vrot.slane %v1259, 4
      %v1274 = vsel %vm114, %v1273, %v1253
      %v1275 = vrot.slane %v1253, 4
      %v1276 = vsel %vm114, %v1259, %v1275
      %v1278 = vunpack.c.l.s4 1983009808
      %v1279 = vunpack.c.0.s8 %v1278
      %v1280 = vperm.slane %v1274, %v1279
      %v1282 = vunpack.c.l.s4 1983009808
      %v1283 = vunpack.c.0.s8 %v1282
      %v1284 = vperm.slane %v1276, %v1283
      %v1285 = vrot.slane %v1280, 4
      %v1286 = vsel %vm114, %v1285, %v1268
      %v1287 = vrot.slane %v1268, 4
      %v1288 = vsel %vm114, %v1280, %v1287
      %v1290 = vunpack.c.l.s4 1934713408
      %v1291 = vunpack.c.0.s8 %v1290
      %v1292 = vperm.slane %v1286, %v1291
      %v1294 = vunpack.c.l.s4 1934713408
      %v1295 = vunpack.c.0.s8 %v1294
      %v1296 = vperm.slane %v1288, %v1295
      %v1297 = vrot.slane %v1284, 4
      %v1298 = vsel %vm114, %v1297, %v1272
      %v1299 = vrot.slane %v1272, 4
      %v1300 = vsel %vm114, %v1284, %v1299
      %v1302 = vunpack.c.l.s4 1934713408
      %v1303 = vunpack.c.0.s8 %v1302
      %v1304 = vperm.slane %v1298, %v1303
      %v1306 = vunpack.c.l.s4 1934713408
      %v1307 = vunpack.c.0.s8 %v1306
      %v1308 = vperm.slane %v1300, %v1307
      %v1309 = vrot.slane %v1292, 4
      %v1310 = vsel %vm114, 0.0, %v1309
      %v1311 = vrot.slane %v1296, 4
      %v1312 = vsel %vm114, 0.0, %v1311
      %v1313 = vrot.slane %v1304, 4
      %v1314 = vsel %vm114, 0.0, %v1313
      %v1315 = vrot.slane %v1308, 4
      %v1316 = vsel %vm114, 0.0, %v1315
      %v1317 = vsel %vm114, %v1311, %v1292
      %v1319 = vunpack.c.l.s4 1983009808
      %v1320 = vunpack.c.0.s8 %v1319
      %v1321 = vperm.slane %v1317, %v1320
      %v1322 = vrot.slane %v1312, 4
      %v1323 = vsel %vm114, %v1322, %v1310
      %v1325 = vunpack.c.l.s4 1983009808
      %v1326 = vunpack.c.0.s8 %v1325
      %v1327 = vperm.slane %v1323, %v1326
      %v1328 = vsel %vm114, %v1315, %v1304
      %v1330 = vunpack.c.l.s4 1983009808
      %v1331 = vunpack.c.0.s8 %v1330
      %v1332 = vperm.slane %v1328, %v1331
      %v1333 = vrot.slane %v1316, 4
      %v1334 = vsel %vm114, %v1333, %v1314
      %v1336 = vunpack.c.l.s4 1983009808
      %v1337 = vunpack.c.0.s8 %v1336
      %v1338 = vperm.slane %v1334, %v1337
      %v1339 = vrot.slane %v1327, 4
      %v1340 = vsel %vm114, %v1339, %v1321
      %v1341 = vrot.slane %v1321, 4
      %v1342 = vsel %vm114, %v1327, %v1341
      %v1344 = vunpack.c.l.s4 1934713408
      %v1345 = vunpack.c.0.s8 %v1344
      %v1346 = vperm.slane %v1340, %v1345
      %v1348 = vunpack.c.l.s4 1934713408
      %v1349 = vunpack.c.0.s8 %v1348
      %v1350 = vperm.slane %v1342, %v1349
      %v1351 = vrot.slane %v1338, 4
      %v1352 = vsel %vm114, %v1351, %v1332
      %v1353 = vrot.slane %v1332, 4
      %v1354 = vsel %vm114, %v1338, %v1353
      %v1356 = vunpack.c.l.s4 1934713408
      %v1357 = vunpack.c.0.s8 %v1356
      %v1358 = vperm.slane %v1352, %v1357
      %v1360 = vunpack.c.l.s4 1934713408
      %v1361 = vunpack.c.0.s8 %v1360
      %v1362 = vperm.slane %v1354, %v1361
      %v1363 = vrot.slane %v1358, 4
      %v1364 = vsel %vm114, %v1363, %v1346
      %v1365 = vrot.slane %v1346, 4
      %v1366 = vsel %vm114, %v1358, %v1365
      %v1367 = vrot.slane %v1362, 4
      %v1368 = vsel %vm114, %v1367, %v1350
      %v1369 = vrot.slane %v1350, 4
      %v1370 = vsel %vm114, %v1362, %v1369
      %v1371 = vpack.c.bf16 %v1364, %v1364
      %v1372 = vpack.c.bf16 %v1366, %v1366
      %v1373 = vpack.c.bf16 %v1368, %v1368
      %v1374 = vpack.c.bf16 %v1370, %v1370
      %1376 = vrot.lane.b32.xlu0 %v397, 112
      %v1377 = vpop.permute.xlu0 %1376
      %1379 = vrot.lane.b32.xlu0 %v397, 96
      %v1380 = vpop.permute.xlu0 %1379
      %1382 = vrot.lane.b32.xlu0 %v397, 80
      %v1383 = vpop.permute.xlu0 %1382
      %v1385 = vrot.slane %v1380, 4
      %v1386 = vsel %vm114, %v1385, %v397
      %v1387 = vrot.slane %v397, 4
      %v1388 = vsel %vm114, %v1380, %v1387
      %v1390 = vunpack.c.l.s4 1983009808
      %v1391 = vunpack.c.0.s8 %v1390
      %v1392 = vperm.slane %v1386, %v1391
      %v1394 = vunpack.c.l.s4 1983009808
      %v1395 = vunpack.c.0.s8 %v1394
      %v1396 = vperm.slane %v1388, %v1395
      %v1397 = vrot.slane %v1383, 4
      %v1398 = vsel %vm114, %v1397, %v1377
      %v1399 = vrot.slane %v1377, 4
      %v1400 = vsel %vm114, %v1383, %v1399
      %v1402 = vunpack.c.l.s4 1983009808
      %v1403 = vunpack.c.0.s8 %v1402
      %v1404 = vperm.slane %v1398, %v1403
      %v1406 = vunpack.c.l.s4 1983009808
      %v1407 = vunpack.c.0.s8 %v1406
      %v1408 = vperm.slane %v1400, %v1407
      %v1409 = vrot.slane %v1404, 4
      %v1410 = vsel %vm114, %v1409, %v1392
      %v1411 = vrot.slane %v1392, 4
      %v1412 = vsel %vm114, %v1404, %v1411
      %v1414 = vunpack.c.l.s4 1934713408
      %v1415 = vunpack.c.0.s8 %v1414
      %v1416 = vperm.slane %v1410, %v1415
      %v1418 = vunpack.c.l.s4 1934713408
      %v1419 = vunpack.c.0.s8 %v1418
      %v1420 = vperm.slane %v1412, %v1419
      %v1421 = vrot.slane %v1408, 4
      %v1422 = vsel %vm114, %v1421, %v1396
      %v1423 = vrot.slane %v1396, 4
      %v1424 = vsel %vm114, %v1408, %v1423
      %v1426 = vunpack.c.l.s4 1934713408
      %v1427 = vunpack.c.0.s8 %v1426
      %v1428 = vperm.slane %v1422, %v1427
      %v1430 = vunpack.c.l.s4 1934713408
      %v1431 = vunpack.c.0.s8 %v1430
      %v1432 = vperm.slane %v1424, %v1431
      %v1433 = vrot.slane %v1416, 4
      %v1434 = vsel %vm114, 0.0, %v1433
      %v1435 = vrot.slane %v1420, 4
      %v1436 = vsel %vm114, 0.0, %v1435
      %v1437 = vrot.slane %v1428, 4
      %v1438 = vsel %vm114, 0.0, %v1437
      %v1439 = vrot.slane %v1432, 4
      %v1440 = vsel %vm114, 0.0, %v1439
      %v1441 = vsel %vm114, %v1435, %v1416
      %v1443 = vunpack.c.l.s4 1983009808
      %v1444 = vunpack.c.0.s8 %v1443
      %v1445 = vperm.slane %v1441, %v1444
      %v1446 = vrot.slane %v1436, 4
      %v1447 = vsel %vm114, %v1446, %v1434
      %v1449 = vunpack.c.l.s4 1983009808
      %v1450 = vunpack.c.0.s8 %v1449
      %v1451 = vperm.slane %v1447, %v1450
      %v1452 = vsel %vm114, %v1439, %v1428
      %v1454 = vunpack.c.l.s4 1983009808
      %v1455 = vunpack.c.0.s8 %v1454
      %v1456 = vperm.slane %v1452, %v1455
      %v1457 = vrot.slane %v1440, 4
      %v1458 = vsel %vm114, %v1457, %v1438
      %v1460 = vunpack.c.l.s4 1983009808
      %v1461 = vunpack.c.0.s8 %v1460
      %v1462 = vperm.slane %v1458, %v1461
      %v1463 = vrot.slane %v1451, 4
      %v1464 = vsel %vm114, %v1463, %v1445
      %v1465 = vrot.slane %v1445, 4
      %v1466 = vsel %vm114, %v1451, %v1465
      %v1468 = vunpack.c.l.s4 1934713408
      %v1469 = vunpack.c.0.s8 %v1468
      %v1470 = vperm.slane %v1464, %v1469
      %v1472 = vunpack.c.l.s4 1934713408
      %v1473 = vunpack.c.0.s8 %v1472
      %v1474 = vperm.slane %v1466, %v1473
      %v1475 = vrot.slane %v1462, 4
      %v1476 = vsel %vm114, %v1475, %v1456
      %v1477 = vrot.slane %v1456, 4
      %v1478 = vsel %vm114, %v1462, %v1477
      %v1480 = vunpack.c.l.s4 1934713408
      %v1481 = vunpack.c.0.s8 %v1480
      %v1482 = vperm.slane %v1476, %v1481
      %v1484 = vunpack.c.l.s4 1934713408
      %v1485 = vunpack.c.0.s8 %v1484
      %v1486 = vperm.slane %v1478, %v1485
      %v1487 = vrot.slane %v1482, 4
      %v1488 = vsel %vm114, %v1487, %v1470
      %v1489 = vrot.slane %v1470, 4
      %v1490 = vsel %vm114, %v1482, %v1489
      %v1491 = vrot.slane %v1486, 4
      %v1492 = vsel %vm114, %v1491, %v1474
      %v1493 = vrot.slane %v1474, 4
      %v1494 = vsel %vm114, %v1486, %v1493
      %v1495 = vpack.c.bf16 %v1488, %v1488
      %v1496 = vpack.c.bf16 %v1490, %v1490
      %v1497 = vpack.c.bf16 %v1492, %v1492
      %v1498 = vpack.c.bf16 %v1494, %v1494
      %1500 = vrot.lane.b32.xlu0 %v452, 112
      %v1501 = vpop.permute.xlu0 %1500
      %1503 = vrot.lane.b32.xlu0 %v452, 96
      %v1504 = vpop.permute.xlu0 %1503
      %1506 = vrot.lane.b32.xlu0 %v452, 80
      %v1507 = vpop.permute.xlu0 %1506
      %v1509 = vrot.slane %v1504, 4
      %v1510 = vsel %vm114, %v1509, %v452
      %v1511 = vrot.slane %v452, 4
      %v1512 = vsel %vm114, %v1504, %v1511
      %v1514 = vunpack.c.l.s4 1983009808
      %v1515 = vunpack.c.0.s8 %v1514
      %v1516 = vperm.slane %v1510, %v1515
      %v1518 = vunpack.c.l.s4 1983009808
      %v1519 = vunpack.c.0.s8 %v1518
      %v1520 = vperm.slane %v1512, %v1519
      %v1521 = vrot.slane %v1507, 4
      %v1522 = vsel %vm114, %v1521, %v1501
      %v1523 = vrot.slane %v1501, 4
      %v1524 = vsel %vm114, %v1507, %v1523
      %v1526 = vunpack.c.l.s4 1983009808
      %v1527 = vunpack.c.0.s8 %v1526
      %v1528 = vperm.slane %v1522, %v1527
      %v1530 = vunpack.c.l.s4 1983009808
      %v1531 = vunpack.c.0.s8 %v1530
      %v1532 = vperm.slane %v1524, %v1531
      %v1533 = vrot.slane %v1528, 4
      %v1534 = vsel %vm114, %v1533, %v1516
      %v1535 = vrot.slane %v1516, 4
      %v1536 = vsel %vm114, %v1528, %v1535
      %v1538 = vunpack.c.l.s4 1934713408
      %v1539 = vunpack.c.0.s8 %v1538
      %v1540 = vperm.slane %v1534, %v1539
      %v1542 = vunpack.c.l.s4 1934713408
      %v1543 = vunpack.c.0.s8 %v1542
      %v1544 = vperm.slane %v1536, %v1543
      %v1545 = vrot.slane %v1532, 4
      %v1546 = vsel %vm114, %v1545, %v1520
      %v1547 = vrot.slane %v1520, 4
      %v1548 = vsel %vm114, %v1532, %v1547
      %v1550 = vunpack.c.l.s4 1934713408
      %v1551 = vunpack.c.0.s8 %v1550
      %v1552 = vperm.slane %v1546, %v1551
      %v1554 = vunpack.c.l.s4 1934713408
      %v1555 = vunpack.c.0.s8 %v1554
      %v1556 = vperm.slane %v1548, %v1555
      %v1557 = vrot.slane %v1540, 4
      %v1558 = vsel %vm114, 0.0, %v1557
      %v1559 = vrot.slane %v1544, 4
      %v1560 = vsel %vm114, 0.0, %v1559
      %v1561 = vrot.slane %v1552, 4
      %v1562 = vsel %vm114, 0.0, %v1561
      %v1563 = vrot.slane %v1556, 4
      %v1564 = vsel %vm114, 0.0, %v1563
      %v1565 = vsel %vm114, %v1559, %v1540
      %v1567 = vunpack.c.l.s4 1983009808
      %v1568 = vunpack.c.0.s8 %v1567
      %v1569 = vperm.slane %v1565, %v1568
      %v1570 = vrot.slane %v1560, 4
      %v1571 = vsel %vm114, %v1570, %v1558
      %v1573 = vunpack.c.l.s4 1983009808
      %v1574 = vunpack.c.0.s8 %v1573
      %v1575 = vperm.slane %v1571, %v1574
      %v1576 = vsel %vm114, %v1563, %v1552
      %v1578 = vunpack.c.l.s4 1983009808
      %v1579 = vunpack.c.0.s8 %v1578
      %v1580 = vperm.slane %v1576, %v1579
      %v1581 = vrot.slane %v1564, 4
      %v1582 = vsel %vm114, %v1581, %v1562
      %v1584 = vunpack.c.l.s4 1983009808
      %v1585 = vunpack.c.0.s8 %v1584
      %v1586 = vperm.slane %v1582, %v1585
      %v1587 = vrot.slane %v1575, 4
      %v1588 = vsel %vm114, %v1587, %v1569
      %v1589 = vrot.slane %v1569, 4
      %v1590 = vsel %vm114, %v1575, %v1589
      %v1592 = vunpack.c.l.s4 1934713408
      %v1593 = vunpack.c.0.s8 %v1592
      %v1594 = vperm.slane %v1588, %v1593
      %v1596 = vunpack.c.l.s4 1934713408
      %v1597 = vunpack.c.0.s8 %v1596
      %v1598 = vperm.slane %v1590, %v1597
      %v1599 = vrot.slane %v1586, 4
      %v1600 = vsel %vm114, %v1599, %v1580
      %v1601 = vrot.slane %v1580, 4
      %v1602 = vsel %vm114, %v1586, %v1601
      %v1604 = vunpack.c.l.s4 1934713408
      %v1605 = vunpack.c.0.s8 %v1604
      %v1606 = vperm.slane %v1600, %v1605
      %v1608 = vunpack.c.l.s4 1934713408
      %v1609 = vunpack.c.0.s8 %v1608
      %v1610 = vperm.slane %v1602, %v1609
      %v1611 = vrot.slane %v1606, 4
      %v1612 = vsel %vm114, %v1611, %v1594
      %v1613 = vrot.slane %v1594, 4
      %v1614 = vsel %vm114, %v1606, %v1613
      %v1615 = vrot.slane %v1610, 4
      %v1616 = vsel %vm114, %v1615, %v1598
      %v1617 = vrot.slane %v1598, 4
      %v1618 = vsel %vm114, %v1610, %v1617
      %v1619 = vpack.c.bf16 %v1612, %v1612
      %v1620 = vpack.c.bf16 %v1614, %v1614
      %v1621 = vpack.c.bf16 %v1616, %v1616
      %v1622 = vpack.c.bf16 %v1618, %v1618
      %v1624 = vsel %vm831, %v1371, 0
      %v1627 = vsel %vm831, %v1495, 0
      %1629 = vmatpush.bf16.xpose.msra.mxu0 0
      %1630 = vmatpush.bf16.xpose.msra.mxu0 0
      %1631 = vmatpush.bf16.xpose.msra.mxu0 0
      %1632 = vmatpush.bf16.xpose.msra.mxu0 0
      %1633 = vmatpush.bf16.xpose.msra.mxu0 0
      %1634 = vmatpush.bf16.xpose.msra.mxu0 0
      %1635 = vmatpush.bf16.xpose.msra.mxu0 0
      %1636 = vmatpush.bf16.xpose.msra.mxu0 %v1627
      %1637 = vmatmul.bf16.gmra.mxu0 %v1624
      %v1638 = vpop.f32.mrf.mxu0
      %v1639 = vadd.f32 0.0, %v1638
      %v1640 = vpop.f32.mrf.mxu0
      %1641 = vdwg.mxu0
      %v1643 = vsel %vm831, %v1372, 0
      %v1646 = vsel %vm831, %v1496, 0
      %1648 = vmatpush.bf16.xpose.msra.mxu0 0
      %1649 = vmatpush.bf16.xpose.msra.mxu0 0
      %1650 = vmatpush.bf16.xpose.msra.mxu0 0
      %1651 = vmatpush.bf16.xpose.msra.mxu0 0
      %1652 = vmatpush.bf16.xpose.msra.mxu0 0
      %1653 = vmatpush.bf16.xpose.msra.mxu0 0
      %1654 = vmatpush.bf16.xpose.msra.mxu0 0
      %1655 = vmatpush.bf16.xpose.msra.mxu0 %v1646
      %1656 = vmatmul.bf16.gmra.mxu0 %v1643
      %v1657 = vpop.f32.mrf.mxu0
      %v1658 = vadd.f32 0.0, %v1657
      %v1659 = vpop.f32.mrf.mxu0
      %1660 = vdwg.mxu0
      %v1662 = vsel %vm831, %v1373, 0
      %v1665 = vsel %vm831, %v1497, 0
      %1667 = vmatpush.bf16.xpose.msra.mxu0 0
      %1668 = vmatpush.bf16.xpose.msra.mxu0 0
      %1669 = vmatpush.bf16.xpose.msra.mxu0 0
      %1670 = vmatpush.bf16.xpose.msra.mxu0 0
      %1671 = vmatpush.bf16.xpose.msra.mxu0 0
      %1672 = vmatpush.bf16.xpose.msra.mxu0 0
      %1673 = vmatpush.bf16.xpose.msra.mxu0 0
      %1674 = vmatpush.bf16.xpose.msra.mxu0 %v1665
      %1675 = vmatmul.bf16.gmra.mxu0 %v1662
      %v1676 = vpop.f32.mrf.mxu0
      %v1677 = vadd.f32 0.0, %v1676
      %v1678 = vpop.f32.mrf.mxu0
      %1679 = vdwg.mxu0
      %v1681 = vsel %vm831, %v1374, 0
      %v1684 = vsel %vm831, %v1498, 0
      %1686 = vmatpush.bf16.xpose.msra.mxu0 0
      %1687 = vmatpush.bf16.xpose.msra.mxu0 0
      %1688 = vmatpush.bf16.xpose.msra.mxu0 0
      %1689 = vmatpush.bf16.xpose.msra.mxu0 0
      %1690 = vmatpush.bf16.xpose.msra.mxu0 0
      %1691 = vmatpush.bf16.xpose.msra.mxu0 0
      %1692 = vmatpush.bf16.xpose.msra.mxu0 0
      %1693 = vmatpush.bf16.xpose.msra.mxu0 %v1684
      %1694 = vmatmul.bf16.gmra.mxu0 %v1681
      %v1695 = vpop.f32.mrf.mxu0
      %v1696 = vadd.f32 0.0, %v1695
      %v1697 = vpop.f32.mrf.mxu0
      %1698 = vdwg.mxu0
      %v1699 = vsel %vm908, %v1639, -inf
      %1700 = vmax.xlane.f32.xlu0 %v1699
      %v1701 = vpop.xlane.xlu0 %1700
      %v1702 = vsel %vm908, %v1658, -inf
      %1703 = vmax.xlane.f32.xlu0 %v1702
      %v1704 = vpop.xlane.xlu0 %1703
      %v1705 = vsel %vm908, %v1677, -inf
      %1706 = vmax.xlane.f32.xlu0 %v1705
      %v1707 = vpop.xlane.xlu0 %1706
      %v1708 = vsel %vm908, %v1696, -inf
      %1709 = vmax.xlane.f32.xlu0 %v1708
      %v1710 = vpop.xlane.xlu0 %1709
      %v1711 = vsub.f32 %v1639, %v1701
      %v1712 = vsub.f32 %v1658, %v1704
      %v1713 = vsub.f32 %v1677, %v1707
      %v1714 = vsub.f32 %v1696, %v1710
      %v1715 = vmul.f32 %v1711, 1.442695
      %v1716 = vpow.pop %v1715
      %v1717 = vmul.f32 %v1712, 1.442695
      %v1718 = vpow.pop %v1717
      %v1719 = vmul.f32 %v1713, 1.442695
      %v1720 = vpow.pop %v1719
      %v1721 = vmul.f32 %v1714, 1.442695
      %v1722 = vpow.pop %v1721
      %v1723 = vsel %vm908, %v1716, 0.0
      %1724 = vadd.xlane.f32.xlu0 %v1723
      %v1725 = vpop.xlane.xlu0 %1724
      %v1726 = vsel %vm908, %v1718, 0.0
      %1727 = vadd.xlane.f32.xlu0 %v1726
      %v1728 = vpop.xlane.xlu0 %1727
      %v1729 = vsel %vm908, %v1720, 0.0
      %1730 = vadd.xlane.f32.xlu0 %v1729
      %v1731 = vpop.xlane.xlu0 %1730
      %v1732 = vsel %vm908, %v1722, 0.0
      %1733 = vadd.xlane.f32.xlu0 %v1732
      %v1734 = vpop.xlane.xlu0 %1733
      %v1735 = vrcp.pop %v1725
      %v1736 = vrcp.pop %v1728
      %v1737 = vrcp.pop %v1731
      %v1738 = vrcp.pop %v1734
      %v1739 = vmul.f32 %v1716, %v1735
      %v1740 = vmul.f32 %v1718, %v1736
      %v1741 = vmul.f32 %v1720, %v1737
      %v1742 = vmul.f32 %v1722, %v1738
      %v1743 = vpack.c.bf16 %v1739, %v1739
      %v1744 = vpack.c.bf16 %v1740, %v1740
      %v1745 = vpack.c.bf16 %v1741, %v1741
      %v1746 = vpack.c.bf16 %v1742, %v1742
      %v1748 = vsel %vm908, %v1743, 0
      %v1751 = vsel %vm960, %v1619, 0
      %1753 = vmatpush.bf16.msra.mxu0 0
      %1754 = vmatpush.bf16.msra.mxu0 0
      %1755 = vmatpush.bf16.msra.mxu0 0
      %1756 = vmatpush.bf16.msra.mxu0 0
      %1757 = vmatpush.bf16.msra.mxu0 0
      %1758 = vmatpush.bf16.msra.mxu0 0
      %1759 = vmatpush.bf16.msra.mxu0 0
      %1760 = vmatpush.bf16.msra.mxu0 %v1751
      %1761 = vmatmul.bf16.gmra.mxu0 %v1748
      %v1762 = vpop.f32.mrf.mxu0
      %v1763 = vadd.f32 0.0, %v1762
      %v1764 = vpop.f32.mrf.mxu0
      %1765 = vdwg.mxu0
      %v1767 = vsel %vm908, %v1744, 0
      %v1770 = vsel %vm960, %v1620, 0
      %1772 = vmatpush.bf16.msra.mxu0 0
      %1773 = vmatpush.bf16.msra.mxu0 0
      %1774 = vmatpush.bf16.msra.mxu0 0
      %1775 = vmatpush.bf16.msra.mxu0 0
      %1776 = vmatpush.bf16.msra.mxu0 0
      %1777 = vmatpush.bf16.msra.mxu0 0
      %1778 = vmatpush.bf16.msra.mxu0 0
      %1779 = vmatpush.bf16.msra.mxu0 %v1770
      %1780 = vmatmul.bf16.gmra.mxu0 %v1767
      %v1781 = vpop.f32.mrf.mxu0
      %v1782 = vadd.f32 0.0, %v1781
      %v1783 = vpop.f32.mrf.mxu0
      %1784 = vdwg.mxu0
      %v1786 = vsel %vm908, %v1745, 0
      %v1789 = vsel %vm960, %v1621, 0
      %1791 = vmatpush.bf16.msra.mxu0 0
      %1792 = vmatpush.bf16.msra.mxu0 0
      %1793 = vmatpush.bf16.msra.mxu0 0
      %1794 = vmatpush.bf16.msra.mxu0 0
      %1795 = vmatpush.bf16.msra.mxu0 0
      %1796 = vmatpush.bf16.msra.mxu0 0
      %1797 = vmatpush.bf16.msra.mxu0 0
      %1798 = vmatpush.bf16.msra.mxu0 %v1789
      %1799 = vmatmul.bf16.gmra.mxu0 %v1786
      %v1800 = vpop.f32.mrf.mxu0
      %v1801 = vadd.f32 0.0, %v1800
      %v1802 = vpop.f32.mrf.mxu0
      %1803 = vdwg.mxu0
      %v1805 = vsel %vm908, %v1746, 0
      %v1808 = vsel %vm960, %v1622, 0
      %1810 = vmatpush.bf16.msra.mxu0 0
      %1811 = vmatpush.bf16.msra.mxu0 0
      %1812 = vmatpush.bf16.msra.mxu0 0
      %1813 = vmatpush.bf16.msra.mxu0 0
      %1814 = vmatpush.bf16.msra.mxu0 0
      %1815 = vmatpush.bf16.msra.mxu0 0
      %1816 = vmatpush.bf16.msra.mxu0 0
      %1817 = vmatpush.bf16.msra.mxu0 %v1808
      %1818 = vmatmul.bf16.gmra.mxu0 %v1805
      %v1819 = vpop.f32.mrf.mxu0
      %v1820 = vadd.f32 0.0, %v1819
      %v1821 = vpop.f32.mrf.mxu0
      %1822 = vdwg.mxu0
      %v1823 = vrot.slane %v1801, 4
      %v1824 = vsel %vm114, %v1823, %v1763
      %v1825 = vrot.slane %v1763, 4
      %v1826 = vsel %vm114, %v1801, %v1825
      %v1828 = vunpack.c.l.s4 1983009808
      %v1829 = vunpack.c.0.s8 %v1828
      %v1830 = vperm.slane %v1824, %v1829
      %v1832 = vunpack.c.l.s4 1983009808
      %v1833 = vunpack.c.0.s8 %v1832
      %v1834 = vperm.slane %v1826, %v1833
      %v1835 = vrot.slane %v1820, 4
      %v1836 = vsel %vm114, %v1835, %v1782
      %v1837 = vrot.slane %v1782, 4
      %v1838 = vsel %vm114, %v1820, %v1837
      %v1840 = vunpack.c.l.s4 1983009808
      %v1841 = vunpack.c.0.s8 %v1840
      %v1842 = vperm.slane %v1836, %v1841
      %v1844 = vunpack.c.l.s4 1983009808
      %v1845 = vunpack.c.0.s8 %v1844
      %v1846 = vperm.slane %v1838, %v1845
      %v1847 = vrot.slane %v1842, 4
      %v1848 = vsel %vm114, %v1847, %v1830
      %v1849 = vrot.slane %v1830, 4
      %v1850 = vsel %vm114, %v1842, %v1849
      %v1852 = vunpack.c.l.s4 1934713408
      %v1853 = vunpack.c.0.s8 %v1852
      %v1854 = vperm.slane %v1848, %v1853
      %v1856 = vunpack.c.l.s4 1934713408
      %v1857 = vunpack.c.0.s8 %v1856
      %v1858 = vperm.slane %v1850, %v1857
      %v1859 = vrot.slane %v1846, 4
      %v1860 = vsel %vm114, %v1859, %v1834
      %v1861 = vrot.slane %v1834, 4
      %v1862 = vsel %vm114, %v1846, %v1861
      %v1864 = vunpack.c.l.s4 1934713408
      %v1865 = vunpack.c.0.s8 %v1864
      %v1866 = vperm.slane %v1860, %v1865
      %v1868 = vunpack.c.l.s4 1934713408
      %v1869 = vunpack.c.0.s8 %v1868
      %v1870 = vperm.slane %v1862, %v1869
      %v1871 = vrot.slane %v1854, 4
      %v1872 = vsel %vm114, 0.0, %v1871
      %v1873 = vrot.slane %v1858, 4
      %v1874 = vsel %vm114, 0.0, %v1873
      %v1875 = vrot.slane %v1866, 4
      %v1876 = vsel %vm114, 0.0, %v1875
      %v1877 = vrot.slane %v1870, 4
      %v1878 = vsel %vm114, 0.0, %v1877
      %v1879 = vsel %vm114, %v1873, %v1854
      %v1881 = vunpack.c.l.s4 1983009808
      %v1882 = vunpack.c.0.s8 %v1881
      %v1883 = vperm.slane %v1879, %v1882
      %v1884 = vrot.slane %v1874, 4
      %v1885 = vsel %vm114, %v1884, %v1872
      %v1887 = vunpack.c.l.s4 1983009808
      %v1888 = vunpack.c.0.s8 %v1887
      %v1889 = vperm.slane %v1885, %v1888
      %v1890 = vsel %vm114, %v1877, %v1866
      %v1892 = vunpack.c.l.s4 1983009808
      %v1893 = vunpack.c.0.s8 %v1892
      %v1894 = vperm.slane %v1890, %v1893
      %v1895 = vrot.slane %v1878, 4
      %v1896 = vsel %vm114, %v1895, %v1876
      %v1898 = vunpack.c.l.s4 1983009808
      %v1899 = vunpack.c.0.s8 %v1898
      %v1900 = vperm.slane %v1896, %v1899
      %v1901 = vrot.slane %v1889, 4
      %v1902 = vsel %vm114, %v1901, %v1883
      %v1903 = vrot.slane %v1883, 4
      %v1904 = vsel %vm114, %v1889, %v1903
      %v1906 = vunpack.c.l.s4 1934713408
      %v1907 = vunpack.c.0.s8 %v1906
      %v1908 = vperm.slane %v1902, %v1907
      %v1910 = vunpack.c.l.s4 1934713408
      %v1911 = vunpack.c.0.s8 %v1910
      %v1912 = vperm.slane %v1904, %v1911
      %v1913 = vrot.slane %v1900, 4
      %v1914 = vsel %vm114, %v1913, %v1894
      %v1915 = vrot.slane %v1894, 4
      %v1916 = vsel %vm114, %v1900, %v1915
      %v1918 = vunpack.c.l.s4 1934713408
      %v1919 = vunpack.c.0.s8 %v1918
      %v1920 = vperm.slane %v1914, %v1919
      %v1922 = vunpack.c.l.s4 1934713408
      %v1923 = vunpack.c.0.s8 %v1922
      %v1924 = vperm.slane %v1916, %v1923
      %v1925 = vrot.slane %v1920, 4
      %v1926 = vsel %vm114, %v1925, %v1908
      %v1927 = vrot.slane %v1908, 4
      %v1928 = vsel %vm114, %v1920, %v1927
      %v1929 = vrot.slane %v1924, 4
      %v1930 = vsel %vm114, %v1929, %v1912
      %v1931 = vrot.slane %v1912, 4
      %v1932 = vsel %vm114, %v1924, %v1931
      %1934 = vrot.lane.b32.xlu0 %v1928, 16
      %v1935 = vpop.permute.xlu0 %1934
      %1938 = vrot.lane.b32.xlu0 %v1930, 32
      %v1939 = vpop.permute.xlu0 %1938
      %1942 = vrot.lane.b32.xlu0 %v1932, 48
      %v1943 = vpop.permute.xlu0 %1942
      %v1945 = vsel %vm831, %v1926, %v1935
      %v1946 = vsel %vm1157, %v1945, %v1939
      %v1947 = vsel %vm1159, %v1946, %v1943
      %v1948 = vpack.c.bf16 %v1947, %v1947
      %v1949 = vld [vmem:[#allocation9] sm:$0xf]
      %v1950 = vld [vmem:[#allocation9 + $0x4] sm:$0xf]
      %v1951 = vld [vmem:[#allocation9 + $0x8] sm:$0xf]
      %v1952 = vld [vmem:[#allocation9 + $0xc] sm:$0xf]
      %v1953 = vld [vmem:[#allocation9 + $0x10] sm:$0xf]
      %v1954 = vld [vmem:[#allocation9 + $0x14] sm:$0xf]
      %v1955 = vld [vmem:[#allocation9 + $0x18] sm:$0xf]
      %v1956 = vld [vmem:[#allocation9 + $0x1c] sm:$0xf]
      %v1957 = vld [vmem:[%s10] sm:$0x1]
      %v1959 = vperm.slane %v1957, 0
      %v1969 = vunpack.c.l.b16 %v1949
      %v1970 = vunpack.c.l.b16 %v1950
      %v1971 = vunpack.c.l.b16 %v1951
      %v1972 = vunpack.c.l.b16 %v1952
      %v1973 = vunpack.c.l.b16 %v1953
      %v1974 = vunpack.c.l.b16 %v1954
      %v1975 = vunpack.c.l.b16 %v1955
      %v1976 = vunpack.c.l.b16 %v1956
      %v1977 = vpack.c.b16 %v1970, %v1969
      %v1978 = vpack.c.b16 %v1972, %v1971
      %v1979 = vpack.c.b16 %v1974, %v1973
      %v1980 = vpack.c.b16 %v1976, %v1975
      %v1986 = vsel %vm172, %v1948, 0
      %1988 = vmatpush.bf16.msra.mxu0 0
      %1989 = vmatpush.bf16.msra.mxu0 0
      %1990 = vmatpush.bf16.msra.mxu0 0
      %1991 = vmatpush.bf16.msra.mxu0 0
      %1992 = vmatpush.bf16.msra.mxu0 %v1980
      %1993 = vmatpush.bf16.msra.mxu0 %v1979
      %1994 = vmatpush.bf16.msra.mxu0 %v1978
      %1995 = vmatpush.bf16.msra.mxu0 %v1977
      %1996 = vmatmul.bf16.gmra.mxu0 %v1986
      %v1997 = vpop.f32.mrf.mxu0
      %v1998 = vadd.f32 %v1959, %v1997
      %v1999 = vpop.f32.mrf.mxu0
      %2000 = vdwg.mxu0
      %v2001 = vadd.f32 %v165, %v1998
      %2002 = vst.msk [vmem:[#allocation2 + $0x8] sm:$0xff] %vm172, %v2001
      %v2003 = vld [vmem:[%s11] sm:$0x1]
      %v2004 = vld [vmem:[%s12] sm:$0x1]
      %v2005 = vsel %vm172, %v2001, 0.0
      %2006 = vadd.xlane.f32.xlu0 %v2005
      %v2007 = vpop.xlane.xlu0 %2006
      %v2008 = vmul.f32 %v2007, %v191
      %v2009 = vsub.f32 %v2001, %v2008
      %v2010 = vmul.f32 %v2009, %v2009
      %v2011 = vsel %vm172, %v2010, 0.0
      %2012 = vadd.xlane.f32.xlu0 %v2011
      %v2013 = vpop.xlane.xlu0 %2012
      %v2014 = vmul.f32 %v2013, %v191
      %v2015 = vadd.f32 %v2014, 1e-05
      %v2016 = vrsqrt.pop %v2015
      %v2017 = vmul.f32 %v2016, %v2015
      %v2018 = vmul.f32 %v2017, %v2016
      %v2019 = vmul.f32 0.5, %v2018
      %v2020 = vsub.f32 1.5, %v2019
      %v2021 = vmul.f32 %v2016, %v2020
      %vm2022 = vweird.f32 %v2015
      %vm2023 = vweird.f32 %v2016
      %vm2024 = vmor %vm2022, %vm2023
      %v2025 = vsel %vm2024, %v2016, %v2021
      %v2026 = vmul.f32 %v2009, %v2025
      %v2028 = vperm.slane %v2003, 0
      %v2030 = vmul.f32 %v2026, %v2028
      %v2032 = vperm.slane %v2004, 0
      %v2034 = vadd.f32 %v2030, %v2032
      %v2035 = vpack.c.bf16 %v2034, %v2034
      %2036 = vst.msk [vmem:[#allocation3 + $0x4] sm:$0xf] %vm1249, %v2035
      %2038 = vrot.lane.b32.xlu0 %v347, 112
      %v2039 = vpop.permute.xlu0 %2038
      %2041 = vrot.lane.b32.xlu0 %v347, 96
      %v2042 = vpop.permute.xlu0 %2041
      %2044 = vrot.lane.b32.xlu0 %v347, 80
      %v2045 = vpop.permute.xlu0 %2044
      %v2047 = vrot.slane %v2042, 4
      %v2048 = vsel %vm114, %v2047, %v347
      %v2049 = vrot.slane %v347, 4
      %v2050 = vsel %vm114, %v2042, %v2049
      %v2052 = vunpack.c.l.s4 1983009808
      %v2053 = vunpack.c.0.s8 %v2052
      %v2054 = vperm.slane %v2048, %v2053
      %v2056 = vunpack.c.l.s4 1983009808
      %v2057 = vunpack.c.0.s8 %v2056
      %v2058 = vperm.slane %v2050, %v2057
      %v2059 = vrot.slane %v2045, 4
      %v2060 = vsel %vm114, %v2059, %v2039
      %v2061 = vrot.slane %v2039, 4
      %v2062 = vsel %vm114, %v2045, %v2061
      %v2064 = vunpack.c.l.s4 1983009808
      %v2065 = vunpack.c.0.s8 %v2064
      %v2066 = vperm.slane %v2060, %v2065
      %v2068 = vunpack.c.l.s4 1983009808
      %v2069 = vunpack.c.0.s8 %v2068
      %v2070 = vperm.slane %v2062, %v2069
      %v2071 = vrot.slane %v2066, 4
      %v2072 = vsel %vm114, %v2071, %v2054
      %v2073 = vrot.slane %v2054, 4
      %v2074 = vsel %vm114, %v2066, %v2073
      %v2076 = vunpack.c.l.s4 1934713408
      %v2077 = vunpack.c.0.s8 %v2076
      %v2078 = vperm.slane %v2072, %v2077
      %v2080 = vunpack.c.l.s4 1934713408
      %v2081 = vunpack.c.0.s8 %v2080
      %v2082 = vperm.slane %v2074, %v2081
      %v2083 = vrot.slane %v2070, 4
      %v2084 = vsel %vm114, %v2083, %v2058
      %v2085 = vrot.slane %v2058, 4
      %v2086 = vsel %vm114, %v2070, %v2085
      %v2088 = vunpack.c.l.s4 1934713408
      %v2089 = vunpack.c.0.s8 %v2088
      %v2090 = vperm.slane %v2084, %v2089
      %v2092 = vunpack.c.l.s4 1934713408
      %v2093 = vunpack.c.0.s8 %v2092
      %v2094 = vperm.slane %v2086, %v2093
      %v2095 = vrot.slane %v2078, 4
      %v2096 = vsel %vm114, 0.0, %v2095
      %v2097 = vrot.slane %v2082, 4
      %v2098 = vsel %vm114, 0.0, %v2097
      %v2099 = vrot.slane %v2090, 4
      %v2100 = vsel %vm114, 0.0, %v2099
      %v2101 = vrot.slane %v2094, 4
      %v2102 = vsel %vm114, 0.0, %v2101
      %v2103 = vsel %vm114, %v2097, %v2078
      %v2105 = vunpack.c.l.s4 1983009808
      %v2106 = vunpack.c.0.s8 %v2105
      %v2107 = vperm.slane %v2103, %v2106
      %v2108 = vrot.slane %v2098, 4
      %v2109 = vsel %vm114, %v2108, %v2096
      %v2111 = vunpack.c.l.s4 1983009808
      %v2112 = vunpack.c.0.s8 %v2111
      %v2113 = vperm.slane %v2109, %v2112
      %v2114 = vsel %vm114, %v2101, %v2090
      %v2116 = vunpack.c.l.s4 1983009808
      %v2117 = vunpack.c.0.s8 %v2116
      %v2118 = vperm.slane %v2114, %v2117
      %v2119 = vrot.slane %v2102, 4
      %v2120 = vsel %vm114, %v2119, %v2100
      %v2122 = vunpack.c.l.s4 1983009808
      %v2123 = vunpack.c.0.s8 %v2122
      %v2124 = vperm.slane %v2120, %v2123
      %v2125 = vrot.slane %v2113, 4
      %v2126 = vsel %vm114, %v2125, %v2107
      %v2127 = vrot.slane %v2107, 4
      %v2128 = vsel %vm114, %v2113, %v2127
      %v2130 = vunpack.c.l.s4 1934713408
      %v2131 = vunpack.c.0.s8 %v2130
      %v2132 = vperm.slane %v2126, %v2131
      %v2134 = vunpack.c.l.s4 1934713408
      %v2135 = vunpack.c.0.s8 %v2134
      %v2136 = vperm.slane %v2128, %v2135
      %v2137 = vrot.slane %v2124, 4
      %v2138 = vsel %vm114, %v2137, %v2118
      %v2139 = vrot.slane %v2118, 4
      %v2140 = vsel %vm114, %v2124, %v2139
      %v2142 = vunpack.c.l.s4 1934713408
      %v2143 = vunpack.c.0.s8 %v2142
      %v2144 = vperm.slane %v2138, %v2143
      %v2146 = vunpack.c.l.s4 1934713408
      %v2147 = vunpack.c.0.s8 %v2146
      %v2148 = vperm.slane %v2140, %v2147
      %v2149 = vrot.slane %v2144, 4
      %v2150 = vsel %vm114, %v2149, %v2132
      %v2151 = vrot.slane %v2132, 4
      %v2152 = vsel %vm114, %v2144, %v2151
      %v2153 = vrot.slane %v2148, 4
      %v2154 = vsel %vm114, %v2153, %v2136
      %v2155 = vrot.slane %v2136, 4
      %v2156 = vsel %vm114, %v2148, %v2155
      %v2157 = vpack.c.bf16 %v2150, %v2150
      %v2158 = vpack.c.bf16 %v2152, %v2152
      %v2159 = vpack.c.bf16 %v2154, %v2154
      %v2160 = vpack.c.bf16 %v2156, %v2156
      %2162 = vrot.lane.b32.xlu0 %v400, 112
      %v2163 = vpop.permute.xlu0 %2162
      %2165 = vrot.lane.b32.xlu0 %v400, 96
      %v2166 = vpop.permute.xlu0 %2165
      %2168 = vrot.lane.b32.xlu0 %v400, 80
      %v2169 = vpop.permute.xlu0 %2168
      %v2171 = vrot.slane %v2166, 4
      %v2172 = vsel %vm114, %v2171, %v400
      %v2173 = vrot.slane %v400, 4
      %v2174 = vsel %vm114, %v2166, %v2173
      %v2176 = vunpack.c.l.s4 1983009808
      %v2177 = vunpack.c.0.s8 %v2176
      %v2178 = vperm.slane %v2172, %v2177
      %v2180 = vunpack.c.l.s4 1983009808
      %v2181 = vunpack.c.0.s8 %v2180
      %v2182 = vperm.slane %v2174, %v2181
      %v2183 = vrot.slane %v2169, 4
      %v2184 = vsel %vm114, %v2183, %v2163
      %v2185 = vrot.slane %v2163, 4
      %v2186 = vsel %vm114, %v2169, %v2185
      %v2188 = vunpack.c.l.s4 1983009808
      %v2189 = vunpack.c.0.s8 %v2188
      %v2190 = vperm.slane %v2184, %v2189
      %v2192 = vunpack.c.l.s4 1983009808
      %v2193 = vunpack.c.0.s8 %v2192
      %v2194 = vperm.slane %v2186, %v2193
      %v2195 = vrot.slane %v2190, 4
      %v2196 = vsel %vm114, %v2195, %v2178
      %v2197 = vrot.slane %v2178, 4
      %v2198 = vsel %vm114, %v2190, %v2197
      %v2200 = vunpack.c.l.s4 1934713408
      %v2201 = vunpack.c.0.s8 %v2200
      %v2202 = vperm.slane %v2196, %v2201
      %v2204 = vunpack.c.l.s4 1934713408
      %v2205 = vunpack.c.0.s8 %v2204
      %v2206 = vperm.slane %v2198, %v2205
      %v2207 = vrot.slane %v2194, 4
      %v2208 = vsel %vm114, %v2207, %v2182
      %v2209 = vrot.slane %v2182, 4
      %v2210 = vsel %vm114, %v2194, %v2209
      %v2212 = vunpack.c.l.s4 1934713408
      %v2213 = vunpack.c.0.s8 %v2212
      %v2214 = vperm.slane %v2208, %v2213
      %v2216 = vunpack.c.l.s4 1934713408
      %v2217 = vunpack.c.0.s8 %v2216
      %v2218 = vperm.slane %v2210, %v2217
      %v2219 = vrot.slane %v2202, 4
      %v2220 = vsel %vm114, 0.0, %v2219
      %v2221 = vrot.slane %v2206, 4
      %v2222 = vsel %vm114, 0.0, %v2221
      %v2223 = vrot.slane %v2214, 4
      %v2224 = vsel %vm114, 0.0, %v2223
      %v2225 = vrot.slane %v2218, 4
      %v2226 = vsel %vm114, 0.0, %v2225
      %v2227 = vsel %vm114, %v2221, %v2202
      %v2229 = vunpack.c.l.s4 1983009808
      %v2230 = vunpack.c.0.s8 %v2229
      %v2231 = vperm.slane %v2227, %v2230
      %v2232 = vrot.slane %v2222, 4
      %v2233 = vsel %vm114, %v2232, %v2220
      %v2235 = vunpack.c.l.s4 1983009808
      %v2236 = vunpack.c.0.s8 %v2235
      %v2237 = vperm.slane %v2233, %v2236
      %v2238 = vsel %vm114, %v2225, %v2214
      %v2240 = vunpack.c.l.s4 1983009808
      %v2241 = vunpack.c.0.s8 %v2240
      %v2242 = vperm.slane %v2238, %v2241
      %v2243 = vrot.slane %v2226, 4
      %v2244 = vsel %vm114, %v2243, %v2224
      %v2246 = vunpack.c.l.s4 1983009808
      %v2247 = vunpack.c.0.s8 %v2246
      %v2248 = vperm.slane %v2244, %v2247
      %v2249 = vrot.slane %v2237, 4
      %v2250 = vsel %vm114, %v2249, %v2231
      %v2251 = vrot.slane %v2231, 4
      %v2252 = vsel %vm114, %v2237, %v2251
      %v2254 = vunpack.c.l.s4 1934713408
      %v2255 = vunpack.c.0.s8 %v2254
      %v2256 = vperm.slane %v2250, %v2255
      %v2258 = vunpack.c.l.s4 1934713408
      %v2259 = vunpack.c.0.s8 %v2258
      %v2260 = vperm.slane %v2252, %v2259
      %v2261 = vrot.slane %v2248, 4
      %v2262 = vsel %vm114, %v2261, %v2242
      %v2263 = vrot.slane %v2242, 4
      %v2264 = vsel %vm114, %v2248, %v2263
      %v2266 = vunpack.c.l.s4 1934713408
      %v2267 = vunpack.c.0.s8 %v2266
      %v2268 = vperm.slane %v2262, %v2267
      %v2270 = vunpack.c.l.s4 1934713408
      %v2271 = vunpack.c.0.s8 %v2270
      %v2272 = vperm.slane %v2264, %v2271
      %v2273 = vrot.slane %v2268, 4
      %v2274 = vsel %vm114, %v2273, %v2256
      %v2275 = vrot.slane %v2256, 4
      %v2276 = vsel %vm114, %v2268, %v2275
      %v2277 = vrot.slane %v2272, 4
      %v2278 = vsel %vm114, %v2277, %v2260
      %v2279 = vrot.slane %v2260, 4
      %v2280 = vsel %vm114, %v2272, %v2279
      %v2281 = vpack.c.bf16 %v2274, %v2274
      %v2282 = vpack.c.bf16 %v2276, %v2276
      %v2283 = vpack.c.bf16 %v2278, %v2278
      %v2284 = vpack.c.bf16 %v2280, %v2280
      %2286 = vrot.lane.b32.xlu0 %v455, 112
      %v2287 = vpop.permute.xlu0 %2286
      %2289 = vrot.lane.b32.xlu0 %v455, 96
      %v2290 = vpop.permute.xlu0 %2289
      %2292 = vrot.lane.b32.xlu0 %v455, 80
      %v2293 = vpop.permute.xlu0 %2292
      %v2295 = vrot.slane %v2290, 4
      %v2296 = vsel %vm114, %v2295, %v455
      %v2297 = vrot.slane %v455, 4
      %v2298 = vsel %vm114, %v2290, %v2297
      %v2300 = vunpack.c.l.s4 1983009808
      %v2301 = vunpack.c.0.s8 %v2300
      %v2302 = vperm.slane %v2296, %v2301
      %v2304 = vunpack.c.l.s4 1983009808
      %v2305 = vunpack.c.0.s8 %v2304
      %v2306 = vperm.slane %v2298, %v2305
      %v2307 = vrot.slane %v2293, 4
      %v2308 = vsel %vm114, %v2307, %v2287
      %v2309 = vrot.slane %v2287, 4
      %v2310 = vsel %vm114, %v2293, %v2309
      %v2312 = vunpack.c.l.s4 1983009808
      %v2313 = vunpack.c.0.s8 %v2312
      %v2314 = vperm.slane %v2308, %v2313
      %v2316 = vunpack.c.l.s4 1983009808
      %v2317 = vunpack.c.0.s8 %v2316
      %v2318 = vperm.slane %v2310, %v2317
      %v2319 = vrot.slane %v2314, 4
      %v2320 = vsel %vm114, %v2319, %v2302
      %v2321 = vrot.slane %v2302, 4
      %v2322 = vsel %vm114, %v2314, %v2321
      %v2324 = vunpack.c.l.s4 1934713408
      %v2325 = vunpack.c.0.s8 %v2324
      %v2326 = vperm.slane %v2320, %v2325
      %v2328 = vunpack.c.l.s4 1934713408
      %v2329 = vunpack.c.0.s8 %v2328
      %v2330 = vperm.slane %v2322, %v2329
      %v2331 = vrot.slane %v2318, 4
      %v2332 = vsel %vm114, %v2331, %v2306
      %v2333 = vrot.slane %v2306, 4
      %v2334 = vsel %vm114, %v2318, %v2333
      %v2336 = vunpack.c.l.s4 1934713408
      %v2337 = vunpack.c.0.s8 %v2336
      %v2338 = vperm.slane %v2332, %v2337
      %v2340 = vunpack.c.l.s4 1934713408
      %v2341 = vunpack.c.0.s8 %v2340
      %v2342 = vperm.slane %v2334, %v2341
      %v2343 = vrot.slane %v2326, 4
      %v2344 = vsel %vm114, 0.0, %v2343
      %v2345 = vrot.slane %v2330, 4
      %v2346 = vsel %vm114, 0.0, %v2345
      %v2347 = vrot.slane %v2338, 4
      %v2348 = vsel %vm114, 0.0, %v2347
      %v2349 = vrot.slane %v2342, 4
      %v2350 = vsel %vm114, 0.0, %v2349
      %v2351 = vsel %vm114, %v2345, %v2326
      %v2353 = vunpack.c.l.s4 1983009808
      %v2354 = vunpack.c.0.s8 %v2353
      %v2355 = vperm.slane %v2351, %v2354
      %v2356 = vrot.slane %v2346, 4
      %v2357 = vsel %vm114, %v2356, %v2344
      %v2359 = vunpack.c.l.s4 1983009808
      %v2360 = vunpack.c.0.s8 %v2359
      %v2361 = vperm.slane %v2357, %v2360
      %v2362 = vsel %vm114, %v2349, %v2338
      %v2364 = vunpack.c.l.s4 1983009808
      %v2365 = vunpack.c.0.s8 %v2364
      %v2366 = vperm.slane %v2362, %v2365
      %v2367 = vrot.slane %v2350, 4
      %v2368 = vsel %vm114, %v2367, %v2348
      %v2370 = vunpack.c.l.s4 1983009808
      %v2371 = vunpack.c.0.s8 %v2370
      %v2372 = vperm.slane %v2368, %v2371
      %v2373 = vrot.slane %v2361, 4
      %v2374 = vsel %vm114, %v2373, %v2355
      %v2375 = vrot.slane %v2355, 4
      %v2376 = vsel %vm114, %v2361, %v2375
      %v2378 = vunpack.c.l.s4 1934713408
      %v2379 = vunpack.c.0.s8 %v2378
      %v2380 = vperm.slane %v2374, %v2379
      %v2382 = vunpack.c.l.s4 1934713408
      %v2383 = vunpack.c.0.s8 %v2382
      %v2384 = vperm.slane %v2376, %v2383
      %v2385 = vrot.slane %v2372, 4
      %v2386 = vsel %vm114, %v2385, %v2366
      %v2387 = vrot.slane %v2366, 4
      %v2388 = vsel %vm114, %v2372, %v2387
      %v2390 = vunpack.c.l.s4 1934713408
      %v2391 = vunpack.c.0.s8 %v2390
      %v2392 = vperm.slane %v2386, %v2391
      %v2394 = vunpack.c.l.s4 1934713408
      %v2395 = vunpack.c.0.s8 %v2394
      %v2396 = vperm.slane %v2388, %v2395
      %v2397 = vrot.slane %v2392, 4
      %v2398 = vsel %vm114, %v2397, %v2380
      %v2399 = vrot.slane %v2380, 4
      %v2400 = vsel %vm114, %v2392, %v2399
      %v2401 = vrot.slane %v2396, 4
      %v2402 = vsel %vm114, %v2401, %v2384
      %v2403 = vrot.slane %v2384, 4
      %v2404 = vsel %vm114, %v2396, %v2403
      %v2405 = vpack.c.bf16 %v2398, %v2398
      %v2406 = vpack.c.bf16 %v2400, %v2400
      %v2407 = vpack.c.bf16 %v2402, %v2402
      %v2408 = vpack.c.bf16 %v2404, %v2404
      %v2410 = vsel %vm831, %v2157, 0
      %v2413 = vsel %vm831, %v2281, 0
      %2415 = vmatpush.bf16.xpose.msra.mxu0 0
      %2416 = vmatpush.bf16.xpose.msra.mxu0 0
      %2417 = vmatpush.bf16.xpose.msra.mxu0 0
      %2418 = vmatpush.bf16.xpose.msra.mxu0 0
      %2419 = vmatpush.bf16.xpose.msra.mxu0 0
      %2420 = vmatpush.bf16.xpose.msra.mxu0 0
      %2421 = vmatpush.bf16.xpose.msra.mxu0 0
      %2422 = vmatpush.bf16.xpose.msra.mxu0 %v2413
      %2423 = vmatmul.bf16.gmra.mxu0 %v2410
      %v2424 = vpop.f32.mrf.mxu0
      %v2425 = vadd.f32 0.0, %v2424
      %v2426 = vpop.f32.mrf.mxu0
      %2427 = vdwg.mxu0
      %v2429 = vsel %vm831, %v2158, 0
      %v2432 = vsel %vm831, %v2282, 0
      %2434 = vmatpush.bf16.xpose.msra.mxu0 0
      %2435 = vmatpush.bf16.xpose.msra.mxu0 0
      %2436 = vmatpush.bf16.xpose.msra.mxu0 0
      %2437 = vmatpush.bf16.xpose.msra.mxu0 0
      %2438 = vmatpush.bf16.xpose.msra.mxu0 0
      %2439 = vmatpush.bf16.xpose.msra.mxu0 0
      %2440 = vmatpush.bf16.xpose.msra.mxu0 0
      %2441 = vmatpush.bf16.xpose.msra.mxu0 %v2432
      %2442 = vmatmul.bf16.gmra.mxu0 %v2429
      %v2443 = vpop.f32.mrf.mxu0
      %v2444 = vadd.f32 0.0, %v2443
      %v2445 = vpop.f32.mrf.mxu0
      %2446 = vdwg.mxu0
      %v2448 = vsel %vm831, %v2159, 0
      %v2451 = vsel %vm831, %v2283, 0
      %2453 = vmatpush.bf16.xpose.msra.mxu0 0
      %2454 = vmatpush.bf16.xpose.msra.mxu0 0
      %2455 = vmatpush.bf16.xpose.msra.mxu0 0
      %2456 = vmatpush.bf16.xpose.msra.mxu0 0
      %2457 = vmatpush.bf16.xpose.msra.mxu0 0
      %2458 = vmatpush.bf16.xpose.msra.mxu0 0
      %2459 = vmatpush.bf16.xpose.msra.mxu0 0
      %2460 = vmatpush.bf16.xpose.msra.mxu0 %v2451
      %2461 = vmatmul.bf16.gmra.mxu0 %v2448
      %v2462 = vpop.f32.mrf.mxu0
      %v2463 = vadd.f32 0.0, %v2462
      %v2464 = vpop.f32.mrf.mxu0
      %2465 = vdwg.mxu0
      %v2467 = vsel %vm831, %v2160, 0
      %v2470 = vsel %vm831, %v2284, 0
      %2472 = vmatpush.bf16.xpose.msra.mxu0 0
      %2473 = vmatpush.bf16.xpose.msra.mxu0 0
      %2474 = vmatpush.bf16.xpose.msra.mxu0 0
      %2475 = vmatpush.bf16.xpose.msra.mxu0 0
      %2476 = vmatpush.bf16.xpose.msra.mxu0 0
      %2477 = vmatpush.bf16.xpose.msra.mxu0 0
      %2478 = vmatpush.bf16.xpose.msra.mxu0 0
      %2479 = vmatpush.bf16.xpose.msra.mxu0 %v2470
      %2480 = vmatmul.bf16.gmra.mxu0 %v2467
      %v2481 = vpop.f32.mrf.mxu0
      %v2482 = vadd.f32 0.0, %v2481
      %v2483 = vpop.f32.mrf.mxu0
      %2484 = vdwg.mxu0
      %v2485 = vsel %vm908, %v2425, -inf
      %2486 = vmax.xlane.f32.xlu0 %v2485
      %v2487 = vpop.xlane.xlu0 %2486
      %v2488 = vsel %vm908, %v2444, -inf
      %2489 = vmax.xlane.f32.xlu0 %v2488
      %v2490 = vpop.xlane.xlu0 %2489
      %v2491 = vsel %vm908, %v2463, -inf
      %2492 = vmax.xlane.f32.xlu0 %v2491
      %v2493 = vpop.xlane.xlu0 %2492
      %v2494 = vsel %vm908, %v2482, -inf
      %2495 = vmax.xlane.f32.xlu0 %v2494
      %v2496 = vpop.xlane.xlu0 %2495
      %v2497 = vsub.f32 %v2425, %v2487
      %v2498 = vsub.f32 %v2444, %v2490
      %v2499 = vsub.f32 %v2463, %v2493
      %v2500 = vsub.f32 %v2482, %v2496
      %v2501 = vmul.f32 %v2497, 1.442695
      %v2502 = vpow.pop %v2501
      %v2503 = vmul.f32 %v2498, 1.442695
      %v2504 = vpow.pop %v2503
      %v2505 = vmul.f32 %v2499, 1.442695
      %v2506 = vpow.pop %v2505
      %v2507 = vmul.f32 %v2500, 1.442695
      %v2508 = vpow.pop %v2507
      %v2509 = vsel %vm908, %v2502, 0.0
      %2510 = vadd.xlane.f32.xlu0 %v2509
      %v2511 = vpop.xlane.xlu0 %2510
      %v2512 = vsel %vm908, %v2504, 0.0
      %2513 = vadd.xlane.f32.xlu0 %v2512
      %v2514 = vpop.xlane.xlu0 %2513
      %v2515 = vsel %vm908, %v2506, 0.0
      %2516 = vadd.xlane.f32.xlu0 %v2515
      %v2517 = vpop.xlane.xlu0 %2516
      %v2518 = vsel %vm908, %v2508, 0.0
      %2519 = vadd.xlane.f32.xlu0 %v2518
      %v2520 = vpop.xlane.xlu0 %2519
      %v2521 = vrcp.pop %v2511
      %v2522 = vrcp.pop %v2514
      %v2523 = vrcp.pop %v2517
      %v2524 = vrcp.pop %v2520
      %v2525 = vmul.f32 %v2502, %v2521
      %v2526 = vmul.f32 %v2504, %v2522
      %v2527 = vmul.f32 %v2506, %v2523
      %v2528 = vmul.f32 %v2508, %v2524
      %v2529 = vpack.c.bf16 %v2525, %v2525
      %v2530 = vpack.c.bf16 %v2526, %v2526
      %v2531 = vpack.c.bf16 %v2527, %v2527
      %v2532 = vpack.c.bf16 %v2528, %v2528
      %v2534 = vsel %vm908, %v2529, 0
      %v2537 = vsel %vm960, %v2405, 0
      %2539 = vmatpush.bf16.msra.mxu0 0
      %2540 = vmatpush.bf16.msra.mxu0 0
      %2541 = vmatpush.bf16.msra.mxu0 0
      %2542 = vmatpush.bf16.msra.mxu0 0
      %2543 = vmatpush.bf16.msra.mxu0 0
      %2544 = vmatpush.bf16.msra.mxu0 0
      %2545 = vmatpush.bf16.msra.mxu0 0
      %2546 = vmatpush.bf16.msra.mxu0 %v2537
      %2547 = vmatmul.bf16.gmra.mxu0 %v2534
      %v2548 = vpop.f32.mrf.mxu0
      %v2549 = vadd.f32 0.0, %v2548
      %v2550 = vpop.f32.mrf.mxu0
      %2551 = vdwg.mxu0
      %v2553 = vsel %vm908, %v2530, 0
      %v2556 = vsel %vm960, %v2406, 0
      %2558 = vmatpush.bf16.msra.mxu0 0
      %2559 = vmatpush.bf16.msra.mxu0 0
      %2560 = vmatpush.bf16.msra.mxu0 0
      %2561 = vmatpush.bf16.msra.mxu0 0
      %2562 = vmatpush.bf16.msra.mxu0 0
      %2563 = vmatpush.bf16.msra.mxu0 0
      %2564 = vmatpush.bf16.msra.mxu0 0
      %2565 = vmatpush.bf16.msra.mxu0 %v2556
      %2566 = vmatmul.bf16.gmra.mxu0 %v2553
      %v2567 = vpop.f32.mrf.mxu0
      %v2568 = vadd.f32 0.0, %v2567
      %v2569 = vpop.f32.mrf.mxu0
      %2570 = vdwg.mxu0
      %v2572 = vsel %vm908, %v2531, 0
      %v2575 = vsel %vm960, %v2407, 0
      %2577 = vmatpush.bf16.msra.mxu0 0
      %2578 = vmatpush.bf16.msra.mxu0 0
      %2579 = vmatpush.bf16.msra.mxu0 0
      %2580 = vmatpush.bf16.msra.mxu0 0
      %2581 = vmatpush.bf16.msra.mxu0 0
      %2582 = vmatpush.bf16.msra.mxu0 0
      %2583 = vmatpush.bf16.msra.mxu0 0
      %2584 = vmatpush.bf16.msra.mxu0 %v2575
      %2585 = vmatmul.bf16.gmra.mxu0 %v2572
      %v2586 = vpop.f32.mrf.mxu0
      %v2587 = vadd.f32 0.0, %v2586
      %v2588 = vpop.f32.mrf.mxu0
      %2589 = vdwg.mxu0
      %v2591 = vsel %vm908, %v2532, 0
      %v2594 = vsel %vm960, %v2408, 0
      %2596 = vmatpush.bf16.msra.mxu0 0
      %2597 = vmatpush.bf16.msra.mxu0 0
      %2598 = vmatpush.bf16.msra.mxu0 0
      %2599 = vmatpush.bf16.msra.mxu0 0
      %2600 = vmatpush.bf16.msra.mxu0 0
      %2601 = vmatpush.bf16.msra.mxu0 0
      %2602 = vmatpush.bf16.msra.mxu0 0
      %2603 = vmatpush.bf16.msra.mxu0 %v2594
      %2604 = vmatmul.bf16.gmra.mxu0 %v2591
      %v2605 = vpop.f32.mrf.mxu0
      %v2606 = vadd.f32 0.0, %v2605
      %v2607 = vpop.f32.mrf.mxu0
      %2608 = vdwg.mxu0
      %v2609 = vrot.slane %v2587, 4
      %v2610 = vsel %vm114, %v2609, %v2549
      %v2611 = vrot.slane %v2549, 4
      %v2612 = vsel %vm114, %v2587, %v2611
      %v2614 = vunpack.c.l.s4 1983009808
      %v2615 = vunpack.c.0.s8 %v2614
      %v2616 = vperm.slane %v2610, %v2615
      %v2618 = vunpack.c.l.s4 1983009808
      %v2619 = vunpack.c.0.s8 %v2618
      %v2620 = vperm.slane %v2612, %v2619
      %v2621 = vrot.slane %v2606, 4
      %v2622 = vsel %vm114, %v2621, %v2568
      %v2623 = vrot.slane %v2568, 4
      %v2624 = vsel %vm114, %v2606, %v2623
      %v2626 = vunpack.c.l.s4 1983009808
      %v2627 = vunpack.c.0.s8 %v2626
      %v2628 = vperm.slane %v2622, %v2627
      %v2630 = vunpack.c.l.s4 1983009808
      %v2631 = vunpack.c.0.s8 %v2630
      %v2632 = vperm.slane %v2624, %v2631
      %v2633 = vrot.slane %v2628, 4
      %v2634 = vsel %vm114, %v2633, %v2616
      %v2635 = vrot.slane %v2616, 4
      %v2636 = vsel %vm114, %v2628, %v2635
      %v2638 = vunpack.c.l.s4 1934713408
      %v2639 = vunpack.c.0.s8 %v2638
      %v2640 = vperm.slane %v2634, %v2639
      %v2642 = vunpack.c.l.s4 1934713408
      %v2643 = vunpack.c.0.s8 %v2642
      %v2644 = vperm.slane %v2636, %v2643
      %v2645 = vrot.slane %v2632, 4
      %v2646 = vsel %vm114, %v2645, %v2620
      %v2647 = vrot.slane %v2620, 4
      %v2648 = vsel %vm114, %v2632, %v2647
      %v2650 = vunpack.c.l.s4 1934713408
      %v2651 = vunpack.c.0.s8 %v2650
      %v2652 = vperm.slane %v2646, %v2651
      %v2654 = vunpack.c.l.s4 1934713408
      %v2655 = vunpack.c.0.s8 %v2654
      %v2656 = vperm.slane %v2648, %v2655
      %v2657 = vrot.slane %v2640, 4
      %v2658 = vsel %vm114, 0.0, %v2657
      %v2659 = vrot.slane %v2644, 4
      %v2660 = vsel %vm114, 0.0, %v2659
      %v2661 = vrot.slane %v2652, 4
      %v2662 = vsel %vm114, 0.0, %v2661
      %v2663 = vrot.slane %v2656, 4
      %v2664 = vsel %vm114, 0.0, %v2663
      %v2665 = vsel %vm114, %v2659, %v2640
      %v2667 = vunpack.c.l.s4 1983009808
      %v2668 = vunpack.c.0.s8 %v2667
      %v2669 = vperm.slane %v2665, %v2668
      %v2670 = vrot.slane %v2660, 4
      %v2671 = vsel %vm114, %v2670, %v2658
      %v2673 = vunpack.c.l.s4 1983009808
      %v2674 = vunpack.c.0.s8 %v2673
      %v2675 = vperm.slane %v2671, %v2674
      %v2676 = vsel %vm114, %v2663, %v2652
      %v2678 = vunpack.c.l.s4 1983009808
      %v2679 = vunpack.c.0.s8 %v2678
      %v2680 = vperm.slane %v2676, %v2679
      %v2681 = vrot.slane %v2664, 4
      %v2682 = vsel %vm114, %v2681, %v2662
      %v2684 = vunpack.c.l.s4 1983009808
      %v2685 = vunpack.c.0.s8 %v2684
      %v2686 = vperm.slane %v2682, %v2685
      %v2687 = vrot.slane %v2675, 4
      %v2688 = vsel %vm114, %v2687, %v2669
      %v2689 = vrot.slane %v2669, 4
      %v2690 = vsel %vm114, %v2675, %v2689
      %v2692 = vunpack.c.l.s4 1934713408
      %v2693 = vunpack.c.0.s8 %v2692
      %v2694 = vperm.slane %v2688, %v2693
      %v2696 = vunpack.c.l.s4 1934713408
      %v2697 = vunpack.c.0.s8 %v2696
      %v2698 = vperm.slane %v2690, %v2697
      %v2699 = vrot.slane %v2686, 4
      %v2700 = vsel %vm114, %v2699, %v2680
      %v2701 = vrot.slane %v2680, 4
      %v2702 = vsel %vm114, %v2686, %v2701
      %v2704 = vunpack.c.l.s4 1934713408
      %v2705 = vunpack.c.0.s8 %v2704
      %v2706 = vperm.slane %v2700, %v2705
      %v2708 = vunpack.c.l.s4 1934713408
      %v2709 = vunpack.c.0.s8 %v2708
      %v2710 = vperm.slane %v2702, %v2709
      %v2711 = vrot.slane %v2706, 4
      %v2712 = vsel %vm114, %v2711, %v2694
      %v2713 = vrot.slane %v2694, 4
      %v2714 = vsel %vm114, %v2706, %v2713
      %v2715 = vrot.slane %v2710, 4
      %v2716 = vsel %vm114, %v2715, %v2698
      %v2717 = vrot.slane %v2698, 4
      %v2718 = vsel %vm114, %v2710, %v2717
      %2720 = vrot.lane.b32.xlu0 %v2714, 16
      %v2721 = vpop.permute.xlu0 %2720
      %2724 = vrot.lane.b32.xlu0 %v2716, 32
      %v2725 = vpop.permute.xlu0 %2724
      %2728 = vrot.lane.b32.xlu0 %v2718, 48
      %v2729 = vpop.permute.xlu0 %2728
      %v2731 = vsel %vm831, %v2712, %v2721
      %v2732 = vsel %vm1157, %v2731, %v2725
      %v2733 = vsel %vm1159, %v2732, %v2729
      %v2734 = vpack.c.bf16 %v2733, %v2733
      %v2735 = vld [vmem:[#allocation9] sm:$0xf]
      %v2736 = vld [vmem:[#allocation9 + $0x4] sm:$0xf]
      %v2737 = vld [vmem:[#allocation9 + $0x8] sm:$0xf]
      %v2738 = vld [vmem:[#allocation9 + $0xc] sm:$0xf]
      %v2739 = vld [vmem:[#allocation9 + $0x10] sm:$0xf]
      %v2740 = vld [vmem:[#allocation9 + $0x14] sm:$0xf]
      %v2741 = vld [vmem:[#allocation9 + $0x18] sm:$0xf]
      %v2742 = vld [vmem:[#allocation9 + $0x1c] sm:$0xf]
      %v2743 = vld [vmem:[%s10] sm:$0x1]
      %v2745 = vperm.slane %v2743, 0
      %v2755 = vunpack.c.l.b16 %v2735
      %v2756 = vunpack.c.l.b16 %v2736
      %v2757 = vunpack.c.l.b16 %v2737
      %v2758 = vunpack.c.l.b16 %v2738
      %v2759 = vunpack.c.l.b16 %v2739
      %v2760 = vunpack.c.l.b16 %v2740
      %v2761 = vunpack.c.l.b16 %v2741
      %v2762 = vunpack.c.l.b16 %v2742
      %v2763 = vpack.c.b16 %v2756, %v2755
      %v2764 = vpack.c.b16 %v2758, %v2757
      %v2765 = vpack.c.b16 %v2760, %v2759
      %v2766 = vpack.c.b16 %v2762, %v2761
      %v2772 = vsel %vm172, %v2734, 0
      %2774 = vmatpush.bf16.msra.mxu0 0
      %2775 = vmatpush.bf16.msra.mxu0 0
      %2776 = vmatpush.bf16.msra.mxu0 0
      %2777 = vmatpush.bf16.msra.mxu0 0
      %2778 = vmatpush.bf16.msra.mxu0 %v2766
      %2779 = vmatpush.bf16.msra.mxu0 %v2765
      %2780 = vmatpush.bf16.msra.mxu0 %v2764
      %2781 = vmatpush.bf16.msra.mxu0 %v2763
      %2782 = vmatmul.bf16.gmra.mxu0 %v2772
      %v2783 = vpop.f32.mrf.mxu0
      %v2784 = vadd.f32 %v2745, %v2783
      %v2785 = vpop.f32.mrf.mxu0
      %2786 = vdwg.mxu0
      %v2787 = vadd.f32 %v167, %v2784
      %2788 = vst.msk [vmem:[#allocation2 + $0x10] sm:$0xff] %vm172, %v2787
      %v2789 = vld [vmem:[%s11] sm:$0x1]
      %v2790 = vld [vmem:[%s12] sm:$0x1]
      %v2791 = vsel %vm172, %v2787, 0.0
      %2792 = vadd.xlane.f32.xlu0 %v2791
      %v2793 = vpop.xlane.xlu0 %2792
      %v2794 = vmul.f32 %v2793, %v191
      %v2795 = vsub.f32 %v2787, %v2794
      %v2796 = vmul.f32 %v2795, %v2795
      %v2797 = vsel %vm172, %v2796, 0.0
      %2798 = vadd.xlane.f32.xlu0 %v2797
      %v2799 = vpop.xlane.xlu0 %2798
      %v2800 = vmul.f32 %v2799, %v191
      %v2801 = vadd.f32 %v2800, 1e-05
      %v2802 = vrsqrt.pop %v2801
      %v2803 = vmul.f32 %v2802, %v2801
      %v2804 = vmul.f32 %v2803, %v2802
      %v2805 = vmul.f32 0.5, %v2804
      %v2806 = vsub.f32 1.5, %v2805
      %v2807 = vmul.f32 %v2802, %v2806
      %vm2808 = vweird.f32 %v2801
      %vm2809 = vweird.f32 %v2802
      %vm2810 = vmor %vm2808, %vm2809
      %v2811 = vsel %vm2810, %v2802, %v2807
      %v2812 = vmul.f32 %v2795, %v2811
      %v2814 = vperm.slane %v2789, 0
      %v2816 = vmul.f32 %v2812, %v2814
      %v2818 = vperm.slane %v2790, 0
      %v2820 = vadd.f32 %v2816, %v2818
      %v2821 = vpack.c.bf16 %v2820, %v2820
      %2822 = vst.msk [vmem:[#allocation3 + $0x8] sm:$0xf] %vm1249, %v2821
      %2824 = vrot.lane.b32.xlu0 %v348, 112
      %v2825 = vpop.permute.xlu0 %2824
      %2827 = vrot.lane.b32.xlu0 %v348, 96
      %v2828 = vpop.permute.xlu0 %2827
      %2830 = vrot.lane.b32.xlu0 %v348, 80
      %v2831 = vpop.permute.xlu0 %2830
      %v2833 = vrot.slane %v2828, 4
      %v2834 = vsel %vm114, %v2833, %v348
      %v2835 = vrot.slane %v348, 4
      %v2836 = vsel %vm114, %v2828, %v2835
      %v2838 = vunpack.c.l.s4 1983009808
      %v2839 = vunpack.c.0.s8 %v2838
      %v2840 = vperm.slane %v2834, %v2839
      %v2842 = vunpack.c.l.s4 1983009808
      %v2843 = vunpack.c.0.s8 %v2842
      %v2844 = vperm.slane %v2836, %v2843
      %v2845 = vrot.slane %v2831, 4
      %v2846 = vsel %vm114, %v2845, %v2825
      %v2847 = vrot.slane %v2825, 4
      %v2848 = vsel %vm114, %v2831, %v2847
      %v2850 = vunpack.c.l.s4 1983009808
      %v2851 = vunpack.c.0.s8 %v2850
      %v2852 = vperm.slane %v2846, %v2851
      %v2854 = vunpack.c.l.s4 1983009808
      %v2855 = vunpack.c.0.s8 %v2854
      %v2856 = vperm.slane %v2848, %v2855
      %v2857 = vrot.slane %v2852, 4
      %v2858 = vsel %vm114, %v2857, %v2840
      %v2859 = vrot.slane %v2840, 4
      %v2860 = vsel %vm114, %v2852, %v2859
      %v2862 = vunpack.c.l.s4 1934713408
      %v2863 = vunpack.c.0.s8 %v2862
      %v2864 = vperm.slane %v2858, %v2863
      %v2866 = vunpack.c.l.s4 1934713408
      %v2867 = vunpack.c.0.s8 %v2866
      %v2868 = vperm.slane %v2860, %v2867
      %v2869 = vrot.slane %v2856, 4
      %v2870 = vsel %vm114, %v2869, %v2844
      %v2871 = vrot.slane %v2844, 4
      %v2872 = vsel %vm114, %v2856, %v2871
      %v2874 = vunpack.c.l.s4 1934713408
      %v2875 = vunpack.c.0.s8 %v2874
      %v2876 = vperm.slane %v2870, %v2875
      %v2878 = vunpack.c.l.s4 1934713408
      %v2879 = vunpack.c.0.s8 %v2878
      %v2880 = vperm.slane %v2872, %v2879
      %v2881 = vrot.slane %v2864, 4
      %v2882 = vsel %vm114, 0.0, %v2881
      %v2883 = vrot.slane %v2868, 4
      %v2884 = vsel %vm114, 0.0, %v2883
      %v2885 = vrot.slane %v2876, 4
      %v2886 = vsel %vm114, 0.0, %v2885
      %v2887 = vrot.slane %v2880, 4
      %v2888 = vsel %vm114, 0.0, %v2887
      %v2889 = vsel %vm114, %v2883, %v2864
      %v2891 = vunpack.c.l.s4 1983009808
      %v2892 = vunpack.c.0.s8 %v2891
      %v2893 = vperm.slane %v2889, %v2892
      %v2894 = vrot.slane %v2884, 4
      %v2895 = vsel %vm114, %v2894, %v2882
      %v2897 = vunpack.c.l.s4 1983009808
      %v2898 = vunpack.c.0.s8 %v2897
      %v2899 = vperm.slane %v2895, %v2898
      %v2900 = vsel %vm114, %v2887, %v2876
      %v2902 = vunpack.c.l.s4 1983009808
      %v2903 = vunpack.c.0.s8 %v2902
      %v2904 = vperm.slane %v2900, %v2903
      %v2905 = vrot.slane %v2888, 4
      %v2906 = vsel %vm114, %v2905, %v2886
      %v2908 = vunpack.c.l.s4 1983009808
      %v2909 = vunpack.c.0.s8 %v2908
      %v2910 = vperm.slane %v2906, %v2909
      %v2911 = vrot.slane %v2899, 4
      %v2912 = vsel %vm114, %v2911, %v2893
      %v2913 = vrot.slane %v2893, 4
      %v2914 = vsel %vm114, %v2899, %v2913
      %v2916 = vunpack.c.l.s4 1934713408
      %v2917 = vunpack.c.0.s8 %v2916
      %v2918 = vperm.slane %v2912, %v2917
      %v2920 = vunpack.c.l.s4 1934713408
      %v2921 = vunpack.c.0.s8 %v2920
      %v2922 = vperm.slane %v2914, %v2921
      %v2923 = vrot.slane %v2910, 4
      %v2924 = vsel %vm114, %v2923, %v2904
      %v2925 = vrot.slane %v2904, 4
      %v2926 = vsel %vm114, %v2910, %v2925
      %v2928 = vunpack.c.l.s4 1934713408
      %v2929 = vunpack.c.0.s8 %v2928
      %v2930 = vperm.slane %v2924, %v2929
      %v2932 = vunpack.c.l.s4 1934713408
      %v2933 = vunpack.c.0.s8 %v2932
      %v2934 = vperm.slane %v2926, %v2933
      %v2935 = vrot.slane %v2930, 4
      %v2936 = vsel %vm114, %v2935, %v2918
      %v2937 = vrot.slane %v2918, 4
      %v2938 = vsel %vm114, %v2930, %v2937
      %v2939 = vrot.slane %v2934, 4
      %v2940 = vsel %vm114, %v2939, %v2922
      %v2941 = vrot.slane %v2922, 4
      %v2942 = vsel %vm114, %v2934, %v2941
      %v2943 = vpack.c.bf16 %v2936, %v2936
      %v2944 = vpack.c.bf16 %v2938, %v2938
      %v2945 = vpack.c.bf16 %v2940, %v2940
      %v2946 = vpack.c.bf16 %v2942, %v2942
      %2948 = vrot.lane.b32.xlu0 %v402, 112
      %v2949 = vpop.permute.xlu0 %2948
      %2951 = vrot.lane.b32.xlu0 %v402, 96
      %v2952 = vpop.permute.xlu0 %2951
      %2954 = vrot.lane.b32.xlu0 %v402, 80
      %v2955 = vpop.permute.xlu0 %2954
      %v2957 = vrot.slane %v2952, 4
      %v2958 = vsel %vm114, %v2957, %v402
      %v2959 = vrot.slane %v402, 4
      %v2960 = vsel %vm114, %v2952, %v2959
      %v2962 = vunpack.c.l.s4 1983009808
      %v2963 = vunpack.c.0.s8 %v2962
      %v2964 = vperm.slane %v2958, %v2963
      %v2966 = vunpack.c.l.s4 1983009808
      %v2967 = vunpack.c.0.s8 %v2966
      %v2968 = vperm.slane %v2960, %v2967
      %v2969 = vrot.slane %v2955, 4
      %v2970 = vsel %vm114, %v2969, %v2949
      %v2971 = vrot.slane %v2949, 4
      %v2972 = vsel %vm114, %v2955, %v2971
      %v2974 = vunpack.c.l.s4 1983009808
      %v2975 = vunpack.c.0.s8 %v2974
      %v2976 = vperm.slane %v2970, %v2975
      %v2978 = vunpack.c.l.s4 1983009808
      %v2979 = vunpack.c.0.s8 %v2978
      %v2980 = vperm.slane %v2972, %v2979
      %v2981 = vrot.slane %v2976, 4
      %v2982 = vsel %vm114, %v2981, %v2964
      %v2983 = vrot.slane %v2964, 4
      %v2984 = vsel %vm114, %v2976, %v2983
      %v2986 = vunpack.c.l.s4 1934713408
      %v2987 = vunpack.c.0.s8 %v2986
      %v2988 = vperm.slane %v2982, %v2987
      %v2990 = vunpack.c.l.s4 1934713408
      %v2991 = vunpack.c.0.s8 %v2990
      %v2992 = vperm.slane %v2984, %v2991
      %v2993 = vrot.slane %v2980, 4
      %v2994 = vsel %vm114, %v2993, %v2968
      %v2995 = vrot.slane %v2968, 4
      %v2996 = vsel %vm114, %v2980, %v2995
      %v2998 = vunpack.c.l.s4 1934713408
      %v2999 = vunpack.c.0.s8 %v2998
      %v3000 = vperm.slane %v2994, %v2999
      %v3002 = vunpack.c.l.s4 1934713408
      %v3003 = vunpack.c.0.s8 %v3002
      %v3004 = vperm.slane %v2996, %v3003
      %v3005 = vrot.slane %v2988, 4
      %v3006 = vsel %vm114, 0.0, %v3005
      %v3007 = vrot.slane %v2992, 4
      %v3008 = vsel %vm114, 0.0, %v3007
      %v3009 = vrot.slane %v3000, 4
      %v3010 = vsel %vm114, 0.0, %v3009
      %v3011 = vrot.slane %v3004, 4
      %v3012 = vsel %vm114, 0.0, %v3011
      %v3013 = vsel %vm114, %v3007, %v2988
      %v3015 = vunpack.c.l.s4 1983009808
      %v3016 = vunpack.c.0.s8 %v3015
      %v3017 = vperm.slane %v3013, %v3016
      %v3018 = vrot.slane %v3008, 4
      %v3019 = vsel %vm114, %v3018, %v3006
      %v3021 = vunpack.c.l.s4 1983009808
      %v3022 = vunpack.c.0.s8 %v3021
      %v3023 = vperm.slane %v3019, %v3022
      %v3024 = vsel %vm114, %v3011, %v3000
      %v3026 = vunpack.c.l.s4 1983009808
      %v3027 = vunpack.c.0.s8 %v3026
      %v3028 = vperm.slane %v3024, %v3027
      %v3029 = vrot.slane %v3012, 4
      %v3030 = vsel %vm114, %v3029, %v3010
      %v3032 = vunpack.c.l.s4 1983009808
      %v3033 = vunpack.c.0.s8 %v3032
      %v3034 = vperm.slane %v3030, %v3033
      %v3035 = vrot.slane %v3023, 4
      %v3036 = vsel %vm114, %v3035, %v3017
      %v3037 = vrot.slane %v3017, 4
      %v3038 = vsel %vm114, %v3023, %v3037
      %v3040 = vunpack.c.l.s4 1934713408
      %v3041 = vunpack.c.0.s8 %v3040
      %v3042 = vperm.slane %v3036, %v3041
      %v3044 = vunpack.c.l.s4 1934713408
      %v3045 = vunpack.c.0.s8 %v3044
      %v3046 = vperm.slane %v3038, %v3045
      %v3047 = vrot.slane %v3034, 4
      %v3048 = vsel %vm114, %v3047, %v3028
      %v3049 = vrot.slane %v3028, 4
      %v3050 = vsel %vm114, %v3034, %v3049
      %v3052 = vunpack.c.l.s4 1934713408
      %v3053 = vunpack.c.0.s8 %v3052
      %v3054 = vperm.slane %v3048, %v3053
      %v3056 = vunpack.c.l.s4 1934713408
      %v3057 = vunpack.c.0.s8 %v3056
      %v3058 = vperm.slane %v3050, %v3057
      %v3059 = vrot.slane %v3054, 4
      %v3060 = vsel %vm114, %v3059, %v3042
      %v3061 = vrot.slane %v3042, 4
      %v3062 = vsel %vm114, %v3054, %v3061
      %v3063 = vrot.slane %v3058, 4
      %v3064 = vsel %vm114, %v3063, %v3046
      %v3065 = vrot.slane %v3046, 4
      %v3066 = vsel %vm114, %v3058, %v3065
      %v3067 = vpack.c.bf16 %v3060, %v3060
      %v3068 = vpack.c.bf16 %v3062, %v3062
      %v3069 = vpack.c.bf16 %v3064, %v3064
      %v3070 = vpack.c.bf16 %v3066, %v3066
      %3072 = vrot.lane.b32.xlu0 %v457, 112
      %v3073 = vpop.permute.xlu0 %3072
      %3075 = vrot.lane.b32.xlu0 %v457, 96
      %v3076 = vpop.permute.xlu0 %3075
      %3078 = vrot.lane.b32.xlu0 %v457, 80
      %v3079 = vpop.permute.xlu0 %3078
      %v3081 = vrot.slane %v3076, 4
      %v3082 = vsel %vm114, %v3081, %v457
      %v3083 = vrot.slane %v457, 4
      %v3084 = vsel %vm114, %v3076, %v3083
      %v3086 = vunpack.c.l.s4 1983009808
      %v3087 = vunpack.c.0.s8 %v3086
      %v3088 = vperm.slane %v3082, %v3087
      %v3090 = vunpack.c.l.s4 1983009808
      %v3091 = vunpack.c.0.s8 %v3090
      %v3092 = vperm.slane %v3084, %v3091
      %v3093 = vrot.slane %v3079, 4
      %v3094 = vsel %vm114, %v3093, %v3073
      %v3095 = vrot.slane %v3073, 4
      %v3096 = vsel %vm114, %v3079, %v3095
      %v3098 = vunpack.c.l.s4 1983009808
      %v3099 = vunpack.c.0.s8 %v3098
      %v3100 = vperm.slane %v3094, %v3099
      %v3102 = vunpack.c.l.s4 1983009808
      %v3103 = vunpack.c.0.s8 %v3102
      %v3104 = vperm.slane %v3096, %v3103
      %v3105 = vrot.slane %v3100, 4
      %v3106 = vsel %vm114, %v3105, %v3088
      %v3107 = vrot.slane %v3088, 4
      %v3108 = vsel %vm114, %v3100, %v3107
      %v3110 = vunpack.c.l.s4 1934713408
      %v3111 = vunpack.c.0.s8 %v3110
      %v3112 = vperm.slane %v3106, %v3111
      %v3114 = vunpack.c.l.s4 1934713408
      %v3115 = vunpack.c.0.s8 %v3114
      %v3116 = vperm.slane %v3108, %v3115
      %v3117 = vrot.slane %v3104, 4
      %v3118 = vsel %vm114, %v3117, %v3092
      %v3119 = vrot.slane %v3092, 4
      %v3120 = vsel %vm114, %v3104, %v3119
      %v3122 = vunpack.c.l.s4 1934713408
      %v3123 = vunpack.c.0.s8 %v3122
      %v3124 = vperm.slane %v3118, %v3123
      %v3126 = vunpack.c.l.s4 1934713408
      %v3127 = vunpack.c.0.s8 %v3126
      %v3128 = vperm.slane %v3120, %v3127
      %v3129 = vrot.slane %v3112, 4
      %v3130 = vsel %vm114, 0.0, %v3129
      %v3131 = vrot.slane %v3116, 4
      %v3132 = vsel %vm114, 0.0, %v3131
      %v3133 = vrot.slane %v3124, 4
      %v3134 = vsel %vm114, 0.0, %v3133
      %v3135 = vrot.slane %v3128, 4
      %v3136 = vsel %vm114, 0.0, %v3135
      %v3137 = vsel %vm114, %v3131, %v3112
      %v3139 = vunpack.c.l.s4 1983009808
      %v3140 = vunpack.c.0.s8 %v3139
      %v3141 = vperm.slane %v3137, %v3140
      %v3142 = vrot.slane %v3132, 4
      %v3143 = vsel %vm114, %v3142, %v3130
      %v3145 = vunpack.c.l.s4 1983009808
      %v3146 = vunpack.c.0.s8 %v3145
      %v3147 = vperm.slane %v3143, %v3146
      %v3148 = vsel %vm114, %v3135, %v3124
      %v3150 = vunpack.c.l.s4 1983009808
      %v3151 = vunpack.c.0.s8 %v3150
      %v3152 = vperm.slane %v3148, %v3151
      %v3153 = vrot.slane %v3136, 4
      %v3154 = vsel %vm114, %v3153, %v3134
      %v3156 = vunpack.c.l.s4 1983009808
      %v3157 = vunpack.c.0.s8 %v3156
      %v3158 = vperm.slane %v3154, %v3157
      %v3159 = vrot.slane %v3147, 4
      %v3160 = vsel %vm114, %v3159, %v3141
      %v3161 = vrot.slane %v3141, 4
      %v3162 = vsel %vm114, %v3147, %v3161
      %v3164 = vunpack.c.l.s4 1934713408
      %v3165 = vunpack.c.0.s8 %v3164
      %v3166 = vperm.slane %v3160, %v3165
      %v3168 = vunpack.c.l.s4 1934713408
      %v3169 = vunpack.c.0.s8 %v3168
      %v3170 = vperm.slane %v3162, %v3169
      %v3171 = vrot.slane %v3158, 4
      %v3172 = vsel %vm114, %v3171, %v3152
      %v3173 = vrot.slane %v3152, 4
      %v3174 = vsel %vm114, %v3158, %v3173
      %v3176 = vunpack.c.l.s4 1934713408
      %v3177 = vunpack.c.0.s8 %v3176
      %v3178 = vperm.slane %v3172, %v3177
      %v3180 = vunpack.c.l.s4 1934713408
      %v3181 = vunpack.c.0.s8 %v3180
      %v3182 = vperm.slane %v3174, %v3181
      %v3183 = vrot.slane %v3178, 4
      %v3184 = vsel %vm114, %v3183, %v3166
      %v3185 = vrot.slane %v3166, 4
      %v3186 = vsel %vm114, %v3178, %v3185
      %v3187 = vrot.slane %v3182, 4
      %v3188 = vsel %vm114, %v3187, %v3170
      %v3189 = vrot.slane %v3170, 4
      %v3190 = vsel %vm114, %v3182, %v3189
      %v3191 = vpack.c.bf16 %v3184, %v3184
      %v3192 = vpack.c.bf16 %v3186, %v3186
      %v3193 = vpack.c.bf16 %v3188, %v3188
      %v3194 = vpack.c.bf16 %v3190, %v3190
      %v3196 = vsel %vm831, %v2943, 0
      %v3199 = vsel %vm831, %v3067, 0
      %3201 = vmatpush.bf16.xpose.msra.mxu0 0
      %3202 = vmatpush.bf16.xpose.msra.mxu0 0
      %3203 = vmatpush.bf16.xpose.msra.mxu0 0
      %3204 = vmatpush.bf16.xpose.msra.mxu0 0
      %3205 = vmatpush.bf16.xpose.msra.mxu0 0
      %3206 = vmatpush.bf16.xpose.msra.mxu0 0
      %3207 = vmatpush.bf16.xpose.msra.mxu0 0
      %3208 = vmatpush.bf16.xpose.msra.mxu0 %v3199
      %3209 = vmatmul.bf16.gmra.mxu0 %v3196
      %v3210 = vpop.f32.mrf.mxu0
      %v3211 = vadd.f32 0.0, %v3210
      %v3212 = vpop.f32.mrf.mxu0
      %3213 = vdwg.mxu0
      %v3215 = vsel %vm831, %v2944, 0
      %v3218 = vsel %vm831, %v3068, 0
      %3220 = vmatpush.bf16.xpose.msra.mxu0 0
      %3221 = vmatpush.bf16.xpose.msra.mxu0 0
      %3222 = vmatpush.bf16.xpose.msra.mxu0 0
      %3223 = vmatpush.bf16.xpose.msra.mxu0 0
      %3224 = vmatpush.bf16.xpose.msra.mxu0 0
      %3225 = vmatpush.bf16.xpose.msra.mxu0 0
      %3226 = vmatpush.bf16.xpose.msra.mxu0 0
      %3227 = vmatpush.bf16.xpose.msra.mxu0 %v3218
      %3228 = vmatmul.bf16.gmra.mxu0 %v3215
      %v3229 = vpop.f32.mrf.mxu0
      %v3230 = vadd.f32 0.0, %v3229
      %v3231 = vpop.f32.mrf.mxu0
      %3232 = vdwg.mxu0
      %v3234 = vsel %vm831, %v2945, 0
      %v3237 = vsel %vm831, %v3069, 0
      %3239 = vmatpush.bf16.xpose.msra.mxu0 0
      %3240 = vmatpush.bf16.xpose.msra.mxu0 0
      %3241 = vmatpush.bf16.xpose.msra.mxu0 0
      %3242 = vmatpush.bf16.xpose.msra.mxu0 0
      %3243 = vmatpush.bf16.xpose.msra.mxu0 0
      %3244 = vmatpush.bf16.xpose.msra.mxu0 0
      %3245 = vmatpush.bf16.xpose.msra.mxu0 0
      %3246 = vmatpush.bf16.xpose.msra.mxu0 %v3237
      %3247 = vmatmul.bf16.gmra.mxu0 %v3234
      %v3248 = vpop.f32.mrf.mxu0
      %v3249 = vadd.f32 0.0, %v3248
      %v3250 = vpop.f32.mrf.mxu0
      %3251 = vdwg.mxu0
      %v3253 = vsel %vm831, %v2946, 0
      %v3256 = vsel %vm831, %v3070, 0
      %3258 = vmatpush.bf16.xpose.msra.mxu0 0
      %3259 = vmatpush.bf16.xpose.msra.mxu0 0
      %3260 = vmatpush.bf16.xpose.msra.mxu0 0
      %3261 = vmatpush.bf16.xpose.msra.mxu0 0
      %3262 = vmatpush.bf16.xpose.msra.mxu0 0
      %3263 = vmatpush.bf16.xpose.msra.mxu0 0
      %3264 = vmatpush.bf16.xpose.msra.mxu0 0
      %3265 = vmatpush.bf16.xpose.msra.mxu0 %v3256
      %3266 = vmatmul.bf16.gmra.mxu0 %v3253
      %v3267 = vpop.f32.mrf.mxu0
      %v3268 = vadd.f32 0.0, %v3267
      %v3269 = vpop.f32.mrf.mxu0
      %3270 = vdwg.mxu0
      %v3271 = vsel %vm908, %v3211, -inf
      %3272 = vmax.xlane.f32.xlu0 %v3271
      %v3273 = vpop.xlane.xlu0 %3272
      %v3274 = vsel %vm908, %v3230, -inf
      %3275 = vmax.xlane.f32.xlu0 %v3274
      %v3276 = vpop.xlane.xlu0 %3275
      %v3277 = vsel %vm908, %v3249, -inf
      %3278 = vmax.xlane.f32.xlu0 %v3277
      %v3279 = vpop.xlane.xlu0 %3278
      %v3280 = vsel %vm908, %v3268, -inf
      %3281 = vmax.xlane.f32.xlu0 %v3280
      %v3282 = vpop.xlane.xlu0 %3281
      %v3283 = vsub.f32 %v3211, %v3273
      %v3284 = vsub.f32 %v3230, %v3276
      %v3285 = vsub.f32 %v3249, %v3279
      %v3286 = vsub.f32 %v3268, %v3282
      %v3287 = vmul.f32 %v3283, 1.442695
      %v3288 = vpow.pop %v3287
      %v3289 = vmul.f32 %v3284, 1.442695
      %v3290 = vpow.pop %v3289
      %v3291 = vmul.f32 %v3285, 1.442695
      %v3292 = vpow.pop %v3291
      %v3293 = vmul.f32 %v3286, 1.442695
      %v3294 = vpow.pop %v3293
      %v3295 = vsel %vm908, %v3288, 0.0
      %3296 = vadd.xlane.f32.xlu0 %v3295
      %v3297 = vpop.xlane.xlu0 %3296
      %v3298 = vsel %vm908, %v3290, 0.0
      %3299 = vadd.xlane.f32.xlu0 %v3298
      %v3300 = vpop.xlane.xlu0 %3299
      %v3301 = vsel %vm908, %v3292, 0.0
      %3302 = vadd.xlane.f32.xlu0 %v3301
      %v3303 = vpop.xlane.xlu0 %3302
      %v3304 = vsel %vm908, %v3294, 0.0
      %3305 = vadd.xlane.f32.xlu0 %v3304
      %v3306 = vpop.xlane.xlu0 %3305
      %v3307 = vrcp.pop %v3297
      %v3308 = vrcp.pop %v3300
      %v3309 = vrcp.pop %v3303
      %v3310 = vrcp.pop %v3306
      %v3311 = vmul.f32 %v3288, %v3307
      %v3312 = vmul.f32 %v3290, %v3308
      %v3313 = vmul.f32 %v3292, %v3309
      %v3314 = vmul.f32 %v3294, %v3310
      %v3315 = vpack.c.bf16 %v3311, %v3311
      %v3316 = vpack.c.bf16 %v3312, %v3312
      %v3317 = vpack.c.bf16 %v3313, %v3313
      %v3318 = vpack.c.bf16 %v3314, %v3314
      %v3320 = vsel %vm908, %v3315, 0
      %v3323 = vsel %vm960, %v3191, 0
      %3325 = vmatpush.bf16.msra.mxu0 0
      %3326 = vmatpush.bf16.msra.mxu0 0
      %3327 = vmatpush.bf16.msra.mxu0 0
      %3328 = vmatpush.bf16.msra.mxu0 0
      %3329 = vmatpush.bf16.msra.mxu0 0
      %3330 = vmatpush.bf16.msra.mxu0 0
      %3331 = vmatpush.bf16.msra.mxu0 0
      %3332 = vmatpush.bf16.msra.mxu0 %v3323
      %3333 = vmatmul.bf16.gmra.mxu0 %v3320
      %v3334 = vpop.f32.mrf.mxu0
      %v3335 = vadd.f32 0.0, %v3334
      %v3336 = vpop.f32.mrf.mxu0
      %3337 = vdwg.mxu0
      %v3339 = vsel %vm908, %v3316, 0
      %v3342 = vsel %vm960, %v3192, 0
      %3344 = vmatpush.bf16.msra.mxu0 0
      %3345 = vmatpush.bf16.msra.mxu0 0
      %3346 = vmatpush.bf16.msra.mxu0 0
      %3347 = vmatpush.bf16.msra.mxu0 0
      %3348 = vmatpush.bf16.msra.mxu0 0
      %3349 = vmatpush.bf16.msra.mxu0 0
      %3350 = vmatpush.bf16.msra.mxu0 0
      %3351 = vmatpush.bf16.msra.mxu0 %v3342
      %3352 = vmatmul.bf16.gmra.mxu0 %v3339
      %v3353 = vpop.f32.mrf.mxu0
      %v3354 = vadd.f32 0.0, %v3353
      %v3355 = vpop.f32.mrf.mxu0
      %3356 = vdwg.mxu0
      %v3358 = vsel %vm908, %v3317, 0
      %v3361 = vsel %vm960, %v3193, 0
      %3363 = vmatpush.bf16.msra.mxu0 0
      %3364 = vmatpush.bf16.msra.mxu0 0
      %3365 = vmatpush.bf16.msra.mxu0 0
      %3366 = vmatpush.bf16.msra.mxu0 0
      %3367 = vmatpush.bf16.msra.mxu0 0
      %3368 = vmatpush.bf16.msra.mxu0 0
      %3369 = vmatpush.bf16.msra.mxu0 0
      %3370 = vmatpush.bf16.msra.mxu0 %v3361
      %3371 = vmatmul.bf16.gmra.mxu0 %v3358
      %v3372 = vpop.f32.mrf.mxu0
      %v3373 = vadd.f32 0.0, %v3372
      %v3374 = vpop.f32.mrf.mxu0
      %3375 = vdwg.mxu0
      %v3377 = vsel %vm908, %v3318, 0
      %v3380 = vsel %vm960, %v3194, 0
      %3382 = vmatpush.bf16.msra.mxu0 0
      %3383 = vmatpush.bf16.msra.mxu0 0
      %3384 = vmatpush.bf16.msra.mxu0 0
      %3385 = vmatpush.bf16.msra.mxu0 0
      %3386 = vmatpush.bf16.msra.mxu0 0
      %3387 = vmatpush.bf16.msra.mxu0 0
      %3388 = vmatpush.bf16.msra.mxu0 0
      %3389 = vmatpush.bf16.msra.mxu0 %v3380
      %3390 = vmatmul.bf16.gmra.mxu0 %v3377
      %v3391 = vpop.f32.mrf.mxu0
      %v3392 = vadd.f32 0.0, %v3391
      %v3393 = vpop.f32.mrf.mxu0
      %3394 = vdwg.mxu0
      %v3395 = vrot.slane %v3373, 4
      %v3396 = vsel %vm114, %v3395, %v3335
      %v3397 = vrot.slane %v3335, 4
      %v3398 = vsel %vm114, %v3373, %v3397
      %v3400 = vunpack.c.l.s4 1983009808
      %v3401 = vunpack.c.0.s8 %v3400
      %v3402 = vperm.slane %v3396, %v3401
      %v3404 = vunpack.c.l.s4 1983009808
      %v3405 = vunpack.c.0.s8 %v3404
      %v3406 = vperm.slane %v3398, %v3405
      %v3407 = vrot.slane %v3392, 4
      %v3408 = vsel %vm114, %v3407, %v3354
      %v3409 = vrot.slane %v3354, 4
      %v3410 = vsel %vm114, %v3392, %v3409
      %v3412 = vunpack.c.l.s4 1983009808
      %v3413 = vunpack.c.0.s8 %v3412
      %v3414 = vperm.slane %v3408, %v3413
      %v3416 = vunpack.c.l.s4 1983009808
      %v3417 = vunpack.c.0.s8 %v3416
      %v3418 = vperm.slane %v3410, %v3417
      %v3419 = vrot.slane %v3414, 4
      %v3420 = vsel %vm114, %v3419, %v3402
      %v3421 = vrot.slane %v3402, 4
      %v3422 = vsel %vm114, %v3414, %v3421
      %v3424 = vunpack.c.l.s4 1934713408
      %v3425 = vunpack.c.0.s8 %v3424
      %v3426 = vperm.slane %v3420, %v3425
      %v3428 = vunpack.c.l.s4 1934713408
      %v3429 = vunpack.c.0.s8 %v3428
      %v3430 = vperm.slane %v3422, %v3429
      %v3431 = vrot.slane %v3418, 4
      %v3432 = vsel %vm114, %v3431, %v3406
      %v3433 = vrot.slane %v3406, 4
      %v3434 = vsel %vm114, %v3418, %v3433
      %v3436 = vunpack.c.l.s4 1934713408
      %v3437 = vunpack.c.0.s8 %v3436
      %v3438 = vperm.slane %v3432, %v3437
      %v3440 = vunpack.c.l.s4 1934713408
      %v3441 = vunpack.c.0.s8 %v3440
      %v3442 = vperm.slane %v3434, %v3441
      %v3443 = vrot.slane %v3426, 4
      %v3444 = vsel %vm114, 0.0, %v3443
      %v3445 = vrot.slane %v3430, 4
      %v3446 = vsel %vm114, 0.0, %v3445
      %v3447 = vrot.slane %v3438, 4
      %v3448 = vsel %vm114, 0.0, %v3447
      %v3449 = vrot.slane %v3442, 4
      %v3450 = vsel %vm114, 0.0, %v3449
      %v3451 = vsel %vm114, %v3445, %v3426
      %v3453 = vunpack.c.l.s4 1983009808
      %v3454 = vunpack.c.0.s8 %v3453
      %v3455 = vperm.slane %v3451, %v3454
      %v3456 = vrot.slane %v3446, 4
      %v3457 = vsel %vm114, %v3456, %v3444
      %v3459 = vunpack.c.l.s4 1983009808
      %v3460 = vunpack.c.0.s8 %v3459
      %v3461 = vperm.slane %v3457, %v3460
      %v3462 = vsel %vm114, %v3449, %v3438
      %v3464 = vunpack.c.l.s4 1983009808
      %v3465 = vunpack.c.0.s8 %v3464
      %v3466 = vperm.slane %v3462, %v3465
      %v3467 = vrot.slane %v3450, 4
      %v3468 = vsel %vm114, %v3467, %v3448
      %v3470 = vunpack.c.l.s4 1983009808
      %v3471 = vunpack.c.0.s8 %v3470
      %v3472 = vperm.slane %v3468, %v3471
      %v3473 = vrot.slane %v3461, 4
      %v3474 = vsel %vm114, %v3473, %v3455
      %v3475 = vrot.slane %v3455, 4
      %v3476 = vsel %vm114, %v3461, %v3475
      %v3478 = vunpack.c.l.s4 1934713408
      %v3479 = vunpack.c.0.s8 %v3478
      %v3480 = vperm.slane %v3474, %v3479
      %v3482 = vunpack.c.l.s4 1934713408
      %v3483 = vunpack.c.0.s8 %v3482
      %v3484 = vperm.slane %v3476, %v3483
      %v3485 = vrot.slane %v3472, 4
      %v3486 = vsel %vm114, %v3485, %v3466
      %v3487 = vrot.slane %v3466, 4
      %v3488 = vsel %vm114, %v3472, %v3487
      %v3490 = vunpack.c.l.s4 1934713408
      %v3491 = vunpack.c.0.s8 %v3490
      %v3492 = vperm.slane %v3486, %v3491
      %v3494 = vunpack.c.l.s4 1934713408
      %v3495 = vunpack.c.0.s8 %v3494
      %v3496 = vperm.slane %v3488, %v3495
      %v3497 = vrot.slane %v3492, 4
      %v3498 = vsel %vm114, %v3497, %v3480
      %v3499 = vrot.slane %v3480, 4
      %v3500 = vsel %vm114, %v3492, %v3499
      %v3501 = vrot.slane %v3496, 4
      %v3502 = vsel %vm114, %v3501, %v3484
      %v3503 = vrot.slane %v3484, 4
      %v3504 = vsel %vm114, %v3496, %v3503
      %3506 = vrot.lane.b32.xlu0 %v3500, 16
      %v3507 = vpop.permute.xlu0 %3506
      %3510 = vrot.lane.b32.xlu0 %v3502, 32
      %v3511 = vpop.permute.xlu0 %3510
      %3514 = vrot.lane.b32.xlu0 %v3504, 48
      %v3515 = vpop.permute.xlu0 %3514
      %v3517 = vsel %vm831, %v3498, %v3507
      %v3518 = vsel %vm1157, %v3517, %v3511
      %v3519 = vsel %vm1159, %v3518, %v3515
      %v3520 = vpack.c.bf16 %v3519, %v3519
      %v3521 = vld [vmem:[#allocation9] sm:$0xf]
      %v3522 = vld [vmem:[#allocation9 + $0x4] sm:$0xf]
      %v3523 = vld [vmem:[#allocation9 + $0x8] sm:$0xf]
      %v3524 = vld [vmem:[#allocation9 + $0xc] sm:$0xf]
      %v3525 = vld [vmem:[#allocation9 + $0x10] sm:$0xf]
      %v3526 = vld [vmem:[#allocation9 + $0x14] sm:$0xf]
      %v3527 = vld [vmem:[#allocation9 + $0x18] sm:$0xf]
      %v3528 = vld [vmem:[#allocation9 + $0x1c] sm:$0xf]
      %v3529 = vld [vmem:[%s10] sm:$0x1]
      %v3531 = vperm.slane %v3529, 0
      %v3541 = vunpack.c.l.b16 %v3521
      %v3542 = vunpack.c.l.b16 %v3522
      %v3543 = vunpack.c.l.b16 %v3523
      %v3544 = vunpack.c.l.b16 %v3524
      %v3545 = vunpack.c.l.b16 %v3525
      %v3546 = vunpack.c.l.b16 %v3526
      %v3547 = vunpack.c.l.b16 %v3527
      %v3548 = vunpack.c.l.b16 %v3528
      %v3549 = vpack.c.b16 %v3542, %v3541
      %v3550 = vpack.c.b16 %v3544, %v3543
      %v3551 = vpack.c.b16 %v3546, %v3545
      %v3552 = vpack.c.b16 %v3548, %v3547
      %v3558 = vsel %vm172, %v3520, 0
      %3560 = vmatpush.bf16.msra.mxu0 0
      %3561 = vmatpush.bf16.msra.mxu0 0
      %3562 = vmatpush.bf16.msra.mxu0 0
      %3563 = vmatpush.bf16.msra.mxu0 0
      %3564 = vmatpush.bf16.msra.mxu0 %v3552
      %3565 = vmatpush.bf16.msra.mxu0 %v3551
      %3566 = vmatpush.bf16.msra.mxu0 %v3550
      %3567 = vmatpush.bf16.msra.mxu0 %v3549
      %3568 = vmatmul.bf16.gmra.mxu0 %v3558
      %v3569 = vpop.f32.mrf.mxu0
      %v3570 = vadd.f32 %v3531, %v3569
      %v3571 = vpop.f32.mrf.mxu0
      %3572 = vdwg.mxu0
      %v3573 = vadd.f32 %v169, %v3570
      %3574 = vst.msk [vmem:[#allocation2 + $0x18] sm:$0xff] %vm172, %v3573
      %v3575 = vld [vmem:[%s11] sm:$0x1]
      %v3576 = vld [vmem:[%s12] sm:$0x1]
      %v3577 = vsel %vm172, %v3573, 0.0
      %3578 = vadd.xlane.f32.xlu0 %v3577
      %v3579 = vpop.xlane.xlu0 %3578
      %v3580 = vmul.f32 %v3579, %v191
      %v3581 = vsub.f32 %v3573, %v3580
      %v3582 = vmul.f32 %v3581, %v3581
      %v3583 = vsel %vm172, %v3582, 0.0
      %3584 = vadd.xlane.f32.xlu0 %v3583
      %v3585 = vpop.xlane.xlu0 %3584
      %v3586 = vmul.f32 %v3585, %v191
      %v3587 = vadd.f32 %v3586, 1e-05
      %v3588 = vrsqrt.pop %v3587
      %v3589 = vmul.f32 %v3588, %v3587
      %v3590 = vmul.f32 %v3589, %v3588
      %v3591 = vmul.f32 0.5, %v3590
      %v3592 = vsub.f32 1.5, %v3591
      %v3593 = vmul.f32 %v3588, %v3592
      %vm3594 = vweird.f32 %v3587
      %vm3595 = vweird.f32 %v3588
      %vm3596 = vmor %vm3594, %vm3595
      %v3597 = vsel %vm3596, %v3588, %v3593
      %v3598 = vmul.f32 %v3581, %v3597
      %v3600 = vperm.slane %v3575, 0
      %v3602 = vmul.f32 %v3598, %v3600
      %v3604 = vperm.slane %v3576, 0
      %v3606 = vadd.f32 %v3602, %v3604
      %v3607 = vpack.c.bf16 %v3606, %v3606
      %3608 = vst.msk [vmem:[#allocation3 + $0xc] sm:$0xf] %vm1249, %v3607
    $region85: #{tpu_custom_call.1} parent=1 // pred_fallthru
      _
    %v3609 = vld [vmem:[#allocation3] sm:$0xf]
    %v3610 = vld [vmem:[#allocation3 + $0x4] sm:$0xf]
    %v3611 = vld [vmem:[#allocation3 + $0x8] sm:$0xf]
    %v3612 = vld [vmem:[#allocation3 + $0xc] sm:$0xf]
    %v3613 = vld [vmem:[%s13] sm:$0xff]
    %v3614 = vld [vmem:[%s13 + $0x8] sm:$0xff]
    %v3615 = vld [vmem:[%s13 + $0x10] sm:$0xff]
    %v3616 = vld [vmem:[%s13 + $0x18] sm:$0xff]
    %v3617 = vld [vmem:[%s13 + $0x20] sm:$0xff]
    %v3618 = vld [vmem:[%s13 + $0x28] sm:$0xff]
    %v3619 = vld [vmem:[%s13 + $0x30] sm:$0xff]
    %v3620 = vld [vmem:[%s13 + $0x38] sm:$0xff]
    %v3621 = vld [vmem:[%s14] sm:$0x3]
    %v3623 = vperm.slane %v3621, 0
    %v3624 = vperm.slane %v3621, 1
    %v3631 = vunpack.c.l.b16 %v3609
    %v3632 = vunpack.c.l.b16 %v3610
    %v3633 = vunpack.c.l.b16 %v3611
    %v3634 = vunpack.c.l.b16 %v3612
    %v3635 = vpack.c.b16 %v3632, %v3631
    %v3636 = vpack.c.b16 %v3634, %v3633
    %v3645 = vunpack.c.l.b16 %v3613
    %v3646 = vunpack.c.h.b16 %v3613
    %v3647 = vunpack.c.l.b16 %v3614
    %v3648 = vunpack.c.h.b16 %v3614
    %v3649 = vunpack.c.l.b16 %v3615
    %v3650 = vunpack.c.h.b16 %v3615
    %v3651 = vunpack.c.l.b16 %v3616
    %v3652 = vunpack.c.h.b16 %v3616
    %v3653 = vunpack.c.l.b16 %v3617
    %v3654 = vunpack.c.h.b16 %v3617
    %v3655 = vunpack.c.l.b16 %v3618
    %v3656 = vunpack.c.h.b16 %v3618
    %v3657 = vunpack.c.l.b16 %v3619
    %v3658 = vunpack.c.h.b16 %v3619
    %v3659 = vunpack.c.l.b16 %v3620
    %v3660 = vunpack.c.h.b16 %v3620
    %v3661 = vpack.c.b16 %v3647, %v3645
    %v3662 = vpack.c.b16 %v3648, %v3646
    %v3663 = vpack.c.b16 %v3651, %v3649
    %v3664 = vpack.c.b16 %v3652, %v3650
    %v3665 = vpack.c.b16 %v3655, %v3653
    %v3666 = vpack.c.b16 %v3656, %v3654
    %v3667 = vpack.c.b16 %v3659, %v3657
    %v3668 = vpack.c.b16 %v3660, %v3658
    %vm3677 = vcmask 523264
    %v3679 = vsel %vm3677, %v3635, 0
    %v3682 = vsel %vm3677, %v3636, 0
    %3684 = vmatpush.bf16.msra.mxu0 0
    %3685 = vmatpush.bf16.msra.mxu0 0
    %3686 = vmatpush.bf16.msra.mxu0 0
    %3687 = vmatpush.bf16.msra.mxu0 0
    %3688 = vmatpush.bf16.msra.mxu0 %v3667
    %3689 = vmatpush.bf16.msra.mxu0 %v3665
    %3690 = vmatpush.bf16.msra.mxu0 %v3663
    %3691 = vmatpush.bf16.msra.mxu0 %v3661
    %3692 = vmatmul.bf16.gmra.mxu0 %v3679
    %v3693 = vpop.f32.mrf.mxu0
    %v3694 = vadd.f32 %v3623, %v3693
    %v3695 = vpop.f32.mrf.mxu0
    %v3696 = vadd.f32 %v3623, %v3695
    %3697 = vmatmul.bf16.gmra.mxu0 %v3682
    %v3698 = vpop.f32.mrf.mxu0
    %v3699 = vadd.f32 %v3623, %v3698
    %v3700 = vpop.f32.mrf.mxu0
    %v3701 = vadd.f32 %v3623, %v3700
    %3702 = vdwg.mxu0
    %3703 = vmatpush.bf16.msra.mxu0 0
    %3704 = vmatpush.bf16.msra.mxu0 0
    %3705 = vmatpush.bf16.msra.mxu0 0
    %3706 = vmatpush.bf16.msra.mxu0 0
    %3707 = vmatpush.bf16.msra.mxu0 %v3668
    %3708 = vmatpush.bf16.msra.mxu0 %v3666
    %3709 = vmatpush.bf16.msra.mxu0 %v3664
    %3710 = vmatpush.bf16.msra.mxu0 %v3662
    %3711 = vmatmul.bf16.gmra.mxu0 %v3679
    %v3712 = vpop.f32.mrf.mxu0
    %v3713 = vadd.f32 %v3624, %v3712
    %v3714 = vpop.f32.mrf.mxu0
    %v3715 = vadd.f32 %v3624, %v3714
    %3716 = vmatmul.bf16.gmra.mxu0 %v3682
    %v3717 = vpop.f32.mrf.mxu0
    %v3718 = vadd.f32 %v3624, %v3717
    %v3719 = vpop.f32.mrf.mxu0
    %v3720 = vadd.f32 %v3624, %v3719
    %3721 = vdwg.mxu0
    %v3722 = vmul.f32 %v3694, 1.702
    %v3723 = vmul.f32 %v3713, 1.702
    %v3724 = vmul.f32 %v3696, 1.702
    %v3725 = vmul.f32 %v3715, 1.702
    %v3726 = vmul.f32 %v3699, 1.702
    %v3727 = vmul.f32 %v3718, 1.702
    %v3728 = vmul.f32 %v3701, 1.702
    %v3729 = vmul.f32 %v3720, 1.702
    %v3730 = vxor.u32 %v3722, 2147483648
    %v3731 = vxor.u32 %v3723, 2147483648
    %v3732 = vxor.u32 %v3724, 2147483648
    %v3733 = vxor.u32 %v3725, 2147483648
    %v3734 = vxor.u32 %v3726, 2147483648
    %v3735 = vxor.u32 %v3727, 2147483648
    %v3736 = vxor.u32 %v3728, 2147483648
    %v3737 = vxor.u32 %v3729, 2147483648
    %v3738 = vmul.f32 %v3730, 1.442695
    %v3739 = vpow.pop %v3738
    %v3740 = vmul.f32 %v3731, 1.442695
    %v3741 = vpow.pop %v3740
    %v3742 = vmul.f32 %v3732, 1.442695
    %v3743 = vpow.pop %v3742
    %v3744 = vmul.f32 %v3733, 1.442695
    %v3745 = vpow.pop %v3744
    %v3746 = vmul.f32 %v3734, 1.442695
    %v3747 = vpow.pop %v3746
    %v3748 = vmul.f32 %v3735, 1.442695
    %v3749 = vpow.pop %v3748
    %v3750 = vmul.f32 %v3736, 1.442695
    %v3751 = vpow.pop %v3750
    %v3752 = vmul.f32 %v3737, 1.442695
    %v3753 = vpow.pop %v3752
    %v3754 = vadd.f32 %v3739, 1.0
    %v3755 = vadd.f32 %v3741, 1.0
    %v3756 = vadd.f32 %v3743, 1.0
    %v3757 = vadd.f32 %v3745, 1.0
    %v3758 = vadd.f32 %v3747, 1.0
    %v3759 = vadd.f32 %v3749, 1.0
    %v3760 = vadd.f32 %v3751, 1.0
    %v3761 = vadd.f32 %v3753, 1.0
    %v3762 = vrcp.pop %v3754
    %v3763 = vmul.f32 %v3754, %v3762
    %v3764 = vsub.f32 1.0, %v3763
    %v3765 = vmul.f32 %v3762, %v3764
    %v3766 = vadd.f32 %v3762, %v3765
    %vm3767 = vweird.f32 %v3754
    %vm3768 = vweird.f32 %v3762
    %vm3769 = vmor %vm3767, %vm3768
    %v3770 = vsel %vm3769, %v3762, %v3766
    %v3771 = vand.u32 2147483647, %v3754
    %vm3772 = vcmp.eq.f32.partialorder %v3771, 8.507059e+37
    %v3773 = vand.u32 %v3754, 2147483648
    %v3774 = vor.u32 1.1754944e-38, %v3773
    %v3775 = vsel %vm3772, %v3774, %v3770
    %v3776 = vmul.f32 1.0, %v3775
    %v3777 = vrcp.pop %v3755
    %v3778 = vmul.f32 %v3755, %v3777
    %v3779 = vsub.f32 1.0, %v3778
    %v3780 = vmul.f32 %v3777, %v3779
    %v3781 = vadd.f32 %v3777, %v3780
    %vm3782 = vweird.f32 %v3755
    %vm3783 = vweird.f32 %v3777
    %vm3784 = vmor %vm3782, %vm3783
    %v3785 = vsel %vm3784, %v3777, %v3781
    %v3786 = vand.u32 2147483647, %v3755
    %vm3787 = vcmp.eq.f32.partialorder %v3786, 8.507059e+37
    %v3788 = vand.u32 %v3755, 2147483648
    %v3789 = vor.u32 1.1754944e-38, %v3788
    %v3790 = vsel %vm3787, %v3789, %v3785
    %v3791 = vmul.f32 1.0, %v3790
    %v3792 = vrcp.pop %v3756
    %v3793 = vmul.f32 %v3756, %v3792
    %v3794 = vsub.f32 1.0, %v3793
    %v3795 = vmul.f32 %v3792, %v3794
    %v3796 = vadd.f32 %v3792, %v3795
    %vm3797 = vweird.f32 %v3756
    %vm3798 = vweird.f32 %v3792
    %vm3799 = vmor %vm3797, %vm3798
    %v3800 = vsel %vm3799, %v3792, %v3796
    %v3801 = vand.u32 2147483647, %v3756
    %vm3802 = vcmp.eq.f32.partialorder %v3801, 8.507059e+37
    %v3803 = vand.u32 %v3756, 2147483648
    %v3804 = vor.u32 1.1754944e-38, %v3803
    %v3805 = vsel %vm3802, %v3804, %v3800
    %v3806 = vmul.f32 1.0, %v3805
    %v3807 = vrcp.pop %v3757
    %v3808 = vmul.f32 %v3757, %v3807
    %v3809 = vsub.f32 1.0, %v3808
    %v3810 = vmul.f32 %v3807, %v3809
    %v3811 = vadd.f32 %v3807, %v3810
    %vm3812 = vweird.f32 %v3757
    %vm3813 = vweird.f32 %v3807
    %vm3814 = vmor %vm3812, %vm3813
    %v3815 = vsel %vm3814, %v3807, %v3811
    %v3816 = vand.u32 2147483647, %v3757
    %vm3817 = vcmp.eq.f32.partialorder %v3816, 8.507059e+37
    %v3818 = vand.u32 %v3757, 2147483648
    %v3819 = vor.u32 1.1754944e-38, %v3818
    %v3820 = vsel %vm3817, %v3819, %v3815
    %v3821 = vmul.f32 1.0, %v3820
    %v3822 = vrcp.pop %v3758
    %v3823 = vmul.f32 %v3758, %v3822
    %v3824 = vsub.f32 1.0, %v3823
    %v3825 = vmul.f32 %v3822, %v3824
    %v3826 = vadd.f32 %v3822, %v3825
    %vm3827 = vweird.f32 %v3758
    %vm3828 = vweird.f32 %v3822
    %vm3829 = vmor %vm3827, %vm3828
    %v3830 = vsel %vm3829, %v3822, %v3826
    %v3831 = vand.u32 2147483647, %v3758
    %vm3832 = vcmp.eq.f32.partialorder %v3831, 8.507059e+37
    %v3833 = vand.u32 %v3758, 2147483648
    %v3834 = vor.u32 1.1754944e-38, %v3833
    %v3835 = vsel %vm3832, %v3834, %v3830
    %v3836 = vmul.f32 1.0, %v3835
    %v3837 = vrcp.pop %v3759
    %v3838 = vmul.f32 %v3759, %v3837
    %v3839 = vsub.f32 1.0, %v3838
    %v3840 = vmul.f32 %v3837, %v3839
    %v3841 = vadd.f32 %v3837, %v3840
    %vm3842 = vweird.f32 %v3759
    %vm3843 = vweird.f32 %v3837
    %vm3844 = vmor %vm3842, %vm3843
    %v3845 = vsel %vm3844, %v3837, %v3841
    %v3846 = vand.u32 2147483647, %v3759
    %vm3847 = vcmp.eq.f32.partialorder %v3846, 8.507059e+37
    %v3848 = vand.u32 %v3759, 2147483648
    %v3849 = vor.u32 1.1754944e-38, %v3848
    %v3850 = vsel %vm3847, %v3849, %v3845
    %v3851 = vmul.f32 1.0, %v3850
    %v3852 = vrcp.pop %v3760
    %v3853 = vmul.f32 %v3760, %v3852
    %v3854 = vsub.f32 1.0, %v3853
    %v3855 = vmul.f32 %v3852, %v3854
    %v3856 = vadd.f32 %v3852, %v3855
    %vm3857 = vweird.f32 %v3760
    %vm3858 = vweird.f32 %v3852
    %vm3859 = vmor %vm3857, %vm3858
    %v3860 = vsel %vm3859, %v3852, %v3856
    %v3861 = vand.u32 2147483647, %v3760
    %vm3862 = vcmp.eq.f32.partialorder %v3861, 8.507059e+37
    %v3863 = vand.u32 %v3760, 2147483648
    %v3864 = vor.u32 1.1754944e-38, %v3863
    %v3865 = vsel %vm3862, %v3864, %v3860
    %v3866 = vmul.f32 1.0, %v3865
    %v3867 = vrcp.pop %v3761
    %v3868 = vmul.f32 %v3761, %v3867
    %v3869 = vsub.f32 1.0, %v3868
    %v3870 = vmul.f32 %v3867, %v3869
    %v3871 = vadd.f32 %v3867, %v3870
    %vm3872 = vweird.f32 %v3761
    %vm3873 = vweird.f32 %v3867
    %vm3874 = vmor %vm3872, %vm3873
    %v3875 = vsel %vm3874, %v3867, %v3871
    %v3876 = vand.u32 2147483647, %v3761
    %vm3877 = vcmp.eq.f32.partialorder %v3876, 8.507059e+37
    %v3878 = vand.u32 %v3761, 2147483648
    %v3879 = vor.u32 1.1754944e-38, %v3878
    %v3880 = vsel %vm3877, %v3879, %v3875
    %v3881 = vmul.f32 1.0, %v3880
    %v3882 = vmul.f32 %v3694, %v3776
    %v3883 = vmul.f32 %v3713, %v3791
    %v3884 = vmul.f32 %v3696, %v3806
    %v3885 = vmul.f32 %v3715, %v3821
    %v3886 = vmul.f32 %v3699, %v3836
    %v3887 = vmul.f32 %v3718, %v3851
    %v3888 = vmul.f32 %v3701, %v3866
    %v3889 = vmul.f32 %v3720, %v3881
    %v3890 = vpack.c.bf16 %v3884, %v3882
    %v3891 = vpack.c.bf16 %v3885, %v3883
    %v3892 = vpack.c.bf16 %v3888, %v3886
    %v3893 = vpack.c.bf16 %v3889, %v3887
    %v3894 = vld [vmem:[%s15] sm:$0xf]
    %v3895 = vld [vmem:[%s15 + $0x4] sm:$0xf]
    %v3896 = vld [vmem:[%s15 + $0x8] sm:$0xf]
    %v3897 = vld [vmem:[%s15 + $0xc] sm:$0xf]
    %v3898 = vld [vmem:[%s15 + $0x10] sm:$0xf]
    %v3899 = vld [vmem:[%s15 + $0x14] sm:$0xf]
    %v3900 = vld [vmem:[%s15 + $0x18] sm:$0xf]
    %v3901 = vld [vmem:[%s15 + $0x1c] sm:$0xf]
    %v3902 = vld [vmem:[%s15 + $0x20] sm:$0xf]
    %v3903 = vld [vmem:[%s15 + $0x24] sm:$0xf]
    %v3904 = vld [vmem:[%s15 + $0x28] sm:$0xf]
    %v3905 = vld [vmem:[%s15 + $0x2c] sm:$0xf]
    %v3906 = vld [vmem:[%s15 + $0x30] sm:$0xf]
    %v3907 = vld [vmem:[%s15 + $0x34] sm:$0xf]
    %v3908 = vld [vmem:[%s15 + $0x38] sm:$0xf]
    %v3909 = vld [vmem:[%s15 + $0x3c] sm:$0xf]
    %v3910 = vld [vmem:[%s15 + $0x40] sm:$0xf]
    %v3911 = vld [vmem:[%s15 + $0x44] sm:$0xf]
    %v3912 = vld [vmem:[%s15 + $0x48] sm:$0xf]
    %v3913 = vld [vmem:[%s15 + $0x4c] sm:$0xf]
    %v3914 = vld [vmem:[%s15 + $0x50] sm:$0xf]
    %v3915 = vld [vmem:[%s15 + $0x54] sm:$0xf]
    %v3916 = vld [vmem:[%s15 + $0x58] sm:$0xf]
    %v3917 = vld [vmem:[%s15 + $0x5c] sm:$0xf]
    %v3918 = vld [vmem:[%s15 + $0x60] sm:$0xf]
    %v3919 = vld [vmem:[%s15 + $0x64] sm:$0xf]
    %v3920 = vld [vmem:[%s15 + $0x68] sm:$0xf]
    %v3921 = vld [vmem:[%s15 + $0x6c] sm:$0xf]
    %v3922 = vld [vmem:[%s15 + $0x70] sm:$0xf]
    %v3923 = vld [vmem:[%s15 + $0x74] sm:$0xf]
    %v3924 = vld [vmem:[%s15 + $0x78] sm:$0xf]
    %v3925 = vld [vmem:[%s15 + $0x7c] sm:$0xf]
    %v3958 = vunpack.c.l.b16 %v3894
    %v3959 = vunpack.c.l.b16 %v3895
    %v3960 = vunpack.c.l.b16 %v3896
    %v3961 = vunpack.c.l.b16 %v3897
    %v3962 = vunpack.c.l.b16 %v3898
    %v3963 = vunpack.c.l.b16 %v3899
    %v3964 = vunpack.c.l.b16 %v3900
    %v3965 = vunpack.c.l.b16 %v3901
    %v3966 = vunpack.c.l.b16 %v3902
    %v3967 = vunpack.c.l.b16 %v3903
    %v3968 = vunpack.c.l.b16 %v3904
    %v3969 = vunpack.c.l.b16 %v3905
    %v3970 = vunpack.c.l.b16 %v3906
    %v3971 = vunpack.c.l.b16 %v3907
    %v3972 = vunpack.c.l.b16 %v3908
    %v3973 = vunpack.c.l.b16 %v3909
    %v3974 = vunpack.c.l.b16 %v3910
    %v3975 = vunpack.c.l.b16 %v3911
    %v3976 = vunpack.c.l.b16 %v3912
    %v3977 = vunpack.c.l.b16 %v3913
    %v3978 = vunpack.c.l.b16 %v3914
    %v3979 = vunpack.c.l.b16 %v3915
    %v3980 = vunpack.c.l.b16 %v3916
    %v3981 = vunpack.c.l.b16 %v3917
    %v3982 = vunpack.c.l.b16 %v3918
    %v3983 = vunpack.c.l.b16 %v3919
    %v3984 = vunpack.c.l.b16 %v3920
    %v3985 = vunpack.c.l.b16 %v3921
    %v3986 = vunpack.c.l.b16 %v3922
    %v3987 = vunpack.c.l.b16 %v3923
    %v3988 = vunpack.c.l.b16 %v3924
    %v3989 = vunpack.c.l.b16 %v3925
    %v3990 = vpack.c.b16 %v3959, %v3958
    %v3991 = vpack.c.b16 %v3961, %v3960
    %v3992 = vpack.c.b16 %v3963, %v3962
    %v3993 = vpack.c.b16 %v3965, %v3964
    %v3994 = vpack.c.b16 %v3967, %v3966
    %v3995 = vpack.c.b16 %v3969, %v3968
    %v3996 = vpack.c.b16 %v3971, %v3970
    %v3997 = vpack.c.b16 %v3973, %v3972
    %v3998 = vpack.c.b16 %v3975, %v3974
    %v3999 = vpack.c.b16 %v3977, %v3976
    %v4000 = vpack.c.b16 %v3979, %v3978
    %v4001 = vpack.c.b16 %v3981, %v3980
    %v4002 = vpack.c.b16 %v3983, %v3982
    %v4003 = vpack.c.b16 %v3985, %v3984
    %v4004 = vpack.c.b16 %v3987, %v3986
    %v4005 = vpack.c.b16 %v3989, %v3988
    %4022 = vmatpush.bf16.msra.mxu0 %v3997
    %4023 = vmatpush.bf16.msra.mxu0 %v3996
    %4024 = vmatpush.bf16.msra.mxu0 %v3995
    %4025 = vmatpush.bf16.msra.mxu0 %v3994
    %4026 = vmatpush.bf16.msra.mxu0 %v3993
    %4027 = vmatpush.bf16.msra.mxu0 %v3992
    %4028 = vmatpush.bf16.msra.mxu0 %v3991
    %4029 = vmatpush.bf16.msra.mxu0 %v3990
    %4030 = vmatmul.bf16.gmra.mxu0 %v3890
    %v4031 = vpop.f32.mrf.mxu0
    %v4032 = vadd.f32 0.0, %v4031
    %v4033 = vpop.f32.mrf.mxu0
    %v4034 = vadd.f32 0.0, %v4033
    %4035 = vmatmul.bf16.gmra.mxu0 %v3892
    %v4036 = vpop.f32.mrf.mxu0
    %v4037 = vadd.f32 0.0, %v4036
    %v4038 = vpop.f32.mrf.mxu0
    %v4039 = vadd.f32 0.0, %v4038
    %4040 = vdwg.mxu0
    %4041 = vmatpush.bf16.msra.mxu0 %v4005
    %4042 = vmatpush.bf16.msra.mxu0 %v4004
    %4043 = vmatpush.bf16.msra.mxu0 %v4003
    %4044 = vmatpush.bf16.msra.mxu0 %v4002
    %4045 = vmatpush.bf16.msra.mxu0 %v4001
    %4046 = vmatpush.bf16.msra.mxu0 %v4000
    %4047 = vmatpush.bf16.msra.mxu0 %v3999
    %4048 = vmatpush.bf16.msra.mxu0 %v3998
    %4049 = vmatmul.bf16.gmra.mxu0 %v3891
    %v4050 = vpop.f32.mrf.mxu0
    %v4051 = vadd.f32 %v4032, %v4050
    %v4052 = vpop.f32.mrf.mxu0
    %v4053 = vadd.f32 %v4034, %v4052
    %4054 = vmatmul.bf16.gmra.mxu0 %v3893
    %v4055 = vpop.f32.mrf.mxu0
    %v4056 = vadd.f32 %v4037, %v4055
    %v4057 = vpop.f32.mrf.mxu0
    %v4058 = vadd.f32 %v4039, %v4057
    %4059 = vdwg.mxu0
    %v4060 = vld [vmem:[#allocation2] sm:$0xff]
    %v4061 = vld [vmem:[#allocation2 + $0x8] sm:$0xff]
    %v4062 = vld [vmem:[#allocation2 + $0x10] sm:$0xff]
    %v4063 = vld [vmem:[#allocation2 + $0x18] sm:$0xff]
    %v4064 = vadd.f32 %v4060, %v4051
    %v4065 = vadd.f32 %v4061, %v4053
    %v4066 = vadd.f32 %v4062, %v4056
    %v4067 = vadd.f32 %v4063, %v4058
    %v4068 = vld [vmem:[%s16] sm:$0x1]
    %v4070 = vperm.slane %v4068, 0
    %v4072 = vadd.f32 %v4064, %v4070
    %v4073 = vadd.f32 %v4065, %v4070
    %v4074 = vadd.f32 %v4066, %v4070
    %v4075 = vadd.f32 %v4067, %v4070
    %v4076 = vrot.slane %v4074, 4
    %vm4077 = vcmask 1047556
    %v4078 = vsel %vm4077, %v4076, %v4072
    %v4079 = vrot.slane %v4072, 4
    %v4080 = vsel %vm4077, %v4074, %v4079
    %v4082 = vunpack.c.l.s4 1983009808
    %v4083 = vunpack.c.0.s8 %v4082
    %v4084 = vperm.slane %v4078, %v4083
    %v4086 = vunpack.c.l.s4 1983009808
    %v4087 = vunpack.c.0.s8 %v4086
    %v4088 = vperm.slane %v4080, %v4087
    %v4089 = vrot.slane %v4075, 4
    %v4090 = vsel %vm4077, %v4089, %v4073
    %v4091 = vrot.slane %v4073, 4
    %v4092 = vsel %vm4077, %v4075, %v4091
    %v4094 = vunpack.c.l.s4 1983009808
    %v4095 = vunpack.c.0.s8 %v4094
    %v4096 = vperm.slane %v4090, %v4095
    %v4098 = vunpack.c.l.s4 1983009808
    %v4099 = vunpack.c.0.s8 %v4098
    %v4100 = vperm.slane %v4092, %v4099
    %v4101 = vrot.slane %v4096, 4
    %v4102 = vsel %vm4077, %v4101, %v4084
    %v4103 = vrot.slane %v4084, 4
    %v4104 = vsel %vm4077, %v4096, %v4103
    %v4106 = vunpack.c.l.s4 1934713408
    %v4107 = vunpack.c.0.s8 %v4106
    %v4108 = vperm.slane %v4102, %v4107
    %v4110 = vunpack.c.l.s4 1934713408
    %v4111 = vunpack.c.0.s8 %v4110
    %v4112 = vperm.slane %v4104, %v4111
    %v4113 = vrot.slane %v4100, 4
    %v4114 = vsel %vm4077, %v4113, %v4088
    %v4115 = vrot.slane %v4088, 4
    %v4116 = vsel %vm4077, %v4100, %v4115
    %v4118 = vunpack.c.l.s4 1934713408
    %v4119 = vunpack.c.0.s8 %v4118
    %v4120 = vperm.slane %v4114, %v4119
    %v4122 = vunpack.c.l.s4 1934713408
    %v4123 = vunpack.c.0.s8 %v4122
    %v4124 = vperm.slane %v4116, %v4123
    %v4125 = vrot.slane %v4108, 4
    %v4126 = vsel %vm4077, 0.0, %v4125
    %v4127 = vrot.slane %v4112, 4
    %v4128 = vsel %vm4077, 0.0, %v4127
    %v4129 = vrot.slane %v4120, 4
    %v4130 = vsel %vm4077, 0.0, %v4129
    %v4131 = vrot.slane %v4124, 4
    %v4132 = vsel %vm4077, 0.0, %v4131
    %vm4133 = vcmask 519168
    %4134 = vst.msk [vmem:[#allocation10] sm:$0xf] %vm4133, %v4108
    %4135 = vst.msk [vmem:[#allocation10 + $0x4] sm:$0xf] %vm4133, %v4126
    %4136 = vst.msk [vmem:[#allocation10 + $0x8] sm:$0xf] %vm4133, %v4112
    %4137 = vst.msk [vmem:[#allocation10 + $0xc] sm:$0xf] %vm4133, %v4128
    %4138 = vst.msk [vmem:[#allocation10 + $0x10] sm:$0xf] %vm4133, %v4120
    %4139 = vst.msk [vmem:[#allocation10 + $0x14] sm:$0xf] %vm4133, %v4130
    %4140 = vst.msk [vmem:[#allocation10 + $0x18] sm:$0xf] %vm4133, %v4124
    %4141 = vst.msk [vmem:[#allocation10 + $0x1c] sm:$0xf] %vm4133, %v4132
    // Predicated region
    $region86: #{tpu_custom_call.1} parent=1 // pred_check
      _
    $region87: #{tpu_custom_call.1} parent=1 // pred_check_branch
      %4143 = sbr.rel (0) target = $region89
    $region88: #{tpu_custom_call.1} parent=1 // pred_region
      %4145 = vsyncadd [#allocation6], 0
      %s4146 = sshll.u32 [#allocation10], 4
      %s4147 = int_to_ptr.vmem [resolvable:$true] %s4146
      %s4148 = sshll.u32 %s17, 4
      %s4149 = int_to_ptr.hbm [resolvable:$true] %s4148
      %4154 = dma.vmem_to_hbm [thread:$0]  %s4147, 512, %s4149, [#allocation6], 64, 64, 4
    $region89: #{tpu_custom_call.1} parent=1 // pred_fallthru
      _
    // Predicated region
    $region90: #{tpu_custom_call.1} parent=1 // pred_check
      _
    $region91: #{tpu_custom_call.1} parent=1 // pred_check_branch
      %4156 = sbr.rel (0) target = $region93
    $region92: #{tpu_custom_call.1} parent=1 // pred_region
      %4158 = dma.done [#allocation6], 512
    $region93: #{tpu_custom_call.1} parent=1 // pred_fallthru
      _
    %4159 = vsyncpa [#allocation5], 1
    %4160 = vsyncpa [#allocation8], 1
    %4161 = vsyncpa [#allocation6], 1

// kernel: tpu_custom_call.1
$region0: #{tpu_custom_call.1}
  #allocation0 [shape = 'u32[]', space=smem, size = 0x4, offset = 0x4, fixed_abs, tag = 'smem constant byte address 0x4 - core index']
  #allocation1 [shape = 'u32[72,128]{1,0:T(1,128)}', space=vmem, size = 0x9000, scoped, tag = 'internal scratch']
  #allocation2 [shape = 'f32[32,64]{1,0:T(8,128)}', space=vmem, size = 0x4000, scoped, tag = 'scratch operand']
  #allocation3 [shape = 'bf16[32,64]{1,0:T(8,128)(2,1)}', space=vmem, size = 0x2000, scoped, tag = 'scratch operand']
  %s0 = inlined_call_operand.vmem [shape: f32[8,4,64], index: 0, kind: input, shape index: {}]
  %s1 = inlined_call_operand.hbm [shape: f32[1,64], index: 1, kind: input, shape index: {}]
  %s2 = inlined_call_operand.hbm [shape: f32[1,64], index: 2, kind: input, shape index: {}]
  %s3 = inlined_call_operand.vmem [shape: bf16[64,64], index: 3, kind: input, shape index: {}]
  %s4 = inlined_call_operand.vmem [shape: bf16[64,64], index: 4, kind: input, shape index: {}]
  %s5 = inlined_call_operand.vmem [shape: bf16[64,64], index: 5, kind: input, shape index: {}]
  %s6 = inlined_call_operand.vmem [shape: f32[1,64], index: 6, kind: input, shape index: {}]
  %s7 = inlined_call_operand.vmem [shape: f32[1,64], index: 7, kind: input, shape index: {}]
  %s8 = inlined_call_operand.vmem [shape: f32[1,64], index: 8, kind: input, shape index: {}]
  %s9 = inlined_call_operand.hbm [shape: bf16[64,64], index: 9, kind: input, shape index: {}]
  %s10 = inlined_call_operand.vmem [shape: f32[1,64], index: 10, kind: input, shape index: {}]
  %s11 = inlined_call_operand.vmem [shape: f32[1,64], index: 11, kind: input, shape index: {}]
  %s12 = inlined_call_operand.vmem [shape: f32[1,64], index: 12, kind: input, shape index: {}]
  %s13 = inlined_call_operand.vmem [shape: bf16[64,256], index: 13, kind: input, shape index: {}]
  %s14 = inlined_call_operand.vmem [shape: f32[1,256], index: 14, kind: input, shape index: {}]
  %s15 = inlined_call_operand.vmem [shape: bf16[256,64], index: 15, kind: input, shape index: {}]
  %s16 = inlined_call_operand.vmem [shape: f32[1,64], index: 16, kind: input, shape index: {}]
  %s17 = inlined_call_operand.hbm [shape: f32[8,4,64], index: 17, kind: output, shape index: {}]
  %s18 = sld [smem:[#allocation0]]
  $region94: #{tpu_custom_call.1} parent=0
    _
  %s20 = ssub.s32 1, %s18
  %s21 = scalar_select 0, %s20, %s18
  $region1: #{tpu_custom_call.1} parent=0
    #allocation4 [shape = 'u8[512]{0}', space=vmem, size = 0x400, scoped, tag = 'input window, operand 1, single buffered']
    #allocation5 [shape = 's32[1]{0}', space=sflag, size = 0x4, scoped, tag = 'scoped memory for tpu_custom_call.1']
    #allocation6 [shape = 's32[1]{0}', space=sflag, size = 0x4, scoped, tag = 'scoped memory for tpu_custom_call.1']
    #allocation7 [shape = 'u8[512]{0}', space=vmem, size = 0x400, scoped, tag = 'input window, operand 2, single buffered']
    #allocation8 [shape = 's32[1]{0}', space=sflag, size = 0x4, scoped, tag = 'scoped memory for tpu_custom_call.1']
    #allocation9 [shape = 'u8[16384]{0}', space=vmem, size = 0x4000, scoped, tag = 'input window, operand 9, single buffered']
    #allocation10 [shape = 'u8[16384]{0}', space=vmem, size = 0x4000, scoped, tag = 'output window, operand 0, single buffered']
    %22 = vsyncpa [#allocation5], 0
    %23 = vsyncpa [#allocation8], 0
    %24 = vsyncpa [#allocation6], 0
    // Predicated region
    $region2: #{tpu_custom_call.1} parent=1 // pred_check
      _
    $region3: #{tpu_custom_call.1} parent=1 // pred_check_branch
      %26 = sbr.rel (0) target = $region5
    $region4: #{tpu_custom_call.1} parent=1 // pred_region
      _
    $region5: #{tpu_custom_call.1} parent=1 // pred_fallthru
      _
    // Predicated region
    $region6: #{tpu_custom_call.1} parent=1 // pred_check
      _
    $region7: #{tpu_custom_call.1} parent=1 // pred_check_branch
      %28 = sbr.rel (0) target = $region9
    $region8: #{tpu_custom_call.1} parent=1 // pred_region
      %30 = vsyncadd [#allocation5], 0
      %s32 = sshll.u32 %s1, 4
      %s33 = int_to_ptr.hbm [resolvable:$true] %s32
      %s34 = sshll.u32 [#allocation4], 4
      %s35 = int_to_ptr.vmem [resolvable:$true] %s34
      %37 = dma.hbm_to_vmem [thread:$0]  %s33, 16, %s35, [#allocation5]
    $region9: #{tpu_custom_call.1} parent=1 // pred_fallthru
      _
    // Predicated region
    $region10: #{tpu_custom_call.1} parent=1 // pred_check
      _
    $region11: #{tpu_custom_call.1} parent=1 // pred_check_branch
      %39 = sbr.rel (0) target = $region13
    $region12: #{tpu_custom_call.1} parent=1 // pred_region
      %41 = vsyncadd [#allocation8], 0
      %s43 = sshll.u32 %s2, 4
      %s44 = int_to_ptr.hbm [resolvable:$true] %s43
      %s45 = sshll.u32 [#allocation7], 4
      %s46 = int_to_ptr.vmem [resolvable:$true] %s45
      %48 = dma.hbm_to_vmem [thread:$0]  %s44, 16, %s46, [#allocation8]
    $region13: #{tpu_custom_call.1} parent=1 // pred_fallthru
      _
    // Predicated region
    $region14: #{tpu_custom_call.1} parent=1 // pred_check
      _
    $region15: #{tpu_custom_call.1} parent=1 // pred_check_branch
      %50 = sbr.rel (0) target = $region17
    $region16: #{tpu_custom_call.1} parent=1 // pred_region
      _
    $region17: #{tpu_custom_call.1} parent=1 // pred_fallthru
      _
    // Predicated region
    $region18: #{tpu_custom_call.1} parent=1 // pred_check
      _
    $region19: #{tpu_custom_call.1} parent=1 // pred_check_branch
      %52 = sbr.rel (0) target = $region21
    $region20: #{tpu_custom_call.1} parent=1 // pred_region
      _
    $region21: #{tpu_custom_call.1} parent=1 // pred_fallthru
      _
    // Predicated region
    $region22: #{tpu_custom_call.1} parent=1 // pred_check
      _
    $region23: #{tpu_custom_call.1} parent=1 // pred_check_branch
      %54 = sbr.rel (0) target = $region25
    $region24: #{tpu_custom_call.1} parent=1 // pred_region
      _
    $region25: #{tpu_custom_call.1} parent=1 // pred_fallthru
      _
    // Predicated region
    $region26: #{tpu_custom_call.1} parent=1 // pred_check
      _
    $region27: #{tpu_custom_call.1} parent=1 // pred_check_branch
      %56 = sbr.rel (0) target = $region29
    $region28: #{tpu_custom_call.1} parent=1 // pred_region
      _
    $region29: #{tpu_custom_call.1} parent=1 // pred_fallthru
      _
    // Predicated region
    $region30: #{tpu_custom_call.1} parent=1 // pred_check
      _
    $region31: #{tpu_custom_call.1} parent=1 // pred_check_branch
      %58 = sbr.rel (0) target = $region33
    $region32: #{tpu_custom_call.1} parent=1 // pred_region
      _
    $region33: #{tpu_custom_call.1} parent=1 // pred_fallthru
      _
    // Predicated region
    $region34: #{tpu_custom_call.1} parent=1 // pred_check
      _
    $region35: #{tpu_custom_call.1} parent=1 // pred_check_branch
      %60 = sbr.rel (0) target = $region37
    $region36: #{tpu_custom_call.1} parent=1 // pred_region
      _
    $region37: #{tpu_custom_call.1} parent=1 // pred_fallthru
      _
    // Predicated region
    $region38: #{tpu_custom_call.1} parent=1 // pred_check
      _
    $region39: #{tpu_custom_call.1} parent=1 // pred_check_branch
      %62 = sbr.rel (0) target = $region41
    $region40: #{tpu_custom_call.1} parent=1 // pred_region
      %64 = vsyncadd [#allocation8], 0
      %s65 = sshll.u32 %s9, 4
      %s66 = int_to_ptr.hbm [resolvable:$true] %s65
      %s67 = sshll.u32 [#allocation9], 4
      %s68 = int_to_ptr.vmem [resolvable:$true] %s67
      %73 = dma.hbm_to_vmem [thread:$0]  %s66, 512, %s68, [#allocation8], 64, 64, 4
    $region41: #{tpu_custom_call.1} parent=1 // pred_fallthru
      _
    // Predicated region
    $region42: #{tpu_custom_call.1} parent=1 // pred_check
      _
    $region43: #{tpu_custom_call.1} parent=1 // pred_check_branch
      %75 = sbr.rel (0) target = $region45
    $region44: #{tpu_custom_call.1} parent=1 // pred_region
      _
    $region45: #{tpu_custom_call.1} parent=1 // pred_fallthru
      _
    // Predicated region
    $region46: #{tpu_custom_call.1} parent=1 // pred_check
      _
    $region47: #{tpu_custom_call.1} parent=1 // pred_check_branch
      %77 = sbr.rel (0) target = $region49
    $region48: #{tpu_custom_call.1} parent=1 // pred_region
      _
    $region49: #{tpu_custom_call.1} parent=1 // pred_fallthru
      _
    // Predicated region
    $region50: #{tpu_custom_call.1} parent=1 // pred_check
      _
    $region51: #{tpu_custom_call.1} parent=1 // pred_check_branch
      %79 = sbr.rel (0) target = $region53
    $region52: #{tpu_custom_call.1} parent=1 // pred_region
      _
    $region53: #{tpu_custom_call.1} parent=1 // pred_fallthru
      _
    // Predicated region
    $region54: #{tpu_custom_call.1} parent=1 // pred_check
      _
    $region55: #{tpu_custom_call.1} parent=1 // pred_check_branch
      %81 = sbr.rel (0) target = $region57
    $region56: #{tpu_custom_call.1} parent=1 // pred_region
      _
    $region57: #{tpu_custom_call.1} parent=1 // pred_fallthru
      _
    // Predicated region
    $region58: #{tpu_custom_call.1} parent=1 // pred_check
      _
    $region59: #{tpu_custom_call.1} parent=1 // pred_check_branch
      %83 = sbr.rel (0) target = $region61
    $region60: #{tpu_custom_call.1} parent=1 // pred_region
      _
    $region61: #{tpu_custom_call.1} parent=1 // pred_fallthru
      _
    // Predicated region
    $region62: #{tpu_custom_call.1} parent=1 // pred_check
      _
    $region63: #{tpu_custom_call.1} parent=1 // pred_check_branch
      %85 = sbr.rel (0) target = $region65
    $region64: #{tpu_custom_call.1} parent=1 // pred_region
      _
    $region65: #{tpu_custom_call.1} parent=1 // pred_fallthru
      _
    // Predicated region
    $region66: #{tpu_custom_call.1} parent=1 // pred_check
      _
    $region67: #{tpu_custom_call.1} parent=1 // pred_check_branch
      %87 = sbr.rel (0) target = $region69
    $region68: #{tpu_custom_call.1} parent=1 // pred_region
      _
    $region69: #{tpu_custom_call.1} parent=1 // pred_fallthru
      _
    // Predicated region
    $region70: #{tpu_custom_call.1} parent=1 // pred_check
      _
    $region71: #{tpu_custom_call.1} parent=1 // pred_check_branch
      %89 = sbr.rel (0) target = $region73
    $region72: #{tpu_custom_call.1} parent=1 // pred_region
      %91 = dma.done [#allocation5], 16
    $region73: #{tpu_custom_call.1} parent=1 // pred_fallthru
      _
    // Predicated region
    $region74: #{tpu_custom_call.1} parent=1 // pred_check
      _
    $region75: #{tpu_custom_call.1} parent=1 // pred_check_branch
      %93 = sbr.rel (0) target = $region77
    $region76: #{tpu_custom_call.1} parent=1 // pred_region
      %95 = dma.done [#allocation8], 16
    $region77: #{tpu_custom_call.1} parent=1 // pred_fallthru
      _
    // Predicated region
    $region78: #{tpu_custom_call.1} parent=1 // pred_check
      _
    $region79: #{tpu_custom_call.1} parent=1 // pred_check_branch
      %97 = sbr.rel (0) target = $region81
    $region80: #{tpu_custom_call.1} parent=1 // pred_region
      %99 = dma.done [#allocation8], 512
    $region81: #{tpu_custom_call.1} parent=1 // pred_fallthru
      _
    %p101 = scmp.eq.s32.totalorder 0, 0
    // Predicated region
    $region82: #{tpu_custom_call.1} parent=1 // pred_check
      %p102 = pneg %p101
    $region83: #{tpu_custom_call.1} parent=1 // pred_check_branch
      %104 = sbr.rel (%p102) target = $region85
    $region84: #{tpu_custom_call.1} parent=1 // pred_region
      %v105 = vld [vmem:[%s0] sm:$0xf]
      %v106 = vld [vmem:[%s0 + $0x4] sm:$0xf]
      %v107 = vld [vmem:[%s0 + $0x8] sm:$0xf]
      %v108 = vld [vmem:[%s0 + $0xc] sm:$0xf]
      %v109 = vld [vmem:[%s0 + $0x10] sm:$0xf]
      %v110 = vld [vmem:[%s0 + $0x14] sm:$0xf]
      %v111 = vld [vmem:[%s0 + $0x18] sm:$0xf]
      %v112 = vld [vmem:[%s0 + $0x1c] sm:$0xf]
      %v113 = vrot.slane %v107, 4
      %vm114 = vcmask 1047556
      %v115 = vsel %vm114, %v113, %v105
      %v117 = vunpack.c.l.s4 1983009808
      %v118 = vunpack.c.0.s8 %v117
      %v119 = vperm.slane %v115, %v118
      %v120 = vrot.slane %v108, 4
      %v121 = vsel %vm114, %v120, %v106
      %v123 = vunpack.c.l.s4 1983009808
      %v124 = vunpack.c.0.s8 %v123
      %v125 = vperm.slane %v121, %v124
      %v126 = vrot.slane %v111, 4
      %v127 = vsel %vm114, %v126, %v109
      %v129 = vunpack.c.l.s4 1983009808
      %v130 = vunpack.c.0.s8 %v129
      %v131 = vperm.slane %v127, %v130
      %v132 = vrot.slane %v112, 4
      %v133 = vsel %vm114, %v132, %v110
      %v135 = vunpack.c.l.s4 1983009808
      %v136 = vunpack.c.0.s8 %v135
      %v137 = vperm.slane %v133, %v136
      %v138 = vrot.slane %v125, 4
      %v139 = vsel %vm114, %v138, %v119
      %v140 = vrot.slane %v119, 4
      %v141 = vsel %vm114, %v125, %v140
      %v143 = vunpack.c.l.s4 1934713408
      %v144 = vunpack.c.0.s8 %v143
      %v145 = vperm.slane %v139, %v144
      %v147 = vunpack.c.l.s4 1934713408
      %v148 = vunpack.c.0.s8 %v147
      %v149 = vperm.slane %v141, %v148
      %v150 = vrot.slane %v137, 4
      %v151 = vsel %vm114, %v150, %v131
      %v152 = vrot.slane %v131, 4
      %v153 = vsel %vm114, %v137, %v152
      %v155 = vunpack.c.l.s4 1934713408
      %v156 = vunpack.c.0.s8 %v155
      %v157 = vperm.slane %v151, %v156
      %v159 = vunpack.c.l.s4 1934713408
      %v160 = vunpack.c.0.s8 %v159
      %v161 = vperm.slane %v153, %v160
      %v162 = vrot.slane %v157, 4
      %v163 = vsel %vm114, %v162, %v145
      %v164 = vrot.slane %v145, 4
      %v165 = vsel %vm114, %v157, %v164
      %v166 = vrot.slane %v161, 4
      %v167 = vsel %vm114, %v166, %v149
      %v168 = vrot.slane %v149, 4
      %v169 = vsel %vm114, %v161, %v168
      %v170 = vld [vmem:[#allocation4] sm:$0x1]
      %v171 = vld [vmem:[#allocation7] sm:$0x1]
      %vm172 = vcmask 523264
      %v173 = vsel %vm172, %v163, 0.0
      %174 = vadd.xlane.f32.xlu0 %v173
      %v175 = vpop.xlane.xlu0 %174
      %v176 = vsel %vm172, %v165, 0.0
      %177 = vadd.xlane.f32.xlu0 %v176
      %v178 = vpop.xlane.xlu0 %177
      %v179 = vsel %vm172, %v167, 0.0
      %180 = vadd.xlane.f32.xlu0 %v179
      %v181 = vpop.xlane.xlu0 %180
      %v182 = vsel %vm172, %v169, 0.0
      %183 = vadd.xlane.f32.xlu0 %v182
      %v184 = vpop.xlane.xlu0 %183
      %v185 = vrcp.pop 64.0
      %v186 = vmul.f32 64.0, %v185
      %v187 = vsub.f32 1.0, %v186
      %v188 = vmul.f32 %v185, %v187
      %v189 = vadd.f32 %v185, %v188
      %vm190 = vweird.f32 %v185
      %v191 = vsel %vm190, %v185, %v189
      %v192 = vmul.f32 %v175, %v191
      %v193 = vmul.f32 %v178, %v191
      %v194 = vmul.f32 %v181, %v191
      %v195 = vmul.f32 %v184, %v191
      %v196 = vsub.f32 %v163, %v192
      %v197 = vsub.f32 %v165, %v193
      %v198 = vsub.f32 %v167, %v194
      %v199 = vsub.f32 %v169, %v195
      %v200 = vmul.f32 %v196, %v196
      %v201 = vmul.f32 %v197, %v197
      %v202 = vmul.f32 %v198, %v198
      %v203 = vmul.f32 %v199, %v199
      %v204 = vsel %vm172, %v200, 0.0
      %205 = vadd.xlane.f32.xlu0 %v204
      %v206 = vpop.xlane.xlu0 %205
      %v207 = vsel %vm172, %v201, 0.0
      %208 = vadd.xlane.f32.xlu0 %v207
      %v209 = vpop.xlane.xlu0 %208
      %v210 = vsel %vm172, %v202, 0.0
      %211 = vadd.xlane.f32.xlu0 %v210
      %v212 = vpop.xlane.xlu0 %211
      %v213 = vsel %vm172, %v203, 0.0
      %214 = vadd.xlane.f32.xlu0 %v213
      %v215 = vpop.xlane.xlu0 %214
      %v216 = vmul.f32 %v206, %v191
      %v217 = vmul.f32 %v209, %v191
      %v218 = vmul.f32 %v212, %v191
      %v219 = vmul.f32 %v215, %v191
      %v220 = vadd.f32 %v216, 1e-05
      %v221 = vadd.f32 %v217, 1e-05
      %v222 = vadd.f32 %v218, 1e-05
      %v223 = vadd.f32 %v219, 1e-05
      %v224 = vrsqrt.pop %v220
      %v225 = vmul.f32 %v224, %v220
      %v226 = vmul.f32 %v225, %v224
      %v227 = vmul.f32 0.5, %v226
      %v228 = vsub.f32 1.5, %v227
      %v229 = vmul.f32 %v224, %v228
      %vm230 = vweird.f32 %v220
      %vm231 = vweird.f32 %v224
      %vm232 = vmor %vm230, %vm231
      %v233 = vsel %vm232, %v224, %v229
      %v234 = vrsqrt.pop %v221
      %v235 = vmul.f32 %v234, %v221
      %v236 = vmul.f32 %v235, %v234
      %v237 = vmul.f32 0.5, %v236
      %v238 = vsub.f32 1.5, %v237
      %v239 = vmul.f32 %v234, %v238
      %vm240 = vweird.f32 %v221
      %vm241 = vweird.f32 %v234
      %vm242 = vmor %vm240, %vm241
      %v243 = vsel %vm242, %v234, %v239
      %v244 = vrsqrt.pop %v222
      %v245 = vmul.f32 %v244, %v222
      %v246 = vmul.f32 %v245, %v244
      %v247 = vmul.f32 0.5, %v246
      %v248 = vsub.f32 1.5, %v247
      %v249 = vmul.f32 %v244, %v248
      %vm250 = vweird.f32 %v222
      %vm251 = vweird.f32 %v244
      %vm252 = vmor %vm250, %vm251
      %v253 = vsel %vm252, %v244, %v249
      %v254 = vrsqrt.pop %v223
      %v255 = vmul.f32 %v254, %v223
      %v256 = vmul.f32 %v255, %v254
      %v257 = vmul.f32 0.5, %v256
      %v258 = vsub.f32 1.5, %v257
      %v259 = vmul.f32 %v254, %v258
      %vm260 = vweird.f32 %v223
      %vm261 = vweird.f32 %v254
      %vm262 = vmor %vm260, %vm261
      %v263 = vsel %vm262, %v254, %v259
      %v264 = vmul.f32 %v196, %v233
      %v265 = vmul.f32 %v197, %v243
      %v266 = vmul.f32 %v198, %v253
      %v267 = vmul.f32 %v199, %v263
      %v269 = vperm.slane %v170, 0
      %v271 = vmul.f32 %v264, %v269
      %v272 = vmul.f32 %v265, %v269
      %v273 = vmul.f32 %v266, %v269
      %v274 = vmul.f32 %v267, %v269
      %v276 = vperm.slane %v171, 0
      %v278 = vadd.f32 %v271, %v276
      %v279 = vadd.f32 %v272, %v276
      %v280 = vadd.f32 %v273, %v276
      %v281 = vadd.f32 %v274, %v276
      %v282 = vpack.c.bf16 %v279, %v278
      %v283 = vpack.c.bf16 %v281, %v280
      %v284 = vld [vmem:[%s3] sm:$0xf]
      %v285 = vld [vmem:[%s3 + $0x4] sm:$0xf]
      %v286 = vld [vmem:[%s3 + $0x8] sm:$0xf]
      %v287 = vld [vmem:[%s3 + $0xc] sm:$0xf]
      %v288 = vld [vmem:[%s3 + $0x10] sm:$0xf]
      %v289 = vld [vmem:[%s3 + $0x14] sm:$0xf]
      %v290 = vld [vmem:[%s3 + $0x18] sm:$0xf]
      %v291 = vld [vmem:[%s3 + $0x1c] sm:$0xf]
      %v292 = vld [vmem:[%s6] sm:$0x1]
      %v294 = vperm.slane %v292, 0
      %v304 = vunpack.c.l.b16 %v284
      %v305 = vunpack.c.l.b16 %v285
      %v306 = vunpack.c.l.b16 %v286
      %v307 = vunpack.c.l.b16 %v287
      %v308 = vunpack.c.l.b16 %v288
      %v309 = vunpack.c.l.b16 %v289
      %v310 = vunpack.c.l.b16 %v290
      %v311 = vunpack.c.l.b16 %v291
      %v312 = vpack.c.b16 %v305, %v304
      %v313 = vpack.c.b16 %v307, %v306
      %v314 = vpack.c.b16 %v309, %v308
      %v315 = vpack.c.b16 %v311, %v310
      %v321 = vsel %vm172, %v282, 0
      %v324 = vsel %vm172, %v283, 0
      %326 = vmatpush.bf16.msra.mxu0 0
      %327 = vmatpush.bf16.msra.mxu0 0
      %328 = vmatpush.bf16.msra.mxu0 0
      %329 = vmatpush.bf16.msra.mxu0 0
      %330 = vmatpush.bf16.msra.mxu0 %v315
      %331 = vmatpush.bf16.msra.mxu0 %v314
      %332 = vmatpush.bf16.msra.mxu0 %v313
      %333 = vmatpush.bf16.msra.mxu0 %v312
      %334 = vmatmul.bf16.gmra.mxu0 %v321
      %v335 = vpop.f32.mrf.mxu0
      %v336 = vadd.f32 %v294, %v335
      %v337 = vpop.f32.mrf.mxu0
      %v338 = vadd.f32 %v294, %v337
      %339 = vmatmul.bf16.gmra.mxu0 %v324
      %v340 = vpop.f32.mrf.mxu0
      %v341 = vadd.f32 %v294, %v340
      %v342 = vpop.f32.mrf.mxu0
      %v343 = vadd.f32 %v294, %v342
      %344 = vdwg.mxu0
      %v345 = vmul.f32 %v336, 0.25
      %v346 = vmul.f32 %v338, 0.25
      %v347 = vmul.f32 %v341, 0.25
      %v348 = vmul.f32 %v343, 0.25
      %v349 = vld [vmem:[%s4] sm:$0xf]
      %v350 = vld [vmem:[%s4 + $0x4] sm:$0xf]
      %v351 = vld [vmem:[%s4 + $0x8] sm:$0xf]
      %v352 = vld [vmem:[%s4 + $0xc] sm:$0xf]
      %v353 = vld [vmem:[%s4 + $0x10] sm:$0xf]
      %v354 = vld [vmem:[%s4 + $0x14] sm:$0xf]
      %v355 = vld [vmem:[%s4 + $0x18] sm:$0xf]
      %v356 = vld [vmem:[%s4 + $0x1c] sm:$0xf]
      %v357 = vld [vmem:[%s7] sm:$0x1]
      %v359 = vperm.slane %v357, 0
      %v369 = vunpack.c.l.b16 %v349
      %v370 = vunpack.c.l.b16 %v350
      %v371 = vunpack.c.l.b16 %v351
      %v372 = vunpack.c.l.b16 %v352
      %v373 = vunpack.c.l.b16 %v353
      %v374 = vunpack.c.l.b16 %v354
      %v375 = vunpack.c.l.b16 %v355
      %v376 = vunpack.c.l.b16 %v356
      %v377 = vpack.c.b16 %v370, %v369
      %v378 = vpack.c.b16 %v372, %v371
      %v379 = vpack.c.b16 %v374, %v373
      %v380 = vpack.c.b16 %v376, %v375
      %385 = vmatpush.bf16.msra.mxu0 0
      %386 = vmatpush.bf16.msra.mxu0 0
      %387 = vmatpush.bf16.msra.mxu0 0
      %388 = vmatpush.bf16.msra.mxu0 0
      %389 = vmatpush.bf16.msra.mxu0 %v380
      %390 = vmatpush.bf16.msra.mxu0 %v379
      %391 = vmatpush.bf16.msra.mxu0 %v378
      %392 = vmatpush.bf16.msra.mxu0 %v377
      %393 = vmatmul.bf16.gmra.mxu0 %v321
      %v394 = vpop.f32.mrf.mxu0
      %v395 = vadd.f32 %v359, %v394
      %v396 = vpop.f32.mrf.mxu0
      %v397 = vadd.f32 %v359, %v396
      %398 = vmatmul.bf16.gmra.mxu0 %v324
      %v399 = vpop.f32.mrf.mxu0
      %v400 = vadd.f32 %v359, %v399
      %v401 = vpop.f32.mrf.mxu0
      %v402 = vadd.f32 %v359, %v401
      %403 = vdwg.mxu0
      %v404 = vld [vmem:[%s5] sm:$0xf]
      %v405 = vld [vmem:[%s5 + $0x4] sm:$0xf]
      %v406 = vld [vmem:[%s5 + $0x8] sm:$0xf]
      %v407 = vld [vmem:[%s5 + $0xc] sm:$0xf]
      %v408 = vld [vmem:[%s5 + $0x10] sm:$0xf]
      %v409 = vld [vmem:[%s5 + $0x14] sm:$0xf]
      %v410 = vld [vmem:[%s5 + $0x18] sm:$0xf]
      %v411 = vld [vmem:[%s5 + $0x1c] sm:$0xf]
      %v412 = vld [vmem:[%s8] sm:$0x1]
      %v414 = vperm.slane %v412, 0
      %v424 = vunpack.c.l.b16 %v404
      %v425 = vunpack.c.l.b16 %v405
      %v426 = vunpack.c.l.b16 %v406
      %v427 = vunpack.c.l.b16 %v407
      %v428 = vunpack.c.l.b16 %v408
      %v429 = vunpack.c.l.b16 %v409
      %v430 = vunpack.c.l.b16 %v410
      %v431 = vunpack.c.l.b16 %v411
      %v432 = vpack.c.b16 %v425, %v424
      %v433 = vpack.c.b16 %v427, %v426
      %v434 = vpack.c.b16 %v429, %v428
      %v435 = vpack.c.b16 %v431, %v430
      %440 = vmatpush.bf16.msra.mxu0 0
      %441 = vmatpush.bf16.msra.mxu0 0
      %442 = vmatpush.bf16.msra.mxu0 0
      %443 = vmatpush.bf16.msra.mxu0 0
      %444 = vmatpush.bf16.msra.mxu0 %v435
      %445 = vmatpush.bf16.msra.mxu0 %v434
      %446 = vmatpush.bf16.msra.mxu0 %v433
      %447 = vmatpush.bf16.msra.mxu0 %v432
      %448 = vmatmul.bf16.gmra.mxu0 %v321
      %v449 = vpop.f32.mrf.mxu0
      %v450 = vadd.f32 %v414, %v449
      %v451 = vpop.f32.mrf.mxu0
      %v452 = vadd.f32 %v414, %v451
      %453 = vmatmul.bf16.gmra.mxu0 %v324
      %v454 = vpop.f32.mrf.mxu0
      %v455 = vadd.f32 %v414, %v454
      %v456 = vpop.f32.mrf.mxu0
      %v457 = vadd.f32 %v414, %v456
      %458 = vdwg.mxu0
      %460 = vrot.lane.b32.xlu0 %v345, 112
      %v461 = vpop.permute.xlu0 %460
      %463 = vrot.lane.b32.xlu0 %v345, 96
      %v464 = vpop.permute.xlu0 %463
      %466 = vrot.lane.b32.xlu0 %v345, 80
      %v467 = vpop.permute.xlu0 %466
      %v469 = vrot.slane %v464, 4
      %v470 = vsel %vm114, %v469, %v345
      %v471 = vrot.slane %v345, 4
      %v472 = vsel %vm114, %v464, %v471
      %v474 = vunpack.c.l.s4 1983009808
      %v475 = vunpack.c.0.s8 %v474
      %v476 = vperm.slane %v470, %v475
      %v478 = vunpack.c.l.s4 1983009808
      %v479 = vunpack.c.0.s8 %v478
      %v480 = vperm.slane %v472, %v479
      %v481 = vrot.slane %v467, 4
      %v482 = vsel %vm114, %v481, %v461
      %v483 = vrot.slane %v461, 4
      %v484 = vsel %vm114, %v467, %v483
      %v486 = vunpack.c.l.s4 1983009808
      %v487 = vunpack.c.0.s8 %v486
      %v488 = vperm.slane %v482, %v487
      %v490 = vunpack.c.l.s4 1983009808
      %v491 = vunpack.c.0.s8 %v490
      %v492 = vperm.slane %v484, %v491
      %v493 = vrot.slane %v488, 4
      %v494 = vsel %vm114, %v493, %v476
      %v495 = vrot.slane %v476, 4
      %v496 = vsel %vm114, %v488, %v495
      %v498 = vunpack.c.l.s4 1934713408
      %v499 = vunpack.c.0.s8 %v498
      %v500 = vperm.slane %v494, %v499
      %v502 = vunpack.c.l.s4 1934713408
      %v503 = vunpack.c.0.s8 %v502
      %v504 = vperm.slane %v496, %v503
      %v505 = vrot.slane %v492, 4
      %v506 = vsel %vm114, %v505, %v480
      %v507 = vrot.slane %v480, 4
      %v508 = vsel %vm114, %v492, %v507
      %v510 = vunpack.c.l.s4 1934713408
      %v511 = vunpack.c.0.s8 %v510
      %v512 = vperm.slane %v506, %v511
      %v514 = vunpack.c.l.s4 1934713408
      %v515 = vunpack.c.0.s8 %v514
      %v516 = vperm.slane %v508, %v515
      %v517 = vrot.slane %v500, 4
      %v518 = vsel %vm114, 0.0, %v517
      %v519 = vrot.slane %v504, 4
      %v520 = vsel %vm114, 0.0, %v519
      %v521 = vrot.slane %v512, 4
      %v522 = vsel %vm114, 0.0, %v521
      %v523 = vrot.slane %v516, 4
      %v524 = vsel %vm114, 0.0, %v523
      %v525 = vsel %vm114, %v519, %v500
      %v527 = vunpack.c.l.s4 1983009808
      %v528 = vunpack.c.0.s8 %v527
      %v529 = vperm.slane %v525, %v528
      %v530 = vrot.slane %v520, 4
      %v531 = vsel %vm114, %v530, %v518
      %v533 = vunpack.c.l.s4 1983009808
      %v534 = vunpack.c.0.s8 %v533
      %v535 = vperm.slane %v531, %v534
      %v536 = vsel %vm114, %v523, %v512
      %v538 = vunpack.c.l.s4 1983009808
      %v539 = vunpack.c.0.s8 %v538
      %v540 = vperm.slane %v536, %v539
      %v541 = vrot.slane %v524, 4
      %v542 = vsel %vm114, %v541, %v522
      %v544 = vunpack.c.l.s4 1983009808
      %v545 = vunpack.c.0.s8 %v544
      %v546 = vperm.slane %v542, %v545
      %v547 = vrot.slane %v535, 4
      %v548 = vsel %vm114, %v547, %v529
      %v549 = vrot.slane %v529, 4
      %v550 = vsel %vm114, %v535, %v549
      %v552 = vunpack.c.l.s4 1934713408
      %v553 = vunpack.c.0.s8 %v552
      %v554 = vperm.slane %v548, %v553
      %v556 = vunpack.c.l.s4 1934713408
      %v557 = vunpack.c.0.s8 %v556
      %v558 = vperm.slane %v550, %v557
      %v559 = vrot.slane %v546, 4
      %v560 = vsel %vm114, %v559, %v540
      %v561 = vrot.slane %v540, 4
      %v562 = vsel %vm114, %v546, %v561
      %v564 = vunpack.c.l.s4 1934713408
      %v565 = vunpack.c.0.s8 %v564
      %v566 = vperm.slane %v560, %v565
      %v568 = vunpack.c.l.s4 1934713408
      %v569 = vunpack.c.0.s8 %v568
      %v570 = vperm.slane %v562, %v569
      %v571 = vrot.slane %v566, 4
      %v572 = vsel %vm114, %v571, %v554
      %v573 = vrot.slane %v554, 4
      %v574 = vsel %vm114, %v566, %v573
      %v575 = vrot.slane %v570, 4
      %v576 = vsel %vm114, %v575, %v558
      %v577 = vrot.slane %v558, 4
      %v578 = vsel %vm114, %v570, %v577
      %v579 = vpack.c.bf16 %v572, %v572
      %v580 = vpack.c.bf16 %v574, %v574
      %v581 = vpack.c.bf16 %v576, %v576
      %v582 = vpack.c.bf16 %v578, %v578
      %584 = vrot.lane.b32.xlu0 %v395, 112
      %v585 = vpop.permute.xlu0 %584
      %587 = vrot.lane.b32.xlu0 %v395, 96
      %v588 = vpop.permute.xlu0 %587
      %590 = vrot.lane.b32.xlu0 %v395, 80
      %v591 = vpop.permute.xlu0 %590
      %v593 = vrot.slane %v588, 4
      %v594 = vsel %vm114, %v593, %v395
      %v595 = vrot.slane %v395, 4
      %v596 = vsel %vm114, %v588, %v595
      %v598 = vunpack.c.l.s4 1983009808
      %v599 = vunpack.c.0.s8 %v598
      %v600 = vperm.slane %v594, %v599
      %v602 = vunpack.c.l.s4 1983009808
      %v603 = vunpack.c.0.s8 %v602
      %v604 = vperm.slane %v596, %v603
      %v605 = vrot.slane %v591, 4
      %v606 = vsel %vm114, %v605, %v585
      %v607 = vrot.slane %v585, 4
      %v608 = vsel %vm114, %v591, %v607
      %v610 = vunpack.c.l.s4 1983009808
      %v611 = vunpack.c.0.s8 %v610
      %v612 = vperm.slane %v606, %v611
      %v614 = vunpack.c.l.s4 1983009808
      %v615 = vunpack.c.0.s8 %v614
      %v616 = vperm.slane %v608, %v615
      %v617 = vrot.slane %v612, 4
      %v618 = vsel %vm114, %v617, %v600
      %v619 = vrot.slane %v600, 4
      %v620 = vsel %vm114, %v612, %v619
      %v622 = vunpack.c.l.s4 1934713408
      %v623 = vunpack.c.0.s8 %v622
      %v624 = vperm.slane %v618, %v623
      %v626 = vunpack.c.l.s4 1934713408
      %v627 = vunpack.c.0.s8 %v626
      %v628 = vperm.slane %v620, %v627
      %v629 = vrot.slane %v616, 4
      %v630 = vsel %vm114, %v629, %v604
      %v631 = vrot.slane %v604, 4
      %v632 = vsel %vm114, %v616, %v631
      %v634 = vunpack.c.l.s4 1934713408
      %v635 = vunpack.c.0.s8 %v634
      %v636 = vperm.slane %v630, %v635
      %v638 = vunpack.c.l.s4 1934713408
      %v639 = vunpack.c.0.s8 %v638
      %v640 = vperm.slane %v632, %v639
      %v641 = vrot.slane %v624, 4
      %v642 = vsel %vm114, 0.0, %v641
      %v643 = vrot.slane %v628, 4
      %v644 = vsel %vm114, 0.0, %v643
      %v645 = vrot.slane %v636, 4
      %v646 = vsel %vm114, 0.0, %v645
      %v647 = vrot.slane %v640, 4
      %v648 = vsel %vm114, 0.0, %v647
      %v649 = vsel %vm114, %v643, %v624
      %v651 = vunpack.c.l.s4 1983009808
      %v652 = vunpack.c.0.s8 %v651
      %v653 = vperm.slane %v649, %v652
      %v654 = vrot.slane %v644, 4
      %v655 = vsel %vm114, %v654, %v642
      %v657 = vunpack.c.l.s4 1983009808
      %v658 = vunpack.c.0.s8 %v657
      %v659 = vperm.slane %v655, %v658
      %v660 = vsel %vm114, %v647, %v636
      %v662 = vunpack.c.l.s4 1983009808
      %v663 = vunpack.c.0.s8 %v662
      %v664 = vperm.slane %v660, %v663
      %v665 = vrot.slane %v648, 4
      %v666 = vsel %vm114, %v665, %v646
      %v668 = vunpack.c.l.s4 1983009808
      %v669 = vunpack.c.0.s8 %v668
      %v670 = vperm.slane %v666, %v669
      %v671 = vrot.slane %v659, 4
      %v672 = vsel %vm114, %v671, %v653
      %v673 = vrot.slane %v653, 4
      %v674 = vsel %vm114, %v659, %v673
      %v676 = vunpack.c.l.s4 1934713408
      %v677 = vunpack.c.0.s8 %v676
      %v678 = vperm.slane %v672, %v677
      %v680 = vunpack.c.l.s4 1934713408
      %v681 = vunpack.c.0.s8 %v680
      %v682 = vperm.slane %v674, %v681
      %v683 = vrot.slane %v670, 4
      %v684 = vsel %vm114, %v683, %v664
      %v685 = vrot.slane %v664, 4
      %v686 = vsel %vm114, %v670, %v685
      %v688 = vunpack.c.l.s4 1934713408
      %v689 = vunpack.c.0.s8 %v688
      %v690 = vperm.slane %v684, %v689
      %v692 = vunpack.c.l.s4 1934713408
      %v693 = vunpack.c.0.s8 %v692
      %v694 = vperm.slane %v686, %v693
      %v695 = vrot.slane %v690, 4
      %v696 = vsel %vm114, %v695, %v678
      %v697 = vrot.slane %v678, 4
      %v698 = vsel %vm114, %v690, %v697
      %v699 = vrot.slane %v694, 4
      %v700 = vsel %vm114, %v699, %v682
      %v701 = vrot.slane %v682, 4
      %v702 = vsel %vm114, %v694, %v701
      %v703 = vpack.c.bf16 %v696, %v696
      %v704 = vpack.c.bf16 %v698, %v698
      %v705 = vpack.c.bf16 %v700, %v700
      %v706 = vpack.c.bf16 %v702, %v702
      %708 = vrot.lane.b32.xlu0 %v450, 112
      %v709 = vpop.permute.xlu0 %708
      %711 = vrot.lane.b32.xlu0 %v450, 96
      %v712 = vpop.permute.xlu0 %711
      %714 = vrot.lane.b32.xlu0 %v450, 80
      %v715 = vpop.permute.xlu0 %714
      %v717 = vrot.slane %v712, 4
      %v718 = vsel %vm114, %v717, %v450
      %v719 = vrot.slane %v450, 4
      %v720 = vsel %vm114, %v712, %v719
      %v722 = vunpack.c.l.s4 1983009808
      %v723 = vunpack.c.0.s8 %v722
      %v724 = vperm.slane %v718, %v723
      %v726 = vunpack.c.l.s4 1983009808
      %v727 = vunpack.c.0.s8 %v726
      %v728 = vperm.slane %v720, %v727
      %v729 = vrot.slane %v715, 4
      %v730 = vsel %vm114, %v729, %v709
      %v731 = vrot.slane %v709, 4
      %v732 = vsel %vm114, %v715, %v731
      %v734 = vunpack.c.l.s4 1983009808
      %v735 = vunpack.c.0.s8 %v734
      %v736 = vperm.slane %v730, %v735
      %v738 = vunpack.c.l.s4 1983009808
      %v739 = vunpack.c.0.s8 %v738
      %v740 = vperm.slane %v732, %v739
      %v741 = vrot.slane %v736, 4
      %v742 = vsel %vm114, %v741, %v724
      %v743 = vrot.slane %v724, 4
      %v744 = vsel %vm114, %v736, %v743
      %v746 = vunpack.c.l.s4 1934713408
      %v747 = vunpack.c.0.s8 %v746
      %v748 = vperm.slane %v742, %v747
      %v750 = vunpack.c.l.s4 1934713408
      %v751 = vunpack.c.0.s8 %v750
      %v752 = vperm.slane %v744, %v751
      %v753 = vrot.slane %v740, 4
      %v754 = vsel %vm114, %v753, %v728
      %v755 = vrot.slane %v728, 4
      %v756 = vsel %vm114, %v740, %v755
      %v758 = vunpack.c.l.s4 1934713408
      %v759 = vunpack.c.0.s8 %v758
      %v760 = vperm.slane %v754, %v759
      %v762 = vunpack.c.l.s4 1934713408
      %v763 = vunpack.c.0.s8 %v762
      %v764 = vperm.slane %v756, %v763
      %v765 = vrot.slane %v748, 4
      %v766 = vsel %vm114, 0.0, %v765
      %v767 = vrot.slane %v752, 4
      %v768 = vsel %vm114, 0.0, %v767
      %v769 = vrot.slane %v760, 4
      %v770 = vsel %vm114, 0.0, %v769
      %v771 = vrot.slane %v764, 4
      %v772 = vsel %vm114, 0.0, %v771
      %v773 = vsel %vm114, %v767, %v748
      %v775 = vunpack.c.l.s4 1983009808
      %v776 = vunpack.c.0.s8 %v775
      %v777 = vperm.slane %v773, %v776
      %v778 = vrot.slane %v768, 4
      %v779 = vsel %vm114, %v778, %v766
      %v781 = vunpack.c.l.s4 1983009808
      %v782 = vunpack.c.0.s8 %v781
      %v783 = vperm.slane %v779, %v782
      %v784 = vsel %vm114, %v771, %v760
      %v786 = vunpack.c.l.s4 1983009808
      %v787 = vunpack.c.0.s8 %v786
      %v788 = vperm.slane %v784, %v787
      %v789 = vrot.slane %v772, 4
      %v790 = vsel %vm114, %v789, %v770
      %v792 = vunpack.c.l.s4 1983009808
      %v793 = vunpack.c.0.s8 %v792
      %v794 = vperm.slane %v790, %v793
      %v795 = vrot.slane %v783, 4
      %v796 = vsel %vm114, %v795, %v777
      %v797 = vrot.slane %v777, 4
      %v798 = vsel %vm114, %v783, %v797
      %v800 = vunpack.c.l.s4 1934713408
      %v801 = vunpack.c.0.s8 %v800
      %v802 = vperm.slane %v796, %v801
      %v804 = vunpack.c.l.s4 1934713408
      %v805 = vunpack.c.0.s8 %v804
      %v806 = vperm.slane %v798, %v805
      %v807 = vrot.slane %v794, 4
      %v808 = vsel %vm114, %v807, %v788
      %v809 = vrot.slane %v788, 4
      %v810 = vsel %vm114, %v794, %v809
      %v812 = vunpack.c.l.s4 1934713408
      %v813 = vunpack.c.0.s8 %v812
      %v814 = vperm.slane %v808, %v813
      %v816 = vunpack.c.l.s4 1934713408
      %v817 = vunpack.c.0.s8 %v816
      %v818 = vperm.slane %v810, %v817
      %v819 = vrot.slane %v814, 4
      %v820 = vsel %vm114, %v819, %v802
      %v821 = vrot.slane %v802, 4
      %v822 = vsel %vm114, %v814, %v821
      %v823 = vrot.slane %v818, 4
      %v824 = vsel %vm114, %v823, %v806
      %v825 = vrot.slane %v806, 4
      %v826 = vsel %vm114, %v818, %v825
      %v827 = vpack.c.bf16 %v820, %v820
      %v828 = vpack.c.bf16 %v822, %v822
      %v829 = vpack.c.bf16 %v824, %v824
      %v830 = vpack.c.bf16 %v826, %v826
      %vm831 = vcmask 130048
      %v833 = vsel %vm831, %v579, 0
      %v836 = vsel %vm831, %v703, 0
      %838 = vmatpush.bf16.xpose.msra.mxu0 0
      %839 = vmatpush.bf16.xpose.msra.mxu0 0
      %840 = vmatpush.bf16.xpose.msra.mxu0 0
      %841 = vmatpush.bf16.xpose.msra.mxu0 0
      %842 = vmatpush.bf16.xpose.msra.mxu0 0
      %843 = vmatpush.bf16.xpose.msra.mxu0 0
      %844 = vmatpush.bf16.xpose.msra.mxu0 0
      %845 = vmatpush.bf16.xpose.msra.mxu0 %v836
      %846 = vmatmul.bf16.gmra.mxu0 %v833
      %v847 = vpop.f32.mrf.mxu0
      %v848 = vadd.f32 0.0, %v847
      %v849 = vpop.f32.mrf.mxu0
      %850 = vdwg.mxu0
      %v852 = vsel %vm831, %v580, 0
      %v855 = vsel %vm831, %v704, 0
      %857 = vmatpush.bf16.xpose.msra.mxu0 0
      %858 = vmatpush.bf16.xpose.msra.mxu0 0
      %859 = vmatpush.bf16.xpose.msra.mxu0 0
      %860 = vmatpush.bf16.xpose.msra.mxu0 0
      %861 = vmatpush.bf16.xpose.msra.mxu0 0
      %862 = vmatpush.bf16.xpose.msra.mxu0 0
      %863 = vmatpush.bf16.xpose.msra.mxu0 0
      %864 = vmatpush.bf16.xpose.msra.mxu0 %v855
      %865 = vmatmul.bf16.gmra.mxu0 %v852
      %v866 = vpop.f32.mrf.mxu0
      %v867 = vadd.f32 0.0, %v866
      %v868 = vpop.f32.mrf.mxu0
      %869 = vdwg.mxu0
      %v871 = vsel %vm831, %v581, 0
      %v874 = vsel %vm831, %v705, 0
      %876 = vmatpush.bf16.xpose.msra.mxu0 0
      %877 = vmatpush.bf16.xpose.msra.mxu0 0
      %878 = vmatpush.bf16.xpose.msra.mxu0 0
      %879 = vmatpush.bf16.xpose.msra.mxu0 0
      %880 = vmatpush.bf16.xpose.msra.mxu0 0
      %881 = vmatpush.bf16.xpose.msra.mxu0 0
      %882 = vmatpush.bf16.xpose.msra.mxu0 0
      %883 = vmatpush.bf16.xpose.msra.mxu0 %v874
      %884 = vmatmul.bf16.gmra.mxu0 %v871
      %v885 = vpop.f32.mrf.mxu0
      %v886 = vadd.f32 0.0, %v885
      %v887 = vpop.f32.mrf.mxu0
      %888 = vdwg.mxu0
      %v890 = vsel %vm831, %v582, 0
      %v893 = vsel %vm831, %v706, 0
      %895 = vmatpush.bf16.xpose.msra.mxu0 0
      %896 = vmatpush.bf16.xpose.msra.mxu0 0
      %897 = vmatpush.bf16.xpose.msra.mxu0 0
      %898 = vmatpush.bf16.xpose.msra.mxu0 0
      %899 = vmatpush.bf16.xpose.msra.mxu0 0
      %900 = vmatpush.bf16.xpose.msra.mxu0 0
      %901 = vmatpush.bf16.xpose.msra.mxu0 0
      %902 = vmatpush.bf16.xpose.msra.mxu0 %v893
      %903 = vmatmul.bf16.gmra.mxu0 %v890
      %v904 = vpop.f32.mrf.mxu0
      %v905 = vadd.f32 0.0, %v904
      %v906 = vpop.f32.mrf.mxu0
      %907 = vdwg.mxu0
      %vm908 = vcmask 64512
      %v909 = vsel %vm908, %v848, -inf
      %910 = vmax.xlane.f32.xlu0 %v909
      %v911 = vpop.xlane.xlu0 %910
      %v912 = vsel %vm908, %v867, -inf
      %913 = vmax.xlane.f32.xlu0 %v912
      %v914 = vpop.xlane.xlu0 %913
      %v915 = vsel %vm908, %v886, -inf
      %916 = vmax.xlane.f32.xlu0 %v915
      %v917 = vpop.xlane.xlu0 %916
      %v918 = vsel %vm908, %v905, -inf
      %919 = vmax.xlane.f32.xlu0 %v918
      %v920 = vpop.xlane.xlu0 %919
      %v921 = vsub.f32 %v848, %v911
      %v922 = vsub.f32 %v867, %v914
      %v923 = vsub.f32 %v886, %v917
      %v924 = vsub.f32 %v905, %v920
      %v925 = vmul.f32 %v921, 1.442695
      %v926 = vpow.pop %v925
      %v927 = vmul.f32 %v922, 1.442695
      %v928 = vpow.pop %v927
      %v929 = vmul.f32 %v923, 1.442695
      %v930 = vpow.pop %v929
      %v931 = vmul.f32 %v924, 1.442695
      %v932 = vpow.pop %v931
      %v933 = vsel %vm908, %v926, 0.0
      %934 = vadd.xlane.f32.xlu0 %v933
      %v935 = vpop.xlane.xlu0 %934
      %v936 = vsel %vm908, %v928, 0.0
      %937 = vadd.xlane.f32.xlu0 %v936
      %v938 = vpop.xlane.xlu0 %937
      %v939 = vsel %vm908, %v930, 0.0
      %940 = vadd.xlane.f32.xlu0 %v939
      %v941 = vpop.xlane.xlu0 %940
      %v942 = vsel %vm908, %v932, 0.0
      %943 = vadd.xlane.f32.xlu0 %v942
      %v944 = vpop.xlane.xlu0 %943
      %v945 = vrcp.pop %v935
      %v946 = vrcp.pop %v938
      %v947 = vrcp.pop %v941
      %v948 = vrcp.pop %v944
      %v949 = vmul.f32 %v926, %v945
      %v950 = vmul.f32 %v928, %v946
      %v951 = vmul.f32 %v930, %v947
      %v952 = vmul.f32 %v932, %v948
      %v953 = vpack.c.bf16 %v949, %v949
      %v954 = vpack.c.bf16 %v950, %v950
      %v955 = vpack.c.bf16 %v951, %v951
      %v956 = vpack.c.bf16 %v952, %v952
      %v958 = vsel %vm908, %v953, 0
      %vm960 = vcmask 1043456
      %v962 = vsel %vm960, %v827, 0
      %964 = vmatpush.bf16.msra.mxu0 0
      %965 = vmatpush.bf16.msra.mxu0 0
      %966 = vmatpush.bf16.msra.mxu0 0
      %967 = vmatpush.bf16.msra.mxu0 0
      %968 = vmatpush.bf16.msra.mxu0 0
      %969 = vmatpush.bf16.msra.mxu0 0
      %970 = vmatpush.bf16.msra.mxu0 0
      %971 = vmatpush.bf16.msra.mxu0 %v962
      %972 = vmatmul.bf16.gmra.mxu0 %v958
      %v973 = vpop.f32.mrf.mxu0
      %v974 = vadd.f32 0.0, %v973
      %v975 = vpop.f32.mrf.mxu0
      %976 = vdwg.mxu0
      %v978 = vsel %vm908, %v954, 0
      %v981 = vsel %vm960, %v828, 0
      %983 = vmatpush.bf16.msra.mxu0 0
      %984 = vmatpush.bf16.msra.mxu0 0
      %985 = vmatpush.bf16.msra.mxu0 0
      %986 = vmatpush.bf16.msra.mxu0 0
      %987 = vmatpush.bf16.msra.mxu0 0
      %988 = vmatpush.bf16.msra.mxu0 0
      %989 = vmatpush.bf16.msra.mxu0 0
      %990 = vmatpush.bf16.msra.mxu0 %v981
      %991 = vmatmul.bf16.gmra.mxu0 %v978
      %v992 = vpop.f32.mrf.mxu0
      %v993 = vadd.f32 0.0, %v992
      %v994 = vpop.f32.mrf.mxu0
      %995 = vdwg.mxu0
      %v997 = vsel %vm908, %v955, 0
      %v1000 = vsel %vm960, %v829, 0
      %1002 = vmatpush.bf16.msra.mxu0 0
      %1003 = vmatpush.bf16.msra.mxu0 0
      %1004 = vmatpush.bf16.msra.mxu0 0
      %1005 = vmatpush.bf16.msra.mxu0 0
      %1006 = vmatpush.bf16.msra.mxu0 0
      %1007 = vmatpush.bf16.msra.mxu0 0
      %1008 = vmatpush.bf16.msra.mxu0 0
      %1009 = vmatpush.bf16.msra.mxu0 %v1000
      %1010 = vmatmul.bf16.gmra.mxu0 %v997
      %v1011 = vpop.f32.mrf.mxu0
      %v1012 = vadd.f32 0.0, %v1011
      %v1013 = vpop.f32.mrf.mxu0
      %1014 = vdwg.mxu0
      %v1016 = vsel %vm908, %v956, 0
      %v1019 = vsel %vm960, %v830, 0
      %1021 = vmatpush.bf16.msra.mxu0 0
      %1022 = vmatpush.bf16.msra.mxu0 0
      %1023 = vmatpush.bf16.msra.mxu0 0
      %1024 = vmatpush.bf16.msra.mxu0 0
      %1025 = vmatpush.bf16.msra.mxu0 0
      %1026 = vmatpush.bf16.msra.mxu0 0
      %1027 = vmatpush.bf16.msra.mxu0 0
      %1028 = vmatpush.bf16.msra.mxu0 %v1019
      %1029 = vmatmul.bf16.gmra.mxu0 %v1016
      %v1030 = vpop.f32.mrf.mxu0
      %v1031 = vadd.f32 0.0, %v1030
      %v1032 = vpop.f32.mrf.mxu0
      %1033 = vdwg.mxu0
      %v1034 = vrot.slane %v1012, 4
      %v1035 = vsel %vm114, %v1034, %v974
      %v1036 = vrot.slane %v974, 4
      %v1037 = vsel %vm114, %v1012, %v1036
      %v1039 = vunpack.c.l.s4 1983009808
      %v1040 = vunpack.c.0.s8 %v1039
      %v1041 = vperm.slane %v1035, %v1040
      %v1043 = vunpack.c.l.s4 1983009808
      %v1044 = vunpack.c.0.s8 %v1043
      %v1045 = vperm.slane %v1037, %v1044
      %v1046 = vrot.slane %v1031, 4
      %v1047 = vsel %vm114, %v1046, %v993
      %v1048 = vrot.slane %v993, 4
      %v1049 = vsel %vm114, %v1031, %v1048
      %v1051 = vunpack.c.l.s4 1983009808
      %v1052 = vunpack.c.0.s8 %v1051
      %v1053 = vperm.slane %v1047, %v1052
      %v1055 = vunpack.c.l.s4 1983009808
      %v1056 = vunpack.c.0.s8 %v1055
      %v1057 = vperm.slane %v1049, %v1056
      %v1058 = vrot.slane %v1053, 4
      %v1059 = vsel %vm114, %v1058, %v1041
      %v1060 = vrot.slane %v1041, 4
      %v1061 = vsel %vm114, %v1053, %v1060
      %v1063 = vunpack.c.l.s4 1934713408
      %v1064 = vunpack.c.0.s8 %v1063
      %v1065 = vperm.slane %v1059, %v1064
      %v1067 = vunpack.c.l.s4 1934713408
      %v1068 = vunpack.c.0.s8 %v1067
      %v1069 = vperm.slane %v1061, %v1068
      %v1070 = vrot.slane %v1057, 4
      %v1071 = vsel %vm114, %v1070, %v1045
      %v1072 = vrot.slane %v1045, 4
      %v1073 = vsel %vm114, %v1057, %v1072
      %v1075 = vunpack.c.l.s4 1934713408
      %v1076 = vunpack.c.0.s8 %v1075
      %v1077 = vperm.slane %v1071, %v1076
      %v1079 = vunpack.c.l.s4 1934713408
      %v1080 = vunpack.c.0.s8 %v1079
      %v1081 = vperm.slane %v1073, %v1080
      %v1082 = vrot.slane %v1065, 4
      %v1083 = vsel %vm114, 0.0, %v1082
      %v1084 = vrot.slane %v1069, 4
      %v1085 = vsel %vm114, 0.0, %v1084
      %v1086 = vrot.slane %v1077, 4
      %v1087 = vsel %vm114, 0.0, %v1086
      %v1088 = vrot.slane %v1081, 4
      %v1089 = vsel %vm114, 0.0, %v1088
      %v1090 = vsel %vm114, %v1084, %v1065
      %v1092 = vunpack.c.l.s4 1983009808
      %v1093 = vunpack.c.0.s8 %v1092
      %v1094 = vperm.slane %v1090, %v1093
      %v1095 = vrot.slane %v1085, 4
      %v1096 = vsel %vm114, %v1095, %v1083
      %v1098 = vunpack.c.l.s4 1983009808
      %v1099 = vunpack.c.0.s8 %v1098
      %v1100 = vperm.slane %v1096, %v1099
      %v1101 = vsel %vm114, %v1088, %v1077
      %v1103 = vunpack.c.l.s4 1983009808
      %v1104 = vunpack.c.0.s8 %v1103
      %v1105 = vperm.slane %v1101, %v1104
      %v1106 = vrot.slane %v1089, 4
      %v1107 = vsel %vm114, %v1106, %v1087
      %v1109 = vunpack.c.l.s4 1983009808
      %v1110 = vunpack.c.0.s8 %v1109
      %v1111 = vperm.slane %v1107, %v1110
      %v1112 = vrot.slane %v1100, 4
      %v1113 = vsel %vm114, %v1112, %v1094
      %v1114 = vrot.slane %v1094, 4
      %v1115 = vsel %vm114, %v1100, %v1114
      %v1117 = vunpack.c.l.s4 1934713408
      %v1118 = vunpack.c.0.s8 %v1117
      %v1119 = vperm.slane %v1113, %v1118
      %v1121 = vunpack.c.l.s4 1934713408
      %v1122 = vunpack.c.0.s8 %v1121
      %v1123 = vperm.slane %v1115, %v1122
      %v1124 = vrot.slane %v1111, 4
      %v1125 = vsel %vm114, %v1124, %v1105
      %v1126 = vrot.slane %v1105, 4
      %v1127 = vsel %vm114, %v1111, %v1126
      %v1129 = vunpack.c.l.s4 1934713408
      %v1130 = vunpack.c.0.s8 %v1129
      %v1131 = vperm.slane %v1125, %v1130
      %v1133 = vunpack.c.l.s4 1934713408
      %v1134 = vunpack.c.0.s8 %v1133
      %v1135 = vperm.slane %v1127, %v1134
      %v1136 = vrot.slane %v1131, 4
      %v1137 = vsel %vm114, %v1136, %v1119
      %v1138 = vrot.slane %v1119, 4
      %v1139 = vsel %vm114, %v1131, %v1138
      %v1140 = vrot.slane %v1135, 4
      %v1141 = vsel %vm114, %v1140, %v1123
      %v1142 = vrot.slane %v1123, 4
      %v1143 = vsel %vm114, %v1135, %v1142
      %1145 = vrot.lane.b32.xlu0 %v1139, 16
      %v1146 = vpop.permute.xlu0 %1145
      %1149 = vrot.lane.b32.xlu0 %v1141, 32
      %v1150 = vpop.permute.xlu0 %1149
      %1153 = vrot.lane.b32.xlu0 %v1143, 48
      %v1154 = vpop.permute.xlu0 %1153
      %v1156 = vsel %vm831, %v1137, %v1146
      %vm1157 = vcmask 261120
      %v1158 = vsel %vm1157, %v1156, %v1150
      %vm1159 = vcmask 392192
      %v1160 = vsel %vm1159, %v1158, %v1154
      %v1161 = vpack.c.bf16 %v1160, %v1160
      %v1162 = vld [vmem:[#allocation9] sm:$0xf]
      %v1163 = vld [vmem:[#allocation9 + $0x4] sm:$0xf]
      %v1164 = vld [vmem:[#allocation9 + $0x8] sm:$0xf]
      %v1165 = vld [vmem:[#allocation9 + $0xc] sm:$0xf]
      %v1166 = vld [vmem:[#allocation9 + $0x10] sm:$0xf]
      %v1167 = vld [vmem:[#allocation9 + $0x14] sm:$0xf]
      %v1168 = vld [vmem:[#allocation9 + $0x18] sm:$0xf]
      %v1169 = vld [vmem:[#allocation9 + $0x1c] sm:$0xf]
      %v1170 = vld [vmem:[%s10] sm:$0x1]
      %v1172 = vperm.slane %v1170, 0
      %v1182 = vunpack.c.l.b16 %v1162
      %v1183 = vunpack.c.l.b16 %v1163
      %v1184 = vunpack.c.l.b16 %v1164
      %v1185 = vunpack.c.l.b16 %v1165
      %v1186 = vunpack.c.l.b16 %v1166
      %v1187 = vunpack.c.l.b16 %v1167
      %v1188 = vunpack.c.l.b16 %v1168
      %v1189 = vunpack.c.l.b16 %v1169
      %v1190 = vpack.c.b16 %v1183, %v1182
      %v1191 = vpack.c.b16 %v1185, %v1184
      %v1192 = vpack.c.b16 %v1187, %v1186
      %v1193 = vpack.c.b16 %v1189, %v1188
      %v1199 = vsel %vm172, %v1161, 0
      %1201 = vmatpush.bf16.msra.mxu0 0
      %1202 = vmatpush.bf16.msra.mxu0 0
      %1203 = vmatpush.bf16.msra.mxu0 0
      %1204 = vmatpush.bf16.msra.mxu0 0
      %1205 = vmatpush.bf16.msra.mxu0 %v1193
      %1206 = vmatpush.bf16.msra.mxu0 %v1192
      %1207 = vmatpush.bf16.msra.mxu0 %v1191
      %1208 = vmatpush.bf16.msra.mxu0 %v1190
      %1209 = vmatmul.bf16.gmra.mxu0 %v1199
      %v1210 = vpop.f32.mrf.mxu0
      %v1211 = vadd.f32 %v1172, %v1210
      %v1212 = vpop.f32.mrf.mxu0
      %1213 = vdwg.mxu0
      %v1214 = vadd.f32 %v163, %v1211
      %1215 = vst.msk [vmem:[#allocation2] sm:$0xff] %vm172, %v1214
      %v1216 = vld [vmem:[%s11] sm:$0x1]
      %v1217 = vld [vmem:[%s12] sm:$0x1]
      %v1218 = vsel %vm172, %v1214, 0.0
      %1219 = vadd.xlane.f32.xlu0 %v1218
      %v1220 = vpop.xlane.xlu0 %1219
      %v1221 = vmul.f32 %v1220, %v191
      %v1222 = vsub.f32 %v1214, %v1221
      %v1223 = vmul.f32 %v1222, %v1222
      %v1224 = vsel %vm172, %v1223, 0.0
      %1225 = vadd.xlane.f32.xlu0 %v1224
      %v1226 = vpop.xlane.xlu0 %1225
      %v1227 = vmul.f32 %v1226, %v191
      %v1228 = vadd.f32 %v1227, 1e-05
      %v1229 = vrsqrt.pop %v1228
      %v1230 = vmul.f32 %v1229, %v1228
      %v1231 = vmul.f32 %v1230, %v1229
      %v1232 = vmul.f32 0.5, %v1231
      %v1233 = vsub.f32 1.5, %v1232
      %v1234 = vmul.f32 %v1229, %v1233
      %vm1235 = vweird.f32 %v1228
      %vm1236 = vweird.f32 %v1229
      %vm1237 = vmor %vm1235, %vm1236
      %v1238 = vsel %vm1237, %v1229, %v1234
      %v1239 = vmul.f32 %v1222, %v1238
      %v1241 = vperm.slane %v1216, 0
      %v1243 = vmul.f32 %v1239, %v1241
      %v1245 = vperm.slane %v1217, 0
      %v1247 = vadd.f32 %v1243, %v1245
      %v1248 = vpack.c.bf16 %v1247, %v1247
      %vm1249 = vcmask 519168
      %1250 = vst.msk [vmem:[#allocation3] sm:$0xf] %vm1249, %v1248
      %1252 = vrot.lane.b32.xlu0 %v346, 112
      %v1253 = vpop.permute.xlu0 %1252
      %1255 = vrot.lane.b32.xlu0 %v346, 96
      %v1256 = vpop.permute.xlu0 %1255
      %1258 = vrot.lane.b32.xlu0 %v346, 80
      %v1259 = vpop.permute.xlu0 %1258
      %v1261 = vrot.slane %v1256, 4
      %v1262 = vsel %vm114, %v1261, %v346
      %v1263 = vrot.slane %v346, 4
      %v1264 = vsel %vm114, %v1256, %v1263
      %v1266 = vunpack.c.l.s4 1983009808
      %v1267 = vunpack.c.0.s8 %v1266
      %v1268 = vperm.slane %v1262, %v1267
      %v1270 = vunpack.c.l.s4 1983009808
      %v1271 = vunpack.c.0.s8 %v1270
      %v1272 = vperm.slane %v1264, %v1271
      %v1273 = vrot.slane %v1259, 4
      %v1274 = vsel %vm114, %v1273, %v1253
      %v1275 = vrot.slane %v1253, 4
      %v1276 = vsel %vm114, %v1259, %v1275
      %v1278 = vunpack.c.l.s4 1983009808
      %v1279 = vunpack.c.0.s8 %v1278
      %v1280 = vperm.slane %v1274, %v1279
      %v1282 = vunpack.c.l.s4 1983009808
      %v1283 = vunpack.c.0.s8 %v1282
      %v1284 = vperm.slane %v1276, %v1283
      %v1285 = vrot.slane %v1280, 4
      %v1286 = vsel %vm114, %v1285, %v1268
      %v1287 = vrot.slane %v1268, 4
      %v1288 = vsel %vm114, %v1280, %v1287
      %v1290 = vunpack.c.l.s4 1934713408
      %v1291 = vunpack.c.0.s8 %v1290
      %v1292 = vperm.slane %v1286, %v1291
      %v1294 = vunpack.c.l.s4 1934713408
      %v1295 = vunpack.c.0.s8 %v1294
      %v1296 = vperm.slane %v1288, %v1295
      %v1297 = vrot.slane %v1284, 4
      %v1298 = vsel %vm114, %v1297, %v1272
      %v1299 = vrot.slane %v1272, 4
      %v1300 = vsel %vm114, %v1284, %v1299
      %v1302 = vunpack.c.l.s4 1934713408
      %v1303 = vunpack.c.0.s8 %v1302
      %v1304 = vperm.slane %v1298, %v1303
      %v1306 = vunpack.c.l.s4 1934713408
      %v1307 = vunpack.c.0.s8 %v1306
      %v1308 = vperm.slane %v1300, %v1307
      %v1309 = vrot.slane %v1292, 4
      %v1310 = vsel %vm114, 0.0, %v1309
      %v1311 = vrot.slane %v1296, 4
      %v1312 = vsel %vm114, 0.0, %v1311
      %v1313 = vrot.slane %v1304, 4
      %v1314 = vsel %vm114, 0.0, %v1313
      %v1315 = vrot.slane %v1308, 4
      %v1316 = vsel %vm114, 0.0, %v1315
      %v1317 = vsel %vm114, %v1311, %v1292
      %v1319 = vunpack.c.l.s4 1983009808
      %v1320 = vunpack.c.0.s8 %v1319
      %v1321 = vperm.slane %v1317, %v1320
      %v1322 = vrot.slane %v1312, 4
      %v1323 = vsel %vm114, %v1322, %v1310
      %v1325 = vunpack.c.l.s4 1983009808
      %v1326 = vunpack.c.0.s8 %v1325
      %v1327 = vperm.slane %v1323, %v1326
      %v1328 = vsel %vm114, %v1315, %v1304
      %v1330 = vunpack.c.l.s4 1983009808
      %v1331 = vunpack.c.0.s8 %v1330
      %v1332 = vperm.slane %v1328, %v1331
      %v1333 = vrot.slane %v1316, 4
      %v1334 = vsel %vm114, %v1333, %v1314
      %v1336 = vunpack.c.l.s4 1983009808
      %v1337 = vunpack.c.0.s8 %v1336
      %v1338 = vperm.slane %v1334, %v1337
      %v1339 = vrot.slane %v1327, 4
      %v1340 = vsel %vm114, %v1339, %v1321
      %v1341 = vrot.slane %v1321, 4
      %v1342 = vsel %vm114, %v1327, %v1341
      %v1344 = vunpack.c.l.s4 1934713408
      %v1345 = vunpack.c.0.s8 %v1344
      %v1346 = vperm.slane %v1340, %v1345
      %v1348 = vunpack.c.l.s4 1934713408
      %v1349 = vunpack.c.0.s8 %v1348
      %v1350 = vperm.slane %v1342, %v1349
      %v1351 = vrot.slane %v1338, 4
      %v1352 = vsel %vm114, %v1351, %v1332
      %v1353 = vrot.slane %v1332, 4
      %v1354 = vsel %vm114, %v1338, %v1353
      %v1356 = vunpack.c.l.s4 1934713408
      %v1357 = vunpack.c.0.s8 %v1356
      %v1358 = vperm.slane %v1352, %v1357
      %v1360 = vunpack.c.l.s4 1934713408
      %v1361 = vunpack.c.0.s8 %v1360
      %v1362 = vperm.slane %v1354, %v1361
      %v1363 = vrot.slane %v1358, 4
      %v1364 = vsel %vm114, %v1363, %v1346
      %v1365 = vrot.slane %v1346, 4
      %v1366 = vsel %vm114, %v1358, %v1365
      %v1367 = vrot.slane %v1362, 4
      %v1368 = vsel %vm114, %v1367, %v1350
      %v1369 = vrot.slane %v1350, 4
      %v1370 = vsel %vm114, %v1362, %v1369
      %v1371 = vpack.c.bf16 %v1364, %v1364
      %v1372 = vpack.c.bf16 %v1366, %v1366
      %v1373 = vpack.c.bf16 %v1368, %v1368
      %v1374 = vpack.c.bf16 %v1370, %v1370
      %1376 = vrot.lane.b32.xlu0 %v397, 112
      %v1377 = vpop.permute.xlu0 %1376
      %1379 = vrot.lane.b32.xlu0 %v397, 96
      %v1380 = vpop.permute.xlu0 %1379
      %1382 = vrot.lane.b32.xlu0 %v397, 80
      %v1383 = vpop.permute.xlu0 %1382
      %v1385 = vrot.slane %v1380, 4
      %v1386 = vsel %vm114, %v1385, %v397
      %v1387 = vrot.slane %v397, 4
      %v1388 = vsel %vm114, %v1380, %v1387
      %v1390 = vunpack.c.l.s4 1983009808
      %v1391 = vunpack.c.0.s8 %v1390
      %v1392 = vperm.slane %v1386, %v1391
      %v1394 = vunpack.c.l.s4 1983009808
      %v1395 = vunpack.c.0.s8 %v1394
      %v1396 = vperm.slane %v1388, %v1395
      %v1397 = vrot.slane %v1383, 4
      %v1398 = vsel %vm114, %v1397, %v1377
      %v1399 = vrot.slane %v1377, 4
      %v1400 = vsel %vm114, %v1383, %v1399
      %v1402 = vunpack.c.l.s4 1983009808
      %v1403 = vunpack.c.0.s8 %v1402
      %v1404 = vperm.slane %v1398, %v1403
      %v1406 = vunpack.c.l.s4 1983009808
      %v1407 = vunpack.c.0.s8 %v1406
      %v1408 = vperm.slane %v1400, %v1407
      %v1409 = vrot.slane %v1404, 4
      %v1410 = vsel %vm114, %v1409, %v1392
      %v1411 = vrot.slane %v1392, 4
      %v1412 = vsel %vm114, %v1404, %v1411
      %v1414 = vunpack.c.l.s4 1934713408
      %v1415 = vunpack.c.0.s8 %v1414
      %v1416 = vperm.slane %v1410, %v1415
      %v1418 = vunpack.c.l.s4 1934713408
      %v1419 = vunpack.c.0.s8 %v1418
      %v1420 = vperm.slane %v1412, %v1419
      %v1421 = vrot.slane %v1408, 4
      %v1422 = vsel %vm114, %v1421, %v1396
      %v1423 = vrot.slane %v1396, 4
      %v1424 = vsel %vm114, %v1408, %v1423
      %v1426 = vunpack.c.l.s4 1934713408
      %v1427 = vunpack.c.0.s8 %v1426
      %v1428 = vperm.slane %v1422, %v1427
      %v1430 = vunpack.c.l.s4 1934713408
      %v1431 = vunpack.c.0.s8 %v1430
      %v1432 = vperm.slane %v1424, %v1431
      %v1433 = vrot.slane %v1416, 4
      %v1434 = vsel %vm114, 0.0, %v1433
      %v1435 = vrot.slane %v1420, 4
      %v1436 = vsel %vm114, 0.0, %v1435
      %v1437 = vrot.slane %v1428, 4
      %v1438 = vsel %vm114, 0.0, %v1437
      %v1439 = vrot.slane %v1432, 4
      %v1440 = vsel %vm114, 0.0, %v1439
      %v1441 = vsel %vm114, %v1435, %v1416
      %v1443 = vunpack.c.l.s4 1983009808
      %v1444 = vunpack.c.0.s8 %v1443
      %v1445 = vperm.slane %v1441, %v1444
      %v1446 = vrot.slane %v1436, 4
      %v1447 = vsel %vm114, %v1446, %v1434
      %v1449 = vunpack.c.l.s4 1983009808
      %v1450 = vunpack.c.0.s8 %v1449
      %v1451 = vperm.slane %v1447, %v1450
      %v1452 = vsel %vm114, %v1439, %v1428
      %v1454 = vunpack.c.l.s4 1983009808
      %v1455 = vunpack.c.0.s8 %v1454
      %v1456 = vperm.slane %v1452, %v1455
      %v1457 = vrot.slane %v1440, 4
      %v1458 = vsel %vm114, %v1457, %v1438
      %v1460 = vunpack.c.l.s4 1983009808
      %v1461 = vunpack.c.0.s8 %v1460
      %v1462 = vperm.slane %v1458, %v1461
      %v1463 = vrot.slane %v1451, 4
      %v1464 = vsel %vm114, %v1463, %v1445
      %v1465 = vrot.slane %v1445, 4
      %v1466 = vsel %vm114, %v1451, %v1465
      %v1468 = vunpack.c.l.s4 1934713408
      %v1469 = vunpack.c.0.s8 %v1468
      %v1470 = vperm.slane %v1464, %v1469
      %v1472 = vunpack.c.l.s4 1934713408
      %v1473 = vunpack.c.0.s8 %v1472
      %v1474 = vperm.slane %v1466, %v1473
      %v1475 = vrot.slane %v1462, 4
      %v1476 = vsel %vm114, %v1475, %v1456
      %v1477 = vrot.slane %v1456, 4
      %v1478 = vsel %vm114, %v1462, %v1477
      %v1480 = vunpack.c.l.s4 1934713408
      %v1481 = vunpack.c.0.s8 %v1480
      %v1482 = vperm.slane %v1476, %v1481
      %v1484 = vunpack.c.l.s4 1934713408
      %v1485 = vunpack.c.0.s8 %v1484
      %v1486 = vperm.slane %v1478, %v1485
      %v1487 = vrot.slane %v1482, 4
      %v1488 = vsel %vm114, %v1487, %v1470
      %v1489 = vrot.slane %v1470, 4
      %v1490 = vsel %vm114, %v1482, %v1489
      %v1491 = vrot.slane %v1486, 4
      %v1492 = vsel %vm114, %v1491, %v1474
      %v1493 = vrot.slane %v1474, 4
      %v1494 = vsel %vm114, %v1486, %v1493
      %v1495 = vpack.c.bf16 %v1488, %v1488
      %v1496 = vpack.c.bf16 %v1490, %v1490
      %v1497 = vpack.c.bf16 %v1492, %v1492
      %v1498 = vpack.c.bf16 %v1494, %v1494
      %1500 = vrot.lane.b32.xlu0 %v452, 112
      %v1501 = vpop.permute.xlu0 %1500
      %1503 = vrot.lane.b32.xlu0 %v452, 96
      %v1504 = vpop.permute.xlu0 %1503
      %1506 = vrot.lane.b32.xlu0 %v452, 80
      %v1507 = vpop.permute.xlu0 %1506
      %v1509 = vrot.slane %v1504, 4
      %v1510 = vsel %vm114, %v1509, %v452
      %v1511 = vrot.slane %v452, 4
      %v1512 = vsel %vm114, %v1504, %v1511
      %v1514 = vunpack.c.l.s4 1983009808
      %v1515 = vunpack.c.0.s8 %v1514
      %v1516 = vperm.slane %v1510, %v1515
      %v1518 = vunpack.c.l.s4 1983009808
      %v1519 = vunpack.c.0.s8 %v1518
      %v1520 = vperm.slane %v1512, %v1519
      %v1521 = vrot.slane %v1507, 4
      %v1522 = vsel %vm114, %v1521, %v1501
      %v1523 = vrot.slane %v1501, 4
      %v1524 = vsel %vm114, %v1507, %v1523
      %v1526 = vunpack.c.l.s4 1983009808
      %v1527 = vunpack.c.0.s8 %v1526
      %v1528 = vperm.slane %v1522, %v1527
      %v1530 = vunpack.c.l.s4 1983009808
      %v1531 = vunpack.c.0.s8 %v1530
      %v1532 = vperm.slane %v1524, %v1531
      %v1533 = vrot.slane %v1528, 4
      %v1534 = vsel %vm114, %v1533, %v1516
      %v1535 = vrot.slane %v1516, 4
      %v1536 = vsel %vm114, %v1528, %v1535
      %v1538 = vunpack.c.l.s4 1934713408
      %v1539 = vunpack.c.0.s8 %v1538
      %v1540 = vperm.slane %v1534, %v1539
      %v1542 = vunpack.c.l.s4 1934713408
      %v1543 = vunpack.c.0.s8 %v1542
      %v1544 = vperm.slane %v1536, %v1543
      %v1545 = vrot.slane %v1532, 4
      %v1546 = vsel %vm114, %v1545, %v1520
      %v1547 = vrot.slane %v1520, 4
      %v1548 = vsel %vm114, %v1532, %v1547
      %v1550 = vunpack.c.l.s4 1934713408
      %v1551 = vunpack.c.0.s8 %v1550
      %v1552 = vperm.slane %v1546, %v1551
      %v1554 = vunpack.c.l.s4 1934713408
      %v1555 = vunpack.c.0.s8 %v1554
      %v1556 = vperm.slane %v1548, %v1555
      %v1557 = vrot.slane %v1540, 4
      %v1558 = vsel %vm114, 0.0, %v1557
      %v1559 = vrot.slane %v1544, 4
      %v1560 = vsel %vm114, 0.0, %v1559
      %v1561 = vrot.slane %v1552, 4
      %v1562 = vsel %vm114, 0.0, %v1561
      %v1563 = vrot.slane %v1556, 4
      %v1564 = vsel %vm114, 0.0, %v1563
      %v1565 = vsel %vm114, %v1559, %v1540
      %v1567 = vunpack.c.l.s4 1983009808
      %v1568 = vunpack.c.0.s8 %v1567
      %v1569 = vperm.slane %v1565, %v1568
      %v1570 = vrot.slane %v1560, 4
      %v1571 = vsel %vm114, %v1570, %v1558
      %v1573 = vunpack.c.l.s4 1983009808
      %v1574 = vunpack.c.0.s8 %v1573
      %v1575 = vperm.slane %v1571, %v1574
      %v1576 = vsel %vm114, %v1563, %v1552
      %v1578 = vunpack.c.l.s4 1983009808
      %v1579 = vunpack.c.0.s8 %v1578
      %v1580 = vperm.slane %v1576, %v1579
      %v1581 = vrot.slane %v1564, 4
      %v1582 = vsel %vm114, %v1581, %v1562
      %v1584 = vunpack.c.l.s4 1983009808
      %v1585 = vunpack.c.0.s8 %v1584
      %v1586 = vperm.slane %v1582, %v1585
      %v1587 = vrot.slane %v1575, 4
      %v1588 = vsel %vm114, %v1587, %v1569
      %v1589 = vrot.slane %v1569, 4
      %v1590 = vsel %vm114, %v1575, %v1589
      %v1592 = vunpack.c.l.s4 1934713408
      %v1593 = vunpack.c.0.s8 %v1592
      %v1594 = vperm.slane %v1588, %v1593
      %v1596 = vunpack.c.l.s4 1934713408
      %v1597 = vunpack.c.0.s8 %v1596
      %v1598 = vperm.slane %v1590, %v1597
      %v1599 = vrot.slane %v1586, 4
      %v1600 = vsel %vm114, %v1599, %v1580
      %v1601 = vrot.slane %v1580, 4
      %v1602 = vsel %vm114, %v1586, %v1601
      %v1604 = vunpack.c.l.s4 1934713408
      %v1605 = vunpack.c.0.s8 %v1604
      %v1606 = vperm.slane %v1600, %v1605
      %v1608 = vunpack.c.l.s4 1934713408
      %v1609 = vunpack.c.0.s8 %v1608
      %v1610 = vperm.slane %v1602, %v1609
      %v1611 = vrot.slane %v1606, 4
      %v1612 = vsel %vm114, %v1611, %v1594
      %v1613 = vrot.slane %v1594, 4
      %v1614 = vsel %vm114, %v1606, %v1613
      %v1615 = vrot.slane %v1610, 4
      %v1616 = vsel %vm114, %v1615, %v1598
      %v1617 = vrot.slane %v1598, 4
      %v1618 = vsel %vm114, %v1610, %v1617
      %v1619 = vpack.c.bf16 %v1612, %v1612
      %v1620 = vpack.c.bf16 %v1614, %v1614
      %v1621 = vpack.c.bf16 %v1616, %v1616
      %v1622 = vpack.c.bf16 %v1618, %v1618
      %v1624 = vsel %vm831, %v1371, 0
      %v1627 = vsel %vm831, %v1495, 0
      %1629 = vmatpush.bf16.xpose.msra.mxu0 0
      %1630 = vmatpush.bf16.xpose.msra.mxu0 0
      %1631 = vmatpush.bf16.xpose.msra.mxu0 0
      %1632 = vmatpush.bf16.xpose.msra.mxu0 0
      %1633 = vmatpush.bf16.xpose.msra.mxu0 0
      %1634 = vmatpush.bf16.xpose.msra.mxu0 0
      %1635 = vmatpush.bf16.xpose.msra.mxu0 0
      %1636 = vmatpush.bf16.xpose.msra.mxu0 %v1627
      %1637 = vmatmul.bf16.gmra.mxu0 %v1624
      %v1638 = vpop.f32.mrf.mxu0
      %v1639 = vadd.f32 0.0, %v1638
      %v1640 = vpop.f32.mrf.mxu0
      %1641 = vdwg.mxu0
      %v1643 = vsel %vm831, %v1372, 0
      %v1646 = vsel %vm831, %v1496, 0
      %1648 = vmatpush.bf16.xpose.msra.mxu0 0
      %1649 = vmatpush.bf16.xpose.msra.mxu0 0
      %1650 = vmatpush.bf16.xpose.msra.mxu0 0
      %1651 = vmatpush.bf16.xpose.msra.mxu0 0
      %1652 = vmatpush.bf16.xpose.msra.mxu0 0
      %1653 = vmatpush.bf16.xpose.msra.mxu0 0
      %1654 = vmatpush.bf16.xpose.msra.mxu0 0
      %1655 = vmatpush.bf16.xpose.msra.mxu0 %v1646
      %1656 = vmatmul.bf16.gmra.mxu0 %v1643
      %v1657 = vpop.f32.mrf.mxu0
      %v1658 = vadd.f32 0.0, %v1657
      %v1659 = vpop.f32.mrf.mxu0
      %1660 = vdwg.mxu0
      %v1662 = vsel %vm831, %v1373, 0
      %v1665 = vsel %vm831, %v1497, 0
      %1667 = vmatpush.bf16.xpose.msra.mxu0 0
      %1668 = vmatpush.bf16.xpose.msra.mxu0 0
      %1669 = vmatpush.bf16.xpose.msra.mxu0 0
      %1670 = vmatpush.bf16.xpose.msra.mxu0 0
      %1671 = vmatpush.bf16.xpose.msra.mxu0 0
      %1672 = vmatpush.bf16.xpose.msra.mxu0 0
      %1673 = vmatpush.bf16.xpose.msra.mxu0 0
      %1674 = vmatpush.bf16.xpose.msra.mxu0 %v1665
      %1675 = vmatmul.bf16.gmra.mxu0 %v1662
      %v1676 = vpop.f32.mrf.mxu0
      %v1677 = vadd.f32 0.0, %v1676
      %v1678 = vpop.f32.mrf.mxu0
      %1679 = vdwg.mxu0
      %v1681 = vsel %vm831, %v1374, 0
      %v1684 = vsel %vm831, %v1498, 0
      %1686 = vmatpush.bf16.xpose.msra.mxu0 0
      %1687 = vmatpush.bf16.xpose.msra.mxu0 0
      %1688 = vmatpush.bf16.xpose.msra.mxu0 0
      %1689 = vmatpush.bf16.xpose.msra.mxu0 0
      %1690 = vmatpush.bf16.xpose.msra.mxu0 0
      %1691 = vmatpush.bf16.xpose.msra.mxu0 0
      %1692 = vmatpush.bf16.xpose.msra.mxu0 0
      %1693 = vmatpush.bf16.xpose.msra.mxu0 %v1684
      %1694 = vmatmul.bf16.gmra.mxu0 %v1681
      %v1695 = vpop.f32.mrf.mxu0
      %v1696 = vadd.f32 0.0, %v1695
      %v1697 = vpop.f32.mrf.mxu0
      %1698 = vdwg.mxu0
      %v1699 = vsel %vm908, %v1639, -inf
      %1700 = vmax.xlane.f32.xlu0 %v1699
      %v1701 = vpop.xlane.xlu0 %1700
      %v1702 = vsel %vm908, %v1658, -inf
      %1703 = vmax.xlane.f32.xlu0 %v1702
      %v1704 = vpop.xlane.xlu0 %1703
      %v1705 = vsel %vm908, %v1677, -inf
      %1706 = vmax.xlane.f32.xlu0 %v1705
      %v1707 = vpop.xlane.xlu0 %1706
      %v1708 = vsel %vm908, %v1696, -inf
      %1709 = vmax.xlane.f32.xlu0 %v1708
      %v1710 = vpop.xlane.xlu0 %1709
      %v1711 = vsub.f32 %v1639, %v1701
      %v1712 = vsub.f32 %v1658, %v1704
      %v1713 = vsub.f32 %v1677, %v1707
      %v1714 = vsub.f32 %v1696, %v1710
      %v1715 = vmul.f32 %v1711, 1.442695
      %v1716 = vpow.pop %v1715
      %v1717 = vmul.f32 %v1712, 1.442695
      %v1718 = vpow.pop %v1717
      %v1719 = vmul.f32 %v1713, 1.442695
      %v1720 = vpow.pop %v1719
      %v1721 = vmul.f32 %v1714, 1.442695
      %v1722 = vpow.pop %v1721
      %v1723 = vsel %vm908, %v1716, 0.0
      %1724 = vadd.xlane.f32.xlu0 %v1723
      %v1725 = vpop.xlane.xlu0 %1724
      %v1726 = vsel %vm908, %v1718, 0.0
      %1727 = vadd.xlane.f32.xlu0 %v1726
      %v1728 = vpop.xlane.xlu0 %1727
      %v1729 = vsel %vm908, %v1720, 0.0
      %1730 = vadd.xlane.f32.xlu0 %v1729
      %v1731 = vpop.xlane.xlu0 %1730
      %v1732 = vsel %vm908, %v1722, 0.0
      %1733 = vadd.xlane.f32.xlu0 %v1732
      %v1734 = vpop.xlane.xlu0 %1733
      %v1735 = vrcp.pop %v1725
      %v1736 = vrcp.pop %v1728
      %v1737 = vrcp.pop %v1731
      %v1738 = vrcp.pop %v1734
      %v1739 = vmul.f32 %v1716, %v1735
      %v1740 = vmul.f32 %v1718, %v1736
      %v1741 = vmul.f32 %v1720, %v1737
      %v1742 = vmul.f32 %v1722, %v1738
      %v1743 = vpack.c.bf16 %v1739, %v1739
      %v1744 = vpack.c.bf16 %v1740, %v1740
      %v1745 = vpack.c.bf16 %v1741, %v1741
      %v1746 = vpack.c.bf16 %v1742, %v1742
      %v1748 = vsel %vm908, %v1743, 0
      %v1751 = vsel %vm960, %v1619, 0
      %1753 = vmatpush.bf16.msra.mxu0 0
      %1754 = vmatpush.bf16.msra.mxu0 0
      %1755 = vmatpush.bf16.msra.mxu0 0
      %1756 = vmatpush.bf16.msra.mxu0 0
      %1757 = vmatpush.bf16.msra.mxu0 0
      %1758 = vmatpush.bf16.msra.mxu0 0
      %1759 = vmatpush.bf16.msra.mxu0 0
      %1760 = vmatpush.bf16.msra.mxu0 %v1751
      %1761 = vmatmul.bf16.gmra.mxu0 %v1748
      %v1762 = vpop.f32.mrf.mxu0
      %v1763 = vadd.f32 0.0, %v1762
      %v1764 = vpop.f32.mrf.mxu0
      %1765 = vdwg.mxu0
      %v1767 = vsel %vm908, %v1744, 0
      %v1770 = vsel %vm960, %v1620, 0
      %1772 = vmatpush.bf16.msra.mxu0 0
      %1773 = vmatpush.bf16.msra.mxu0 0
      %1774 = vmatpush.bf16.msra.mxu0 0
      %1775 = vmatpush.bf16.msra.mxu0 0
      %1776 = vmatpush.bf16.msra.mxu0 0
      %1777 = vmatpush.bf16.msra.mxu0 0
      %1778 = vmatpush.bf16.msra.mxu0 0
      %1779 = vmatpush.bf16.msra.mxu0 %v1770
      %1780 = vmatmul.bf16.gmra.mxu0 %v1767
      %v1781 = vpop.f32.mrf.mxu0
      %v1782 = vadd.f32 0.0, %v1781
      %v1783 = vpop.f32.mrf.mxu0
      %1784 = vdwg.mxu0
      %v1786 = vsel %vm908, %v1745, 0
      %v1789 = vsel %vm960, %v1621, 0
      %1791 = vmatpush.bf16.msra.mxu0 0
      %1792 = vmatpush.bf16.msra.mxu0 0
      %1793 = vmatpush.bf16.msra.mxu0 0
      %1794 = vmatpush.bf16.msra.mxu0 0
      %1795 = vmatpush.bf16.msra.mxu0 0
      %1796 = vmatpush.bf16.msra.mxu0 0
      %1797 = vmatpush.bf16.msra.mxu0 0
      %1798 = vmatpush.bf16.msra.mxu0 %v1789
      %1799 = vmatmul.bf16.gmra.mxu0 %v1786
      %v1800 = vpop.f32.mrf.mxu0
      %v1801 = vadd.f32 0.0, %v1800
      %v1802 = vpop.f32.mrf.mxu0
      %1803 = vdwg.mxu0
      %v1805 = vsel %vm908, %v1746, 0
      %v1808 = vsel %vm960, %v1622, 0
      %1810 = vmatpush.bf16.msra.mxu0 0
      %1811 = vmatpush.bf16.msra.mxu0 0
      %1812 = vmatpush.bf16.msra.mxu0 0
      %1813 = vmatpush.bf16.msra.mxu0 0
      %1814 = vmatpush.bf16.msra.mxu0 0
      %1815 = vmatpush.bf16.msra.mxu0 0
      %1816 = vmatpush.bf16.msra.mxu0 0
      %1817 = vmatpush.bf16.msra.mxu0 %v1808
      %1818 = vmatmul.bf16.gmra.mxu0 %v1805
      %v1819 = vpop.f32.mrf.mxu0
      %v1820 = vadd.f32 0.0, %v1819
      %v1821 = vpop.f32.mrf.mxu0
      %1822 = vdwg.mxu0
      %v1823 = vrot.slane %v1801, 4
      %v1824 = vsel %vm114, %v1823, %v1763
      %v1825 = vrot.slane %v1763, 4
      %v1826 = vsel %vm114, %v1801, %v1825
      %v1828 = vunpack.c.l.s4 1983009808
      %v1829 = vunpack.c.0.s8 %v1828
      %v1830 = vperm.slane %v1824, %v1829
      %v1832 = vunpack.c.l.s4 1983009808
      %v1833 = vunpack.c.0.s8 %v1832
      %v1834 = vperm.slane %v1826, %v1833
      %v1835 = vrot.slane %v1820, 4
      %v1836 = vsel %vm114, %v1835, %v1782
      %v1837 = vrot.slane %v1782, 4
      %v1838 = vsel %vm114, %v1820, %v1837
      %v1840 = vunpack.c.l.s4 1983009808
      %v1841 = vunpack.c.0.s8 %v1840
      %v1842 = vperm.slane %v1836, %v1841
      %v1844 = vunpack.c.l.s4 1983009808
      %v1845 = vunpack.c.0.s8 %v1844
      %v1846 = vperm.slane %v1838, %v1845
      %v1847 = vrot.slane %v1842, 4
      %v1848 = vsel %vm114, %v1847, %v1830
      %v1849 = vrot.slane %v1830, 4
      %v1850 = vsel %vm114, %v1842, %v1849
      %v1852 = vunpack.c.l.s4 1934713408
      %v1853 = vunpack.c.0.s8 %v1852
      %v1854 = vperm.slane %v1848, %v1853
      %v1856 = vunpack.c.l.s4 1934713408
      %v1857 = vunpack.c.0.s8 %v1856
      %v1858 = vperm.slane %v1850, %v1857
      %v1859 = vrot.slane %v1846, 4
      %v1860 = vsel %vm114, %v1859, %v1834
      %v1861 = vrot.slane %v1834, 4
      %v1862 = vsel %vm114, %v1846, %v1861
      %v1864 = vunpack.c.l.s4 1934713408
      %v1865 = vunpack.c.0.s8 %v1864
      %v1866 = vperm.slane %v1860, %v1865
      %v1868 = vunpack.c.l.s4 1934713408
      %v1869 = vunpack.c.0.s8 %v1868
      %v1870 = vperm.slane %v1862, %v1869
      %v1871 = vrot.slane %v1854, 4
      %v1872 = vsel %vm114, 0.0, %v1871
      %v1873 = vrot.slane %v1858, 4
      %v1874 = vsel %vm114, 0.0, %v1873
      %v1875 = vrot.slane %v1866, 4
      %v1876 = vsel %vm114, 0.0, %v1875
      %v1877 = vrot.slane %v1870, 4
      %v1878 = vsel %vm114, 0.0, %v1877
      %v1879 = vsel %vm114, %v1873, %v1854
      %v1881 = vunpack.c.l.s4 1983009808
      %v1882 = vunpack.c.0.s8 %v1881
      %v1883 = vperm.slane %v1879, %v1882
      %v1884 = vrot.slane %v1874, 4
      %v1885 = vsel %vm114, %v1884, %v1872
      %v1887 = vunpack.c.l.s4 1983009808
      %v1888 = vunpack.c.0.s8 %v1887
      %v1889 = vperm.slane %v1885, %v1888
      %v1890 = vsel %vm114, %v1877, %v1866
      %v1892 = vunpack.c.l.s4 1983009808
      %v1893 = vunpack.c.0.s8 %v1892
      %v1894 = vperm.slane %v1890, %v1893
      %v1895 = vrot.slane %v1878, 4
      %v1896 = vsel %vm114, %v1895, %v1876
      %v1898 = vunpack.c.l.s4 1983009808
      %v1899 = vunpack.c.0.s8 %v1898
      %v1900 = vperm.slane %v1896, %v1899
      %v1901 = vrot.slane %v1889, 4
      %v1902 = vsel %vm114, %v1901, %v1883
      %v1903 = vrot.slane %v1883, 4
      %v1904 = vsel %vm114, %v1889, %v1903
      %v1906 = vunpack.c.l.s4 1934713408
      %v1907 = vunpack.c.0.s8 %v1906
      %v1908 = vperm.slane %v1902, %v1907
      %v1910 = vunpack.c.l.s4 1934713408
      %v1911 = vunpack.c.0.s8 %v1910
      %v1912 = vperm.slane %v1904, %v1911
      %v1913 = vrot.slane %v1900, 4
      %v1914 = vsel %vm114, %v1913, %v1894
      %v1915 = vrot.slane %v1894, 4
      %v1916 = vsel %vm114, %v1900, %v1915
      %v1918 = vunpack.c.l.s4 1934713408
      %v1919 = vunpack.c.0.s8 %v1918
      %v1920 = vperm.slane %v1914, %v1919
      %v1922 = vunpack.c.l.s4 1934713408
      %v1923 = vunpack.c.0.s8 %v1922
      %v1924 = vperm.slane %v1916, %v1923
      %v1925 = vrot.slane %v1920, 4
      %v1926 = vsel %vm114, %v1925, %v1908
      %v1927 = vrot.slane %v1908, 4
      %v1928 = vsel %vm114, %v1920, %v1927
      %v1929 = vrot.slane %v1924, 4
      %v1930 = vsel %vm114, %v1929, %v1912
      %v1931 = vrot.slane %v1912, 4
      %v1932 = vsel %vm114, %v1924, %v1931
      %1934 = vrot.lane.b32.xlu0 %v1928, 16
      %v1935 = vpop.permute.xlu0 %1934
      %1938 = vrot.lane.b32.xlu0 %v1930, 32
      %v1939 = vpop.permute.xlu0 %1938
      %1942 = vrot.lane.b32.xlu0 %v1932, 48
      %v1943 = vpop.permute.xlu0 %1942
      %v1945 = vsel %vm831, %v1926, %v1935
      %v1946 = vsel %vm1157, %v1945, %v1939
      %v1947 = vsel %vm1159, %v1946, %v1943
      %v1948 = vpack.c.bf16 %v1947, %v1947
      %v1949 = vld [vmem:[#allocation9] sm:$0xf]
      %v1950 = vld [vmem:[#allocation9 + $0x4] sm:$0xf]
      %v1951 = vld [vmem:[#allocation9 + $0x8] sm:$0xf]
      %v1952 = vld [vmem:[#allocation9 + $0xc] sm:$0xf]
      %v1953 = vld [vmem:[#allocation9 + $0x10] sm:$0xf]
      %v1954 = vld [vmem:[#allocation9 + $0x14] sm:$0xf]
      %v1955 = vld [vmem:[#allocation9 + $0x18] sm:$0xf]
      %v1956 = vld [vmem:[#allocation9 + $0x1c] sm:$0xf]
      %v1957 = vld [vmem:[%s10] sm:$0x1]
      %v1959 = vperm.slane %v1957, 0
      %v1969 = vunpack.c.l.b16 %v1949
      %v1970 = vunpack.c.l.b16 %v1950
      %v1971 = vunpack.c.l.b16 %v1951
      %v1972 = vunpack.c.l.b16 %v1952
      %v1973 = vunpack.c.l.b16 %v1953
      %v1974 = vunpack.c.l.b16 %v1954
      %v1975 = vunpack.c.l.b16 %v1955
      %v1976 = vunpack.c.l.b16 %v1956
      %v1977 = vpack.c.b16 %v1970, %v1969
      %v1978 = vpack.c.b16 %v1972, %v1971
      %v1979 = vpack.c.b16 %v1974, %v1973
      %v1980 = vpack.c.b16 %v1976, %v1975
      %v1986 = vsel %vm172, %v1948, 0
      %1988 = vmatpush.bf16.msra.mxu0 0
      %1989 = vmatpush.bf16.msra.mxu0 0
      %1990 = vmatpush.bf16.msra.mxu0 0
      %1991 = vmatpush.bf16.msra.mxu0 0
      %1992 = vmatpush.bf16.msra.mxu0 %v1980
      %1993 = vmatpush.bf16.msra.mxu0 %v1979
      %1994 = vmatpush.bf16.msra.mxu0 %v1978
      %1995 = vmatpush.bf16.msra.mxu0 %v1977
      %1996 = vmatmul.bf16.gmra.mxu0 %v1986
      %v1997 = vpop.f32.mrf.mxu0
      %v1998 = vadd.f32 %v1959, %v1997
      %v1999 = vpop.f32.mrf.mxu0
      %2000 = vdwg.mxu0
      %v2001 = vadd.f32 %v165, %v1998
      %2002 = vst.msk [vmem:[#allocation2 + $0x8] sm:$0xff] %vm172, %v2001
      %v2003 = vld [vmem:[%s11] sm:$0x1]
      %v2004 = vld [vmem:[%s12] sm:$0x1]
      %v2005 = vsel %vm172, %v2001, 0.0
      %2006 = vadd.xlane.f32.xlu0 %v2005
      %v2007 = vpop.xlane.xlu0 %2006
      %v2008 = vmul.f32 %v2007, %v191
      %v2009 = vsub.f32 %v2001, %v2008
      %v2010 = vmul.f32 %v2009, %v2009
      %v2011 = vsel %vm172, %v2010, 0.0
      %2012 = vadd.xlane.f32.xlu0 %v2011
      %v2013 = vpop.xlane.xlu0 %2012
      %v2014 = vmul.f32 %v2013, %v191
      %v2015 = vadd.f32 %v2014, 1e-05
      %v2016 = vrsqrt.pop %v2015
      %v2017 = vmul.f32 %v2016, %v2015
      %v2018 = vmul.f32 %v2017, %v2016
      %v2019 = vmul.f32 0.5, %v2018
      %v2020 = vsub.f32 1.5, %v2019
      %v2021 = vmul.f32 %v2016, %v2020
      %vm2022 = vweird.f32 %v2015
      %vm2023 = vweird.f32 %v2016
      %vm2024 = vmor %vm2022, %vm2023
      %v2025 = vsel %vm2024, %v2016, %v2021
      %v2026 = vmul.f32 %v2009, %v2025
      %v2028 = vperm.slane %v2003, 0
      %v2030 = vmul.f32 %v2026, %v2028
      %v2032 = vperm.slane %v2004, 0
      %v2034 = vadd.f32 %v2030, %v2032
      %v2035 = vpack.c.bf16 %v2034, %v2034
      %2036 = vst.msk [vmem:[#allocation3 + $0x4] sm:$0xf] %vm1249, %v2035
      %2038 = vrot.lane.b32.xlu0 %v347, 112
      %v2039 = vpop.permute.xlu0 %2038
      %2041 = vrot.lane.b32.xlu0 %v347, 96
      %v2042 = vpop.permute.xlu0 %2041
      %2044 = vrot.lane.b32.xlu0 %v347, 80
      %v2045 = vpop.permute.xlu0 %2044
      %v2047 = vrot.slane %v2042, 4
      %v2048 = vsel %vm114, %v2047, %v347
      %v2049 = vrot.slane %v347, 4
      %v2050 = vsel %vm114, %v2042, %v2049
      %v2052 = vunpack.c.l.s4 1983009808
      %v2053 = vunpack.c.0.s8 %v2052
      %v2054 = vperm.slane %v2048, %v2053
      %v2056 = vunpack.c.l.s4 1983009808
      %v2057 = vunpack.c.0.s8 %v2056
      %v2058 = vperm.slane %v2050, %v2057
      %v2059 = vrot.slane %v2045, 4
      %v2060 = vsel %vm114, %v2059, %v2039
      %v2061 = vrot.slane %v2039, 4
      %v2062 = vsel %vm114, %v2045, %v2061
      %v2064 = vunpack.c.l.s4 1983009808
      %v2065 = vunpack.c.0.s8 %v2064
      %v2066 = vperm.slane %v2060, %v2065
      %v2068 = vunpack.c.l.s4 1983009808
      %v2069 = vunpack.c.0.s8 %v2068
      %v2070 = vperm.slane %v2062, %v2069
      %v2071 = vrot.slane %v2066, 4
      %v2072 = vsel %vm114, %v2071, %v2054
      %v2073 = vrot.slane %v2054, 4
      %v2074 = vsel %vm114, %v2066, %v2073
      %v2076 = vunpack.c.l.s4 1934713408
      %v2077 = vunpack.c.0.s8 %v2076
      %v2078 = vperm.slane %v2072, %v2077
      %v2080 = vunpack.c.l.s4 1934713408
      %v2081 = vunpack.c.0.s8 %v2080
      %v2082 = vperm.slane %v2074, %v2081
      %v2083 = vrot.slane %v2070, 4
      %v2084 = vsel %vm114, %v2083, %v2058
      %v2085 = vrot.slane %v2058, 4
      %v2086 = vsel %vm114, %v2070, %v2085
      %v2088 = vunpack.c.l.s4 1934713408
      %v2089 = vunpack.c.0.s8 %v2088
      %v2090 = vperm.slane %v2084, %v2089
      %v2092 = vunpack.c.l.s4 1934713408
      %v2093 = vunpack.c.0.s8 %v2092
      %v2094 = vperm.slane %v2086, %v2093
      %v2095 = vrot.slane %v2078, 4
      %v2096 = vsel %vm114, 0.0, %v2095
      %v2097 = vrot.slane %v2082, 4
      %v2098 = vsel %vm114, 0.0, %v2097
      %v2099 = vrot.slane %v2090, 4
      %v2100 = vsel %vm114, 0.0, %v2099
      %v2101 = vrot.slane %v2094, 4
      %v2102 = vsel %vm114, 0.0, %v2101
      %v2103 = vsel %vm114, %v2097, %v2078
      %v2105 = vunpack.c.l.s4 1983009808
      %v2106 = vunpack.c.0.s8 %v2105
      %v2107 = vperm.slane %v2103, %v2106
      %v2108 = vrot.slane %v2098, 4
      %v2109 = vsel %vm114, %v2108, %v2096
      %v2111 = vunpack.c.l.s4 1983009808
      %v2112 = vunpack.c.0.s8 %v2111
      %v2113 = vperm.slane %v2109, %v2112
      %v2114 = vsel %vm114, %v2101, %v2090
      %v2116 = vunpack.c.l.s4 1983009808
      %v2117 = vunpack.c.0.s8 %v2116
      %v2118 = vperm.slane %v2114, %v2117
      %v2119 = vrot.slane %v2102, 4
      %v2120 = vsel %vm114, %v2119, %v2100
      %v2122 = vunpack.c.l.s4 1983009808
      %v2123 = vunpack.c.0.s8 %v2122
      %v2124 = vperm.slane %v2120, %v2123
      %v2125 = vrot.slane %v2113, 4
      %v2126 = vsel %vm114, %v2125, %v2107
      %v2127 = vrot.slane %v2107, 4
      %v2128 = vsel %vm114, %v2113, %v2127
      %v2130 = vunpack.c.l.s4 1934713408
      %v2131 = vunpack.c.0.s8 %v2130
      %v2132 = vperm.slane %v2126, %v2131
      %v2134 = vunpack.c.l.s4 1934713408
      %v2135 = vunpack.c.0.s8 %v2134
      %v2136 = vperm.slane %v2128, %v2135
      %v2137 = vrot.slane %v2124, 4
      %v2138 = vsel %vm114, %v2137, %v2118
      %v2139 = vrot.slane %v2118, 4
      %v2140 = vsel %vm114, %v2124, %v2139
      %v2142 = vunpack.c.l.s4 1934713408
      %v2143 = vunpack.c.0.s8 %v2142
      %v2144 = vperm.slane %v2138, %v2143
      %v2146 = vunpack.c.l.s4 1934713408
      %v2147 = vunpack.c.0.s8 %v2146
      %v2148 = vperm.slane %v2140, %v2147
      %v2149 = vrot.slane %v2144, 4
      %v2150 = vsel %vm114, %v2149, %v2132
      %v2151 = vrot.slane %v2132, 4
      %v2152 = vsel %vm114, %v2144, %v2151
      %v2153 = vrot.slane %v2148, 4
      %v2154 = vsel %vm114, %v2153, %v2136
      %v2155 = vrot.slane %v2136, 4
      %v2156 = vsel %vm114, %v2148, %v2155
      %v2157 = vpack.c.bf16 %v2150, %v2150
      %v2158 = vpack.c.bf16 %v2152, %v2152
      %v2159 = vpack.c.bf16 %v2154, %v2154
      %v2160 = vpack.c.bf16 %v2156, %v2156
      %2162 = vrot.lane.b32.xlu0 %v400, 112
      %v2163 = vpop.permute.xlu0 %2162
      %2165 = vrot.lane.b32.xlu0 %v400, 96
      %v2166 = vpop.permute.xlu0 %2165
      %2168 = vrot.lane.b32.xlu0 %v400, 80
      %v2169 = vpop.permute.xlu0 %2168
      %v2171 = vrot.slane %v2166, 4
      %v2172 = vsel %vm114, %v2171, %v400
      %v2173 = vrot.slane %v400, 4
      %v2174 = vsel %vm114, %v2166, %v2173
      %v2176 = vunpack.c.l.s4 1983009808
      %v2177 = vunpack.c.0.s8 %v2176
      %v2178 = vperm.slane %v2172, %v2177
      %v2180 = vunpack.c.l.s4 1983009808
      %v2181 = vunpack.c.0.s8 %v2180
      %v2182 = vperm.slane %v2174, %v2181
      %v2183 = vrot.slane %v2169, 4
      %v2184 = vsel %vm114, %v2183, %v2163
      %v2185 = vrot.slane %v2163, 4
      %v2186 = vsel %vm114, %v2169, %v2185
      %v2188 = vunpack.c.l.s4 1983009808
      %v2189 = vunpack.c.0.s8 %v2188
      %v2190 = vperm.slane %v2184, %v2189
      %v2192 = vunpack.c.l.s4 1983009808
      %v2193 = vunpack.c.0.s8 %v2192
      %v2194 = vperm.slane %v2186, %v2193
      %v2195 = vrot.slane %v2190, 4
      %v2196 = vsel %vm114, %v2195, %v2178
      %v2197 = vrot.slane %v2178, 4
      %v2198 = vsel %vm114, %v2190, %v2197
      %v2200 = vunpack.c.l.s4 1934713408
      %v2201 = vunpack.c.0.s8 %v2200
      %v2202 = vperm.slane %v2196, %v2201
      %v2204 = vunpack.c.l.s4 1934713408
      %v2205 = vunpack.c.0.s8 %v2204
      %v2206 = vperm.slane %v2198, %v2205
      %v2207 = vrot.slane %v2194, 4
      %v2208 = vsel %vm114, %v2207, %v2182
      %v2209 = vrot.slane %v2182, 4
      %v2210 = vsel %vm114, %v2194, %v2209
      %v2212 = vunpack.c.l.s4 1934713408
      %v2213 = vunpack.c.0.s8 %v2212
      %v2214 = vperm.slane %v2208, %v2213
      %v2216 = vunpack.c.l.s4 1934713408
      %v2217 = vunpack.c.0.s8 %v2216
      %v2218 = vperm.slane %v2210, %v2217
      %v2219 = vrot.slane %v2202, 4
      %v2220 = vsel %vm114, 0.0, %v2219
      %v2221 = vrot.slane %v2206, 4
      %v2222 = vsel %vm114, 0.0, %v2221
      %v2223 = vrot.slane %v2214, 4
      %v2224 = vsel %vm114, 0.0, %v2223
      %v2225 = vrot.slane %v2218, 4
      %v2226 = vsel %vm114, 0.0, %v2225
      %v2227 = vsel %vm114, %v2221, %v2202
      %v2229 = vunpack.c.l.s4 1983009808
      %v2230 = vunpack.c.0.s8 %v2229
      %v2231 = vperm.slane %v2227, %v2230
      %v2232 = vrot.slane %v2222, 4
      %v2233 = vsel %vm114, %v2232, %v2220
      %v2235 = vunpack.c.l.s4 1983009808
      %v2236 = vunpack.c.0.s8 %v2235
      %v2237 = vperm.slane %v2233, %v2236
      %v2238 = vsel %vm114, %v2225, %v2214
      %v2240 = vunpack.c.l.s4 1983009808
      %v2241 = vunpack.c.0.s8 %v2240
      %v2242 = vperm.slane %v2238, %v2241
      %v2243 = vrot.slane %v2226, 4
      %v2244 = vsel %vm114, %v2243, %v2224
      %v2246 = vunpack.c.l.s4 1983009808
      %v2247 = vunpack.c.0.s8 %v2246
      %v2248 = vperm.slane %v2244, %v2247
      %v2249 = vrot.slane %v2237, 4
      %v2250 = vsel %vm114, %v2249, %v2231
      %v2251 = vrot.slane %v2231, 4
      %v2252 = vsel %vm114, %v2237, %v2251
      %v2254 = vunpack.c.l.s4 1934713408
      %v2255 = vunpack.c.0.s8 %v2254
      %v2256 = vperm.slane %v2250, %v2255
      %v2258 = vunpack.c.l.s4 1934713408
      %v2259 = vunpack.c.0.s8 %v2258
      %v2260 = vperm.slane %v2252, %v2259
      %v2261 = vrot.slane %v2248, 4
      %v2262 = vsel %vm114, %v2261, %v2242
      %v2263 = vrot.slane %v2242, 4
      %v2264 = vsel %vm114, %v2248, %v2263
      %v2266 = vunpack.c.l.s4 1934713408
      %v2267 = vunpack.c.0.s8 %v2266
      %v2268 = vperm.slane %v2262, %v2267
      %v2270 = vunpack.c.l.s4 1934713408
      %v2271 = vunpack.c.0.s8 %v2270
      %v2272 = vperm.slane %v2264, %v2271
      %v2273 = vrot.slane %v2268, 4
      %v2274 = vsel %vm114, %v2273, %v2256
      %v2275 = vrot.slane %v2256, 4
      %v2276 = vsel %vm114, %v2268, %v2275
      %v2277 = vrot.slane %v2272, 4
      %v2278 = vsel %vm114, %v2277, %v2260
      %v2279 = vrot.slane %v2260, 4
      %v2280 = vsel %vm114, %v2272, %v2279
      %v2281 = vpack.c.bf16 %v2274, %v2274
      %v2282 = vpack.c.bf16 %v2276, %v2276
      %v2283 = vpack.c.bf16 %v2278, %v2278
      %v2284 = vpack.c.bf16 %v2280, %v2280
      %2286 = vrot.lane.b32.xlu0 %v455, 112
      %v2287 = vpop.permute.xlu0 %2286
      %2289 = vrot.lane.b32.xlu0 %v455, 96
      %v2290 = vpop.permute.xlu0 %2289
      %2292 = vrot.lane.b32.xlu0 %v455, 80
      %v2293 = vpop.permute.xlu0 %2292
      %v2295 = vrot.slane %v2290, 4
      %v2296 = vsel %vm114, %v2295, %v455
      %v2297 = vrot.slane %v455, 4
      %v2298 = vsel %vm114, %v2290, %v2297
      %v2300 = vunpack.c.l.s4 1983009808
      %v2301 = vunpack.c.0.s8 %v2300
      %v2302 = vperm.slane %v2296, %v2301
      %v2304 = vunpack.c.l.s4 1983009808
      %v2305 = vunpack.c.0.s8 %v2304
      %v2306 = vperm.slane %v2298, %v2305
      %v2307 = vrot.slane %v2293, 4
      %v2308 = vsel %vm114, %v2307, %v2287
      %v2309 = vrot.slane %v2287, 4
      %v2310 = vsel %vm114, %v2293, %v2309
      %v2312 = vunpack.c.l.s4 1983009808
      %v2313 = vunpack.c.0.s8 %v2312
      %v2314 = vperm.slane %v2308, %v2313
      %v2316 = vunpack.c.l.s4 1983009808
      %v2317 = vunpack.c.0.s8 %v2316
      %v2318 = vperm.slane %v2310, %v2317
      %v2319 = vrot.slane %v2314, 4
      %v2320 = vsel %vm114, %v2319, %v2302
      %v2321 = vrot.slane %v2302, 4
      %v2322 = vsel %vm114, %v2314, %v2321
      %v2324 = vunpack.c.l.s4 1934713408
      %v2325 = vunpack.c.0.s8 %v2324
      %v2326 = vperm.slane %v2320, %v2325
      %v2328 = vunpack.c.l.s4 1934713408
      %v2329 = vunpack.c.0.s8 %v2328
      %v2330 = vperm.slane %v2322, %v2329
      %v2331 = vrot.slane %v2318, 4
      %v2332 = vsel %vm114, %v2331, %v2306
      %v2333 = vrot.slane %v2306, 4
      %v2334 = vsel %vm114, %v2318, %v2333
      %v2336 = vunpack.c.l.s4 1934713408
      %v2337 = vunpack.c.0.s8 %v2336
      %v2338 = vperm.slane %v2332, %v2337
      %v2340 = vunpack.c.l.s4 1934713408
      %v2341 = vunpack.c.0.s8 %v2340
      %v2342 = vperm.slane %v2334, %v2341
      %v2343 = vrot.slane %v2326, 4
      %v2344 = vsel %vm114, 0.0, %v2343
      %v2345 = vrot.slane %v2330, 4
      %v2346 = vsel %vm114, 0.0, %v2345
      %v2347 = vrot.slane %v2338, 4
      %v2348 = vsel %vm114, 0.0, %v2347
      %v2349 = vrot.slane %v2342, 4
      %v2350 = vsel %vm114, 0.0, %v2349
      %v2351 = vsel %vm114, %v2345, %v2326
      %v2353 = vunpack.c.l.s4 1983009808
      %v2354 = vunpack.c.0.s8 %v2353
      %v2355 = vperm.slane %v2351, %v2354
      %v2356 = vrot.slane %v2346, 4
      %v2357 = vsel %vm114, %v2356, %v2344
      %v2359 = vunpack.c.l.s4 1983009808
      %v2360 = vunpack.c.0.s8 %v2359
      %v2361 = vperm.slane %v2357, %v2360
      %v2362 = vsel %vm114, %v2349, %v2338
      %v2364 = vunpack.c.l.s4 1983009808
      %v2365 = vunpack.c.0.s8 %v2364
      %v2366 = vperm.slane %v2362, %v2365
      %v2367 = vrot.slane %v2350, 4
      %v2368 = vsel %vm114, %v2367, %v2348
      %v2370 = vunpack.c.l.s4 1983009808
      %v2371 = vunpack.c.0.s8 %v2370
      %v2372 = vperm.slane %v2368, %v2371
      %v2373 = vrot.slane %v2361, 4
      %v2374 = vsel %vm114, %v2373, %v2355
      %v2375 = vrot.slane %v2355, 4
      %v2376 = vsel %vm114, %v2361, %v2375
      %v2378 = vunpack.c.l.s4 1934713408
      %v2379 = vunpack.c.0.s8 %v2378
      %v2380 = vperm.slane %v2374, %v2379
      %v2382 = vunpack.c.l.s4 1934713408
      %v2383 = vunpack.c.0.s8 %v2382
      %v2384 = vperm.slane %v2376, %v2383
      %v2385 = vrot.slane %v2372, 4
      %v2386 = vsel %vm114, %v2385, %v2366
      %v2387 = vrot.slane %v2366, 4
      %v2388 = vsel %vm114, %v2372, %v2387
      %v2390 = vunpack.c.l.s4 1934713408
      %v2391 = vunpack.c.0.s8 %v2390
      %v2392 = vperm.slane %v2386, %v2391
      %v2394 = vunpack.c.l.s4 1934713408
      %v2395 = vunpack.c.0.s8 %v2394
      %v2396 = vperm.slane %v2388, %v2395
      %v2397 = vrot.slane %v2392, 4
      %v2398 = vsel %vm114, %v2397, %v2380
      %v2399 = vrot.slane %v2380, 4
      %v2400 = vsel %vm114, %v2392, %v2399
      %v2401 = vrot.slane %v2396, 4
      %v2402 = vsel %vm114, %v2401, %v2384
      %v2403 = vrot.slane %v2384, 4
      %v2404 = vsel %vm114, %v2396, %v2403
      %v2405 = vpack.c.bf16 %v2398, %v2398
      %v2406 = vpack.c.bf16 %v2400, %v2400
      %v2407 = vpack.c.bf16 %v2402, %v2402
      %v2408 = vpack.c.bf16 %v2404, %v2404
      %v2410 = vsel %vm831, %v2157, 0
      %v2413 = vsel %vm831, %v2281, 0
      %2415 = vmatpush.bf16.xpose.msra.mxu0 0
      %2416 = vmatpush.bf16.xpose.msra.mxu0 0
      %2417 = vmatpush.bf16.xpose.msra.mxu0 0
      %2418 = vmatpush.bf16.xpose.msra.mxu0 0
      %2419 = vmatpush.bf16.xpose.msra.mxu0 0
      %2420 = vmatpush.bf16.xpose.msra.mxu0 0
      %2421 = vmatpush.bf16.xpose.msra.mxu0 0
      %2422 = vmatpush.bf16.xpose.msra.mxu0 %v2413
      %2423 = vmatmul.bf16.gmra.mxu0 %v2410
      %v2424 = vpop.f32.mrf.mxu0
      %v2425 = vadd.f32 0.0, %v2424
      %v2426 = vpop.f32.mrf.mxu0
      %2427 = vdwg.mxu0
      %v2429 = vsel %vm831, %v2158, 0
      %v2432 = vsel %vm831, %v2282, 0
      %2434 = vmatpush.bf16.xpose.msra.mxu0 0
      %2435 = vmatpush.bf16.xpose.msra.mxu0 0
      %2436 = vmatpush.bf16.xpose.msra.mxu0 0
      %2437 = vmatpush.bf16.xpose.msra.mxu0 0
      %2438 = vmatpush.bf16.xpose.msra.mxu0 0
      %2439 = vmatpush.bf16.xpose.msra.mxu0 0
      %2440 = vmatpush.bf16.xpose.msra.mxu0 0
      %2441 = vmatpush.bf16.xpose.msra.mxu0 %v2432
      %2442 = vmatmul.bf16.gmra.mxu0 %v2429
      %v2443 = vpop.f32.mrf.mxu0
      %v2444 = vadd.f32 0.0, %v2443
      %v2445 = vpop.f32.mrf.mxu0
      %2446 = vdwg.mxu0
      %v2448 = vsel %vm831, %v2159, 0
      %v2451 = vsel %vm831, %v2283, 0
      %2453 = vmatpush.bf16.xpose.msra.mxu0 0
      %2454 = vmatpush.bf16.xpose.msra.mxu0 0
      %2455 = vmatpush.bf16.xpose.msra.mxu0 0
      %2456 = vmatpush.bf16.xpose.msra.mxu0 0
      %2457 = vmatpush.bf16.xpose.msra.mxu0 0
      %2458 = vmatpush.bf16.xpose.msra.mxu0 0
      %2459 = vmatpush.bf16.xpose.msra.mxu0 0
      %2460 = vmatpush.bf16.xpose.msra.mxu0 %v2451
      %2461 = vmatmul.bf16.gmra.mxu0 %v2448
      %v2462 = vpop.f32.mrf.mxu0
      %v2463 = vadd.f32 0.0, %v2462
      %v2464 = vpop.f32.mrf.mxu0
      %2465 = vdwg.mxu0
      %v2467 = vsel %vm831, %v2160, 0
      %v2470 = vsel %vm831, %v2284, 0
      %2472 = vmatpush.bf16.xpose.msra.mxu0 0
      %2473 = vmatpush.bf16.xpose.msra.mxu0 0
      %2474 = vmatpush.bf16.xpose.msra.mxu0 0
      %2475 = vmatpush.bf16.xpose.msra.mxu0 0
      %2476 = vmatpush.bf16.xpose.msra.mxu0 0
      %2477 = vmatpush.bf16.xpose.msra.mxu0 0
      %2478 = vmatpush.bf16.xpose.msra.mxu0 0
      %2479 = vmatpush.bf16.xpose.msra.mxu0 %v2470
      %2480 = vmatmul.bf16.gmra.mxu0 %v2467
      %v2481 = vpop.f32.mrf.mxu0
      %v2482 = vadd.f32 0.0, %v2481
      %v2483 = vpop.f32.mrf.mxu0
      %2484 = vdwg.mxu0
      %v2485 = vsel %vm908, %v2425, -inf
      %2486 = vmax.xlane.f32.xlu0 %v2485
      %v2487 = vpop.xlane.xlu0 %2486
      %v2488 = vsel %vm908, %v2444, -inf
      %2489 = vmax.xlane.f32.xlu0 %v2488
      %v2490 = vpop.xlane.xlu0 %2489
      %v2491 = vsel %vm908, %v2463, -inf
      %2492 = vmax.xlane.f32.xlu0 %v2491
      %v2493 = vpop.xlane.xlu0 %2492
      %v2494 = vsel %vm908, %v2482, -inf
      %2495 = vmax.xlane.f32.xlu0 %v2494
      %v2496 = vpop.xlane.xlu0 %2495
      %v2497 = vsub.f32 %v2425, %v2487
      %v2498 = vsub.f32 %v2444, %v2490
      %v2499 = vsub.f32 %v2463, %v2493
      %v2500 = vsub.f32 %v2482, %v2496
      %v2501 = vmul.f32 %v2497, 1.442695
      %v2502 = vpow.pop %v2501
      %v2503 = vmul.f32 %v2498, 1.442695
      %v2504 = vpow.pop %v2503
      %v2505 = vmul.f32 %v2499, 1.442695
      %v2506 = vpow.pop %v2505
      %v2507 = vmul.f32 %v2500, 1.442695
      %v2508 = vpow.pop %v2507
      %v2509 = vsel %vm908, %v2502, 0.0
      %2510 = vadd.xlane.f32.xlu0 %v2509
      %v2511 = vpop.xlane.xlu0 %2510
      %v2512 = vsel %vm908, %v2504, 0.0
      %2513 = vadd.xlane.f32.xlu0 %v2512
      %v2514 = vpop.xlane.xlu0 %2513
      %v2515 = vsel %vm908, %v2506, 0.0
      %2516 = vadd.xlane.f32.xlu0 %v2515
      %v2517 = vpop.xlane.xlu0 %2516
      %v2518 = vsel %vm908, %v2508, 0.0
      %2519 = vadd.xlane.f32.xlu0 %v2518
      %v2520 = vpop.xlane.xlu0 %2519
      %v2521 = vrcp.pop %v2511
      %v2522 = vrcp.pop %v2514
      %v2523 = vrcp.pop %v2517
      %v2524 = vrcp.pop %v2520
      %v2525 = vmul.f32 %v2502, %v2521
      %v2526 = vmul.f32 %v2504, %v2522
      %v2527 = vmul.f32 %v2506, %v2523
      %v2528 = vmul.f32 %v2508, %v2524
      %v2529 = vpack.c.bf16 %v2525, %v2525
      %v2530 = vpack.c.bf16 %v2526, %v2526
      %v2531 = vpack.c.bf16 %v2527, %v2527
      %v2532 = vpack.c.bf16 %v2528, %v2528
      %v2534 = vsel %vm908, %v2529, 0
      %v2537 = vsel %vm960, %v2405, 0
      %2539 = vmatpush.bf16.msra.mxu0 0
      %2540 = vmatpush.bf16.msra.mxu0 0
      %2541 = vmatpush.bf16.msra.mxu0 0
      %2542 = vmatpush.bf16.msra.mxu0 0
      %2543 = vmatpush.bf16.msra.mxu0 0
      %2544 = vmatpush.bf16.msra.mxu0 0
      %2545 = vmatpush.bf16.msra.mxu0 0
      %2546 = vmatpush.bf16.msra.mxu0 %v2537
      %2547 = vmatmul.bf16.gmra.mxu0 %v2534
      %v2548 = vpop.f32.mrf.mxu0
      %v2549 = vadd.f32 0.0, %v2548
      %v2550 = vpop.f32.mrf.mxu0
      %2551 = vdwg.mxu0
      %v2553 = vsel %vm908, %v2530, 0
      %v2556 = vsel %vm960, %v2406, 0
      %2558 = vmatpush.bf16.msra.mxu0 0
      %2559 = vmatpush.bf16.msra.mxu0 0
      %2560 = vmatpush.bf16.msra.mxu0 0
      %2561 = vmatpush.bf16.msra.mxu0 0
      %2562 = vmatpush.bf16.msra.mxu0 0
      %2563 = vmatpush.bf16.msra.mxu0 0
      %2564 = vmatpush.bf16.msra.mxu0 0
      %2565 = vmatpush.bf16.msra.mxu0 %v2556
      %2566 = vmatmul.bf16.gmra.mxu0 %v2553
      %v2567 = vpop.f32.mrf.mxu0
      %v2568 = vadd.f32 0.0, %v2567
      %v2569 = vpop.f32.mrf.mxu0
      %2570 = vdwg.mxu0
      %v2572 = vsel %vm908, %v2531, 0
      %v2575 = vsel %vm960, %v2407, 0
      %2577 = vmatpush.bf16.msra.mxu0 0
      %2578 = vmatpush.bf16.msra.mxu0 0
      %2579 = vmatpush.bf16.msra.mxu0 0
      %2580 = vmatpush.bf16.msra.mxu0 0
      %2581 = vmatpush.bf16.msra.mxu0 0
      %2582 = vmatpush.bf16.msra.mxu0 0
      %2583 = vmatpush.bf16.msra.mxu0 0
      %2584 = vmatpush.bf16.msra.mxu0 %v2575
      %2585 = vmatmul.bf16.gmra.mxu0 %v2572
      %v2586 = vpop.f32.mrf.mxu0
      %v2587 = vadd.f32 0.0, %v2586
      %v2588 = vpop.f32.mrf.mxu0
      %2589 = vdwg.mxu0
      %v2591 = vsel %vm908, %v2532, 0
      %v2594 = vsel %vm960, %v2408, 0
      %2596 = vmatpush.bf16.msra.mxu0 0
      %2597 = vmatpush.bf16.msra.mxu0 0
      %2598 = vmatpush.bf16.msra.mxu0 0
      %2599 = vmatpush.bf16.msra.mxu0 0
      %2600 = vmatpush.bf16.msra.mxu0 0
      %2601 = vmatpush.bf16.msra.mxu0 0
      %2602 = vmatpush.bf16.msra.mxu0 0
      %2603 = vmatpush.bf16.msra.mxu0 %v2594
      %2604 = vmatmul.bf16.gmra.mxu0 %v2591
      %v2605 = vpop.f32.mrf.mxu0
      %v2606 = vadd.f32 0.0, %v2605
      %v2607 = vpop.f32.mrf.mxu0
      %2608 = vdwg.mxu0
      %v2609 = vrot.slane %v2587, 4
      %v2610 = vsel %vm114, %v2609, %v2549
      %v2611 = vrot.slane %v2549, 4
      %v2612 = vsel %vm114, %v2587, %v2611
      %v2614 = vunpack.c.l.s4 1983009808
      %v2615 = vunpack.c.0.s8 %v2614
      %v2616 = vperm.slane %v2610, %v2615
      %v2618 = vunpack.c.l.s4 1983009808
      %v2619 = vunpack.c.0.s8 %v2618
      %v2620 = vperm.slane %v2612, %v2619
      %v2621 = vrot.slane %v2606, 4
      %v2622 = vsel %vm114, %v2621, %v2568
      %v2623 = vrot.slane %v2568, 4
      %v2624 = vsel %vm114, %v2606, %v2623
      %v2626 = vunpack.c.l.s4 1983009808
      %v2627 = vunpack.c.0.s8 %v2626
      %v2628 = vperm.slane %v2622, %v2627
      %v2630 = vunpack.c.l.s4 1983009808
      %v2631 = vunpack.c.0.s8 %v2630
      %v2632 = vperm.slane %v2624, %v2631
      %v2633 = vrot.slane %v2628, 4
      %v2634 = vsel %vm114, %v2633, %v2616
      %v2635 = vrot.slane %v2616, 4
      %v2636 = vsel %vm114, %v2628, %v2635
      %v2638 = vunpack.c.l.s4 1934713408
      %v2639 = vunpack.c.0.s8 %v2638
      %v2640 = vperm.slane %v2634, %v2639
      %v2642 = vunpack.c.l.s4 1934713408
      %v2643 = vunpack.c.0.s8 %v2642
      %v2644 = vperm.slane %v2636, %v2643
      %v2645 = vrot.slane %v2632, 4
      %v2646 = vsel %vm114, %v2645, %v2620
      %v2647 = vrot.slane %v2620, 4
      %v2648 = vsel %vm114, %v2632, %v2647
      %v2650 = vunpack.c.l.s4 1934713408
      %v2651 = vunpack.c.0.s8 %v2650
      %v2652 = vperm.slane %v2646, %v2651
      %v2654 = vunpack.c.l.s4 1934713408
      %v2655 = vunpack.c.0.s8 %v2654
      %v2656 = vperm.slane %v2648, %v2655
      %v2657 = vrot.slane %v2640, 4
      %v2658 = vsel %vm114, 0.0, %v2657
      %v2659 = vrot.slane %v2644, 4
      %v2660 = vsel %vm114, 0.0, %v2659
      %v2661 = vrot.slane %v2652, 4
      %v2662 = vsel %vm114, 0.0, %v2661
      %v2663 = vrot.slane %v2656, 4
      %v2664 = vsel %vm114, 0.0, %v2663
      %v2665 = vsel %vm114, %v2659, %v2640
      %v2667 = vunpack.c.l.s4 1983009808
      %v2668 = vunpack.c.0.s8 %v2667
      %v2669 = vperm.slane %v2665, %v2668
      %v2670 = vrot.slane %v2660, 4
      %v2671 = vsel %vm114, %v2670, %v2658
      %v2673 = vunpack.c.l.s4 1983009808
      %v2674 = vunpack.c.0.s8 %v2673
      %v2675 = vperm.slane %v2671, %v2674
      %v2676 = vsel %vm114, %v2663, %v2652
      %v2678 = vunpack.c.l.s4 1983009808
      %v2679 = vunpack.c.0.s8 %v2678
      %v2680 = vperm.slane %v2676, %v2679
      %v2681 = vrot.slane %v2664, 4
      %v2682 = vsel %vm114, %v2681, %v2662
      %v2684 = vunpack.c.l.s4 1983009808
      %v2685 = vunpack.c.0.s8 %v2684
      %v2686 = vperm.slane %v2682, %v2685
      %v2687 = vrot.slane %v2675, 4
      %v2688 = vsel %vm114, %v2687, %v2669
      %v2689 = vrot.slane %v2669, 4
      %v2690 = vsel %vm114, %v2675, %v2689
      %v2692 = vunpack.c.l.s4 1934713408
      %v2693 = vunpack.c.0.s8 %v2692
      %v2694 = vperm.slane %v2688, %v2693
      %v2696 = vunpack.c.l.s4 1934713408
      %v2697 = vunpack.c.0.s8 %v2696
      %v2698 = vperm.slane %v2690, %v2697
      %v2699 = vrot.slane %v2686, 4
      %v2700 = vsel %vm114, %v2699, %v2680
      %v2701 = vrot.slane %v2680, 4
      %v2702 = vsel %vm114, %v2686, %v2701
      %v2704 = vunpack.c.l.s4 1934713408
      %v2705 = vunpack.c.0.s8 %v2704
      %v2706 = vperm.slane %v2700, %v2705
      %v2708 = vunpack.c.l.s4 1934713408
      %v2709 = vunpack.c.0.s8 %v2708
      %v2710 = vperm.slane %v2702, %v2709
      %v2711 = vrot.slane %v2706, 4
      %v2712 = vsel %vm114, %v2711, %v2694
      %v2713 = vrot.slane %v2694, 4
      %v2714 = vsel %vm114, %v2706, %v2713
      %v2715 = vrot.slane %v2710, 4
      %v2716 = vsel %vm114, %v2715, %v2698
      %v2717 = vrot.slane %v2698, 4
      %v2718 = vsel %vm114, %v2710, %v2717
      %2720 = vrot.lane.b32.xlu0 %v2714, 16
      %v2721 = vpop.permute.xlu0 %2720
      %2724 = vrot.lane.b32.xlu0 %v2716, 32
      %v2725 = vpop.permute.xlu0 %2724
      %2728 = vrot.lane.b32.xlu0 %v2718, 48
      %v2729 = vpop.permute.xlu0 %2728
      %v2731 = vsel %vm831, %v2712, %v2721
      %v2732 = vsel %vm1157, %v2731, %v2725
      %v2733 = vsel %vm1159, %v2732, %v2729
      %v2734 = vpack.c.bf16 %v2733, %v2733
      %v2735 = vld [vmem:[#allocation9] sm:$0xf]
      %v2736 = vld [vmem:[#allocation9 + $0x4] sm:$0xf]
      %v2737 = vld [vmem:[#allocation9 + $0x8] sm:$0xf]
      %v2738 = vld [vmem:[#allocation9 + $0xc] sm:$0xf]
      %v2739 = vld [vmem:[#allocation9 + $0x10] sm:$0xf]
      %v2740 = vld [vmem:[#allocation9 + $0x14] sm:$0xf]
      %v2741 = vld [vmem:[#allocation9 + $0x18] sm:$0xf]
      %v2742 = vld [vmem:[#allocation9 + $0x1c] sm:$0xf]
      %v2743 = vld [vmem:[%s10] sm:$0x1]
      %v2745 = vperm.slane %v2743, 0
      %v2755 = vunpack.c.l.b16 %v2735
      %v2756 = vunpack.c.l.b16 %v2736
      %v2757 = vunpack.c.l.b16 %v2737
      %v2758 = vunpack.c.l.b16 %v2738
      %v2759 = vunpack.c.l.b16 %v2739
      %v2760 = vunpack.c.l.b16 %v2740
      %v2761 = vunpack.c.l.b16 %v2741
      %v2762 = vunpack.c.l.b16 %v2742
      %v2763 = vpack.c.b16 %v2756, %v2755
      %v2764 = vpack.c.b16 %v2758, %v2757
      %v2765 = vpack.c.b16 %v2760, %v2759
      %v2766 = vpack.c.b16 %v2762, %v2761
      %v2772 = vsel %vm172, %v2734, 0
      %2774 = vmatpush.bf16.msra.mxu0 0
      %2775 = vmatpush.bf16.msra.mxu0 0
      %2776 = vmatpush.bf16.msra.mxu0 0
      %2777 = vmatpush.bf16.msra.mxu0 0
      %2778 = vmatpush.bf16.msra.mxu0 %v2766
      %2779 = vmatpush.bf16.msra.mxu0 %v2765
      %2780 = vmatpush.bf16.msra.mxu0 %v2764
      %2781 = vmatpush.bf16.msra.mxu0 %v2763
      %2782 = vmatmul.bf16.gmra.mxu0 %v2772
      %v2783 = vpop.f32.mrf.mxu0
      %v2784 = vadd.f32 %v2745, %v2783
      %v2785 = vpop.f32.mrf.mxu0
      %2786 = vdwg.mxu0
      %v2787 = vadd.f32 %v167, %v2784
      %2788 = vst.msk [vmem:[#allocation2 + $0x10] sm:$0xff] %vm172, %v2787
      %v2789 = vld [vmem:[%s11] sm:$0x1]
      %v2790 = vld [vmem:[%s12] sm:$0x1]
      %v2791 = vsel %vm172, %v2787, 0.0
      %2792 = vadd.xlane.f32.xlu0 %v2791
      %v2793 = vpop.xlane.xlu0 %2792
      %v2794 = vmul.f32 %v2793, %v191
      %v2795 = vsub.f32 %v2787, %v2794
      %v2796 = vmul.f32 %v2795, %v2795
      %v2797 = vsel %vm172, %v2796, 0.0
      %2798 = vadd.xlane.f32.xlu0 %v2797
      %v2799 = vpop.xlane.xlu0 %2798
      %v2800 = vmul.f32 %v2799, %v191
      %v2801 = vadd.f32 %v2800, 1e-05
      %v2802 = vrsqrt.pop %v2801
      %v2803 = vmul.f32 %v2802, %v2801
      %v2804 = vmul.f32 %v2803, %v2802
      %v2805 = vmul.f32 0.5, %v2804
      %v2806 = vsub.f32 1.5, %v2805
      %v2807 = vmul.f32 %v2802, %v2806
      %vm2808 = vweird.f32 %v2801
      %vm2809 = vweird.f32 %v2802
      %vm2810 = vmor %vm2808, %vm2809
      %v2811 = vsel %vm2810, %v2802, %v2807
      %v2812 = vmul.f32 %v2795, %v2811
      %v2814 = vperm.slane %v2789, 0
      %v2816 = vmul.f32 %v2812, %v2814
      %v2818 = vperm.slane %v2790, 0
      %v2820 = vadd.f32 %v2816, %v2818
      %v2821 = vpack.c.bf16 %v2820, %v2820
      %2822 = vst.msk [vmem:[#allocation3 + $0x8] sm:$0xf] %vm1249, %v2821
      %2824 = vrot.lane.b32.xlu0 %v348, 112
      %v2825 = vpop.permute.xlu0 %2824
      %2827 = vrot.lane.b32.xlu0 %v348, 96
      %v2828 = vpop.permute.xlu0 %2827
      %2830 = vrot.lane.b32.xlu0 %v348, 80
      %v2831 = vpop.permute.xlu0 %2830
      %v2833 = vrot.slane %v2828, 4
      %v2834 = vsel %vm114, %v2833, %v348
      %v2835 = vrot.slane %v348, 4
      %v2836 = vsel %vm114, %v2828, %v2835
      %v2838 = vunpack.c.l.s4 1983009808
      %v2839 = vunpack.c.0.s8 %v2838
      %v2840 = vperm.slane %v2834, %v2839
      %v2842 = vunpack.c.l.s4 1983009808
      %v2843 = vunpack.c.0.s8 %v2842
      %v2844 = vperm.slane %v2836, %v2843
      %v2845 = vrot.slane %v2831, 4
      %v2846 = vsel %vm114, %v2845, %v2825
      %v2847 = vrot.slane %v2825, 4
      %v2848 = vsel %vm114, %v2831, %v2847
      %v2850 = vunpack.c.l.s4 1983009808
      %v2851 = vunpack.c.0.s8 %v2850
      %v2852 = vperm.slane %v2846, %v2851
      %v2854 = vunpack.c.l.s4 1983009808
      %v2855 = vunpack.c.0.s8 %v2854
      %v2856 = vperm.slane %v2848, %v2855
      %v2857 = vrot.slane %v2852, 4
      %v2858 = vsel %vm114, %v2857, %v2840
      %v2859 = vrot.slane %v2840, 4
      %v2860 = vsel %vm114, %v2852, %v2859
      %v2862 = vunpack.c.l.s4 1934713408
      %v2863 = vunpack.c.0.s8 %v2862
      %v2864 = vperm.slane %v2858, %v2863
      %v2866 = vunpack.c.l.s4 1934713408
      %v2867 = vunpack.c.0.s8 %v2866
      %v2868 = vperm.slane %v2860, %v2867
      %v2869 = vrot.slane %v2856, 4
      %v2870 = vsel %vm114, %v2869, %v2844
      %v2871 = vrot.slane %v2844, 4
      %v2872 = vsel %vm114, %v2856, %v2871
      %v2874 = vunpack.c.l.s4 1934713408
      %v2875 = vunpack.c.0.s8 %v2874
      %v2876 = vperm.slane %v2870, %v2875
      %v2878 = vunpack.c.l.s4 1934713408
      %v2879 = vunpack.c.0.s8 %v2878
      %v2880 = vperm.slane %v2872, %v2879
      %v2881 = vrot.slane %v2864, 4
      %v2882 = vsel %vm114, 0.0, %v2881
      %v2883 = vrot.slane %v2868, 4
      %v2884 = vsel %vm114, 0.0, %v2883
      %v2885 = vrot.slane %v2876, 4
      %v2886 = vsel %vm114, 0.0, %v2885
      %v2887 = vrot.slane %v2880, 4
      %v2888 = vsel %vm114, 0.0, %v2887
      %v2889 = vsel %vm114, %v2883, %v2864
      %v2891 = vunpack.c.l.s4 1983009808
      %v2892 = vunpack.c.0.s8 %v2891
      %v2893 = vperm.slane %v2889, %v2892
      %v2894 = vrot.slane %v2884, 4
      %v2895 = vsel %vm114, %v2894, %v2882
      %v2897 = vunpack.c.l.s4 1983009808
      %v2898 = vunpack.c.0.s8 %v2897
      %v2899 = vperm.slane %v2895, %v2898
      %v2900 = vsel %vm114, %v2887, %v2876
      %v2902 = vunpack.c.l.s4 1983009808
      %v2903 = vunpack.c.0.s8 %v2902
      %v2904 = vperm.slane %v2900, %v2903
      %v2905 = vrot.slane %v2888, 4
      %v2906 = vsel %vm114, %v2905, %v2886
      %v2908 = vunpack.c.l.s4 1983009808
      %v2909 = vunpack.c.0.s8 %v2908
      %v2910 = vperm.slane %v2906, %v2909
      %v2911 = vrot.slane %v2899, 4
      %v2912 = vsel %vm114, %v2911, %v2893
      %v2913 = vrot.slane %v2893, 4
      %v2914 = vsel %vm114, %v2899, %v2913
      %v2916 = vunpack.c.l.s4 1934713408
      %v2917 = vunpack.c.0.s8 %v2916
      %v2918 = vperm.slane %v2912, %v2917
      %v2920 = vunpack.c.l.s4 1934713408
      %v2921 = vunpack.c.0.s8 %v2920
      %v2922 = vperm.slane %v2914, %v2921
      %v2923 = vrot.slane %v2910, 4
      %v2924 = vsel %vm114, %v2923, %v2904
      %v2925 = vrot.slane %v2904, 4
      %v2926 = vsel %vm114, %v2910, %v2925
      %v2928 = vunpack.c.l.s4 1934713408
      %v2929 = vunpack.c.0.s8 %v2928
      %v2930 = vperm.slane %v2924, %v2929
      %v2932 = vunpack.c.l.s4 1934713408
      %v2933 = vunpack.c.0.s8 %v2932
      %v2934 = vperm.slane %v2926, %v2933
      %v2935 = vrot.slane %v2930, 4
      %v2936 = vsel %vm114, %v2935, %v2918
      %v2937 = vrot.slane %v2918, 4
      %v2938 = vsel %vm114, %v2930, %v2937
      %v2939 = vrot.slane %v2934, 4
      %v2940 = vsel %vm114, %v2939, %v2922
      %v2941 = vrot.slane %v2922, 4
      %v2942 = vsel %vm114, %v2934, %v2941
      %v2943 = vpack.c.bf16 %v2936, %v2936
      %v2944 = vpack.c.bf16 %v2938, %v2938
      %v2945 = vpack.c.bf16 %v2940, %v2940
      %v2946 = vpack.c.bf16 %v2942, %v2942
      %2948 = vrot.lane.b32.xlu0 %v402, 112
      %v2949 = vpop.permute.xlu0 %2948
      %2951 = vrot.lane.b32.xlu0 %v402, 96
      %v2952 = vpop.permute.xlu0 %2951
      %2954 = vrot.lane.b32.xlu0 %v402, 80
      %v2955 = vpop.permute.xlu0 %2954
      %v2957 = vrot.slane %v2952, 4
      %v2958 = vsel %vm114, %v2957, %v402
      %v2959 = vrot.slane %v402, 4
      %v2960 = vsel %vm114, %v2952, %v2959
      %v2962 = vunpack.c.l.s4 1983009808
      %v2963 = vunpack.c.0.s8 %v2962
      %v2964 = vperm.slane %v2958, %v2963
      %v2966 = vunpack.c.l.s4 1983009808
      %v2967 = vunpack.c.0.s8 %v2966
      %v2968 = vperm.slane %v2960, %v2967
      %v2969 = vrot.slane %v2955, 4
      %v2970 = vsel %vm114, %v2969, %v2949
      %v2971 = vrot.slane %v2949, 4
      %v2972 = vsel %vm114, %v2955, %v2971
      %v2974 = vunpack.c.l.s4 1983009808
      %v2975 = vunpack.c.0.s8 %v2974
      %v2976 = vperm.slane %v2970, %v2975
      %v2978 = vunpack.c.l.s4 1983009808
      %v2979 = vunpack.c.0.s8 %v2978
      %v2980 = vperm.slane %v2972, %v2979
      %v2981 = vrot.slane %v2976, 4
      %v2982 = vsel %vm114, %v2981, %v2964
      %v2983 = vrot.slane %v2964, 4
      %v2984 = vsel %vm114, %v2976, %v2983
      %v2986 = vunpack.c.l.s4 1934713408
      %v2987 = vunpack.c.0.s8 %v2986
      %v2988 = vperm.slane %v2982, %v2987
      %v2990 = vunpack.c.l.s4 1934713408
      %v2991 = vunpack.c.0.s8 %v2990
      %v2992 = vperm.slane %v2984, %v2991
      %v2993 = vrot.slane %v2980, 4
      %v2994 = vsel %vm114, %v2993, %v2968
      %v2995 = vrot.slane %v2968, 4
      %v2996 = vsel %vm114, %v2980, %v2995
      %v2998 = vunpack.c.l.s4 1934713408
      %v2999 = vunpack.c.0.s8 %v2998
      %v3000 = vperm.slane %v2994, %v2999
      %v3002 = vunpack.c.l.s4 1934713408
      %v3003 = vunpack.c.0.s8 %v3002
      %v3004 = vperm.slane %v2996, %v3003
      %v3005 = vrot.slane %v2988, 4
      %v3006 = vsel %vm114, 0.0, %v3005
      %v3007 = vrot.slane %v2992, 4
      %v3008 = vsel %vm114, 0.0, %v3007
      %v3009 = vrot.slane %v3000, 4
      %v3010 = vsel %vm114, 0.0, %v3009
      %v3011 = vrot.slane %v3004, 4
      %v3012 = vsel %vm114, 0.0, %v3011
      %v3013 = vsel %vm114, %v3007, %v2988
      %v3015 = vunpack.c.l.s4 1983009808
      %v3016 = vunpack.c.0.s8 %v3015
      %v3017 = vperm.slane %v3013, %v3016
      %v3018 = vrot.slane %v3008, 4
      %v3019 = vsel %vm114, %v3018, %v3006
      %v3021 = vunpack.c.l.s4 1983009808
      %v3022 = vunpack.c.0.s8 %v3021
      %v3023 = vperm.slane %v3019, %v3022
      %v3024 = vsel %vm114, %v3011, %v3000
      %v3026 = vunpack.c.l.s4 1983009808
      %v3027 = vunpack.c.0.s8 %v3026
      %v3028 = vperm.slane %v3024, %v3027
      %v3029 = vrot.slane %v3012, 4
      %v3030 = vsel %vm114, %v3029, %v3010
      %v3032 = vunpack.c.l.s4 1983009808
      %v3033 = vunpack.c.0.s8 %v3032
      %v3034 = vperm.slane %v3030, %v3033
      %v3035 = vrot.slane %v3023, 4
      %v3036 = vsel %vm114, %v3035, %v3017
      %v3037 = vrot.slane %v3017, 4
      %v3038 = vsel %vm114, %v3023, %v3037
      %v3040 = vunpack.c.l.s4 1934713408
      %v3041 = vunpack.c.0.s8 %v3040
      %v3042 = vperm.slane %v3036, %v3041
      %v3044 = vunpack.c.l.s4 1934713408
      %v3045 = vunpack.c.0.s8 %v3044
      %v3046 = vperm.slane %v3038, %v3045
      %v3047 = vrot.slane %v3034, 4
      %v3048 = vsel %vm114, %v3047, %v3028
      %v3049 = vrot.slane %v3028, 4
      %v3050 = vsel %vm114, %v3034, %v3049
      %v3052 = vunpack.c.l.s4 1934713408
      %v3053 = vunpack.c.0.s8 %v3052
      %v3054 = vperm.slane %v3048, %v3053
      %v3056 = vunpack.c.l.s4 1934713408
      %v3057 = vunpack.c.0.s8 %v3056
      %v3058 = vperm.slane %v3050, %v3057
      %v3059 = vrot.slane %v3054, 4
      %v3060 = vsel %vm114, %v3059, %v3042
      %v3061 = vrot.slane %v3042, 4
      %v3062 = vsel %vm114, %v3054, %v3061
      %v3063 = vrot.slane %v3058, 4
      %v3064 = vsel %vm114, %v3063, %v3046
      %v3065 = vrot.slane %v3046, 4
      %v3066 = vsel %vm114, %v3058, %v3065
      %v3067 = vpack.c.bf16 %v3060, %v3060
      %v3068 = vpack.c.bf16 %v3062, %v3062
      %v3069 = vpack.c.bf16 %v3064, %v3064
      %v3070 = vpack.c.bf16 %v3066, %v3066
      %3072 = vrot.lane.b32.xlu0 %v457, 112
      %v3073 = vpop.permute.xlu0 %3072
      %3075 = vrot.lane.b32.xlu0 %v457, 96
      %v3076 = vpop.permute.xlu0 %3075
      %3078 = vrot.lane.b32.xlu0 %v457, 80
      %v3079 = vpop.permute.xlu0 %3078
      %v3081 = vrot.slane %v3076, 4
      %v3082 = vsel %vm114, %v3081, %v457
      %v3083 = vrot.slane %v457, 4
      %v3084 = vsel %vm114, %v3076, %v3083
      %v3086 = vunpack.c.l.s4 1983009808
      %v3087 = vunpack.c.0.s8 %v3086
      %v3088 = vperm.slane %v3082, %v3087
      %v3090 = vunpack.c.l.s4 1983009808
      %v3091 = vunpack.c.0.s8 %v3090
      %v3092 = vperm.slane %v3084, %v3091
      %v3093 = vrot.slane %v3079, 4
      %v3094 = vsel %vm114, %v3093, %v3073
      %v3095 = vrot.slane %v3073, 4
      %v3096 = vsel %vm114, %v3079, %v3095
      %v3098 = vunpack.c.l.s4 1983009808
      %v3099 = vunpack.c.0.s8 %v3098
      %v3100 = vperm.slane %v3094, %v3099
      %v3102 = vunpack.c.l.s4 1983009808
      %v3103 = vunpack.c.0.s8 %v3102
      %v3104 = vperm.slane %v3096, %v3103
      %v3105 = vrot.slane %v3100, 4
      %v3106 = vsel %vm114, %v3105, %v3088
      %v3107 = vrot.slane %v3088, 4
      %v3108 = vsel %vm114, %v3100, %v3107
      %v3110 = vunpack.c.l.s4 1934713408
      %v3111 = vunpack.c.0.s8 %v3110
      %v3112 = vperm.slane %v3106, %v3111
      %v3114 = vunpack.c.l.s4 1934713408
      %v3115 = vunpack.c.0.s8 %v3114
      %v3116 = vperm.slane %v3108, %v3115
      %v3117 = vrot.slane %v3104, 4
      %v3118 = vsel %vm114, %v3117, %v3092
      %v3119 = vrot.slane %v3092, 4
      %v3120 = vsel %vm114, %v3104, %v3119
      %v3122 = vunpack.c.l.s4 1934713408
      %v3123 = vunpack.c.0.s8 %v3122
      %v3124 = vperm.slane %v3118, %v3123
      %v3126 = vunpack.c.l.s4 1934713408
      %v3127 = vunpack.c.0.s8 %v3126
      %v3128 = vperm.slane %v3120, %v3127
      %v3129 = vrot.slane %v3112, 4
      %v3130 = vsel %vm114, 0.0, %v3129
      %v3131 = vrot.slane %v3116, 4
      %v3132 = vsel %vm114, 0.0, %v3131
      %v3133 = vrot.slane %v3124, 4
      %v3134 = vsel %vm114, 0.0, %v3133
      %v3135 = vrot.slane %v3128, 4
      %v3136 = vsel %vm114, 0.0, %v3135
      %v3137 = vsel %vm114, %v3131, %v3112
      %v3139 = vunpack.c.l.s4 1983009808
      %v3140 = vunpack.c.0.s8 %v3139
      %v3141 = vperm.slane %v3137, %v3140
      %v3142 = vrot.slane %v3132, 4
      %v3143 = vsel %vm114, %v3142, %v3130
      %v3145 = vunpack.c.l.s4 1983009808
      %v3146 = vunpack.c.0.s8 %v3145
      %v3147 = vperm.slane %v3143, %v3146
      %v3148 = vsel %vm114, %v3135, %v3124
      %v3150 = vunpack.c.l.s4 1983009808
      %v3151 = vunpack.c.0.s8 %v3150
      %v3152 = vperm.slane %v3148, %v3151
      %v3153 = vrot.slane %v3136, 4
      %v3154 = vsel %vm114, %v3153, %v3134
      %v3156 = vunpack.c.l.s4 1983009808
      %v3157 = vunpack.c.0.s8 %v3156
      %v3158 = vperm.slane %v3154, %v3157
      %v3159 = vrot.slane %v3147, 4
      %v3160 = vsel %vm114, %v3159, %v3141
      %v3161 = vrot.slane %v3141, 4
      %v3162 = vsel %vm114, %v3147, %v3161
      %v3164 = vunpack.c.l.s4 1934713408
      %v3165 = vunpack.c.0.s8 %v3164
      %v3166 = vperm.slane %v3160, %v3165
      %v3168 = vunpack.c.l.s4 1934713408
      %v3169 = vunpack.c.0.s8 %v3168
      %v3170 = vperm.slane %v3162, %v3169
      %v3171 = vrot.slane %v3158, 4
      %v3172 = vsel %vm114, %v3171, %v3152
      %v3173 = vrot.slane %v3152, 4
      %v3174 = vsel %vm114, %v3158, %v3173
      %v3176 = vunpack.c.l.s4 1934713408
      %v3177 = vunpack.c.0.s8 %v3176
      %v3178 = vperm.slane %v3172, %v3177
      %v3180 = vunpack.c.l.s4 1934713408
      %v3181 = vunpack.c.0.s8 %v3180
      %v3182 = vperm.slane %v3174, %v3181
      %v3183 = vrot.slane %v3178, 4
      %v3184 = vsel %vm114, %v3183, %v3166
      %v3185 = vrot.slane %v3166, 4
      %v3186 = vsel %vm114, %v3178, %v3185
      %v3187 = vrot.slane %v3182, 4
      %v3188 = vsel %vm114, %v3187, %v3170
      %v3189 = vrot.slane %v3170, 4
      %v3190 = vsel %vm114, %v3182, %v3189
      %v3191 = vpack.c.bf16 %v3184, %v3184
      %v3192 = vpack.c.bf16 %v3186, %v3186
      %v3193 = vpack.c.bf16 %v3188, %v3188
      %v3194 = vpack.c.bf16 %v3190, %v3190
      %v3196 = vsel %vm831, %v2943, 0
      %v3199 = vsel %vm831, %v3067, 0
      %3201 = vmatpush.bf16.xpose.msra.mxu0 0
      %3202 = vmatpush.bf16.xpose.msra.mxu0 0
      %3203 = vmatpush.bf16.xpose.msra.mxu0 0
      %3204 = vmatpush.bf16.xpose.msra.mxu0 0
      %3205 = vmatpush.bf16.xpose.msra.mxu0 0
      %3206 = vmatpush.bf16.xpose.msra.mxu0 0
      %3207 = vmatpush.bf16.xpose.msra.mxu0 0
      %3208 = vmatpush.bf16.xpose.msra.mxu0 %v3199
      %3209 = vmatmul.bf16.gmra.mxu0 %v3196
      %v3210 = vpop.f32.mrf.mxu0
      %v3211 = vadd.f32 0.0, %v3210
      %v3212 = vpop.f32.mrf.mxu0
      %3213 = vdwg.mxu0
      %v3215 = vsel %vm831, %v2944, 0
      %v3218 = vsel %vm831, %v3068, 0
      %3220 = vmatpush.bf16.xpose.msra.mxu0 0
      %3221 = vmatpush.bf16.xpose.msra.mxu0 0
      %3222 = vmatpush.bf16.xpose.msra.mxu0 0
      %3223 = vmatpush.bf16.xpose.msra.mxu0 0
      %3224 = vmatpush.bf16.xpose.msra.mxu0 0
      %3225 = vmatpush.bf16.xpose.msra.mxu0 0
      %3226 = vmatpush.bf16.xpose.msra.mxu0 0
      %3227 = vmatpush.bf16.xpose.msra.mxu0 %v3218
      %3228 = vmatmul.bf16.gmra.mxu0 %v3215
      %v3229 = vpop.f32.mrf.mxu0
      %v3230 = vadd.f32 0.0, %v3229
      %v3231 = vpop.f32.mrf.mxu0
      %3232 = vdwg.mxu0
      %v3234 = vsel %vm831, %v2945, 0
      %v3237 = vsel %vm831, %v3069, 0
      %3239 = vmatpush.bf16.xpose.msra.mxu0 0
      %3240 = vmatpush.bf16.xpose.msra.mxu0 0
      %3241 = vmatpush.bf16.xpose.msra.mxu0 0
      %3242 = vmatpush.bf16.xpose.msra.mxu0 0
      %3243 = vmatpush.bf16.xpose.msra.mxu0 0
      %3244 = vmatpush.bf16.xpose.msra.mxu0 0
      %3245 = vmatpush.bf16.xpose.msra.mxu0 0
      %3246 = vmatpush.bf16.xpose.msra.mxu0 %v3237
      %3247 = vmatmul.bf16.gmra.mxu0 %v3234
      %v3248 = vpop.f32.mrf.mxu0
      %v3249 = vadd.f32 0.0, %v3248
      %v3250 = vpop.f32.mrf.mxu0
      %3251 = vdwg.mxu0
      %v3253 = vsel %vm831, %v2946, 0
      %v3256 = vsel %vm831, %v3070, 0
      %3258 = vmatpush.bf16.xpose.msra.mxu0 0
      %3259 = vmatpush.bf16.xpose.msra.mxu0 0
      %3260 = vmatpush.bf16.xpose.msra.mxu0 0
      %3261 = vmatpush.bf16.xpose.msra.mxu0 0
      %3262 = vmatpush.bf16.xpose.msra.mxu0 0
      %3263 = vmatpush.bf16.xpose.msra.mxu0 0
      %3264 = vmatpush.bf16.xpose.msra.mxu0 0
      %3265 = vmatpush.bf16.xpose.msra.mxu0 %v3256
      %3266 = vmatmul.bf16.gmra.mxu0 %v3253
      %v3267 = vpop.f32.mrf.mxu0
      %v3268 = vadd.f32 0.0, %v3267
      %v3269 = vpop.f32.mrf.mxu0
      %3270 = vdwg.mxu0
      %v3271 = vsel %vm908, %v3211, -inf
      %3272 = vmax.xlane.f32.xlu0 %v3271
      %v3273 = vpop.xlane.xlu0 %3272
      %v3274 = vsel %vm908, %v3230, -inf
      %3275 = vmax.xlane.f32.xlu0 %v3274
      %v3276 = vpop.xlane.xlu0 %3275
      %v3277 = vsel %vm908, %v3249, -inf
      %3278 = vmax.xlane.f32.xlu0 %v3277
      %v3279 = vpop.xlane.xlu0 %3278
      %v3280 = vsel %vm908, %v3268, -inf
      %3281 = vmax.xlane.f32.xlu0 %v3280
      %v3282 = vpop.xlane.xlu0 %3281
      %v3283 = vsub.f32 %v3211, %v3273
      %v3284 = vsub.f32 %v3230, %v3276
      %v3285 = vsub.f32 %v3249, %v3279
      %v3286 = vsub.f32 %v3268, %v3282
      %v3287 = vmul.f32 %v3283, 1.442695
      %v3288 = vpow.pop %v3287
      %v3289 = vmul.f32 %v3284, 1.442695
      %v3290 = vpow.pop %v3289
      %v3291 = vmul.f32 %v3285, 1.442695
      %v3292 = vpow.pop %v3291
      %v3293 = vmul.f32 %v3286, 1.442695
      %v3294 = vpow.pop %v3293
      %v3295 = vsel %vm908, %v3288, 0.0
      %3296 = vadd.xlane.f32.xlu0 %v3295
      %v3297 = vpop.xlane.xlu0 %3296
      %v3298 = vsel %vm908, %v3290, 0.0
      %3299 = vadd.xlane.f32.xlu0 %v3298
      %v3300 = vpop.xlane.xlu0 %3299
      %v3301 = vsel %vm908, %v3292, 0.0
      %3302 = vadd.xlane.f32.xlu0 %v3301
      %v3303 = vpop.xlane.xlu0 %3302
      %v3304 = vsel %vm908, %v3294, 0.0
      %3305 = vadd.xlane.f32.xlu0 %v3304
      %v3306 = vpop.xlane.xlu0 %3305
      %v3307 = vrcp.pop %v3297
      %v3308 = vrcp.pop %v3300
      %v3309 = vrcp.pop %v3303
      %v3310 = vrcp.pop %v3306
      %v3311 = vmul.f32 %v3288, %v3307
      %v3312 = vmul.f32 %v3290, %v3308
      %v3313 = vmul.f32 %v3292, %v3309
      %v3314 = vmul.f32 %v3294, %v3310
      %v3315 = vpack.c.bf16 %v3311, %v3311
      %v3316 = vpack.c.bf16 %v3312, %v3312
      %v3317 = vpack.c.bf16 %v3313, %v3313
      %v3318 = vpack.c.bf16 %v3314, %v3314
      %v3320 = vsel %vm908, %v3315, 0
      %v3323 = vsel %vm960, %v3191, 0
      %3325 = vmatpush.bf16.msra.mxu0 0
      %3326 = vmatpush.bf16.msra.mxu0 0
      %3327 = vmatpush.bf16.msra.mxu0 0
      %3328 = vmatpush.bf16.msra.mxu0 0
      %3329 = vmatpush.bf16.msra.mxu0 0
      %3330 = vmatpush.bf16.msra.mxu0 0
      %3331 = vmatpush.bf16.msra.mxu0 0
      %3332 = vmatpush.bf16.msra.mxu0 %v3323
      %3333 = vmatmul.bf16.gmra.mxu0 %v3320
      %v3334 = vpop.f32.mrf.mxu0
      %v3335 = vadd.f32 0.0, %v3334
      %v3336 = vpop.f32.mrf.mxu0
      %3337 = vdwg.mxu0
      %v3339 = vsel %vm908, %v3316, 0
      %v3342 = vsel %vm960, %v3192, 0
      %3344 = vmatpush.bf16.msra.mxu0 0
      %3345 = vmatpush.bf16.msra.mxu0 0
      %3346 = vmatpush.bf16.msra.mxu0 0
      %3347 = vmatpush.bf16.msra.mxu0 0
      %3348 = vmatpush.bf16.msra.mxu0 0
      %3349 = vmatpush.bf16.msra.mxu0 0
      %3350 = vmatpush.bf16.msra.mxu0 0
      %3351 = vmatpush.bf16.msra.mxu0 %v3342
      %3352 = vmatmul.bf16.gmra.mxu0 %v3339
      %v3353 = vpop.f32.mrf.mxu0
      %v3354 = vadd.f32 0.0, %v3353
      %v3355 = vpop.f32.mrf.mxu0
      %3356 = vdwg.mxu0
      %v3358 = vsel %vm908, %v3317, 0
      %v3361 = vsel %vm960, %v3193, 0
      %3363 = vmatpush.bf16.msra.mxu0 0
      %3364 = vmatpush.bf16.msra.mxu0 0
      %3365 = vmatpush.bf16.msra.mxu0 0
      %3366 = vmatpush.bf16.msra.mxu0 0
      %3367 = vmatpush.bf16.msra.mxu0 0
      %3368 = vmatpush.bf16.msra.mxu0 0
      %3369 = vmatpush.bf16.msra.mxu0 0
      %3370 = vmatpush.bf16.msra.mxu0 %v3361
      %3371 = vmatmul.bf16.gmra.mxu0 %v3358
      %v3372 = vpop.f32.mrf.mxu0
      %v3373 = vadd.f32 0.0, %v3372
      %v3374 = vpop.f32.mrf.mxu0
      %3375 = vdwg.mxu0
      %v3377 = vsel %vm908, %v3318, 0
      %v3380 = vsel %vm960, %v3194, 0
      %3382 = vmatpush.bf16.msra.mxu0 0
      %3383 = vmatpush.bf16.msra.mxu0 0
      %3384 = vmatpush.bf16.msra.mxu0 0
      %3385 = vmatpush.bf16.msra.mxu0 0
      %3386 = vmatpush.bf16.msra.mxu0 0
      %3387 = vmatpush.bf16.msra.mxu0 0
      %3388 = vmatpush.bf16.msra.mxu0 0
      %3389 = vmatpush.bf16.msra.mxu0 %v3380
      %3390 = vmatmul.bf16.gmra.mxu0 %v3377
      %v3391 = vpop.f32.mrf.mxu0
      %v3392 = vadd.f32 0.0, %v3391
      %v3393 = vpop.f32.mrf.mxu0
      %3394 = vdwg.mxu0
      %v3395 = vrot.slane %v3373, 4
      %v3396 = vsel %vm114, %v3395, %v3335
      %v3397 = vrot.slane %v3335, 4
      %v3398 = vsel %vm114, %v3373, %v3397
      %v3400 = vunpack.c.l.s4 1983009808
      %v3401 = vunpack.c.0.s8 %v3400
      %v3402 = vperm.slane %v3396, %v3401
      %v3404 = vunpack.c.l.s4 1983009808
      %v3405 = vunpack.c.0.s8 %v3404
      %v3406 = vperm.slane %v3398, %v3405
      %v3407 = vrot.slane %v3392, 4
      %v3408 = vsel %vm114, %v3407, %v3354
      %v3409 = vrot.slane %v3354, 4
      %v3410 = vsel %vm114, %v3392, %v3409
      %v3412 = vunpack.c.l.s4 1983009808
      %v3413 = vunpack.c.0.s8 %v3412
      %v3414 = vperm.slane %v3408, %v3413
      %v3416 = vunpack.c.l.s4 1983009808
      %v3417 = vunpack.c.0.s8 %v3416
      %v3418 = vperm.slane %v3410, %v3417
      %v3419 = vrot.slane %v3414, 4
      %v3420 = vsel %vm114, %v3419, %v3402
      %v3421 = vrot.slane %v3402, 4
      %v3422 = vsel %vm114, %v3414, %v3421
      %v3424 = vunpack.c.l.s4 1934713408
      %v3425 = vunpack.c.0.s8 %v3424
      %v3426 = vperm.slane %v3420, %v3425
      %v3428 = vunpack.c.l.s4 1934713408
      %v3429 = vunpack.c.0.s8 %v3428
      %v3430 = vperm.slane %v3422, %v3429
      %v3431 = vrot.slane %v3418, 4
      %v3432 = vsel %vm114, %v3431, %v3406
      %v3433 = vrot.slane %v3406, 4
      %v3434 = vsel %vm114, %v3418, %v3433
      %v3436 = vunpack.c.l.s4 1934713408
      %v3437 = vunpack.c.0.s8 %v3436
      %v3438 = vperm.slane %v3432, %v3437
      %v3440 = vunpack.c.l.s4 1934713408
      %v3441 = vunpack.c.0.s8 %v3440
      %v3442 = vperm.slane %v3434, %v3441
      %v3443 = vrot.slane %v3426, 4
      %v3444 = vsel %vm114, 0.0, %v3443
      %v3445 = vrot.slane %v3430, 4
      %v3446 = vsel %vm114, 0.0, %v3445
      %v3447 = vrot.slane %v3438, 4
      %v3448 = vsel %vm114, 0.0, %v3447
      %v3449 = vrot.slane %v3442, 4
      %v3450 = vsel %vm114, 0.0, %v3449
      %v3451 = vsel %vm114, %v3445, %v3426
      %v3453 = vunpack.c.l.s4 1983009808
      %v3454 = vunpack.c.0.s8 %v3453
      %v3455 = vperm.slane %v3451, %v3454
      %v3456 = vrot.slane %v3446, 4
      %v3457 = vsel %vm114, %v3456, %v3444
      %v3459 = vunpack.c.l.s4 1983009808
      %v3460 = vunpack.c.0.s8 %v3459
      %v3461 = vperm.slane %v3457, %v3460
      %v3462 = vsel %vm114, %v3449, %v3438
      %v3464 = vunpack.c.l.s4 1983009808
      %v3465 = vunpack.c.0.s8 %v3464
      %v3466 = vperm.slane %v3462, %v3465
      %v3467 = vrot.slane %v3450, 4
      %v3468 = vsel %vm114, %v3467, %v3448
      %v3470 = vunpack.c.l.s4 1983009808
      %v3471 = vunpack.c.0.s8 %v3470
      %v3472 = vperm.slane %v3468, %v3471
      %v3473 = vrot.slane %v3461, 4
      %v3474 = vsel %vm114, %v3473, %v3455
      %v3475 = vrot.slane %v3455, 4
      %v3476 = vsel %vm114, %v3461, %v3475
      %v3478 = vunpack.c.l.s4 1934713408
      %v3479 = vunpack.c.0.s8 %v3478
      %v3480 = vperm.slane %v3474, %v3479
      %v3482 = vunpack.c.l.s4 1934713408
      %v3483 = vunpack.c.0.s8 %v3482
      %v3484 = vperm.slane %v3476, %v3483
      %v3485 = vrot.slane %v3472, 4
      %v3486 = vsel %vm114, %v3485, %v3466
      %v3487 = vrot.slane %v3466, 4
      %v3488 = vsel %vm114, %v3472, %v3487
      %v3490 = vunpack.c.l.s4 1934713408
      %v3491 = vunpack.c.0.s8 %v3490
      %v3492 = vperm.slane %v3486, %v3491
      %v3494 = vunpack.c.l.s4 1934713408
      %v3495 = vunpack.c.0.s8 %v3494
      %v3496 = vperm.slane %v3488, %v3495
      %v3497 = vrot.slane %v3492, 4
      %v3498 = vsel %vm114, %v3497, %v3480
      %v3499 = vrot.slane %v3480, 4
      %v3500 = vsel %vm114, %v3492, %v3499
      %v3501 = vrot.slane %v3496, 4
      %v3502 = vsel %vm114, %v3501, %v3484
      %v3503 = vrot.slane %v3484, 4
      %v3504 = vsel %vm114, %v3496, %v3503
      %3506 = vrot.lane.b32.xlu0 %v3500, 16
      %v3507 = vpop.permute.xlu0 %3506
      %3510 = vrot.lane.b32.xlu0 %v3502, 32
      %v3511 = vpop.permute.xlu0 %3510
      %3514 = vrot.lane.b32.xlu0 %v3504, 48
      %v3515 = vpop.permute.xlu0 %3514
      %v3517 = vsel %vm831, %v3498, %v3507
      %v3518 = vsel %vm1157, %v3517, %v3511
      %v3519 = vsel %vm1159, %v3518, %v3515
      %v3520 = vpack.c.bf16 %v3519, %v3519
      %v3521 = vld [vmem:[#allocation9] sm:$0xf]
      %v3522 = vld [vmem:[#allocation9 + $0x4] sm:$0xf]
      %v3523 = vld [vmem:[#allocation9 + $0x8] sm:$0xf]
      %v3524 = vld [vmem:[#allocation9 + $0xc] sm:$0xf]
      %v3525 = vld [vmem:[#allocation9 + $0x10] sm:$0xf]
      %v3526 = vld [vmem:[#allocation9 + $0x14] sm:$0xf]
      %v3527 = vld [vmem:[#allocation9 + $0x18] sm:$0xf]
      %v3528 = vld [vmem:[#allocation9 + $0x1c] sm:$0xf]
      %v3529 = vld [vmem:[%s10] sm:$0x1]
      %v3531 = vperm.slane %v3529, 0
      %v3541 = vunpack.c.l.b16 %v3521
      %v3542 = vunpack.c.l.b16 %v3522
      %v3543 = vunpack.c.l.b16 %v3523
      %v3544 = vunpack.c.l.b16 %v3524
      %v3545 = vunpack.c.l.b16 %v3525
      %v3546 = vunpack.c.l.b16 %v3526
      %v3547 = vunpack.c.l.b16 %v3527
      %v3548 = vunpack.c.l.b16 %v3528
      %v3549 = vpack.c.b16 %v3542, %v3541
      %v3550 = vpack.c.b16 %v3544, %v3543
      %v3551 = vpack.c.b16 %v3546, %v3545
      %v3552 = vpack.c.b16 %v3548, %v3547
      %v3558 = vsel %vm172, %v3520, 0
      %3560 = vmatpush.bf16.msra.mxu0 0
      %3561 = vmatpush.bf16.msra.mxu0 0
      %3562 = vmatpush.bf16.msra.mxu0 0
      %3563 = vmatpush.bf16.msra.mxu0 0
      %3564 = vmatpush.bf16.msra.mxu0 %v3552
      %3565 = vmatpush.bf16.msra.mxu0 %v3551
      %3566 = vmatpush.bf16.msra.mxu0 %v3550
      %3567 = vmatpush.bf16.msra.mxu0 %v3549
      %3568 = vmatmul.bf16.gmra.mxu0 %v3558
      %v3569 = vpop.f32.mrf.mxu0
      %v3570 = vadd.f32 %v3531, %v3569
      %v3571 = vpop.f32.mrf.mxu0
      %3572 = vdwg.mxu0
      %v3573 = vadd.f32 %v169, %v3570
      %3574 = vst.msk [vmem:[#allocation2 + $0x18] sm:$0xff] %vm172, %v3573
      %v3575 = vld [vmem:[%s11] sm:$0x1]
      %v3576 = vld [vmem:[%s12] sm:$0x1]
      %v3577 = vsel %vm172, %v3573, 0.0
      %3578 = vadd.xlane.f32.xlu0 %v3577
      %v3579 = vpop.xlane.xlu0 %3578
      %v3580 = vmul.f32 %v3579, %v191
      %v3581 = vsub.f32 %v3573, %v3580
      %v3582 = vmul.f32 %v3581, %v3581
      %v3583 = vsel %vm172, %v3582, 0.0
      %3584 = vadd.xlane.f32.xlu0 %v3583
      %v3585 = vpop.xlane.xlu0 %3584
      %v3586 = vmul.f32 %v3585, %v191
      %v3587 = vadd.f32 %v3586, 1e-05
      %v3588 = vrsqrt.pop %v3587
      %v3589 = vmul.f32 %v3588, %v3587
      %v3590 = vmul.f32 %v3589, %v3588
      %v3591 = vmul.f32 0.5, %v3590
      %v3592 = vsub.f32 1.5, %v3591
      %v3593 = vmul.f32 %v3588, %v3592
      %vm3594 = vweird.f32 %v3587
      %vm3595 = vweird.f32 %v3588
      %vm3596 = vmor %vm3594, %vm3595
      %v3597 = vsel %vm3596, %v3588, %v3593
      %v3598 = vmul.f32 %v3581, %v3597
      %v3600 = vperm.slane %v3575, 0
      %v3602 = vmul.f32 %v3598, %v3600
      %v3604 = vperm.slane %v3576, 0
      %v3606 = vadd.f32 %v3602, %v3604
      %v3607 = vpack.c.bf16 %v3606, %v3606
      %3608 = vst.msk [vmem:[#allocation3 + $0xc] sm:$0xf] %vm1249, %v3607
    $region85: #{tpu_custom_call.1} parent=1 // pred_fallthru
      _
    %v3609 = vld [vmem:[#allocation3] sm:$0xf]
    %v3610 = vld [vmem:[#allocation3 + $0x4] sm:$0xf]
    %v3611 = vld [vmem:[#allocation3 + $0x8] sm:$0xf]
    %v3612 = vld [vmem:[#allocation3 + $0xc] sm:$0xf]
    %v3613 = vld [vmem:[%s13] sm:$0xff]
    %v3614 = vld [vmem:[%s13 + $0x8] sm:$0xff]
    %v3615 = vld [vmem:[%s13 + $0x10] sm:$0xff]
    %v3616 = vld [vmem:[%s13 + $0x18] sm:$0xff]
    %v3617 = vld [vmem:[%s13 + $0x20] sm:$0xff]
    %v3618 = vld [vmem:[%s13 + $0x28] sm:$0xff]
    %v3619 = vld [vmem:[%s13 + $0x30] sm:$0xff]
    %v3620 = vld [vmem:[%s13 + $0x38] sm:$0xff]
    %v3621 = vld [vmem:[%s14] sm:$0x3]
    %v3623 = vperm.slane %v3621, 0
    %v3624 = vperm.slane %v3621, 1
    %v3631 = vunpack.c.l.b16 %v3609
    %v3632 = vunpack.c.l.b16 %v3610
    %v3633 = vunpack.c.l.b16 %v3611
    %v3634 = vunpack.c.l.b16 %v3612
    %v3635 = vpack.c.b16 %v3632, %v3631
    %v3636 = vpack.c.b16 %v3634, %v3633
    %v3645 = vunpack.c.l.b16 %v3613
    %v3646 = vunpack.c.h.b16 %v3613
    %v3647 = vunpack.c.l.b16 %v3614
    %v3648 = vunpack.c.h.b16 %v3614
    %v3649 = vunpack.c.l.b16 %v3615
    %v3650 = vunpack.c.h.b16 %v3615
    %v3651 = vunpack.c.l.b16 %v3616
    %v3652 = vunpack.c.h.b16 %v3616
    %v3653 = vunpack.c.l.b16 %v3617
    %v3654 = vunpack.c.h.b16 %v3617
    %v3655 = vunpack.c.l.b16 %v3618
    %v3656 = vunpack.c.h.b16 %v3618
    %v3657 = vunpack.c.l.b16 %v3619
    %v3658 = vunpack.c.h.b16 %v3619
    %v3659 = vunpack.c.l.b16 %v3620
    %v3660 = vunpack.c.h.b16 %v3620
    %v3661 = vpack.c.b16 %v3647, %v3645
    %v3662 = vpack.c.b16 %v3648, %v3646
    %v3663 = vpack.c.b16 %v3651, %v3649
    %v3664 = vpack.c.b16 %v3652, %v3650
    %v3665 = vpack.c.b16 %v3655, %v3653
    %v3666 = vpack.c.b16 %v3656, %v3654
    %v3667 = vpack.c.b16 %v3659, %v3657
    %v3668 = vpack.c.b16 %v3660, %v3658
    %vm3677 = vcmask 523264
    %v3679 = vsel %vm3677, %v3635, 0
    %v3682 = vsel %vm3677, %v3636, 0
    %3684 = vmatpush.bf16.msra.mxu0 0
    %3685 = vmatpush.bf16.msra.mxu0 0
    %3686 = vmatpush.bf16.msra.mxu0 0
    %3687 = vmatpush.bf16.msra.mxu0 0
    %3688 = vmatpush.bf16.msra.mxu0 %v3667
    %3689 = vmatpush.bf16.msra.mxu0 %v3665
    %3690 = vmatpush.bf16.msra.mxu0 %v3663
    %3691 = vmatpush.bf16.msra.mxu0 %v3661
    %3692 = vmatmul.bf16.gmra.mxu0 %v3679
    %v3693 = vpop.f32.mrf.mxu0
    %v3694 = vadd.f32 %v3623, %v3693
    %v3695 = vpop.f32.mrf.mxu0
    %v3696 = vadd.f32 %v3623, %v3695
    %3697 = vmatmul.bf16.gmra.mxu0 %v3682
    %v3698 = vpop.f32.mrf.mxu0
    %v3699 = vadd.f32 %v3623, %v3698
    %v3700 = vpop.f32.mrf.mxu0
    %v3701 = vadd.f32 %v3623, %v3700
    %3702 = vdwg.mxu0
    %3703 = vmatpush.bf16.msra.mxu0 0
    %3704 = vmatpush.bf16.msra.mxu0 0
    %3705 = vmatpush.bf16.msra.mxu0 0
    %3706 = vmatpush.bf16.msra.mxu0 0
    %3707 = vmatpush.bf16.msra.mxu0 %v3668
    %3708 = vmatpush.bf16.msra.mxu0 %v3666
    %3709 = vmatpush.bf16.msra.mxu0 %v3664
    %3710 = vmatpush.bf16.msra.mxu0 %v3662
    %3711 = vmatmul.bf16.gmra.mxu0 %v3679
    %v3712 = vpop.f32.mrf.mxu0
    %v3713 = vadd.f32 %v3624, %v3712
    %v3714 = vpop.f32.mrf.mxu0
    %v3715 = vadd.f32 %v3624, %v3714
    %3716 = vmatmul.bf16.gmra.mxu0 %v3682
    %v3717 = vpop.f32.mrf.mxu0
    %v3718 = vadd.f32 %v3624, %v3717
    %v3719 = vpop.f32.mrf.mxu0
    %v3720 = vadd.f32 %v3624, %v3719
    %3721 = vdwg.mxu0
    %v3722 = vmul.f32 %v3694, 1.702
    %v3723 = vmul.f32 %v3713, 1.702
    %v3724 = vmul.f32 %v3696, 1.702
    %v3725 = vmul.f32 %v3715, 1.702
    %v3726 = vmul.f32 %v3699, 1.702
    %v3727 = vmul.f32 %v3718, 1.702
    %v3728 = vmul.f32 %v3701, 1.702
    %v3729 = vmul.f32 %v3720, 1.702
    %v3730 = vxor.u32 %v3722, 2147483648
    %v3731 = vxor.u32 %v3723, 2147483648
    %v3732 = vxor.u32 %v3724, 2147483648
    %v3733 = vxor.u32 %v3725, 2147483648
    %v3734 = vxor.u32 %v3726, 2147483648
    %v3735 = vxor.u32 %v3727, 2147483648
    %v3736 = vxor.u32 %v3728, 2147483648
    %v3737 = vxor.u32 %v3729, 2147483648
    %v3738 = vmul.f32 %v3730, 1.442695
    %v3739 = vpow.pop %v3738
    %v3740 = vmul.f32 %v3731, 1.442695
    %v3741 = vpow.pop %v3740
    %v3742 = vmul.f32 %v3732, 1.442695
    %v3743 = vpow.pop %v3742
    %v3744 = vmul.f32 %v3733, 1.442695
    %v3745 = vpow.pop %v3744
    %v3746 = vmul.f32 %v3734, 1.442695
    %v3747 = vpow.pop %v3746
    %v3748 = vmul.f32 %v3735, 1.442695
    %v3749 = vpow.pop %v3748
    %v3750 = vmul.f32 %v3736, 1.442695
    %v3751 = vpow.pop %v3750
    %v3752 = vmul.f32 %v3737, 1.442695
    %v3753 = vpow.pop %v3752
    %v3754 = vadd.f32 %v3739, 1.0
    %v3755 = vadd.f32 %v3741, 1.0
    %v3756 = vadd.f32 %v3743, 1.0
    %v3757 = vadd.f32 %v3745, 1.0
    %v3758 = vadd.f32 %v3747, 1.0
    %v3759 = vadd.f32 %v3749, 1.0
    %v3760 = vadd.f32 %v3751, 1.0
    %v3761 = vadd.f32 %v3753, 1.0
    %v3762 = vrcp.pop %v3754
    %v3763 = vmul.f32 %v3754, %v3762
    %v3764 = vsub.f32 1.0, %v3763
    %v3765 = vmul.f32 %v3762, %v3764
    %v3766 = vadd.f32 %v3762, %v3765
    %vm3767 = vweird.f32 %v3754
    %vm3768 = vweird.f32 %v3762
    %vm3769 = vmor %vm3767, %vm3768
    %v3770 = vsel %vm3769, %v3762, %v3766
    %v3771 = vand.u32 2147483647, %v3754
    %vm3772 = vcmp.eq.f32.partialorder %v3771, 8.507059e+37
    %v3773 = vand.u32 %v3754, 2147483648
    %v3774 = vor.u32 1.1754944e-38, %v3773
    %v3775 = vsel %vm3772, %v3774, %v3770
    %v3776 = vmul.f32 1.0, %v3775
    %v3777 = vrcp.pop %v3755
    %v3778 = vmul.f32 %v3755, %v3777
    %v3779 = vsub.f32 1.0, %v3778
    %v3780 = vmul.f32 %v3777, %v3779
    %v3781 = vadd.f32 %v3777, %v3780
    %vm3782 = vweird.f32 %v3755
    %vm3783 = vweird.f32 %v3777
    %vm3784 = vmor %vm3782, %vm3783
    %v3785 = vsel %vm3784, %v3777, %v3781
    %v3786 = vand.u32 2147483647, %v3755
    %vm3787 = vcmp.eq.f32.partialorder %v3786, 8.507059e+37
    %v3788 = vand.u32 %v3755, 2147483648
    %v3789 = vor.u32 1.1754944e-38, %v3788
    %v3790 = vsel %vm3787, %v3789, %v3785
    %v3791 = vmul.f32 1.0, %v3790
    %v3792 = vrcp.pop %v3756
    %v3793 = vmul.f32 %v3756, %v3792
    %v3794 = vsub.f32 1.0, %v3793
    %v3795 = vmul.f32 %v3792, %v3794
    %v3796 = vadd.f32 %v3792, %v3795
    %vm3797 = vweird.f32 %v3756
    %vm3798 = vweird.f32 %v3792
    %vm3799 = vmor %vm3797, %vm3798
    %v3800 = vsel %vm3799, %v3792, %v3796
    %v3801 = vand.u32 2147483647, %v3756
    %vm3802 = vcmp.eq.f32.partialorder %v3801, 8.507059e+37
    %v3803 = vand.u32 %v3756, 2147483648
    %v3804 = vor.u32 1.1754944e-38, %v3803
    %v3805 = vsel %vm3802, %v3804, %v3800
    %v3806 = vmul.f32 1.0, %v3805
    %v3807 = vrcp.pop %v3757
    %v3808 = vmul.f32 %v3757, %v3807
    %v3809 = vsub.f32 1.0, %v3808
    %v3810 = vmul.f32 %v3807, %v3809
    %v3811 = vadd.f32 %v3807, %v3810
    %vm3812 = vweird.f32 %v3757
    %vm3813 = vweird.f32 %v3807
    %vm3814 = vmor %vm3812, %vm3813
    %v3815 = vsel %vm3814, %v3807, %v3811
    %v3816 = vand.u32 2147483647, %v3757
    %vm3817 = vcmp.eq.f32.partialorder %v3816, 8.507059e+37
    %v3818 = vand.u32 %v3757, 2147483648
    %v3819 = vor.u32 1.1754944e-38, %v3818
    %v3820 = vsel %vm3817, %v3819, %v3815
    %v3821 = vmul.f32 1.0, %v3820
    %v3822 = vrcp.pop %v3758
    %v3823 = vmul.f32 %v3758, %v3822
    %v3824 = vsub.f32 1.0, %v3823
    %v3825 = vmul.f32 %v3822, %v3824
    %v3826 = vadd.f32 %v3822, %v3825
    %vm3827 = vweird.f32 %v3758
    %vm3828 = vweird.f32 %v3822
    %vm3829 = vmor %vm3827, %vm3828
    %v3830 = vsel %vm3829, %v3822, %v3826
    %v3831 = vand.u32 2147483647, %v3758
    %vm3832 = vcmp.eq.f32.partialorder %v3831, 8.507059e+37
    %v3833 = vand.u32 %v3758, 2147483648
    %v3834 = vor.u32 1.1754944e-38, %v3833
    %v3835 = vsel %vm3832, %v3834, %v3830
    %v3836 = vmul.f32 1.0, %v3835
    %v3837 = vrcp.pop %v3759
    %v3838 = vmul.f32 %v3759, %v3837
    %v3839 = vsub.f32 1.0, %v3838
    %v3840 = vmul.f32 %v3837, %v3839
    %v3841 = vadd.f32 %v3837, %v3840
    %vm3842 = vweird.f32 %v3759
    %vm3843 = vweird.f32 %v3837
    %vm3844 = vmor %vm3842, %vm3843
    %v3845 = vsel %vm3844, %v3837, %v3841
    %v3846 = vand.u32 2147483647, %v3759
    %vm3847 = vcmp.eq.f32.partialorder %v3846, 8.507059e+37
    %v3848 = vand.u32 %v3759, 2147483648
    %v3849 = vor.u32 1.1754944e-38, %v3848
    %v3850 = vsel %vm3847, %v3849, %v3845
    %v3851 = vmul.f32 1.0, %v3850
    %v3852 = vrcp.pop %v3760
    %v3853 = vmul.f32 %v3760, %v3852
    %v3854 = vsub.f32 1.0, %v3853
    %v3855 = vmul.f32 %v3852, %v3854
    %v3856 = vadd.f32 %v3852, %v3855
    %vm3857 = vweird.f32 %v3760
    %vm3858 = vweird.f32 %v3852
    %vm3859 = vmor %vm3857, %vm3858
    %v3860 = vsel %vm3859, %v3852, %v3856
    %v3861 = vand.u32 2147483647, %v3760
    %vm3862 = vcmp.eq.f32.partialorder %v3861, 8.507059e+37
    %v3863 = vand.u32 %v3760, 2147483648
    %v3864 = vor.u32 1.1754944e-38, %v3863
    %v3865 = vsel %vm3862, %v3864, %v3860
    %v3866 = vmul.f32 1.0, %v3865
    %v3867 = vrcp.pop %v3761
    %v3868 = vmul.f32 %v3761, %v3867
    %v3869 = vsub.f32 1.0, %v3868
    %v3870 = vmul.f32 %v3867, %v3869
    %v3871 = vadd.f32 %v3867, %v3870
    %vm3872 = vweird.f32 %v3761
    %vm3873 = vweird.f32 %v3867
    %vm3874 = vmor %vm3872, %vm3873
    %v3875 = vsel %vm3874, %v3867, %v3871
    %v3876 = vand.u32 2147483647, %v3761
    %vm3877 = vcmp.eq.f32.partialorder %v3876, 8.507059e+37
    %v3878 = vand.u32 %v3761, 2147483648
    %v3879 = vor.u32 1.1754944e-38, %v3878
    %v3880 = vsel %vm3877, %v3879, %v3875
    %v3881 = vmul.f32 1.0, %v3880
    %v3882 = vmul.f32 %v3694, %v3776
    %v3883 = vmul.f32 %v3713, %v3791
    %v3884 = vmul.f32 %v3696, %v3806
    %v3885 = vmul.f32 %v3715, %v3821
    %v3886 = vmul.f32 %v3699, %v3836
    %v3887 = vmul.f32 %v3718, %v3851
    %v3888 = vmul.f32 %v3701, %v3866
    %v3889 = vmul.f32 %v3720, %v3881
    %v3890 = vpack.c.bf16 %v3884, %v3882
    %v3891 = vpack.c.bf16 %v3885, %v3883
    %v3892 = vpack.c.bf16 %v3888, %v3886
    %v3893 = vpack.c.bf16 %v3889, %v3887
    %v3894 = vld [vmem:[%s15] sm:$0xf]
    %v3895 = vld [vmem:[%s15 + $0x4] sm:$0xf]
    %v3896 = vld [vmem:[%s15 + $0x8] sm:$0xf]
    %v3897 = vld [vmem:[%s15 + $0xc] sm:$0xf]
    %v3898 = vld [vmem:[%s15 + $0x10] sm:$0xf]
    %v3899 = vld [vmem:[%s15 + $0x14] sm:$0xf]
    %v3900 = vld [vmem:[%s15 + $0x18] sm:$0xf]
    %v3901 = vld [vmem:[%s15 + $0x1c] sm:$0xf]
    %v3902 = vld [vmem:[%s15 + $0x20] sm:$0xf]
    %v3903 = vld [vmem:[%s15 + $0x24] sm:$0xf]
    %v3904 = vld [vmem:[%s15 + $0x28] sm:$0xf]
    %v3905 = vld [vmem:[%s15 + $0x2c] sm:$0xf]
    %v3906 = vld [vmem:[%s15 + $0x30] sm:$0xf]
    %v3907 = vld [vmem:[%s15 + $0x34] sm:$0xf]
    %v3908 = vld [vmem:[%s15 + $0x38] sm:$0xf]
    %v3909 = vld [vmem:[%s15 + $0x3c] sm:$0xf]
    %v3910 = vld [vmem:[%s15 + $0x40] sm:$0xf]
    %v3911 = vld [vmem:[%s15 + $0x44] sm:$0xf]
    %v3912 = vld [vmem:[%s15 + $0x48] sm:$0xf]
    %v3913 = vld [vmem:[%s15 + $0x4c] sm:$0xf]
    %v3914 = vld [vmem:[%s15 + $0x50] sm:$0xf]
    %v3915 = vld [vmem:[%s15 + $0x54] sm:$0xf]
    %v3916 = vld [vmem:[%s15 + $0x58] sm:$0xf]
    %v3917 = vld [vmem:[%s15 + $0x5c] sm:$0xf]
    %v3918 = vld [vmem:[%s15 + $0x60] sm:$0xf]
    %v3919 = vld [vmem:[%s15 + $0x64] sm:$0xf]
    %v3920 = vld [vmem:[%s15 + $0x68] sm:$0xf]
    %v3921 = vld [vmem:[%s15 + $0x6c] sm:$0xf]
    %v3922 = vld [vmem:[%s15 + $0x70] sm:$0xf]
    %v3923 = vld [vmem:[%s15 + $0x74] sm:$0xf]
    %v3924 = vld [vmem:[%s15 + $0x78] sm:$0xf]
    %v3925 = vld [vmem:[%s15 + $0x7c] sm:$0xf]
    %v3958 = vunpack.c.l.b16 %v3894
    %v3959 = vunpack.c.l.b16 %v3895
    %v3960 = vunpack.c.l.b16 %v3896
    %v3961 = vunpack.c.l.b16 %v3897
    %v3962 = vunpack.c.l.b16 %v3898
    %v3963 = vunpack.c.l.b16 %v3899
    %v3964 = vunpack.c.l.b16 %v3900
    %v3965 = vunpack.c.l.b16 %v3901
    %v3966 = vunpack.c.l.b16 %v3902
    %v3967 = vunpack.c.l.b16 %v3903
    %v3968 = vunpack.c.l.b16 %v3904
    %v3969 = vunpack.c.l.b16 %v3905
    %v3970 = vunpack.c.l.b16 %v3906
    %v3971 = vunpack.c.l.b16 %v3907
    %v3972 = vunpack.c.l.b16 %v3908
    %v3973 = vunpack.c.l.b16 %v3909
    %v3974 = vunpack.c.l.b16 %v3910
    %v3975 = vunpack.c.l.b16 %v3911
    %v3976 = vunpack.c.l.b16 %v3912
    %v3977 = vunpack.c.l.b16 %v3913
    %v3978 = vunpack.c.l.b16 %v3914
    %v3979 = vunpack.c.l.b16 %v3915
    %v3980 = vunpack.c.l.b16 %v3916
    %v3981 = vunpack.c.l.b16 %v3917
    %v3982 = vunpack.c.l.b16 %v3918
    %v3983 = vunpack.c.l.b16 %v3919
    %v3984 = vunpack.c.l.b16 %v3920
    %v3985 = vunpack.c.l.b16 %v3921
    %v3986 = vunpack.c.l.b16 %v3922
    %v3987 = vunpack.c.l.b16 %v3923
    %v3988 = vunpack.c.l.b16 %v3924
    %v3989 = vunpack.c.l.b16 %v3925
    %v3990 = vpack.c.b16 %v3959, %v3958
    %v3991 = vpack.c.b16 %v3961, %v3960
    %v3992 = vpack.c.b16 %v3963, %v3962
    %v3993 = vpack.c.b16 %v3965, %v3964
    %v3994 = vpack.c.b16 %v3967, %v3966
    %v3995 = vpack.c.b16 %v3969, %v3968
    %v3996 = vpack.c.b16 %v3971, %v3970
    %v3997 = vpack.c.b16 %v3973, %v3972
    %v3998 = vpack.c.b16 %v3975, %v3974
    %v3999 = vpack.c.b16 %v3977, %v3976
    %v4000 = vpack.c.b16 %v3979, %v3978
    %v4001 = vpack.c.b16 %v3981, %v3980
    %v4002 = vpack.c.b16 %v3983, %v3982
    %v4003 = vpack.c.b16 %v3985, %v3984
    %v4004 = vpack.c.b16 %v3987, %v3986
    %v4005 = vpack.c.b16 %v3989, %v3988
    %4022 = vmatpush.bf16.msra.mxu0 %v3997
    %4023 = vmatpush.bf16.msra.mxu0 %v3996
    %4024 = vmatpush.bf16.msra.mxu0 %v3995
    %4025 = vmatpush.bf16.msra.mxu0 %v3994
    %4026 = vmatpush.bf16.msra.mxu0 %v3993
    %4027 = vmatpush.bf16.msra.mxu0 %v3992
    %4028 = vmatpush.bf16.msra.mxu0 %v3991
    %4029 = vmatpush.bf16.msra.mxu0 %v3990
    %4030 = vmatmul.bf16.gmra.mxu0 %v3890
    %v4031 = vpop.f32.mrf.mxu0
    %v4032 = vadd.f32 0.0, %v4031
    %v4033 = vpop.f32.mrf.mxu0
    %v4034 = vadd.f32 0.0, %v4033
    %4035 = vmatmul.bf16.gmra.mxu0 %v3892
    %v4036 = vpop.f32.mrf.mxu0
    %v4037 = vadd.f32 0.0, %v4036
    %v4038 = vpop.f32.mrf.mxu0
    %v4039 = vadd.f32 0.0, %v4038
    %4040 = vdwg.mxu0
    %4041 = vmatpush.bf16.msra.mxu0 %v4005
    %4042 = vmatpush.bf16.msra.mxu0 %v4004
    %4043 = vmatpush.bf16.msra.mxu0 %v4003
    %4044 = vmatpush.bf16.msra.mxu0 %v4002
    %4045 = vmatpush.bf16.msra.mxu0 %v4001
    %4046 = vmatpush.bf16.msra.mxu0 %v4000
    %4047 = vmatpush.bf16.msra.mxu0 %v3999
    %4048 = vmatpush.bf16.msra.mxu0 %v3998
    %4049 = vmatmul.bf16.gmra.mxu0 %v3891
    %v4050 = vpop.f32.mrf.mxu0
    %v4051 = vadd.f32 %v4032, %v4050
    %v4052 = vpop.f32.mrf.mxu0
    %v4053 = vadd.f32 %v4034, %v4052
    %4054 = vmatmul.bf16.gmra.mxu0 %v3893
    %v4055 = vpop.f32.mrf.mxu0
    %v4056 = vadd.f32 %v4037, %v4055
    %v4057 = vpop.f32.mrf.mxu0
    %v4058 = vadd.f32 %v4039, %v4057
    %4059 = vdwg.mxu0
    %v4060 = vld [vmem:[#allocation2] sm:$0xff]
    %v4061 = vld [vmem:[#allocation2 + $0x8] sm:$0xff]
    %v4062 = vld [vmem:[#allocation2 + $0x10] sm:$0xff]
    %v4063 = vld [vmem:[#allocation2 + $0x18] sm:$0xff]
    %v4064 = vadd.f32 %v4060, %v4051
    %v4065 = vadd.f32 %v4061, %v4053
    %v4066 = vadd.f32 %v4062, %v4056
    %v4067 = vadd.f32 %v4063, %v4058
    %v4068 = vld [vmem:[%s16] sm:$0x1]
    %v4070 = vperm.slane %v4068, 0
    %v4072 = vadd.f32 %v4064, %v4070
    %v4073 = vadd.f32 %v4065, %v4070
    %v4074 = vadd.f32 %v4066, %v4070
    %v4075 = vadd.f32 %v4067, %v4070
    %v4076 = vrot.slane %v4074, 4
    %vm4077 = vcmask 1047556
    %v4078 = vsel %vm4077, %v4076, %v4072
    %v4079 = vrot.slane %v4072, 4
    %v4080 = vsel %vm4077, %v4074, %v4079
    %v4082 = vunpack.c.l.s4 1983009808
    %v4083 = vunpack.c.0.s8 %v4082
    %v4084 = vperm.slane %v4078, %v4083
    %v4086 = vunpack.c.l.s4 1983009808
    %v4087 = vunpack.c.0.s8 %v4086
    %v4088 = vperm.slane %v4080, %v4087
    %v4089 = vrot.slane %v4075, 4
    %v4090 = vsel %vm4077, %v4089, %v4073
    %v4091 = vrot.slane %v4073, 4
    %v4092 = vsel %vm4077, %v4075, %v4091
    %v4094 = vunpack.c.l.s4 1983009808
    %v4095 = vunpack.c.0.s8 %v4094
    %v4096 = vperm.slane %v4090, %v4095
    %v4098 = vunpack.c.l.s4 1983009808
    %v4099 = vunpack.c.0.s8 %v4098
    %v4100 = vperm.slane %v4092, %v4099
    %v4101 = vrot.slane %v4096, 4
    %v4102 = vsel %vm4077, %v4101, %v4084
    %v4103 = vrot.slane %v4084, 4
    %v4104 = vsel %vm4077, %v4096, %v4103
    %v4106 = vunpack.c.l.s4 1934713408
    %v4107 = vunpack.c.0.s8 %v4106
    %v4108 = vperm.slane %v4102, %v4107
    %v4110 = vunpack.c.l.s4 1934713408
    %v4111 = vunpack.c.0.s8 %v4110
    %v4112 = vperm.slane %v4104, %v4111
    %v4113 = vrot.slane %v4100, 4
    %v4114 = vsel %vm4077, %v4113, %v4088
    %v4115 = vrot.slane %v4088, 4
    %v4116 = vsel %vm4077, %v4100, %v4115
    %v4118 = vunpack.c.l.s4 1934713408
    %v4119 = vunpack.c.0.s8 %v4118
    %v4120 = vperm.slane %v4114, %v4119
    %v4122 = vunpack.c.l.s4 1934713408
    %v4123 = vunpack.c.0.s8 %v4122
    %v4124 = vperm.slane %v4116, %v4123
    %v4125 = vrot.slane %v4108, 4
    %v4126 = vsel %vm4077, 0.0, %v4125
    %v4127 = vrot.slane %v4112, 4
    %v4128 = vsel %vm4077, 0.0, %v4127
    %v4129 = vrot.slane %v4120, 4
    %v4130 = vsel %vm4077, 0.0, %v4129
    %v4131 = vrot.slane %v4124, 4
    %v4132 = vsel %vm4077, 0.0, %v4131
    %vm4133 = vcmask 519168
    %4134 = vst.msk [vmem:[#allocation10] sm:$0xf] %vm4133, %v4108
    %4135 = vst.msk [vmem:[#allocation10 + $0x4] sm:$0xf] %vm4133, %v4126
    %4136 = vst.msk [vmem:[#allocation10 + $0x8] sm:$0xf] %vm4133, %v4112
    %4137 = vst.msk [vmem:[#allocation10 + $0xc] sm:$0xf] %vm4133, %v4128
    %4138 = vst.msk [vmem:[#allocation10 + $0x10] sm:$0xf] %vm4133, %v4120
    %4139 = vst.msk [vmem:[#allocation10 + $0x14] sm:$0xf] %vm4133, %v4130
    %4140 = vst.msk [vmem:[#allocation10 + $0x18] sm:$0xf] %vm4133, %v4124
    %4141 = vst.msk [vmem:[#allocation10 + $0x1c] sm:$0xf] %vm4133, %v4132
    // Predicated region
    $region86: #{tpu_custom_call.1} parent=1 // pred_check
      _
    $region87: #{tpu_custom_call.1} parent=1 // pred_check_branch
      %4143 = sbr.rel (0) target = $region89
    $region88: #{tpu_custom_call.1} parent=1 // pred_region
      %4145 = vsyncadd [#allocation6], 0
      %s4146 = sshll.u32 [#allocation10], 4
      %s4147 = int_to_ptr.vmem [resolvable:$true] %s4146
      %s4148 = sshll.u32 %s17, 4
      %s4149 = int_to_ptr.hbm [resolvable:$true] %s4148
      %4154 = dma.vmem_to_hbm [thread:$0]  %s4147, 512, %s4149, [#allocation6], 64, 64, 4
    $region89: #{tpu_custom_call.1} parent=1 // pred_fallthru
      _
    // Predicated region
    $region90: #{tpu_custom_call.1} parent=1 // pred_check
      _
    $region91: #{tpu_custom_call.1} parent=1 // pred_check_branch
      %4156 = sbr.rel (0) target = $region93
    $region92: #{tpu_custom_call.1} parent=1 // pred_region
      %4158 = dma.done [#allocation6], 512
    $region93: #{tpu_custom_call.1} parent=1 // pred_fallthru
      _
    %4159 = vsyncpa [#allocation5], 1
    %4160 = vsyncpa [#allocation8], 1
    %4161 = vsyncpa [#allocation6], 1

</llo_original>
